<compile_context>
chip_gen: v5e
topology: v5e:2x2
jax: 0.10.0
libtpu: 0.0.40
codegen_flags: <defaults>
</compile_context>

<pallas_src>
import functools
import math

import jax
import jax.numpy as jnp
from jax.experimental import pallas as pl
from jax.experimental.pallas import tpu as pltpu


def _round_up(x, m):
    return ((x + m - 1) // m) * m


# Activation-buffer row layout (all offsets multiples of 16 for bf16 tiling).
_ROW_X, _ROW_X1, _ROW_X2, _ROW_X3, _ROW_X4, _ROW_X5 = 0, 16, 48, 80, 112, 144
_ACT_ROWS = 176
_STG_ROWS = 576          # max K = 9 * 64


# ----------------------------------------------------------------------------
# Fused kernel: 7 convs (3x3, pad 1, bias) + 8-step curve enhancement.
# ----------------------------------------------------------------------------
def _enhancer_kernel(
    x_ref, mask_ref, rnsh_ref,
    w1, b1, w2, b2, w3, b3, w4, b4, w5, b5, w78, b78,
    enh_ref, rn_ref,
    act, stg,
    *, H, W, s0, Lcp,
):
    Wp = W + 2
    ibase = s0 + Wp + 1                 # lane of output pixel (0,0); 128-aligned
    nrows, Lbuf = act.shape
    tail = Lbuf - ibase - Lcp

    # Zero ONLY the never-written halo lanes (top-pad-row head + read-ahead
    # tail).  The interior [ibase, ibase+Lcp) is fully overwritten every step,
    # so no full-buffer memset.  Done unconditionally each grid step (megacore
    # safe: do not rely on program_id==0 for scratch init).
    act[:, 0:ibase] = jnp.zeros((nrows, ibase), act.dtype)
    act[:, ibase + Lcp:Lbuf] = jnp.zeros((nrows, tail), act.dtype)

    # One-pass bf16 copy of the (channel-padded) input into rows [0, 16).
    x_full = x_ref[0]                                  # (16, Lbuf) f32
    act[_ROW_X:_ROW_X + 16, :] = x_full.astype(act.dtype)

    mask = mask_ref[...]                               # (1, Lcp) valid-lane mask

    def conv(src, cin, w_ref, b_ref, act_fn):
        # Pack the 9 shifted tap windows into one (9*cin, Lcp) operand, then a
        # single MXU contraction with K = 9*cin.  Staging stores are lane- and
        # sublane-aligned; only the tap reads are lane-shifted.
        for t in range(9):
            dy, dx = t // 3, t % 3
            d = (dy - 1) * Wp + (dx - 1)
            stg[t * cin:(t + 1) * cin, :] = act[src:src + cin,
                                                ibase + d:ibase + d + Lcp]
        y = jnp.dot(w_ref[...], stg[0:9 * cin, :],
                    preferred_element_type=jnp.float32)
        return act_fn(y + b_ref[...])

    def write(y, dst, cout):
        # Zero pad-columns / tail lanes so the next conv sees correct zero
        # padding, then store bf16 into the activation-buffer interior.
        act[dst:dst + cout, ibase:ibase + Lcp] = (y * mask).astype(act.dtype)

    relu = lambda v: jnp.maximum(v, 0.0)

    write(conv(_ROW_X, 16, w1, b1, relu), _ROW_X1, 32)    # x1
    write(conv(_ROW_X1, 32, w2, b2, relu), _ROW_X2, 32)   # x2
    write(conv(_ROW_X1, 64, w3, b3, relu), _ROW_X3, 32)   # x3 = conv(cat[x1,x2])
    write(conv(_ROW_X2, 64, w4, b4, relu), _ROW_X4, 32)   # x4 = conv(cat[x2,x3])
    write(conv(_ROW_X3, 64, w5, b5, relu), _ROW_X5, 32)   # x5 = conv(cat[x3,x4])
    y78 = conv(_ROW_X4, 64, w78, b78, jnp.tanh)           # conv7 | conv8 on cat[x4,x5]

    # rows 0..7: r_i = tanh(conv7) + 1 ; rows 8..15: n_i = tanh(conv8).
    rn = y78 + rnsh_ref[...]

    # 8-step curve enhancement on the original f32 image interior.
    cur = x_full[0:3, ibase:ibase + Lcp]                  # (3, Lcp) f32
    for i in range(8):
        cur = (cur - rn[8 + i:9 + i, :]) * rn[i:i + 1, :]

    enh_ref[0] = cur.astype(enh_ref.dtype)
    rn_ref[0] = rn.astype(rn_ref.dtype)


# ----------------------------------------------------------------------------
# Wrapper: layout plumbing (NCHW -> padded-flat), weight packing, pallas_call,
# crop back to (N, C, H, W).
# ----------------------------------------------------------------------------
def enhancer_forward(x_nchw, params):
    N, C, H, W = x_nchw.shape
    assert C == 3
    Hp, Wp = H + 2, W + 2
    Lc = H * Wp                              # contiguous span covering all H rows
    Lcp = _round_up(Lc, 128)                 # lane-dense compute/output span
    s0 = (-(Wp + 1)) % 128                   # makes ibase = s0+Wp+1 a multiple of 128
    ibase = s0 + Wp + 1
    Lbuf = _round_up(ibase + Lcp + Wp + 1, 128)

    f32, bf16 = jnp.float32, jnp.bfloat16

    # Input: pad channels 3->16 (dense K-packed staging rows for conv1),
    # zero-pad spatially, flatten row-major, place at lane offset s0.
    xp = jnp.pad(x_nchw.astype(f32), ((0, 0), (0, 13), (1, 1), (1, 1)))
    xflat = xp.reshape(N, 16, Hp * Wp)
    xflat = jnp.pad(xflat, ((0, 0), (0, 0), (s0, Lbuf - s0 - Hp * Wp)))

    # Valid-output-lane mask: inside each Wp-group only the first W lanes are
    # real output pixels; lanes >= Lc are the rounding extension (zeroed).
    j = jnp.arange(Lcp)
    mask = ((j % Wp < W) & (j < Lc)).astype(f32).reshape(1, Lcp)
    rn_shift = jnp.concatenate([jnp.ones((8, 1), f32), jnp.zeros((8, 1), f32)])

    def prep_w(w, cin_pad=0):
        # (Cout, Cin, 3, 3) -> (Cout, 9*(Cin+pad)), K index = tap*Cin' + c,
        # tap = ky*3+kx, matching the staging-row layout in the kernel.
        co, ci = w.shape[0], w.shape[1]
        wt = jnp.transpose(w, (0, 2, 3, 1))             # (Cout, ky, kx, Cin)
        if cin_pad:
            wt = jnp.pad(wt, ((0, 0), (0, 0), (0, 0), (0, cin_pad)))
        return wt.reshape(co, 9 * (ci + cin_pad)).astype(bf16)

    def prep_b(b):
        return b.reshape(-1, 1).astype(f32)

    w1 = prep_w(params["w1"], cin_pad=13); b1 = prep_b(params["b1"])     # (32, 144)
    w2 = prep_w(params["w2"]); b2 = prep_b(params["b2"])                 # (32, 288)
    w3 = prep_w(params["w3"]); b3 = prep_b(params["b3"])                 # (32, 576)
    w4 = prep_w(params["w4"]); b4 = prep_b(params["b4"])
    w5 = prep_w(params["w5"]); b5 = prep_b(params["b5"])
    w78 = prep_w(jnp.concatenate([params["w7"], params["w8"]], axis=0))  # (16, 576)
    b78 = prep_b(jnp.concatenate([params["b7"], params["b8"]], axis=0))

    consts = [mask, rn_shift, w1, b1, w2, b2, w3, b3, w4, b4, w5, b5, w78, b78]

    def full_spec(a):
        nd = a.ndim
        return pl.BlockSpec(a.shape, lambda nb, _nd=nd: (0,) * _nd)

    # Scoped-VMEM limit sized from the real working set (+headroom) and a cost
    # estimate so XLA can schedule the surrounding pad/crop ops around the call.
    weight_bytes = sum(int(a.size) * a.dtype.itemsize for a in consts)
    ws = ((_ACT_ROWS * Lbuf + _STG_ROWS * Lcp) * 2     # bf16 scratch
          + 2 * 16 * Lbuf * 4                          # double-buffered input block
          + 2 * (3 + 16) * Lcp * 4                     # double-buffered output blocks
          + weight_bytes)
    vmem_limit = int(min(max(2 * ws, 16 * 2**20), 48 * 2**20))

    macs_per_px = 9 * (16 * 32 + 32 * 32 + 3 * 64 * 32 + 64 * 16)
    ce = pl.CostEstimate(
        flops=2 * macs_per_px * H * W * N,
        transcendentals=16 * H * W * N,
        bytes_accessed=int(xflat.size * 4 + N * 19 * Lcp * 4 + weight_bytes),
    )

    kernel = functools.partial(_enhancer_kernel, H=H, W=W, s0=s0, Lcp=Lcp)

    enh, rn = pl.pallas_call(
        kernel,
        out_shape=(
            jax.ShapeDtypeStruct((N, 3, Lcp), f32),
            jax.ShapeDtypeStruct((N, 16, Lcp), f32),
        ),
        grid=(N,),
        in_specs=[pl.BlockSpec((1, 16, Lbuf), lambda nb: (nb, 0, 0))]
                 + [full_spec(a) for a in consts],
        out_specs=(
            pl.BlockSpec((1, 3, Lcp), lambda nb: (nb, 0, 0)),
            pl.BlockSpec((1, 16, Lcp), lambda nb: (nb, 0, 0)),
        ),
        scratch_shapes=[
            pltpu.VMEM((_ACT_ROWS, Lbuf), bf16),   # x(bf16) + x1..x5, channels in sublanes
            pltpu.VMEM((_STG_ROWS, Lcp), bf16),    # 9-tap K-packed contraction operand
        ],
        compiler_params=pltpu.CompilerParams(
            dimension_semantics=("parallel",),
            vmem_limit_bytes=vmem_limit,
        ),
        cost_estimate=ce,
    )(xflat, *consts)

    # Drop the extension lanes and the 2 pad columns per row.
    def crop(a, c):
        return a[:, :, :Lc].reshape(N, c, H, Wp)[:, :, :, :W]

    return crop(enh, 3), crop(rn[:, :8], 8), crop(rn[:, 8:], 8)


# ----------------------------------------------------------------------------
# Deterministic parameter init (PyTorch Conv2d default-style uniform bounds)
# ----------------------------------------------------------------------------
def init_params(key):
    number_f = 32
    specs = {
        "1": (number_f, 3),
        "2": (number_f, number_f),
        "3": (number_f, number_f * 2),
        "4": (number_f, number_f * 2),
        "5": (number_f, number_f * 2),
        "7": (8, number_f * 2),
        "8": (8, number_f * 2),
    }
    params = {}
    for name, (cout, cin) in specs.items():
        key, kw, kb = jax.random.split(key, 3)
        bound = 1.0 / math.sqrt(cin * 9)
        params["w" + name] = jax.random.uniform(
            kw, (cout, cin, 3, 3), jnp.float32, -bound, bound)
        params["b" + name] = jax.random.uniform(
            kb, (cout,), jnp.float32, -bound, bound)
    return params


if __name__ == "__main__":
    key = jax.random.PRNGKey(0)
    kx, kp = jax.random.split(key)
    x = jax.random.uniform(kx, (2, 3, 16, 16), jnp.float32)  # NCHW, like PyTorch
    params = init_params(kp)

    fwd = jax.jit(lambda xx: enhancer_forward(xx, params))
    enhance_image, r, n = fwd(x)
    jax.block_until_ready((enhance_image, r, n))

    assert enhance_image.shape == (2, 3, 16, 16)
    assert r.shape == (2, 8, 16, 16)
    assert n.shape == (2, 8, 16, 16)
    assert bool(jnp.isfinite(enhance_image).all())
    assert bool(jnp.isfinite(r).all())
    assert bool(jnp.isfinite(n).all())
    print("KERNEL_OK")
</pallas_src>

<mosaic_0001>
module attributes {stable_mosaic.version = 11 : i64} {
  func.func @_enhancer_kernel(%arg0: i32, %arg1: memref<1x16x640xf32, #tpu.memory_space<vmem>>, %arg2: memref<1x384xf32, #tpu.memory_space<vmem>>, %arg3: memref<16x1xf32, #tpu.memory_space<vmem>>, %arg4: memref<32x144xbf16, #tpu.memory_space<vmem>>, %arg5: memref<32x1xf32, #tpu.memory_space<vmem>>, %arg6: memref<32x288xbf16, #tpu.memory_space<vmem>>, %arg7: memref<32x1xf32, #tpu.memory_space<vmem>>, %arg8: memref<32x576xbf16, #tpu.memory_space<vmem>>, %arg9: memref<32x1xf32, #tpu.memory_space<vmem>>, %arg10: memref<32x576xbf16, #tpu.memory_space<vmem>>, %arg11: memref<32x1xf32, #tpu.memory_space<vmem>>, %arg12: memref<32x576xbf16, #tpu.memory_space<vmem>>, %arg13: memref<32x1xf32, #tpu.memory_space<vmem>>, %arg14: memref<16x576xbf16, #tpu.memory_space<vmem>>, %arg15: memref<16x1xf32, #tpu.memory_space<vmem>>, %arg16: memref<1x3x384xf32, #tpu.memory_space<vmem>>, %arg17: memref<1x16x384xf32, #tpu.memory_space<vmem>>, %arg18: memref<176x640xbf16, #tpu.memory_space<vmem>>, %arg19: memref<576x384xbf16, #tpu.memory_space<vmem>>) attributes {dimension_semantics = [#tpu.dimension_semantics<parallel>], iteration_bounds = array<i64: 2>, scalar_prefetch = 0 : i64, scratch_operands = 2 : i64, tpu.core_type = #tpu.core_type<tc>, window_params = [{transform_indices = @transform_0, window_bounds = array<i64: 1, 16, 640>}, {pipeline_mode = #tpu.pipeline_mode<synchronous>, transform_indices = @transform_1, window_bounds = array<i64: 1, 384>}, {pipeline_mode = #tpu.pipeline_mode<synchronous>, transform_indices = @transform_2, window_bounds = array<i64: 16, 1>}, {pipeline_mode = #tpu.pipeline_mode<synchronous>, transform_indices = @transform_3, window_bounds = array<i64: 32, 144>}, {pipeline_mode = #tpu.pipeline_mode<synchronous>, transform_indices = @transform_4, window_bounds = array<i64: 32, 1>}, {pipeline_mode = #tpu.pipeline_mode<synchronous>, transform_indices = @transform_5, window_bounds = array<i64: 32, 288>}, {pipeline_mode = #tpu.pipeline_mode<synchronous>, transform_indices = @transform_6, window_bounds = array<i64: 32, 1>}, {pipeline_mode = #tpu.pipeline_mode<synchronous>, transform_indices = @transform_7, window_bounds = array<i64: 32, 576>}, {pipeline_mode = #tpu.pipeline_mode<synchronous>, transform_indices = @transform_8, window_bounds = array<i64: 32, 1>}, {pipeline_mode = #tpu.pipeline_mode<synchronous>, transform_indices = @transform_9, window_bounds = array<i64: 32, 576>}, {pipeline_mode = #tpu.pipeline_mode<synchronous>, transform_indices = @transform_10, window_bounds = array<i64: 32, 1>}, {pipeline_mode = #tpu.pipeline_mode<synchronous>, transform_indices = @transform_11, window_bounds = array<i64: 32, 576>}, {pipeline_mode = #tpu.pipeline_mode<synchronous>, transform_indices = @transform_12, window_bounds = array<i64: 32, 1>}, {pipeline_mode = #tpu.pipeline_mode<synchronous>, transform_indices = @transform_13, window_bounds = array<i64: 16, 576>}, {pipeline_mode = #tpu.pipeline_mode<synchronous>, transform_indices = @transform_14, window_bounds = array<i64: 16, 1>}, {transform_indices = @transform_15, window_bounds = array<i64: 1, 3, 384>}, {transform_indices = @transform_16, window_bounds = array<i64: 1, 16, 384>}]} {
    %cst = arith.constant 0.000000e+00 : bf16
    %0 = vector.broadcast %cst : bf16 to vector<176x128xbf16>
    %c0 = arith.constant 0 : index
    %c0_0 = arith.constant 0 : index
    %1 = vector.load %arg18[%c0, %c0_0] : memref<176x640xbf16, #tpu.memory_space<vmem>>, vector<176x128xbf16>
    tpu.vector_store %arg18[%c0, %c0_0], %0 {strides = array<i32>} : memref<176x640xbf16, #tpu.memory_space<vmem>>, vector<176x128xbf16>,
    %cst_1 = arith.constant 0.000000e+00 : bf16
    %2 = vector.broadcast %cst_1 : bf16 to vector<176x128xbf16>
    %c0_2 = arith.constant 0 : index
    %c512 = arith.constant 512 : index
    %3 = vector.load %arg18[%c0_2, %c512] : memref<176x640xbf16, #tpu.memory_space<vmem>>, vector<176x128xbf16>
    tpu.vector_store %arg18[%c0_2, %c512], %2 {strides = array<i32>} : memref<176x640xbf16, #tpu.memory_space<vmem>>, vector<176x128xbf16>,
    %c0_3 = arith.constant 0 : index
    %c0_4 = arith.constant 0 : index
    %c0_5 = arith.constant 0 : index
    %4 = vector.load %arg1[%c0_3, %c0_4, %c0_5] : memref<1x16x640xf32, #tpu.memory_space<vmem>>, vector<1x16x640xf32>
    %5 = vector.shape_cast %4 : vector<1x16x640xf32> to vector<16x640xf32>
    %6 = arith.truncf %5 : vector<16x640xf32> to vector<16x640xbf16>
    %c0_6 = arith.constant 0 : index
    %c0_7 = arith.constant 0 : index
    %7 = vector.load %arg18[%c0_6, %c0_7] : memref<176x640xbf16, #tpu.memory_space<vmem>>, vector<16x640xbf16>
    tpu.vector_store %arg18[%c0_6, %c0_7], %6 {strides = array<i32>} : memref<176x640xbf16, #tpu.memory_space<vmem>>, vector<16x640xbf16>,
    %c0_8 = arith.constant 0 : index
    %c0_9 = arith.constant 0 : index
    %8 = vector.load %arg2[%c0_8, %c0_9] : memref<1x384xf32, #tpu.memory_space<vmem>>, vector<1x384xf32>
    %c0_10 = arith.constant 0 : index
    %c109 = arith.constant 109 : index
    %9 = vector.load %arg18[%c0_10, %c109] : memref<176x640xbf16, #tpu.memory_space<vmem>>, vector<16x384xbf16>
    %c0_11 = arith.constant 0 : index
    %c0_12 = arith.constant 0 : index
    %10 = vector.load %arg19[%c0_11, %c0_12] : memref<576x384xbf16, #tpu.memory_space<vmem>>, vector<16x384xbf16>
    tpu.vector_store %arg19[%c0_11, %c0_12], %9 {strides = array<i32>} : memref<576x384xbf16, #tpu.memory_space<vmem>>, vector<16x384xbf16>,
    %c0_13 = arith.constant 0 : index
    %c110 = arith.constant 110 : index
    %11 = vector.load %arg18[%c0_13, %c110] : memref<176x640xbf16, #tpu.memory_space<vmem>>, vector<16x384xbf16>
    %c16 = arith.constant 16 : index
    %c0_14 = arith.constant 0 : index
    %12 = vector.load %arg19[%c16, %c0_14] : memref<576x384xbf16, #tpu.memory_space<vmem>>, vector<16x384xbf16>
    tpu.vector_store %arg19[%c16, %c0_14], %11 {strides = array<i32>} : memref<576x384xbf16, #tpu.memory_space<vmem>>, vector<16x384xbf16>,
    %c0_15 = arith.constant 0 : index
    %c111 = arith.constant 111 : index
    %13 = vector.load %arg18[%c0_15, %c111] : memref<176x640xbf16, #tpu.memory_space<vmem>>, vector<16x384xbf16>
    %c32 = arith.constant 32 : index
    %c0_16 = arith.constant 0 : index
    %14 = vector.load %arg19[%c32, %c0_16] : memref<576x384xbf16, #tpu.memory_space<vmem>>, vector<16x384xbf16>
    tpu.vector_store %arg19[%c32, %c0_16], %13 {strides = array<i32>} : memref<576x384xbf16, #tpu.memory_space<vmem>>, vector<16x384xbf16>,
    %c0_17 = arith.constant 0 : index
    %c127 = arith.constant 127 : index
    %15 = vector.load %arg18[%c0_17, %c127] : memref<176x640xbf16, #tpu.memory_space<vmem>>, vector<16x384xbf16>
    %c48 = arith.constant 48 : index
    %c0_18 = arith.constant 0 : index
    %16 = vector.load %arg19[%c48, %c0_18] : memref<576x384xbf16, #tpu.memory_space<vmem>>, vector<16x384xbf16>
    tpu.vector_store %arg19[%c48, %c0_18], %15 {strides = array<i32>} : memref<576x384xbf16, #tpu.memory_space<vmem>>, vector<16x384xbf16>,
    %c0_19 = arith.constant 0 : index
    %c128 = arith.constant 128 : index
    %17 = vector.load %arg18[%c0_19, %c128] : memref<176x640xbf16, #tpu.memory_space<vmem>>, vector<16x384xbf16>
    %c64 = arith.constant 64 : index
    %c0_20 = arith.constant 0 : index
    %18 = vector.load %arg19[%c64, %c0_20] : memref<576x384xbf16, #tpu.memory_space<vmem>>, vector<16x384xbf16>
    tpu.vector_store %arg19[%c64, %c0_20], %17 {strides = array<i32>} : memref<576x384xbf16, #tpu.memory_space<vmem>>, vector<16x384xbf16>,
    %c0_21 = arith.constant 0 : index
    %c129 = arith.constant 129 : index
    %19 = vector.load %arg18[%c0_21, %c129] : memref<176x640xbf16, #tpu.memory_space<vmem>>, vector<16x384xbf16>
    %c80 = arith.constant 80 : index
    %c0_22 = arith.constant 0 : index
    %20 = vector.load %arg19[%c80, %c0_22] : memref<576x384xbf16, #tpu.memory_space<vmem>>, vector<16x384xbf16>
    tpu.vector_store %arg19[%c80, %c0_22], %19 {strides = array<i32>} : memref<576x384xbf16, #tpu.memory_space<vmem>>, vector<16x384xbf16>,
    %c0_23 = arith.constant 0 : index
    %c145 = arith.constant 145 : index
    %21 = vector.load %arg18[%c0_23, %c145] : memref<176x640xbf16, #tpu.memory_space<vmem>>, vector<16x384xbf16>
    %c96 = arith.constant 96 : index
    %c0_24 = arith.constant 0 : index
    %22 = vector.load %arg19[%c96, %c0_24] : memref<576x384xbf16, #tpu.memory_space<vmem>>, vector<16x384xbf16>
    tpu.vector_store %arg19[%c96, %c0_24], %21 {strides = array<i32>} : memref<576x384xbf16, #tpu.memory_space<vmem>>, vector<16x384xbf16>,
    %c0_25 = arith.constant 0 : index
    %c146 = arith.constant 146 : index
    %23 = vector.load %arg18[%c0_25, %c146] : memref<176x640xbf16, #tpu.memory_space<vmem>>, vector<16x384xbf16>
    %c112 = arith.constant 112 : index
    %c0_26 = arith.constant 0 : index
    %24 = vector.load %arg19[%c112, %c0_26] : memref<576x384xbf16, #tpu.memory_space<vmem>>, vector<16x384xbf16>
    tpu.vector_store %arg19[%c112, %c0_26], %23 {strides = array<i32>} : memref<576x384xbf16, #tpu.memory_space<vmem>>, vector<16x384xbf16>,
    %c0_27 = arith.constant 0 : index
    %c147 = arith.constant 147 : index
    %25 = vector.load %arg18[%c0_27, %c147] : memref<176x640xbf16, #tpu.memory_space<vmem>>, vector<16x384xbf16>
    %c128_28 = arith.constant 128 : index
    %c0_29 = arith.constant 0 : index
    %26 = vector.load %arg19[%c128_28, %c0_29] : memref<576x384xbf16, #tpu.memory_space<vmem>>, vector<16x384xbf16>
    tpu.vector_store %arg19[%c128_28, %c0_29], %25 {strides = array<i32>} : memref<576x384xbf16, #tpu.memory_space<vmem>>, vector<16x384xbf16>,
    %c0_30 = arith.constant 0 : index
    %c0_31 = arith.constant 0 : index
    %27 = vector.load %arg4[%c0_30, %c0_31] : memref<32x144xbf16, #tpu.memory_space<vmem>>, vector<32x144xbf16>
    %c0_32 = arith.constant 0 : index
    %c0_33 = arith.constant 0 : index
    %28 = vector.load %arg19[%c0_32, %c0_33] : memref<576x384xbf16, #tpu.memory_space<vmem>>, vector<144x384xbf16>
    %cst_34 = arith.constant dense<0.000000e+00> : vector<32x384xf32>
    %29 = tpu.matmul %27, %28, %cst_34 {dimension_numbers = #tpu.dot_dimension_numbers<[1], [0], [0], [1], [0, 0, 1, 1], [], []>} : vector<32x144xbf16>, vector<144x384xbf16>, vector<32x384xf32> -> vector<32x384xf32>
    %c0_35 = arith.constant 0 : index
    %c0_36 = arith.constant 0 : index
    %30 = vector.load %arg5[%c0_35, %c0_36] : memref<32x1xf32, #tpu.memory_space<vmem>>, vector<32x1xf32>
    %31 = vector.broadcast %30 : vector<32x1xf32> to vector<32x384xf32>
    %32 = arith.addf %29, %31 : vector<32x384xf32>
    %cst_37 = arith.constant 0.000000e+00 : f32
    %33 = vector.broadcast %cst_37 : f32 to vector<32x384xf32>
    %34 = arith.maximumf %32, %33 : vector<32x384xf32>
    %35 = vector.broadcast %8 : vector<1x384xf32> to vector<32x384xf32>
    %36 = arith.mulf %34, %35 : vector<32x384xf32>
    %37 = arith.truncf %36 : vector<32x384xf32> to vector<32x384xbf16>
    %c16_38 = arith.constant 16 : index
    %c128_39 = arith.constant 128 : index
    %38 = vector.load %arg18[%c16_38, %c128_39] : memref<176x640xbf16, #tpu.memory_space<vmem>>, vector<32x384xbf16>
    tpu.vector_store %arg18[%c16_38, %c128_39], %37 {strides = array<i32>} : memref<176x640xbf16, #tpu.memory_space<vmem>>, vector<32x384xbf16>,
    %c16_40 = arith.constant 16 : index
    %c109_41 = arith.constant 109 : index
    %39 = vector.load %arg18[%c16_40, %c109_41] : memref<176x640xbf16, #tpu.memory_space<vmem>>, vector<32x384xbf16>
    %c0_42 = arith.constant 0 : index
    %c0_43 = arith.constant 0 : index
    %40 = vector.load %arg19[%c0_42, %c0_43] : memref<576x384xbf16, #tpu.memory_space<vmem>>, vector<32x384xbf16>
    tpu.vector_store %arg19[%c0_42, %c0_43], %39 {strides = array<i32>} : memref<576x384xbf16, #tpu.memory_space<vmem>>, vector<32x384xbf16>,
    %c16_44 = arith.constant 16 : index
    %c110_45 = arith.constant 110 : index
    %41 = vector.load %arg18[%c16_44, %c110_45] : memref<176x640xbf16, #tpu.memory_space<vmem>>, vector<32x384xbf16>
    %c32_46 = arith.constant 32 : index
    %c0_47 = arith.constant 0 : index
    %42 = vector.load %arg19[%c32_46, %c0_47] : memref<576x384xbf16, #tpu.memory_space<vmem>>, vector<32x384xbf16>
    tpu.vector_store %arg19[%c32_46, %c0_47], %41 {strides = array<i32>} : memref<576x384xbf16, #tpu.memory_space<vmem>>, vector<32x384xbf16>,
    %c16_48 = arith.constant 16 : index
    %c111_49 = arith.constant 111 : index
    %43 = vector.load %arg18[%c16_48, %c111_49] : memref<176x640xbf16, #tpu.memory_space<vmem>>, vector<32x384xbf16>
    %c64_50 = arith.constant 64 : index
    %c0_51 = arith.constant 0 : index
    %44 = vector.load %arg19[%c64_50, %c0_51] : memref<576x384xbf16, #tpu.memory_space<vmem>>, vector<32x384xbf16>
    tpu.vector_store %arg19[%c64_50, %c0_51], %43 {strides = array<i32>} : memref<576x384xbf16, #tpu.memory_space<vmem>>, vector<32x384xbf16>,
    %c16_52 = arith.constant 16 : index
    %c127_53 = arith.constant 127 : index
    %45 = vector.load %arg18[%c16_52, %c127_53] : memref<176x640xbf16, #tpu.memory_space<vmem>>, vector<32x384xbf16>
    %c96_54 = arith.constant 96 : index
    %c0_55 = arith.constant 0 : index
    %46 = vector.load %arg19[%c96_54, %c0_55] : memref<576x384xbf16, #tpu.memory_space<vmem>>, vector<32x384xbf16>
    tpu.vector_store %arg19[%c96_54, %c0_55], %45 {strides = array<i32>} : memref<576x384xbf16, #tpu.memory_space<vmem>>, vector<32x384xbf16>,
    %c16_56 = arith.constant 16 : index
    %c128_57 = arith.constant 128 : index
    %47 = vector.load %arg18[%c16_56, %c128_57] : memref<176x640xbf16, #tpu.memory_space<vmem>>, vector<32x384xbf16>
    %c128_58 = arith.constant 128 : index
    %c0_59 = arith.constant 0 : index
    %48 = vector.load %arg19[%c128_58, %c0_59] : memref<576x384xbf16, #tpu.memory_space<vmem>>, vector<32x384xbf16>
    tpu.vector_store %arg19[%c128_58, %c0_59], %47 {strides = array<i32>} : memref<576x384xbf16, #tpu.memory_space<vmem>>, vector<32x384xbf16>,
    %c16_60 = arith.constant 16 : index
    %c129_61 = arith.constant 129 : index
    %49 = vector.load %arg18[%c16_60, %c129_61] : memref<176x640xbf16, #tpu.memory_space<vmem>>, vector<32x384xbf16>
    %c160 = arith.constant 160 : index
    %c0_62 = arith.constant 0 : index
    %50 = vector.load %arg19[%c160, %c0_62] : memref<576x384xbf16, #tpu.memory_space<vmem>>, vector<32x384xbf16>
    tpu.vector_store %arg19[%c160, %c0_62], %49 {strides = array<i32>} : memref<576x384xbf16, #tpu.memory_space<vmem>>, vector<32x384xbf16>,
    %c16_63 = arith.constant 16 : index
    %c145_64 = arith.constant 145 : index
    %51 = vector.load %arg18[%c16_63, %c145_64] : memref<176x640xbf16, #tpu.memory_space<vmem>>, vector<32x384xbf16>
    %c192 = arith.constant 192 : index
    %c0_65 = arith.constant 0 : index
    %52 = vector.load %arg19[%c192, %c0_65] : memref<576x384xbf16, #tpu.memory_space<vmem>>, vector<32x384xbf16>
    tpu.vector_store %arg19[%c192, %c0_65], %51 {strides = array<i32>} : memref<576x384xbf16, #tpu.memory_space<vmem>>, vector<32x384xbf16>,
    %c16_66 = arith.constant 16 : index
    %c146_67 = arith.constant 146 : index
    %53 = vector.load %arg18[%c16_66, %c146_67] : memref<176x640xbf16, #tpu.memory_space<vmem>>, vector<32x384xbf16>
    %c224 = arith.constant 224 : index
    %c0_68 = arith.constant 0 : index
    %54 = vector.load %arg19[%c224, %c0_68] : memref<576x384xbf16, #tpu.memory_space<vmem>>, vector<32x384xbf16>
    tpu.vector_store %arg19[%c224, %c0_68], %53 {strides = array<i32>} : memref<576x384xbf16, #tpu.memory_space<vmem>>, vector<32x384xbf16>,
    %c16_69 = arith.constant 16 : index
    %c147_70 = arith.constant 147 : index
    %55 = vector.load %arg18[%c16_69, %c147_70] : memref<176x640xbf16, #tpu.memory_space<vmem>>, vector<32x384xbf16>
    %c256 = arith.constant 256 : index
    %c0_71 = arith.constant 0 : index
    %56 = vector.load %arg19[%c256, %c0_71] : memref<576x384xbf16, #tpu.memory_space<vmem>>, vector<32x384xbf16>
    tpu.vector_store %arg19[%c256, %c0_71], %55 {strides = array<i32>} : memref<576x384xbf16, #tpu.memory_space<vmem>>, vector<32x384xbf16>,
    %c0_72 = arith.constant 0 : index
    %c0_73 = arith.constant 0 : index
    %57 = vector.load %arg6[%c0_72, %c0_73] : memref<32x288xbf16, #tpu.memory_space<vmem>>, vector<32x288xbf16>
    %c0_74 = arith.constant 0 : index
    %c0_75 = arith.constant 0 : index
    %58 = vector.load %arg19[%c0_74, %c0_75] : memref<576x384xbf16, #tpu.memory_space<vmem>>, vector<288x384xbf16>
    %cst_76 = arith.constant dense<0.000000e+00> : vector<32x384xf32>
    %59 = tpu.matmul %57, %58, %cst_76 {dimension_numbers = #tpu.dot_dimension_numbers<[1], [0], [0], [1], [0, 0, 1, 1], [], []>} : vector<32x288xbf16>, vector<288x384xbf16>, vector<32x384xf32> -> vector<32x384xf32>
    %c0_77 = arith.constant 0 : index
    %c0_78 = arith.constant 0 : index
    %60 = vector.load %arg7[%c0_77, %c0_78] : memref<32x1xf32, #tpu.memory_space<vmem>>, vector<32x1xf32>
    %61 = vector.broadcast %60 : vector<32x1xf32> to vector<32x384xf32>
    %62 = arith.addf %59, %61 : vector<32x384xf32>
    %cst_79 = arith.constant 0.000000e+00 : f32
    %63 = vector.broadcast %cst_79 : f32 to vector<32x384xf32>
    %64 = arith.maximumf %62, %63 : vector<32x384xf32>
    %65 = vector.broadcast %8 : vector<1x384xf32> to vector<32x384xf32>
    %66 = arith.mulf %64, %65 : vector<32x384xf32>
    %67 = arith.truncf %66 : vector<32x384xf32> to vector<32x384xbf16>
    %c48_80 = arith.constant 48 : index
    %c128_81 = arith.constant 128 : index
    %68 = vector.load %arg18[%c48_80, %c128_81] : memref<176x640xbf16, #tpu.memory_space<vmem>>, vector<32x384xbf16>
    tpu.vector_store %arg18[%c48_80, %c128_81], %67 {strides = array<i32>} : memref<176x640xbf16, #tpu.memory_space<vmem>>, vector<32x384xbf16>,
    %c16_82 = arith.constant 16 : index
    %c109_83 = arith.constant 109 : index
    %69 = vector.load %arg18[%c16_82, %c109_83] : memref<176x640xbf16, #tpu.memory_space<vmem>>, vector<64x384xbf16>
    %c0_84 = arith.constant 0 : index
    %c0_85 = arith.constant 0 : index
    %70 = vector.load %arg19[%c0_84, %c0_85] : memref<576x384xbf16, #tpu.memory_space<vmem>>, vector<64x384xbf16>
    tpu.vector_store %arg19[%c0_84, %c0_85], %69 {strides = array<i32>} : memref<576x384xbf16, #tpu.memory_space<vmem>>, vector<64x384xbf16>,
    %c16_86 = arith.constant 16 : index
    %c110_87 = arith.constant 110 : index
    %71 = vector.load %arg18[%c16_86, %c110_87] : memref<176x640xbf16, #tpu.memory_space<vmem>>, vector<64x384xbf16>
    %c64_88 = arith.constant 64 : index
    %c0_89 = arith.constant 0 : index
    %72 = vector.load %arg19[%c64_88, %c0_89] : memref<576x384xbf16, #tpu.memory_space<vmem>>, vector<64x384xbf16>
    tpu.vector_store %arg19[%c64_88, %c0_89], %71 {strides = array<i32>} : memref<576x384xbf16, #tpu.memory_space<vmem>>, vector<64x384xbf16>,
    %c16_90 = arith.constant 16 : index
    %c111_91 = arith.constant 111 : index
    %73 = vector.load %arg18[%c16_90, %c111_91] : memref<176x640xbf16, #tpu.memory_space<vmem>>, vector<64x384xbf16>
    %c128_92 = arith.constant 128 : index
    %c0_93 = arith.constant 0 : index
    %74 = vector.load %arg19[%c128_92, %c0_93] : memref<576x384xbf16, #tpu.memory_space<vmem>>, vector<64x384xbf16>
    tpu.vector_store %arg19[%c128_92, %c0_93], %73 {strides = array<i32>} : memref<576x384xbf16, #tpu.memory_space<vmem>>, vector<64x384xbf16>,
    %c16_94 = arith.constant 16 : index
    %c127_95 = arith.constant 127 : index
    %75 = vector.load %arg18[%c16_94, %c127_95] : memref<176x640xbf16, #tpu.memory_space<vmem>>, vector<64x384xbf16>
    %c192_96 = arith.constant 192 : index
    %c0_97 = arith.constant 0 : index
    %76 = vector.load %arg19[%c192_96, %c0_97] : memref<576x384xbf16, #tpu.memory_space<vmem>>, vector<64x384xbf16>
    tpu.vector_store %arg19[%c192_96, %c0_97], %75 {strides = array<i32>} : memref<576x384xbf16, #tpu.memory_space<vmem>>, vector<64x384xbf16>,
    %c16_98 = arith.constant 16 : index
    %c128_99 = arith.constant 128 : index
    %77 = vector.load %arg18[%c16_98, %c128_99] : memref<176x640xbf16, #tpu.memory_space<vmem>>, vector<64x384xbf16>
    %c256_100 = arith.constant 256 : index
    %c0_101 = arith.constant 0 : index
    %78 = vector.load %arg19[%c256_100, %c0_101] : memref<576x384xbf16, #tpu.memory_space<vmem>>, vector<64x384xbf16>
    tpu.vector_store %arg19[%c256_100, %c0_101], %77 {strides = array<i32>} : memref<576x384xbf16, #tpu.memory_space<vmem>>, vector<64x384xbf16>,
    %c16_102 = arith.constant 16 : index
    %c129_103 = arith.constant 129 : index
    %79 = vector.load %arg18[%c16_102, %c129_103] : memref<176x640xbf16, #tpu.memory_space<vmem>>, vector<64x384xbf16>
    %c320 = arith.constant 320 : index
    %c0_104 = arith.constant 0 : index
    %80 = vector.load %arg19[%c320, %c0_104] : memref<576x384xbf16, #tpu.memory_space<vmem>>, vector<64x384xbf16>
    tpu.vector_store %arg19[%c320, %c0_104], %79 {strides = array<i32>} : memref<576x384xbf16, #tpu.memory_space<vmem>>, vector<64x384xbf16>,
    %c16_105 = arith.constant 16 : index
    %c145_106 = arith.constant 145 : index
    %81 = vector.load %arg18[%c16_105, %c145_106] : memref<176x640xbf16, #tpu.memory_space<vmem>>, vector<64x384xbf16>
    %c384 = arith.constant 384 : index
    %c0_107 = arith.constant 0 : index
    %82 = vector.load %arg19[%c384, %c0_107] : memref<576x384xbf16, #tpu.memory_space<vmem>>, vector<64x384xbf16>
    tpu.vector_store %arg19[%c384, %c0_107], %81 {strides = array<i32>} : memref<576x384xbf16, #tpu.memory_space<vmem>>, vector<64x384xbf16>,
    %c16_108 = arith.constant 16 : index
    %c146_109 = arith.constant 146 : index
    %83 = vector.load %arg18[%c16_108, %c146_109] : memref<176x640xbf16, #tpu.memory_space<vmem>>, vector<64x384xbf16>
    %c448 = arith.constant 448 : index
    %c0_110 = arith.constant 0 : index
    %84 = vector.load %arg19[%c448, %c0_110] : memref<576x384xbf16, #tpu.memory_space<vmem>>, vector<64x384xbf16>
    tpu.vector_store %arg19[%c448, %c0_110], %83 {strides = array<i32>} : memref<576x384xbf16, #tpu.memory_space<vmem>>, vector<64x384xbf16>,
    %c16_111 = arith.constant 16 : index
    %c147_112 = arith.constant 147 : index
    %85 = vector.load %arg18[%c16_111, %c147_112] : memref<176x640xbf16, #tpu.memory_space<vmem>>, vector<64x384xbf16>
    %c512_113 = arith.constant 512 : index
    %c0_114 = arith.constant 0 : index
    %86 = vector.load %arg19[%c512_113, %c0_114] : memref<576x384xbf16, #tpu.memory_space<vmem>>, vector<64x384xbf16>
    tpu.vector_store %arg19[%c512_113, %c0_114], %85 {strides = array<i32>} : memref<576x384xbf16, #tpu.memory_space<vmem>>, vector<64x384xbf16>,
    %c0_115 = arith.constant 0 : index
    %c0_116 = arith.constant 0 : index
    %87 = vector.load %arg8[%c0_115, %c0_116] : memref<32x576xbf16, #tpu.memory_space<vmem>>, vector<32x576xbf16>
    %c0_117 = arith.constant 0 : index
    %c0_118 = arith.constant 0 : index
    %88 = vector.load %arg19[%c0_117, %c0_118] : memref<576x384xbf16, #tpu.memory_space<vmem>>, vector<576x384xbf16>
    %cst_119 = arith.constant dense<0.000000e+00> : vector<32x384xf32>
    %89 = tpu.matmul %87, %88, %cst_119 {dimension_numbers = #tpu.dot_dimension_numbers<[1], [0], [0], [1], [0, 0, 1, 1], [], []>} : vector<32x576xbf16>, vector<576x384xbf16>, vector<32x384xf32> -> vector<32x384xf32>
    %c0_120 = arith.constant 0 : index
    %c0_121 = arith.constant 0 : index
    %90 = vector.load %arg9[%c0_120, %c0_121] : memref<32x1xf32, #tpu.memory_space<vmem>>, vector<32x1xf32>
    %91 = vector.broadcast %90 : vector<32x1xf32> to vector<32x384xf32>
    %92 = arith.addf %89, %91 : vector<32x384xf32>
    %cst_122 = arith.constant 0.000000e+00 : f32
    %93 = vector.broadcast %cst_122 : f32 to vector<32x384xf32>
    %94 = arith.maximumf %92, %93 : vector<32x384xf32>
    %95 = vector.broadcast %8 : vector<1x384xf32> to vector<32x384xf32>
    %96 = arith.mulf %94, %95 : vector<32x384xf32>
    %97 = arith.truncf %96 : vector<32x384xf32> to vector<32x384xbf16>
    %c80_123 = arith.constant 80 : index
    %c128_124 = arith.constant 128 : index
    %98 = vector.load %arg18[%c80_123, %c128_124] : memref<176x640xbf16, #tpu.memory_space<vmem>>, vector<32x384xbf16>
    tpu.vector_store %arg18[%c80_123, %c128_124], %97 {strides = array<i32>} : memref<176x640xbf16, #tpu.memory_space<vmem>>, vector<32x384xbf16>,
    %c48_125 = arith.constant 48 : index
    %c109_126 = arith.constant 109 : index
    %99 = vector.load %arg18[%c48_125, %c109_126] : memref<176x640xbf16, #tpu.memory_space<vmem>>, vector<64x384xbf16>
    %c0_127 = arith.constant 0 : index
    %c0_128 = arith.constant 0 : index
    %100 = vector.load %arg19[%c0_127, %c0_128] : memref<576x384xbf16, #tpu.memory_space<vmem>>, vector<64x384xbf16>
    tpu.vector_store %arg19[%c0_127, %c0_128], %99 {strides = array<i32>} : memref<576x384xbf16, #tpu.memory_space<vmem>>, vector<64x384xbf16>,
    %c48_129 = arith.constant 48 : index
    %c110_130 = arith.constant 110 : index
    %101 = vector.load %arg18[%c48_129, %c110_130] : memref<176x640xbf16, #tpu.memory_space<vmem>>, vector<64x384xbf16>
    %c64_131 = arith.constant 64 : index
    %c0_132 = arith.constant 0 : index
    %102 = vector.load %arg19[%c64_131, %c0_132] : memref<576x384xbf16, #tpu.memory_space<vmem>>, vector<64x384xbf16>
    tpu.vector_store %arg19[%c64_131, %c0_132], %101 {strides = array<i32>} : memref<576x384xbf16, #tpu.memory_space<vmem>>, vector<64x384xbf16>,
    %c48_133 = arith.constant 48 : index
    %c111_134 = arith.constant 111 : index
    %103 = vector.load %arg18[%c48_133, %c111_134] : memref<176x640xbf16, #tpu.memory_space<vmem>>, vector<64x384xbf16>
    %c128_135 = arith.constant 128 : index
    %c0_136 = arith.constant 0 : index
    %104 = vector.load %arg19[%c128_135, %c0_136] : memref<576x384xbf16, #tpu.memory_space<vmem>>, vector<64x384xbf16>
    tpu.vector_store %arg19[%c128_135, %c0_136], %103 {strides = array<i32>} : memref<576x384xbf16, #tpu.memory_space<vmem>>, vector<64x384xbf16>,
    %c48_137 = arith.constant 48 : index
    %c127_138 = arith.constant 127 : index
    %105 = vector.load %arg18[%c48_137, %c127_138] : memref<176x640xbf16, #tpu.memory_space<vmem>>, vector<64x384xbf16>
    %c192_139 = arith.constant 192 : index
    %c0_140 = arith.constant 0 : index
    %106 = vector.load %arg19[%c192_139, %c0_140] : memref<576x384xbf16, #tpu.memory_space<vmem>>, vector<64x384xbf16>
    tpu.vector_store %arg19[%c192_139, %c0_140], %105 {strides = array<i32>} : memref<576x384xbf16, #tpu.memory_space<vmem>>, vector<64x384xbf16>,
    %c48_141 = arith.constant 48 : index
    %c128_142 = arith.constant 128 : index
    %107 = vector.load %arg18[%c48_141, %c128_142] : memref<176x640xbf16, #tpu.memory_space<vmem>>, vector<64x384xbf16>
    %c256_143 = arith.constant 256 : index
    %c0_144 = arith.constant 0 : index
    %108 = vector.load %arg19[%c256_143, %c0_144] : memref<576x384xbf16, #tpu.memory_space<vmem>>, vector<64x384xbf16>
    tpu.vector_store %arg19[%c256_143, %c0_144], %107 {strides = array<i32>} : memref<576x384xbf16, #tpu.memory_space<vmem>>, vector<64x384xbf16>,
    %c48_145 = arith.constant 48 : index
    %c129_146 = arith.constant 129 : index
    %109 = vector.load %arg18[%c48_145, %c129_146] : memref<176x640xbf16, #tpu.memory_space<vmem>>, vector<64x384xbf16>
    %c320_147 = arith.constant 320 : index
    %c0_148 = arith.constant 0 : index
    %110 = vector.load %arg19[%c320_147, %c0_148] : memref<576x384xbf16, #tpu.memory_space<vmem>>, vector<64x384xbf16>
    tpu.vector_store %arg19[%c320_147, %c0_148], %109 {strides = array<i32>} : memref<576x384xbf16, #tpu.memory_space<vmem>>, vector<64x384xbf16>,
    %c48_149 = arith.constant 48 : index
    %c145_150 = arith.constant 145 : index
    %111 = vector.load %arg18[%c48_149, %c145_150] : memref<176x640xbf16, #tpu.memory_space<vmem>>, vector<64x384xbf16>
    %c384_151 = arith.constant 384 : index
    %c0_152 = arith.constant 0 : index
    %112 = vector.load %arg19[%c384_151, %c0_152] : memref<576x384xbf16, #tpu.memory_space<vmem>>, vector<64x384xbf16>
    tpu.vector_store %arg19[%c384_151, %c0_152], %111 {strides = array<i32>} : memref<576x384xbf16, #tpu.memory_space<vmem>>, vector<64x384xbf16>,
    %c48_153 = arith.constant 48 : index
    %c146_154 = arith.constant 146 : index
    %113 = vector.load %arg18[%c48_153, %c146_154] : memref<176x640xbf16, #tpu.memory_space<vmem>>, vector<64x384xbf16>
    %c448_155 = arith.constant 448 : index
    %c0_156 = arith.constant 0 : index
    %114 = vector.load %arg19[%c448_155, %c0_156] : memref<576x384xbf16, #tpu.memory_space<vmem>>, vector<64x384xbf16>
    tpu.vector_store %arg19[%c448_155, %c0_156], %113 {strides = array<i32>} : memref<576x384xbf16, #tpu.memory_space<vmem>>, vector<64x384xbf16>,
    %c48_157 = arith.constant 48 : index
    %c147_158 = arith.constant 147 : index
    %115 = vector.load %arg18[%c48_157, %c147_158] : memref<176x640xbf16, #tpu.memory_space<vmem>>, vector<64x384xbf16>
    %c512_159 = arith.constant 512 : index
    %c0_160 = arith.constant 0 : index
    %116 = vector.load %arg19[%c512_159, %c0_160] : memref<576x384xbf16, #tpu.memory_space<vmem>>, vector<64x384xbf16>
    tpu.vector_store %arg19[%c512_159, %c0_160], %115 {strides = array<i32>} : memref<576x384xbf16, #tpu.memory_space<vmem>>, vector<64x384xbf16>,
    %c0_161 = arith.constant 0 : index
    %c0_162 = arith.constant 0 : index
    %117 = vector.load %arg10[%c0_161, %c0_162] : memref<32x576xbf16, #tpu.memory_space<vmem>>, vector<32x576xbf16>
    %c0_163 = arith.constant 0 : index
    %c0_164 = arith.constant 0 : index
    %118 = vector.load %arg19[%c0_163, %c0_164] : memref<576x384xbf16, #tpu.memory_space<vmem>>, vector<576x384xbf16>
    %cst_165 = arith.constant dense<0.000000e+00> : vector<32x384xf32>
    %119 = tpu.matmul %117, %118, %cst_165 {dimension_numbers = #tpu.dot_dimension_numbers<[1], [0], [0], [1], [0, 0, 1, 1], [], []>} : vector<32x576xbf16>, vector<576x384xbf16>, vector<32x384xf32> -> vector<32x384xf32>
    %c0_166 = arith.constant 0 : index
    %c0_167 = arith.constant 0 : index
    %120 = vector.load %arg11[%c0_166, %c0_167] : memref<32x1xf32, #tpu.memory_space<vmem>>, vector<32x1xf32>
    %121 = vector.broadcast %120 : vector<32x1xf32> to vector<32x384xf32>
    %122 = arith.addf %119, %121 : vector<32x384xf32>
    %cst_168 = arith.constant 0.000000e+00 : f32
    %123 = vector.broadcast %cst_168 : f32 to vector<32x384xf32>
    %124 = arith.maximumf %122, %123 : vector<32x384xf32>
    %125 = vector.broadcast %8 : vector<1x384xf32> to vector<32x384xf32>
    %126 = arith.mulf %124, %125 : vector<32x384xf32>
    %127 = arith.truncf %126 : vector<32x384xf32> to vector<32x384xbf16>
    %c112_169 = arith.constant 112 : index
    %c128_170 = arith.constant 128 : index
    %128 = vector.load %arg18[%c112_169, %c128_170] : memref<176x640xbf16, #tpu.memory_space<vmem>>, vector<32x384xbf16>
    tpu.vector_store %arg18[%c112_169, %c128_170], %127 {strides = array<i32>} : memref<176x640xbf16, #tpu.memory_space<vmem>>, vector<32x384xbf16>,
    %c80_171 = arith.constant 80 : index
    %c109_172 = arith.constant 109 : index
    %129 = vector.load %arg18[%c80_171, %c109_172] : memref<176x640xbf16, #tpu.memory_space<vmem>>, vector<64x384xbf16>
    %c0_173 = arith.constant 0 : index
    %c0_174 = arith.constant 0 : index
    %130 = vector.load %arg19[%c0_173, %c0_174] : memref<576x384xbf16, #tpu.memory_space<vmem>>, vector<64x384xbf16>
    tpu.vector_store %arg19[%c0_173, %c0_174], %129 {strides = array<i32>} : memref<576x384xbf16, #tpu.memory_space<vmem>>, vector<64x384xbf16>,
    %c80_175 = arith.constant 80 : index
    %c110_176 = arith.constant 110 : index
    %131 = vector.load %arg18[%c80_175, %c110_176] : memref<176x640xbf16, #tpu.memory_space<vmem>>, vector<64x384xbf16>
    %c64_177 = arith.constant 64 : index
    %c0_178 = arith.constant 0 : index
    %132 = vector.load %arg19[%c64_177, %c0_178] : memref<576x384xbf16, #tpu.memory_space<vmem>>, vector<64x384xbf16>
    tpu.vector_store %arg19[%c64_177, %c0_178], %131 {strides = array<i32>} : memref<576x384xbf16, #tpu.memory_space<vmem>>, vector<64x384xbf16>,
    %c80_179 = arith.constant 80 : index
    %c111_180 = arith.constant 111 : index
    %133 = vector.load %arg18[%c80_179, %c111_180] : memref<176x640xbf16, #tpu.memory_space<vmem>>, vector<64x384xbf16>
    %c128_181 = arith.constant 128 : index
    %c0_182 = arith.constant 0 : index
    %134 = vector.load %arg19[%c128_181, %c0_182] : memref<576x384xbf16, #tpu.memory_space<vmem>>, vector<64x384xbf16>
    tpu.vector_store %arg19[%c128_181, %c0_182], %133 {strides = array<i32>} : memref<576x384xbf16, #tpu.memory_space<vmem>>, vector<64x384xbf16>,
    %c80_183 = arith.constant 80 : index
    %c127_184 = arith.constant 127 : index
    %135 = vector.load %arg18[%c80_183, %c127_184] : memref<176x640xbf16, #tpu.memory_space<vmem>>, vector<64x384xbf16>
    %c192_185 = arith.constant 192 : index
    %c0_186 = arith.constant 0 : index
    %136 = vector.load %arg19[%c192_185, %c0_186] : memref<576x384xbf16, #tpu.memory_space<vmem>>, vector<64x384xbf16>
    tpu.vector_store %arg19[%c192_185, %c0_186], %135 {strides = array<i32>} : memref<576x384xbf16, #tpu.memory_space<vmem>>, vector<64x384xbf16>,
    %c80_187 = arith.constant 80 : index
    %c128_188 = arith.constant 128 : index
    %137 = vector.load %arg18[%c80_187, %c128_188] : memref<176x640xbf16, #tpu.memory_space<vmem>>, vector<64x384xbf16>
    %c256_189 = arith.constant 256 : index
    %c0_190 = arith.constant 0 : index
    %138 = vector.load %arg19[%c256_189, %c0_190] : memref<576x384xbf16, #tpu.memory_space<vmem>>, vector<64x384xbf16>
    tpu.vector_store %arg19[%c256_189, %c0_190], %137 {strides = array<i32>} : memref<576x384xbf16, #tpu.memory_space<vmem>>, vector<64x384xbf16>,
    %c80_191 = arith.constant 80 : index
    %c129_192 = arith.constant 129 : index
    %139 = vector.load %arg18[%c80_191, %c129_192] : memref<176x640xbf16, #tpu.memory_space<vmem>>, vector<64x384xbf16>
    %c320_193 = arith.constant 320 : index
    %c0_194 = arith.constant 0 : index
    %140 = vector.load %arg19[%c320_193, %c0_194] : memref<576x384xbf16, #tpu.memory_space<vmem>>, vector<64x384xbf16>
    tpu.vector_store %arg19[%c320_193, %c0_194], %139 {strides = array<i32>} : memref<576x384xbf16, #tpu.memory_space<vmem>>, vector<64x384xbf16>,
    %c80_195 = arith.constant 80 : index
    %c145_196 = arith.constant 145 : index
    %141 = vector.load %arg18[%c80_195, %c145_196] : memref<176x640xbf16, #tpu.memory_space<vmem>>, vector<64x384xbf16>
    %c384_197 = arith.constant 384 : index
    %c0_198 = arith.constant 0 : index
    %142 = vector.load %arg19[%c384_197, %c0_198] : memref<576x384xbf16, #tpu.memory_space<vmem>>, vector<64x384xbf16>
    tpu.vector_store %arg19[%c384_197, %c0_198], %141 {strides = array<i32>} : memref<576x384xbf16, #tpu.memory_space<vmem>>, vector<64x384xbf16>,
    %c80_199 = arith.constant 80 : index
    %c146_200 = arith.constant 146 : index
    %143 = vector.load %arg18[%c80_199, %c146_200] : memref<176x640xbf16, #tpu.memory_space<vmem>>, vector<64x384xbf16>
    %c448_201 = arith.constant 448 : index
    %c0_202 = arith.constant 0 : index
    %144 = vector.load %arg19[%c448_201, %c0_202] : memref<576x384xbf16, #tpu.memory_space<vmem>>, vector<64x384xbf16>
    tpu.vector_store %arg19[%c448_201, %c0_202], %143 {strides = array<i32>} : memref<576x384xbf16, #tpu.memory_space<vmem>>, vector<64x384xbf16>,
    %c80_203 = arith.constant 80 : index
    %c147_204 = arith.constant 147 : index
    %145 = vector.load %arg18[%c80_203, %c147_204] : memref<176x640xbf16, #tpu.memory_space<vmem>>, vector<64x384xbf16>
    %c512_205 = arith.constant 512 : index
    %c0_206 = arith.constant 0 : index
    %146 = vector.load %arg19[%c512_205, %c0_206] : memref<576x384xbf16, #tpu.memory_space<vmem>>, vector<64x384xbf16>
    tpu.vector_store %arg19[%c512_205, %c0_206], %145 {strides = array<i32>} : memref<576x384xbf16, #tpu.memory_space<vmem>>, vector<64x384xbf16>,
    %c0_207 = arith.constant 0 : index
    %c0_208 = arith.constant 0 : index
    %147 = vector.load %arg12[%c0_207, %c0_208] : memref<32x576xbf16, #tpu.memory_space<vmem>>, vector<32x576xbf16>
    %c0_209 = arith.constant 0 : index
    %c0_210 = arith.constant 0 : index
    %148 = vector.load %arg19[%c0_209, %c0_210] : memref<576x384xbf16, #tpu.memory_space<vmem>>, vector<576x384xbf16>
    %cst_211 = arith.constant dense<0.000000e+00> : vector<32x384xf32>
    %149 = tpu.matmul %147, %148, %cst_211 {dimension_numbers = #tpu.dot_dimension_numbers<[1], [0], [0], [1], [0, 0, 1, 1], [], []>} : vector<32x576xbf16>, vector<576x384xbf16>, vector<32x384xf32> -> vector<32x384xf32>
    %c0_212 = arith.constant 0 : index
    %c0_213 = arith.constant 0 : index
    %150 = vector.load %arg13[%c0_212, %c0_213] : memref<32x1xf32, #tpu.memory_space<vmem>>, vector<32x1xf32>
    %151 = vector.broadcast %150 : vector<32x1xf32> to vector<32x384xf32>
    %152 = arith.addf %149, %151 : vector<32x384xf32>
    %cst_214 = arith.constant 0.000000e+00 : f32
    %153 = vector.broadcast %cst_214 : f32 to vector<32x384xf32>
    %154 = arith.maximumf %152, %153 : vector<32x384xf32>
    %155 = vector.broadcast %8 : vector<1x384xf32> to vector<32x384xf32>
    %156 = arith.mulf %154, %155 : vector<32x384xf32>
    %157 = arith.truncf %156 : vector<32x384xf32> to vector<32x384xbf16>
    %c144 = arith.constant 144 : index
    %c128_215 = arith.constant 128 : index
    %158 = vector.load %arg18[%c144, %c128_215] : memref<176x640xbf16, #tpu.memory_space<vmem>>, vector<32x384xbf16>
    tpu.vector_store %arg18[%c144, %c128_215], %157 {strides = array<i32>} : memref<176x640xbf16, #tpu.memory_space<vmem>>, vector<32x384xbf16>,
    %c112_216 = arith.constant 112 : index
    %c109_217 = arith.constant 109 : index
    %159 = vector.load %arg18[%c112_216, %c109_217] : memref<176x640xbf16, #tpu.memory_space<vmem>>, vector<64x384xbf16>
    %c0_218 = arith.constant 0 : index
    %c0_219 = arith.constant 0 : index
    %160 = vector.load %arg19[%c0_218, %c0_219] : memref<576x384xbf16, #tpu.memory_space<vmem>>, vector<64x384xbf16>
    tpu.vector_store %arg19[%c0_218, %c0_219], %159 {strides = array<i32>} : memref<576x384xbf16, #tpu.memory_space<vmem>>, vector<64x384xbf16>,
    %c112_220 = arith.constant 112 : index
    %c110_221 = arith.constant 110 : index
    %161 = vector.load %arg18[%c112_220, %c110_221] : memref<176x640xbf16, #tpu.memory_space<vmem>>, vector<64x384xbf16>
    %c64_222 = arith.constant 64 : index
    %c0_223 = arith.constant 0 : index
    %162 = vector.load %arg19[%c64_222, %c0_223] : memref<576x384xbf16, #tpu.memory_space<vmem>>, vector<64x384xbf16>
    tpu.vector_store %arg19[%c64_222, %c0_223], %161 {strides = array<i32>} : memref<576x384xbf16, #tpu.memory_space<vmem>>, vector<64x384xbf16>,
    %c112_224 = arith.constant 112 : index
    %c111_225 = arith.constant 111 : index
    %163 = vector.load %arg18[%c112_224, %c111_225] : memref<176x640xbf16, #tpu.memory_space<vmem>>, vector<64x384xbf16>
    %c128_226 = arith.constant 128 : index
    %c0_227 = arith.constant 0 : index
    %164 = vector.load %arg19[%c128_226, %c0_227] : memref<576x384xbf16, #tpu.memory_space<vmem>>, vector<64x384xbf16>
    tpu.vector_store %arg19[%c128_226, %c0_227], %163 {strides = array<i32>} : memref<576x384xbf16, #tpu.memory_space<vmem>>, vector<64x384xbf16>,
    %c112_228 = arith.constant 112 : index
    %c127_229 = arith.constant 127 : index
    %165 = vector.load %arg18[%c112_228, %c127_229] : memref<176x640xbf16, #tpu.memory_space<vmem>>, vector<64x384xbf16>
    %c192_230 = arith.constant 192 : index
    %c0_231 = arith.constant 0 : index
    %166 = vector.load %arg19[%c192_230, %c0_231] : memref<576x384xbf16, #tpu.memory_space<vmem>>, vector<64x384xbf16>
    tpu.vector_store %arg19[%c192_230, %c0_231], %165 {strides = array<i32>} : memref<576x384xbf16, #tpu.memory_space<vmem>>, vector<64x384xbf16>,
    %c112_232 = arith.constant 112 : index
    %c128_233 = arith.constant 128 : index
    %167 = vector.load %arg18[%c112_232, %c128_233] : memref<176x640xbf16, #tpu.memory_space<vmem>>, vector<64x384xbf16>
    %c256_234 = arith.constant 256 : index
    %c0_235 = arith.constant 0 : index
    %168 = vector.load %arg19[%c256_234, %c0_235] : memref<576x384xbf16, #tpu.memory_space<vmem>>, vector<64x384xbf16>
    tpu.vector_store %arg19[%c256_234, %c0_235], %167 {strides = array<i32>} : memref<576x384xbf16, #tpu.memory_space<vmem>>, vector<64x384xbf16>,
    %c112_236 = arith.constant 112 : index
    %c129_237 = arith.constant 129 : index
    %169 = vector.load %arg18[%c112_236, %c129_237] : memref<176x640xbf16, #tpu.memory_space<vmem>>, vector<64x384xbf16>
    %c320_238 = arith.constant 320 : index
    %c0_239 = arith.constant 0 : index
    %170 = vector.load %arg19[%c320_238, %c0_239] : memref<576x384xbf16, #tpu.memory_space<vmem>>, vector<64x384xbf16>
    tpu.vector_store %arg19[%c320_238, %c0_239], %169 {strides = array<i32>} : memref<576x384xbf16, #tpu.memory_space<vmem>>, vector<64x384xbf16>,
    %c112_240 = arith.constant 112 : index
    %c145_241 = arith.constant 145 : index
    %171 = vector.load %arg18[%c112_240, %c145_241] : memref<176x640xbf16, #tpu.memory_space<vmem>>, vector<64x384xbf16>
    %c384_242 = arith.constant 384 : index
    %c0_243 = arith.constant 0 : index
    %172 = vector.load %arg19[%c384_242, %c0_243] : memref<576x384xbf16, #tpu.memory_space<vmem>>, vector<64x384xbf16>
    tpu.vector_store %arg19[%c384_242, %c0_243], %171 {strides = array<i32>} : memref<576x384xbf16, #tpu.memory_space<vmem>>, vector<64x384xbf16>,
    %c112_244 = arith.constant 112 : index
    %c146_245 = arith.constant 146 : index
    %173 = vector.load %arg18[%c112_244, %c146_245] : memref<176x640xbf16, #tpu.memory_space<vmem>>, vector<64x384xbf16>
    %c448_246 = arith.constant 448 : index
    %c0_247 = arith.constant 0 : index
    %174 = vector.load %arg19[%c448_246, %c0_247] : memref<576x384xbf16, #tpu.memory_space<vmem>>, vector<64x384xbf16>
    tpu.vector_store %arg19[%c448_246, %c0_247], %173 {strides = array<i32>} : memref<576x384xbf16, #tpu.memory_space<vmem>>, vector<64x384xbf16>,
    %c112_248 = arith.constant 112 : index
    %c147_249 = arith.constant 147 : index
    %175 = vector.load %arg18[%c112_248, %c147_249] : memref<176x640xbf16, #tpu.memory_space<vmem>>, vector<64x384xbf16>
    %c512_250 = arith.constant 512 : index
    %c0_251 = arith.constant 0 : index
    %176 = vector.load %arg19[%c512_250, %c0_251] : memref<576x384xbf16, #tpu.memory_space<vmem>>, vector<64x384xbf16>
    tpu.vector_store %arg19[%c512_250, %c0_251], %175 {strides = array<i32>} : memref<576x384xbf16, #tpu.memory_space<vmem>>, vector<64x384xbf16>,
    %c0_252 = arith.constant 0 : index
    %c0_253 = arith.constant 0 : index
    %177 = vector.load %arg14[%c0_252, %c0_253] : memref<16x576xbf16, #tpu.memory_space<vmem>>, vector<16x576xbf16>
    %c0_254 = arith.constant 0 : index
    %c0_255 = arith.constant 0 : index
    %178 = vector.load %arg19[%c0_254, %c0_255] : memref<576x384xbf16, #tpu.memory_space<vmem>>, vector<576x384xbf16>
    %cst_256 = arith.constant dense<0.000000e+00> : vector<16x384xf32>
    %179 = tpu.matmul %177, %178, %cst_256 {dimension_numbers = #tpu.dot_dimension_numbers<[1], [0], [0], [1], [0, 0, 1, 1], [], []>} : vector<16x576xbf16>, vector<576x384xbf16>, vector<16x384xf32> -> vector<16x384xf32>
    %c0_257 = arith.constant 0 : index
    %c0_258 = arith.constant 0 : index
    %180 = vector.load %arg15[%c0_257, %c0_258] : memref<16x1xf32, #tpu.memory_space<vmem>>, vector<16x1xf32>
    %181 = vector.broadcast %180 : vector<16x1xf32> to vector<16x384xf32>
    %182 = arith.addf %179, %181 : vector<16x384xf32>
    %183 = math.tanh %182 : vector<16x384xf32>
    %c0_259 = arith.constant 0 : index
    %c0_260 = arith.constant 0 : index
    %184 = vector.load %arg3[%c0_259, %c0_260] : memref<16x1xf32, #tpu.memory_space<vmem>>, vector<16x1xf32>
    %185 = vector.broadcast %184 : vector<16x1xf32> to vector<16x384xf32>
    %186 = arith.addf %183, %185 : vector<16x384xf32>
    %187 = vector.extract_strided_slice %5 {offsets = [0, 128], sizes = [3, 384], strides = [1, 1]} : vector<16x640xf32> to vector<3x384xf32>
    %188 = vector.extract_strided_slice %186 {offsets = [8, 0], sizes = [1, 384], strides = [1, 1]} : vector<16x384xf32> to vector<1x384xf32>
    %189 = vector.broadcast %188 : vector<1x384xf32> to vector<3x384xf32>
    %190 = arith.subf %187, %189 : vector<3x384xf32>
    %191 = vector.extract_strided_slice %186 {offsets = [0, 0], sizes = [1, 384], strides = [1, 1]} : vector<16x384xf32> to vector<1x384xf32>
    %192 = vector.broadcast %191 : vector<1x384xf32> to vector<3x384xf32>
    %193 = arith.mulf %190, %192 : vector<3x384xf32>
    %194 = vector.extract_strided_slice %186 {offsets = [9, 0], sizes = [1, 384], strides = [1, 1]} : vector<16x384xf32> to vector<1x384xf32>
    %195 = vector.broadcast %194 : vector<1x384xf32> to vector<3x384xf32>
    %196 = arith.subf %193, %195 : vector<3x384xf32>
    %197 = vector.extract_strided_slice %186 {offsets = [1, 0], sizes = [1, 384], strides = [1, 1]} : vector<16x384xf32> to vector<1x384xf32>
    %198 = vector.broadcast %197 : vector<1x384xf32> to vector<3x384xf32>
    %199 = arith.mulf %196, %198 : vector<3x384xf32>
    %200 = vector.extract_strided_slice %186 {offsets = [10, 0], sizes = [1, 384], strides = [1, 1]} : vector<16x384xf32> to vector<1x384xf32>
    %201 = vector.broadcast %200 : vector<1x384xf32> to vector<3x384xf32>
    %202 = arith.subf %199, %201 : vector<3x384xf32>
    %203 = vector.extract_strided_slice %186 {offsets = [2, 0], sizes = [1, 384], strides = [1, 1]} : vector<16x384xf32> to vector<1x384xf32>
    %204 = vector.broadcast %203 : vector<1x384xf32> to vector<3x384xf32>
    %205 = arith.mulf %202, %204 : vector<3x384xf32>
    %206 = vector.extract_strided_slice %186 {offsets = [11, 0], sizes = [1, 384], strides = [1, 1]} : vector<16x384xf32> to vector<1x384xf32>
    %207 = vector.broadcast %206 : vector<1x384xf32> to vector<3x384xf32>
    %208 = arith.subf %205, %207 : vector<3x384xf32>
    %209 = vector.extract_strided_slice %186 {offsets = [3, 0], sizes = [1, 384], strides = [1, 1]} : vector<16x384xf32> to vector<1x384xf32>
    %210 = vector.broadcast %209 : vector<1x384xf32> to vector<3x384xf32>
    %211 = arith.mulf %208, %210 : vector<3x384xf32>
    %212 = vector.extract_strided_slice %186 {offsets = [12, 0], sizes = [1, 384], strides = [1, 1]} : vector<16x384xf32> to vector<1x384xf32>
    %213 = vector.broadcast %212 : vector<1x384xf32> to vector<3x384xf32>
    %214 = arith.subf %211, %213 : vector<3x384xf32>
    %215 = vector.extract_strided_slice %186 {offsets = [4, 0], sizes = [1, 384], strides = [1, 1]} : vector<16x384xf32> to vector<1x384xf32>
    %216 = vector.broadcast %215 : vector<1x384xf32> to vector<3x384xf32>
    %217 = arith.mulf %214, %216 : vector<3x384xf32>
    %218 = vector.extract_strided_slice %186 {offsets = [13, 0], sizes = [1, 384], strides = [1, 1]} : vector<16x384xf32> to vector<1x384xf32>
    %219 = vector.broadcast %218 : vector<1x384xf32> to vector<3x384xf32>
    %220 = arith.subf %217, %219 : vector<3x384xf32>
    %221 = vector.extract_strided_slice %186 {offsets = [5, 0], sizes = [1, 384], strides = [1, 1]} : vector<16x384xf32> to vector<1x384xf32>
    %222 = vector.broadcast %221 : vector<1x384xf32> to vector<3x384xf32>
    %223 = arith.mulf %220, %222 : vector<3x384xf32>
    %224 = vector.extract_strided_slice %186 {offsets = [14, 0], sizes = [1, 384], strides = [1, 1]} : vector<16x384xf32> to vector<1x384xf32>
    %225 = vector.broadcast %224 : vector<1x384xf32> to vector<3x384xf32>
    %226 = arith.subf %223, %225 : vector<3x384xf32>
    %227 = vector.extract_strided_slice %186 {offsets = [6, 0], sizes = [1, 384], strides = [1, 1]} : vector<16x384xf32> to vector<1x384xf32>
    %228 = vector.broadcast %227 : vector<1x384xf32> to vector<3x384xf32>
    %229 = arith.mulf %226, %228 : vector<3x384xf32>
    %230 = vector.extract_strided_slice %186 {offsets = [15, 0], sizes = [1, 384], strides = [1, 1]} : vector<16x384xf32> to vector<1x384xf32>
    %231 = vector.broadcast %230 : vector<1x384xf32> to vector<3x384xf32>
    %232 = arith.subf %229, %231 : vector<3x384xf32>
    %233 = vector.extract_strided_slice %186 {offsets = [7, 0], sizes = [1, 384], strides = [1, 1]} : vector<16x384xf32> to vector<1x384xf32>
    %234 = vector.broadcast %233 : vector<1x384xf32> to vector<3x384xf32>
    %235 = arith.mulf %232, %234 : vector<3x384xf32>
    %c0_261 = arith.constant 0 : index
    %c0_262 = arith.constant 0 : index
    %c0_263 = arith.constant 0 : index
    %236 = vector.load %arg16[%c0_261, %c0_262, %c0_263] : memref<1x3x384xf32, #tpu.memory_space<vmem>>, vector<1x3x384xf32>
    %237 = vector.shape_cast %236 : vector<1x3x384xf32> to vector<3x384xf32>
    %238 = vector.shape_cast %235 : vector<3x384xf32> to vector<1x3x384xf32>
    tpu.vector_store %arg16[%c0_261, %c0_262, %c0_263], %238 {strides = array<i32>} : memref<1x3x384xf32, #tpu.memory_space<vmem>>, vector<1x3x384xf32>,
    %c0_264 = arith.constant 0 : index
    %c0_265 = arith.constant 0 : index
    %c0_266 = arith.constant 0 : index
    %239 = vector.load %arg17[%c0_264, %c0_265, %c0_266] : memref<1x16x384xf32, #tpu.memory_space<vmem>>, vector<1x16x384xf32>
    %240 = vector.shape_cast %239 : vector<1x16x384xf32> to vector<16x384xf32>
    %241 = vector.shape_cast %186 : vector<16x384xf32> to vector<1x16x384xf32>
    tpu.vector_store %arg17[%c0_264, %c0_265, %c0_266], %241 {strides = array<i32>} : memref<1x16x384xf32, #tpu.memory_space<vmem>>, vector<1x16x384xf32>,
    return
  }
  func.func @transform_0(%arg0: i32) -> (i32, i32, i32) {
    %c0_i32 = arith.constant 0 : i32
    %c0_i32_0 = arith.constant 0 : i32
    %c0_i32_1 = arith.constant 0 : i32
    return %arg0, %c0_i32, %c0_i32_0 : i32, i32, i32
  }
  func.func @transform_1(%arg0: i32) -> (i32, i32) {
    %c0_i32 = arith.constant 0 : i32
    %c0_i32_0 = arith.constant 0 : i32
    %c0_i32_1 = arith.constant 0 : i32
    return %c0_i32, %c0_i32_0 : i32, i32
  }
  func.func @transform_2(%arg0: i32) -> (i32, i32) {
    %c0_i32 = arith.constant 0 : i32
    %c0_i32_0 = arith.constant 0 : i32
    %c0_i32_1 = arith.constant 0 : i32
    return %c0_i32, %c0_i32_0 : i32, i32
  }
  func.func @transform_3(%arg0: i32) -> (i32, i32) {
    %c0_i32 = arith.constant 0 : i32
    %c0_i32_0 = arith.constant 0 : i32
    %c0_i32_1 = arith.constant 0 : i32
    return %c0_i32, %c0_i32_0 : i32, i32
  }
  func.func @transform_4(%arg0: i32) -> (i32, i32) {
    %c0_i32 = arith.constant 0 : i32
    %c0_i32_0 = arith.constant 0 : i32
    %c0_i32_1 = arith.constant 0 : i32
    return %c0_i32, %c0_i32_0 : i32, i32
  }
  func.func @transform_5(%arg0: i32) -> (i32, i32) {
    %c0_i32 = arith.constant 0 : i32
    %c0_i32_0 = arith.constant 0 : i32
    %c0_i32_1 = arith.constant 0 : i32
    return %c0_i32, %c0_i32_0 : i32, i32
  }
  func.func @transform_6(%arg0: i32) -> (i32, i32) {
    %c0_i32 = arith.constant 0 : i32
    %c0_i32_0 = arith.constant 0 : i32
    %c0_i32_1 = arith.constant 0 : i32
    return %c0_i32, %c0_i32_0 : i32, i32
  }
  func.func @transform_7(%arg0: i32) -> (i32, i32) {
    %c0_i32 = arith.constant 0 : i32
    %c0_i32_0 = arith.constant 0 : i32
    %c0_i32_1 = arith.constant 0 : i32
    return %c0_i32, %c0_i32_0 : i32, i32
  }
  func.func @transform_8(%arg0: i32) -> (i32, i32) {
    %c0_i32 = arith.constant 0 : i32
    %c0_i32_0 = arith.constant 0 : i32
    %c0_i32_1 = arith.constant 0 : i32
    return %c0_i32, %c0_i32_0 : i32, i32
  }
  func.func @transform_9(%arg0: i32) -> (i32, i32) {
    %c0_i32 = arith.constant 0 : i32
    %c0_i32_0 = arith.constant 0 : i32
    %c0_i32_1 = arith.constant 0 : i32
    return %c0_i32, %c0_i32_0 : i32, i32
  }
  func.func @transform_10(%arg0: i32) -> (i32, i32) {
    %c0_i32 = arith.constant 0 : i32
    %c0_i32_0 = arith.constant 0 : i32
    %c0_i32_1 = arith.constant 0 : i32
    return %c0_i32, %c0_i32_0 : i32, i32
  }
  func.func @transform_11(%arg0: i32) -> (i32, i32) {
    %c0_i32 = arith.constant 0 : i32
    %c0_i32_0 = arith.constant 0 : i32
    %c0_i32_1 = arith.constant 0 : i32
    return %c0_i32, %c0_i32_0 : i32, i32
  }
  func.func @transform_12(%arg0: i32) -> (i32, i32) {
    %c0_i32 = arith.constant 0 : i32
    %c0_i32_0 = arith.constant 0 : i32
    %c0_i32_1 = arith.constant 0 : i32
    return %c0_i32, %c0_i32_0 : i32, i32
  }
  func.func @transform_13(%arg0: i32) -> (i32, i32) {
    %c0_i32 = arith.constant 0 : i32
    %c0_i32_0 = arith.constant 0 : i32
    %c0_i32_1 = arith.constant 0 : i32
    return %c0_i32, %c0_i32_0 : i32, i32
  }
  func.func @transform_14(%arg0: i32) -> (i32, i32) {
    %c0_i32 = arith.constant 0 : i32
    %c0_i32_0 = arith.constant 0 : i32
    %c0_i32_1 = arith.constant 0 : i32
    return %c0_i32, %c0_i32_0 : i32, i32
  }
  func.func @transform_15(%arg0: i32) -> (i32, i32, i32) {
    %c0_i32 = arith.constant 0 : i32
    %c0_i32_0 = arith.constant 0 : i32
    %c0_i32_1 = arith.constant 0 : i32
    return %arg0, %c0_i32, %c0_i32_0 : i32, i32, i32
  }
  func.func @transform_16(%arg0: i32) -> (i32, i32, i32) {
    %c0_i32 = arith.constant 0 : i32
    %c0_i32_0 = arith.constant 0 : i32
    %c0_i32_1 = arith.constant 0 : i32
    return %arg0, %c0_i32, %c0_i32_0 : i32, i32, i32
  }
}

</mosaic_0001>

<llo_original>
// kernel: _lambda_.1
$region0: #{_lambda_.1}
  #allocation0 [shape = 'u32[]', space=smem, size = 0x4, offset = 0x4, fixed_abs, tag = 'smem constant byte address 0x4 - core index']
  #allocation1 [shape = 'u32[72,128]{1,0:T(1,128)}', space=vmem, size = 0x9000, scoped, tag = 'internal scratch']
  #allocation2 [shape = 'bf16[176,640]{1,0:T(8,128)(2,1)}', space=vmem, size = 0x37000, scoped, tag = 'scratch operand']
  #allocation3 [shape = 'bf16[576,384]{1,0:T(8,128)(2,1)}', space=vmem, size = 0x6c000, scoped, tag = 'scratch operand']
  %s0 = inlined_call_operand.vmem [shape: f32[2,16,640], index: 0, kind: input, shape index: {}]
  %s1 = inlined_call_operand.vmem [shape: f32[1,384], index: 1, kind: input, shape index: {}]
  %s2 = inlined_call_operand.vmem [shape: f32[16,1], index: 2, kind: input, shape index: {}]
  %s3 = inlined_call_operand.vmem [shape: bf16[32,144], index: 3, kind: input, shape index: {}]
  %s4 = inlined_call_operand.vmem [shape: f32[32,1], index: 4, kind: input, shape index: {}]
  %s5 = inlined_call_operand.vmem [shape: bf16[32,288], index: 5, kind: input, shape index: {}]
  %s6 = inlined_call_operand.vmem [shape: f32[32,1], index: 6, kind: input, shape index: {}]
  %s7 = inlined_call_operand.vmem [shape: bf16[32,576], index: 7, kind: input, shape index: {}]
  %s8 = inlined_call_operand.vmem [shape: f32[32,1], index: 8, kind: input, shape index: {}]
  %s9 = inlined_call_operand.vmem [shape: bf16[32,576], index: 9, kind: input, shape index: {}]
  %s10 = inlined_call_operand.vmem [shape: f32[32,1], index: 10, kind: input, shape index: {}]
  %s11 = inlined_call_operand.vmem [shape: bf16[32,576], index: 11, kind: input, shape index: {}]
  %s12 = inlined_call_operand.vmem [shape: f32[32,1], index: 12, kind: input, shape index: {}]
  %s13 = inlined_call_operand.vmem [shape: bf16[16,576], index: 13, kind: input, shape index: {}]
  %s14 = inlined_call_operand.vmem [shape: f32[16,1], index: 14, kind: input, shape index: {}]
  %s15 = inlined_call_operand.vmem [shape: f32[2,3,384], index: 15, kind: output, shape index: {0}]
  %s16 = inlined_call_operand.vmem [shape: f32[2,16,384], index: 16, kind: output, shape index: {1}]
  %17 = xla_tuple %s15, %s16
  %s18 = sld [smem:[#allocation0]]
  $region101: #{_lambda_.1} parent=0
    _
  %s20 = ssub.s32 1, %s18
  %s21 = scalar_select 0, %s20, %s18
  loop: start=0, step=1, limit=4
  $region2: #{_lambda_.1} parent=0 // loop_pre_header
    _
  $region3: #{_lambda_.1} parent=0 // loop_header
    %s23 = sphi 0, %s27
    %p24 = scmp.ge.s32.totalorder %s23, 4
    %s33 = sphi 0, %s35
    %s36 = sphi 0, %s33
    %s37 = sphi 0, %s36
    %s53 = sphi 0, %s37
    %s57 = sphi 0, %s57
    %s59 = sphi 0, %s57
    %s60 = sphi 0, %s59
    %s74 = sphi 0, %s60
    %s78 = sphi 0, %s78
    %s80 = sphi 0, %s78
    %s81 = sphi 0, %s80
    %s95 = sphi 0, %s81
    %s99 = sphi 0, %s99
    %s101 = sphi 0, %s99
    %s102 = sphi 0, %s101
    %s116 = sphi 0, %s102
    %s120 = sphi 0, %s120
    %s122 = sphi 0, %s120
    %s123 = sphi 0, %s122
    %s137 = sphi 0, %s123
    %s141 = sphi 0, %s141
    %s143 = sphi 0, %s141
    %s144 = sphi 0, %s143
    %s158 = sphi 0, %s144
    %s162 = sphi 0, %s162
    %s164 = sphi 0, %s162
    %s165 = sphi 0, %s164
    %s179 = sphi 0, %s165
    %s183 = sphi 0, %s183
    %s185 = sphi 0, %s183
    %s186 = sphi 0, %s185
    %s200 = sphi 0, %s186
    %s204 = sphi 0, %s204
    %s206 = sphi 0, %s204
    %s207 = sphi 0, %s206
    %s221 = sphi 0, %s207
    %s225 = sphi 0, %s225
    %s227 = sphi 0, %s225
    %s228 = sphi 0, %s227
    %s242 = sphi 0, %s228
    %s246 = sphi 0, %s246
    %s248 = sphi 0, %s246
    %s249 = sphi 0, %s248
    %s263 = sphi 0, %s249
    %s267 = sphi 0, %s267
    %s269 = sphi 0, %s267
    %s270 = sphi 0, %s269
    %s284 = sphi 0, %s270
    %s288 = sphi 0, %s288
    %s290 = sphi 0, %s288
    %s291 = sphi 0, %s290
    %s305 = sphi 0, %s291
    %s309 = sphi 0, %s309
    %s311 = sphi 0, %s309
    %s312 = sphi 0, %s311
    %s326 = sphi 0, %s312
    %s330 = sphi 0, %s330
    %s332 = sphi 0, %s330
    %s333 = sphi 0, %s332
    %s347 = sphi 0, %s333
    %s353 = sphi 0, %s355
    %s356 = sphi 0, %s353
    %s357 = sphi 0, %s356
    %s373 = sphi 0, %s357
    %s379 = sphi 0, %s381
    %s382 = sphi 0, %s379
    %s383 = sphi 0, %s382
    %s399 = sphi 0, %s383
  $region4: #{_lambda_.1} parent=0 // loop_header_branch
    %26 = sbr.rel (%p24) target = $region8
  $region5: #{_lambda_.1} parent=0 // loop_body
    %s28 = ssub.s32 %s23, 1
    %s29 = ssub.s32 %s23, 2
    %s30 = sadd.s32 %s23, 1
    %s31 = ssub.s32 %s23, %s30
    %p32 = scmp.eq.s32.totalorder %s31, 0
    %s34 = sadd.s32 %s33, 1
    %s35 = scalar_select %p32, %s33, %s34
    %p38 = pneg %p32
    %p39 = scmp.eq.s32.totalorder %s23, 1
    %p40 = por %p38, %p39
    %p41 = scmp.ne.s32.totalorder %s33, %s36
    %p42 = scmp.eq.s32.totalorder %s23, 0
    %p43 = por %p41, %p42
    %p44 = scmp.ne.s32.totalorder %s33, %s36
    %p45 = scmp.eq.s32.totalorder %s28, 1
    %p46 = por %p44, %p45
    %p47 = scmp.ne.s32.totalorder %s36, %s37
    %p48 = scmp.eq.s32.totalorder %s28, 0
    %p49 = por %p47, %p48
    %p50 = scmp.ne.s32.totalorder %s36, %s37
    %p51 = scmp.eq.s32.totalorder %s29, 1
    %p52 = por %p50, %p51
    %p54 = scmp.ne.s32.totalorder %s37, %s53
    %p55 = scmp.eq.s32.totalorder %s29, 0
    %p56 = por %p54, %p55
    %s58 = sadd.s32 %s57, 1
    %p61 = scmp.eq.s32.totalorder %s23, 1
    %p62 = scmp.ne.s32.totalorder %s57, %s59
    %p63 = scmp.eq.s32.totalorder %s23, 0
    %p64 = por %p62, %p63
    %p65 = scmp.ne.s32.totalorder %s57, %s59
    %p66 = scmp.eq.s32.totalorder %s28, 1
    %p67 = por %p65, %p66
    %p68 = scmp.ne.s32.totalorder %s59, %s60
    %p69 = scmp.eq.s32.totalorder %s28, 0
    %p70 = por %p68, %p69
    %p71 = scmp.ne.s32.totalorder %s59, %s60
    %p72 = scmp.eq.s32.totalorder %s29, 1
    %p73 = por %p71, %p72
    %p75 = scmp.ne.s32.totalorder %s60, %s74
    %p76 = scmp.eq.s32.totalorder %s29, 0
    %p77 = por %p75, %p76
    %s79 = sadd.s32 %s78, 1
    %p82 = scmp.eq.s32.totalorder %s23, 1
    %p83 = scmp.ne.s32.totalorder %s78, %s80
    %p84 = scmp.eq.s32.totalorder %s23, 0
    %p85 = por %p83, %p84
    %p86 = scmp.ne.s32.totalorder %s78, %s80
    %p87 = scmp.eq.s32.totalorder %s28, 1
    %p88 = por %p86, %p87
    %p89 = scmp.ne.s32.totalorder %s80, %s81
    %p90 = scmp.eq.s32.totalorder %s28, 0
    %p91 = por %p89, %p90
    %p92 = scmp.ne.s32.totalorder %s80, %s81
    %p93 = scmp.eq.s32.totalorder %s29, 1
    %p94 = por %p92, %p93
    %p96 = scmp.ne.s32.totalorder %s81, %s95
    %p97 = scmp.eq.s32.totalorder %s29, 0
    %p98 = por %p96, %p97
    %s100 = sadd.s32 %s99, 1
    %p103 = scmp.eq.s32.totalorder %s23, 1
    %p104 = scmp.ne.s32.totalorder %s99, %s101
    %p105 = scmp.eq.s32.totalorder %s23, 0
    %p106 = por %p104, %p105
    %p107 = scmp.ne.s32.totalorder %s99, %s101
    %p108 = scmp.eq.s32.totalorder %s28, 1
    %p109 = por %p107, %p108
    %p110 = scmp.ne.s32.totalorder %s101, %s102
    %p111 = scmp.eq.s32.totalorder %s28, 0
    %p112 = por %p110, %p111
    %p113 = scmp.ne.s32.totalorder %s101, %s102
    %p114 = scmp.eq.s32.totalorder %s29, 1
    %p115 = por %p113, %p114
    %p117 = scmp.ne.s32.totalorder %s102, %s116
    %p118 = scmp.eq.s32.totalorder %s29, 0
    %p119 = por %p117, %p118
    %s121 = sadd.s32 %s120, 1
    %p124 = scmp.eq.s32.totalorder %s23, 1
    %p125 = scmp.ne.s32.totalorder %s120, %s122
    %p126 = scmp.eq.s32.totalorder %s23, 0
    %p127 = por %p125, %p126
    %p128 = scmp.ne.s32.totalorder %s120, %s122
    %p129 = scmp.eq.s32.totalorder %s28, 1
    %p130 = por %p128, %p129
    %p131 = scmp.ne.s32.totalorder %s122, %s123
    %p132 = scmp.eq.s32.totalorder %s28, 0
    %p133 = por %p131, %p132
    %p134 = scmp.ne.s32.totalorder %s122, %s123
    %p135 = scmp.eq.s32.totalorder %s29, 1
    %p136 = por %p134, %p135
    %p138 = scmp.ne.s32.totalorder %s123, %s137
    %p139 = scmp.eq.s32.totalorder %s29, 0
    %p140 = por %p138, %p139
    %s142 = sadd.s32 %s141, 1
    %p145 = scmp.eq.s32.totalorder %s23, 1
    %p146 = scmp.ne.s32.totalorder %s141, %s143
    %p147 = scmp.eq.s32.totalorder %s23, 0
    %p148 = por %p146, %p147
    %p149 = scmp.ne.s32.totalorder %s141, %s143
    %p150 = scmp.eq.s32.totalorder %s28, 1
    %p151 = por %p149, %p150
    %p152 = scmp.ne.s32.totalorder %s143, %s144
    %p153 = scmp.eq.s32.totalorder %s28, 0
    %p154 = por %p152, %p153
    %p155 = scmp.ne.s32.totalorder %s143, %s144
    %p156 = scmp.eq.s32.totalorder %s29, 1
    %p157 = por %p155, %p156
    %p159 = scmp.ne.s32.totalorder %s144, %s158
    %p160 = scmp.eq.s32.totalorder %s29, 0
    %p161 = por %p159, %p160
    %s163 = sadd.s32 %s162, 1
    %p166 = scmp.eq.s32.totalorder %s23, 1
    %p167 = scmp.ne.s32.totalorder %s162, %s164
    %p168 = scmp.eq.s32.totalorder %s23, 0
    %p169 = por %p167, %p168
    %p170 = scmp.ne.s32.totalorder %s162, %s164
    %p171 = scmp.eq.s32.totalorder %s28, 1
    %p172 = por %p170, %p171
    %p173 = scmp.ne.s32.totalorder %s164, %s165
    %p174 = scmp.eq.s32.totalorder %s28, 0
    %p175 = por %p173, %p174
    %p176 = scmp.ne.s32.totalorder %s164, %s165
    %p177 = scmp.eq.s32.totalorder %s29, 1
    %p178 = por %p176, %p177
    %p180 = scmp.ne.s32.totalorder %s165, %s179
    %p181 = scmp.eq.s32.totalorder %s29, 0
    %p182 = por %p180, %p181
    %s184 = sadd.s32 %s183, 1
    %p187 = scmp.eq.s32.totalorder %s23, 1
    %p188 = scmp.ne.s32.totalorder %s183, %s185
    %p189 = scmp.eq.s32.totalorder %s23, 0
    %p190 = por %p188, %p189
    %p191 = scmp.ne.s32.totalorder %s183, %s185
    %p192 = scmp.eq.s32.totalorder %s28, 1
    %p193 = por %p191, %p192
    %p194 = scmp.ne.s32.totalorder %s185, %s186
    %p195 = scmp.eq.s32.totalorder %s28, 0
    %p196 = por %p194, %p195
    %p197 = scmp.ne.s32.totalorder %s185, %s186
    %p198 = scmp.eq.s32.totalorder %s29, 1
    %p199 = por %p197, %p198
    %p201 = scmp.ne.s32.totalorder %s186, %s200
    %p202 = scmp.eq.s32.totalorder %s29, 0
    %p203 = por %p201, %p202
    %s205 = sadd.s32 %s204, 1
    %p208 = scmp.eq.s32.totalorder %s23, 1
    %p209 = scmp.ne.s32.totalorder %s204, %s206
    %p210 = scmp.eq.s32.totalorder %s23, 0
    %p211 = por %p209, %p210
    %p212 = scmp.ne.s32.totalorder %s204, %s206
    %p213 = scmp.eq.s32.totalorder %s28, 1
    %p214 = por %p212, %p213
    %p215 = scmp.ne.s32.totalorder %s206, %s207
    %p216 = scmp.eq.s32.totalorder %s28, 0
    %p217 = por %p215, %p216
    %p218 = scmp.ne.s32.totalorder %s206, %s207
    %p219 = scmp.eq.s32.totalorder %s29, 1
    %p220 = por %p218, %p219
    %p222 = scmp.ne.s32.totalorder %s207, %s221
    %p223 = scmp.eq.s32.totalorder %s29, 0
    %p224 = por %p222, %p223
    %s226 = sadd.s32 %s225, 1
    %p229 = scmp.eq.s32.totalorder %s23, 1
    %p230 = scmp.ne.s32.totalorder %s225, %s227
    %p231 = scmp.eq.s32.totalorder %s23, 0
    %p232 = por %p230, %p231
    %p233 = scmp.ne.s32.totalorder %s225, %s227
    %p234 = scmp.eq.s32.totalorder %s28, 1
    %p235 = por %p233, %p234
    %p236 = scmp.ne.s32.totalorder %s227, %s228
    %p237 = scmp.eq.s32.totalorder %s28, 0
    %p238 = por %p236, %p237
    %p239 = scmp.ne.s32.totalorder %s227, %s228
    %p240 = scmp.eq.s32.totalorder %s29, 1
    %p241 = por %p239, %p240
    %p243 = scmp.ne.s32.totalorder %s228, %s242
    %p244 = scmp.eq.s32.totalorder %s29, 0
    %p245 = por %p243, %p244
    %s247 = sadd.s32 %s246, 1
    %p250 = scmp.eq.s32.totalorder %s23, 1
    %p251 = scmp.ne.s32.totalorder %s246, %s248
    %p252 = scmp.eq.s32.totalorder %s23, 0
    %p253 = por %p251, %p252
    %p254 = scmp.ne.s32.totalorder %s246, %s248
    %p255 = scmp.eq.s32.totalorder %s28, 1
    %p256 = por %p254, %p255
    %p257 = scmp.ne.s32.totalorder %s248, %s249
    %p258 = scmp.eq.s32.totalorder %s28, 0
    %p259 = por %p257, %p258
    %p260 = scmp.ne.s32.totalorder %s248, %s249
    %p261 = scmp.eq.s32.totalorder %s29, 1
    %p262 = por %p260, %p261
    %p264 = scmp.ne.s32.totalorder %s249, %s263
    %p265 = scmp.eq.s32.totalorder %s29, 0
    %p266 = por %p264, %p265
    %s268 = sadd.s32 %s267, 1
    %p271 = scmp.eq.s32.totalorder %s23, 1
    %p272 = scmp.ne.s32.totalorder %s267, %s269
    %p273 = scmp.eq.s32.totalorder %s23, 0
    %p274 = por %p272, %p273
    %p275 = scmp.ne.s32.totalorder %s267, %s269
    %p276 = scmp.eq.s32.totalorder %s28, 1
    %p277 = por %p275, %p276
    %p278 = scmp.ne.s32.totalorder %s269, %s270
    %p279 = scmp.eq.s32.totalorder %s28, 0
    %p280 = por %p278, %p279
    %p281 = scmp.ne.s32.totalorder %s269, %s270
    %p282 = scmp.eq.s32.totalorder %s29, 1
    %p283 = por %p281, %p282
    %p285 = scmp.ne.s32.totalorder %s270, %s284
    %p286 = scmp.eq.s32.totalorder %s29, 0
    %p287 = por %p285, %p286
    %s289 = sadd.s32 %s288, 1
    %p292 = scmp.eq.s32.totalorder %s23, 1
    %p293 = scmp.ne.s32.totalorder %s288, %s290
    %p294 = scmp.eq.s32.totalorder %s23, 0
    %p295 = por %p293, %p294
    %p296 = scmp.ne.s32.totalorder %s288, %s290
    %p297 = scmp.eq.s32.totalorder %s28, 1
    %p298 = por %p296, %p297
    %p299 = scmp.ne.s32.totalorder %s290, %s291
    %p300 = scmp.eq.s32.totalorder %s28, 0
    %p301 = por %p299, %p300
    %p302 = scmp.ne.s32.totalorder %s290, %s291
    %p303 = scmp.eq.s32.totalorder %s29, 1
    %p304 = por %p302, %p303
    %p306 = scmp.ne.s32.totalorder %s291, %s305
    %p307 = scmp.eq.s32.totalorder %s29, 0
    %p308 = por %p306, %p307
    %s310 = sadd.s32 %s309, 1
    %p313 = scmp.eq.s32.totalorder %s23, 1
    %p314 = scmp.ne.s32.totalorder %s309, %s311
    %p315 = scmp.eq.s32.totalorder %s23, 0
    %p316 = por %p314, %p315
    %p317 = scmp.ne.s32.totalorder %s309, %s311
    %p318 = scmp.eq.s32.totalorder %s28, 1
    %p319 = por %p317, %p318
    %p320 = scmp.ne.s32.totalorder %s311, %s312
    %p321 = scmp.eq.s32.totalorder %s28, 0
    %p322 = por %p320, %p321
    %p323 = scmp.ne.s32.totalorder %s311, %s312
    %p324 = scmp.eq.s32.totalorder %s29, 1
    %p325 = por %p323, %p324
    %p327 = scmp.ne.s32.totalorder %s312, %s326
    %p328 = scmp.eq.s32.totalorder %s29, 0
    %p329 = por %p327, %p328
    %s331 = sadd.s32 %s330, 1
    %p334 = scmp.eq.s32.totalorder %s23, 1
    %p335 = scmp.ne.s32.totalorder %s330, %s332
    %p336 = scmp.eq.s32.totalorder %s23, 0
    %p337 = por %p335, %p336
    %p338 = scmp.ne.s32.totalorder %s330, %s332
    %p339 = scmp.eq.s32.totalorder %s28, 1
    %p340 = por %p338, %p339
    %p341 = scmp.ne.s32.totalorder %s332, %s333
    %p342 = scmp.eq.s32.totalorder %s28, 0
    %p343 = por %p341, %p342
    %p344 = scmp.ne.s32.totalorder %s332, %s333
    %p345 = scmp.eq.s32.totalorder %s29, 1
    %p346 = por %p344, %p345
    %p348 = scmp.ne.s32.totalorder %s333, %s347
    %p349 = scmp.eq.s32.totalorder %s29, 0
    %p350 = por %p348, %p349
    %s351 = ssub.s32 %s23, %s30
    %p352 = scmp.eq.s32.totalorder %s351, 0
    %s354 = sadd.s32 %s353, 1
    %s355 = scalar_select %p352, %s353, %s354
    %p358 = pneg %p352
    %p359 = scmp.eq.s32.totalorder %s23, 1
    %p360 = por %p358, %p359
    %p361 = scmp.ne.s32.totalorder %s353, %s356
    %p362 = scmp.eq.s32.totalorder %s23, 0
    %p363 = por %p361, %p362
    %p364 = scmp.ne.s32.totalorder %s353, %s356
    %p365 = scmp.eq.s32.totalorder %s28, 1
    %p366 = por %p364, %p365
    %p367 = scmp.ne.s32.totalorder %s356, %s357
    %p368 = scmp.eq.s32.totalorder %s28, 0
    %p369 = por %p367, %p368
    %p370 = scmp.ne.s32.totalorder %s356, %s357
    %p371 = scmp.eq.s32.totalorder %s29, 1
    %p372 = por %p370, %p371
    %p374 = scmp.ne.s32.totalorder %s357, %s373
    %p375 = scmp.eq.s32.totalorder %s29, 0
    %p376 = por %p374, %p375
    %s377 = ssub.s32 %s23, %s30
    %p378 = scmp.eq.s32.totalorder %s377, 0
    %s380 = sadd.s32 %s379, 1
    %s381 = scalar_select %p378, %s379, %s380
    %p384 = pneg %p378
    %p385 = scmp.eq.s32.totalorder %s23, 1
    %p386 = por %p384, %p385
    %p387 = scmp.ne.s32.totalorder %s379, %s382
    %p388 = scmp.eq.s32.totalorder %s23, 0
    %p389 = por %p387, %p388
    %p390 = scmp.ne.s32.totalorder %s379, %s382
    %p391 = scmp.eq.s32.totalorder %s28, 1
    %p392 = por %p390, %p391
    %p393 = scmp.ne.s32.totalorder %s382, %s383
    %p394 = scmp.eq.s32.totalorder %s28, 0
    %p395 = por %p393, %p394
    %p396 = scmp.ne.s32.totalorder %s382, %s383
    %p397 = scmp.eq.s32.totalorder %s29, 1
    %p398 = por %p396, %p397
    %p400 = scmp.ne.s32.totalorder %s383, %s399
    %p401 = scmp.eq.s32.totalorder %s29, 0
    %p402 = por %p400, %p401
    %p403 = scmp.le.s32.totalorder 1, %s23
    %p404 = scmp.lt.s32.totalorder %s23, 3
    %p405 = pnand %p403, %p404
    %p406 = pneg %p405
    // Predicated region
    $region9: #{_lambda_.1} parent=5 // pred_check
      _
    $region10: #{_lambda_.1} parent=5 // pred_check_branch
      %408 = sbr.rel (%p405) target = $region12
    $region11: #{_lambda_.1} parent=5 // pred_region
      %s409 = ssub.s32 %s23, 1
      // Predicated region
      $region13: #{_lambda_.1} parent=11 // pred_check
        %p410 = pneg %p70
      $region14: #{_lambda_.1} parent=11 // pred_check_branch
        %412 = sbr.rel (%p410) target = $region16
      $region15: #{_lambda_.1} parent=11 // pred_region
        _
      $region16: #{_lambda_.1} parent=11 // pred_fallthru
        _
      // Predicated region
      $region17: #{_lambda_.1} parent=11 // pred_check
        %p413 = pneg %p91
      $region18: #{_lambda_.1} parent=11 // pred_check_branch
        %415 = sbr.rel (%p413) target = $region20
      $region19: #{_lambda_.1} parent=11 // pred_region
        _
      $region20: #{_lambda_.1} parent=11 // pred_fallthru
        _
      // Predicated region
      $region21: #{_lambda_.1} parent=11 // pred_check
        %p416 = pneg %p112
      $region22: #{_lambda_.1} parent=11 // pred_check_branch
        %418 = sbr.rel (%p416) target = $region24
      $region23: #{_lambda_.1} parent=11 // pred_region
        _
      $region24: #{_lambda_.1} parent=11 // pred_fallthru
        _
      // Predicated region
      $region25: #{_lambda_.1} parent=11 // pred_check
        %p419 = pneg %p133
      $region26: #{_lambda_.1} parent=11 // pred_check_branch
        %421 = sbr.rel (%p419) target = $region28
      $region27: #{_lambda_.1} parent=11 // pred_region
        _
      $region28: #{_lambda_.1} parent=11 // pred_fallthru
        _
      // Predicated region
      $region29: #{_lambda_.1} parent=11 // pred_check
        %p422 = pneg %p154
      $region30: #{_lambda_.1} parent=11 // pred_check_branch
        %424 = sbr.rel (%p422) target = $region32
      $region31: #{_lambda_.1} parent=11 // pred_region
        _
      $region32: #{_lambda_.1} parent=11 // pred_fallthru
        _
      // Predicated region
      $region33: #{_lambda_.1} parent=11 // pred_check
        %p425 = pneg %p175
      $region34: #{_lambda_.1} parent=11 // pred_check_branch
        %427 = sbr.rel (%p425) target = $region36
      $region35: #{_lambda_.1} parent=11 // pred_region
        _
      $region36: #{_lambda_.1} parent=11 // pred_fallthru
        _
      // Predicated region
      $region37: #{_lambda_.1} parent=11 // pred_check
        %p428 = pneg %p196
      $region38: #{_lambda_.1} parent=11 // pred_check_branch
        %430 = sbr.rel (%p428) target = $region40
      $region39: #{_lambda_.1} parent=11 // pred_region
        _
      $region40: #{_lambda_.1} parent=11 // pred_fallthru
        _
      // Predicated region
      $region41: #{_lambda_.1} parent=11 // pred_check
        %p431 = pneg %p217
      $region42: #{_lambda_.1} parent=11 // pred_check_branch
        %433 = sbr.rel (%p431) target = $region44
      $region43: #{_lambda_.1} parent=11 // pred_region
        _
      $region44: #{_lambda_.1} parent=11 // pred_fallthru
        _
      // Predicated region
      $region45: #{_lambda_.1} parent=11 // pred_check
        %p434 = pneg %p238
      $region46: #{_lambda_.1} parent=11 // pred_check_branch
        %436 = sbr.rel (%p434) target = $region48
      $region47: #{_lambda_.1} parent=11 // pred_region
        _
      $region48: #{_lambda_.1} parent=11 // pred_fallthru
        _
      // Predicated region
      $region49: #{_lambda_.1} parent=11 // pred_check
        %p437 = pneg %p259
      $region50: #{_lambda_.1} parent=11 // pred_check_branch
        %439 = sbr.rel (%p437) target = $region52
      $region51: #{_lambda_.1} parent=11 // pred_region
        _
      $region52: #{_lambda_.1} parent=11 // pred_fallthru
        _
      // Predicated region
      $region53: #{_lambda_.1} parent=11 // pred_check
        %p440 = pneg %p280
      $region54: #{_lambda_.1} parent=11 // pred_check_branch
        %442 = sbr.rel (%p440) target = $region56
      $region55: #{_lambda_.1} parent=11 // pred_region
        _
      $region56: #{_lambda_.1} parent=11 // pred_fallthru
        _
      // Predicated region
      $region57: #{_lambda_.1} parent=11 // pred_check
        %p443 = pneg %p301
      $region58: #{_lambda_.1} parent=11 // pred_check_branch
        %445 = sbr.rel (%p443) target = $region60
      $region59: #{_lambda_.1} parent=11 // pred_region
        _
      $region60: #{_lambda_.1} parent=11 // pred_fallthru
        _
      // Predicated region
      $region61: #{_lambda_.1} parent=11 // pred_check
        %p446 = pneg %p322
      $region62: #{_lambda_.1} parent=11 // pred_check_branch
        %448 = sbr.rel (%p446) target = $region64
      $region63: #{_lambda_.1} parent=11 // pred_region
        _
      $region64: #{_lambda_.1} parent=11 // pred_fallthru
        _
      // Predicated region
      $region65: #{_lambda_.1} parent=11 // pred_check
        %p449 = pneg %p343
      $region66: #{_lambda_.1} parent=11 // pred_check_branch
        %451 = sbr.rel (%p449) target = $region68
      $region67: #{_lambda_.1} parent=11 // pred_region
        _
      $region68: #{_lambda_.1} parent=11 // pred_fallthru
        _
    $region12: #{_lambda_.1} parent=5 // pred_fallthru
      _
    %p452 = scmp.lt.s32.totalorder %s23, 2
    // Predicated region
    $region69: #{_lambda_.1} parent=5 // pred_check
      %p453 = pneg %p452
    $region70: #{_lambda_.1} parent=5 // pred_check_branch
      %455 = sbr.rel (%p453) target = $region72
    $region71: #{_lambda_.1} parent=5 // pred_region
      // Predicated region
      $region73: #{_lambda_.1} parent=71 // pred_check
        %p456 = pneg %p43
      $region74: #{_lambda_.1} parent=71 // pred_check_branch
        %458 = sbr.rel (%p456) target = $region76
      $region75: #{_lambda_.1} parent=71 // pred_region
        %p459 = scmp.lt.s32.totalorder %s23, 1
        %s460 = scalar_select %p459, %s23, 1
        %s461 = smul.addr %s460, 10
        %s462 = smul.addr %s461, 8
        %s463 = scalar_lea.vmem %s0, %s462
      $region76: #{_lambda_.1} parent=71 // pred_fallthru
        _
    $region72: #{_lambda_.1} parent=5 // pred_fallthru
      _
    %p464 = scmp.le.s32.totalorder 1, %s23
    %p465 = scmp.lt.s32.totalorder %s23, 3
    %p466 = pnand %p464, %p465
    %p467 = pneg %p466
    // Predicated region
    $region77: #{_lambda_.1} parent=5 // pred_check
      _
    $region78: #{_lambda_.1} parent=5 // pred_check_branch
      %469 = sbr.rel (%p466) target = $region80
    $region79: #{_lambda_.1} parent=5 // pred_region
      %s470 = ssub.s32 %s23, 1
      %p471 = scmp.lt.s32.totalorder %s28, 1
      %s472 = scalar_select %p471, %s28, 1
      %s473 = smul.addr %s472, 10
      %s474 = smul.addr %s473, 8
      %s475 = scalar_lea.vmem %s0, %s474
      %p476 = pneg %p49
      %p477 = pneg %p46
      %p478 = pneg %p70
      %p479 = pneg %p67
      %p480 = pneg %p91
      %p481 = pneg %p88
      %p482 = pneg %p112
      %p483 = pneg %p109
      %p484 = pneg %p133
      %p485 = pneg %p130
      %p486 = pneg %p154
      %p487 = pneg %p151
      %p488 = pneg %p175
      %p489 = pneg %p172
      %p490 = pneg %p196
      %p491 = pneg %p193
      %p492 = pneg %p217
      %p493 = pneg %p214
      %p494 = pneg %p238
      %p495 = pneg %p235
      %p496 = pneg %p259
      %p497 = pneg %p256
      %p498 = pneg %p280
      %p499 = pneg %p277
      %p500 = pneg %p301
      %p501 = pneg %p298
      %p502 = pneg %p322
      %p503 = pneg %p319
      %p504 = pneg %p343
      %p505 = pneg %p340
      %p506 = pneg %p369
      %p507 = pneg %p366
      %p508 = scmp.lt.s32.totalorder %s28, 1
      %s509 = scalar_select %p508, %s28, 1
      %s510 = smul.addr %s509, 3
      %s511 = smul.addr %s510, 4
      %s512 = scalar_lea.vmem %s15, %s511
      %p513 = pneg %p395
      %p514 = pneg %p392
      %p515 = scmp.lt.s32.totalorder %s28, 1
      %s516 = scalar_select %p515, %s28, 1
      %s517 = smul.addr %s516, 6
      %s518 = smul.addr %s517, 8
      %s519 = scalar_lea.vmem %s16, %s518
      %p520 = scmp.lt.s32.totalorder %s28, 1
      %s521 = scalar_select %p520, %s28, 1
      %s522 = smul.addr %s521, 10
      %s523 = smul.addr %s522, 8
      %s524 = scalar_lea.vmem %s0, %s523
      %p525 = scmp.lt.s32.totalorder %s28, 1
      %s526 = scalar_select %p525, %s28, 1
      %s527 = smul.addr %s526, 3
      %s528 = smul.addr %s527, 4
      %s529 = scalar_lea.vmem %s15, %s528
      %p530 = scmp.lt.s32.totalorder %s28, 1
      %s531 = scalar_select %p530, %s28, 1
      %s532 = smul.addr %s531, 6
      %s533 = smul.addr %s532, 8
      %s534 = scalar_lea.vmem %s16, %s533
      %536 = vst [vmem:[#allocation2] sm:$0xf] 0
      %537 = vst [vmem:[#allocation2 + $0x14] sm:$0xf] 0
      %538 = vst [vmem:[#allocation2 + $0x28] sm:$0xf] 0
      %539 = vst [vmem:[#allocation2 + $0x3c] sm:$0xf] 0
      %540 = vst [vmem:[#allocation2 + $0x50] sm:$0xf] 0
      %541 = vst [vmem:[#allocation2 + $0x64] sm:$0xf] 0
      %542 = vst [vmem:[#allocation2 + $0x78] sm:$0xf] 0
      %543 = vst [vmem:[#allocation2 + $0x8c] sm:$0xf] 0
      %544 = vst [vmem:[#allocation2 + $0xa0] sm:$0xf] 0
      %545 = vst [vmem:[#allocation2 + $0xb4] sm:$0xf] 0
      %546 = vst [vmem:[#allocation2 + $0xc8] sm:$0xf] 0
      %547 = vst [vmem:[#allocation2 + $0xdc] sm:$0xf] 0
      %548 = vst [vmem:[#allocation2 + $0xf0] sm:$0xf] 0
      %549 = vst [vmem:[#allocation2 + $0x104] sm:$0xf] 0
      %550 = vst [vmem:[#allocation2 + $0x118] sm:$0xf] 0
      %551 = vst [vmem:[#allocation2 + $0x12c] sm:$0xf] 0
      %552 = vst [vmem:[#allocation2 + $0x140] sm:$0xf] 0
      %553 = vst [vmem:[#allocation2 + $0x154] sm:$0xf] 0
      %554 = vst [vmem:[#allocation2 + $0x168] sm:$0xf] 0
      %555 = vst [vmem:[#allocation2 + $0x17c] sm:$0xf] 0
      %556 = vst [vmem:[#allocation2 + $0x190] sm:$0xf] 0
      %557 = vst [vmem:[#allocation2 + $0x1a4] sm:$0xf] 0
      %558 = vst [vmem:[#allocation2 + $0x10] sm:$0xf] 0
      %559 = vst [vmem:[#allocation2 + $0x24] sm:$0xf] 0
      %560 = vst [vmem:[#allocation2 + $0x38] sm:$0xf] 0
      %561 = vst [vmem:[#allocation2 + $0x4c] sm:$0xf] 0
      %562 = vst [vmem:[#allocation2 + $0x60] sm:$0xf] 0
      %563 = vst [vmem:[#allocation2 + $0x74] sm:$0xf] 0
      %564 = vst [vmem:[#allocation2 + $0x88] sm:$0xf] 0
      %565 = vst [vmem:[#allocation2 + $0x9c] sm:$0xf] 0
      %566 = vst [vmem:[#allocation2 + $0xb0] sm:$0xf] 0
      %567 = vst [vmem:[#allocation2 + $0xc4] sm:$0xf] 0
      %568 = vst [vmem:[#allocation2 + $0xd8] sm:$0xf] 0
      %569 = vst [vmem:[#allocation2 + $0xec] sm:$0xf] 0
      %570 = vst [vmem:[#allocation2 + $0x100] sm:$0xf] 0
      %571 = vst [vmem:[#allocation2 + $0x114] sm:$0xf] 0
      %572 = vst [vmem:[#allocation2 + $0x128] sm:$0xf] 0
      %573 = vst [vmem:[#allocation2 + $0x13c] sm:$0xf] 0
      %574 = vst [vmem:[#allocation2 + $0x150] sm:$0xf] 0
      %575 = vst [vmem:[#allocation2 + $0x164] sm:$0xf] 0
      %576 = vst [vmem:[#allocation2 + $0x178] sm:$0xf] 0
      %577 = vst [vmem:[#allocation2 + $0x18c] sm:$0xf] 0
      %578 = vst [vmem:[#allocation2 + $0x1a0] sm:$0xf] 0
      %579 = vst [vmem:[#allocation2 + $0x1b4] sm:$0xf] 0
      %v580 = vld [vmem:[%s524] sm:$0xff]
      %v581 = vld [vmem:[%s524 + $0x8] sm:$0xff]
      %v582 = vld [vmem:[%s524 + $0x10] sm:$0xff]
      %v583 = vld [vmem:[%s524 + $0x18] sm:$0xff]
      %v584 = vld [vmem:[%s524 + $0x20] sm:$0xff]
      %v585 = vld [vmem:[%s524 + $0x28] sm:$0xff]
      %v586 = vld [vmem:[%s524 + $0x30] sm:$0xff]
      %v587 = vld [vmem:[%s524 + $0x38] sm:$0xff]
      %v588 = vld [vmem:[%s524 + $0x40] sm:$0xff]
      %v589 = vld [vmem:[%s524 + $0x48] sm:$0xff]
      %v590 = vpack.c.bf16 %v581, %v580
      %v591 = vpack.c.bf16 %v583, %v582
      %v592 = vpack.c.bf16 %v584, %v584
      %v593 = vpack.c.bf16 %v586, %v585
      %v594 = vpack.c.bf16 %v588, %v587
      %v595 = vpack.c.bf16 %v589, %v589
      %596 = vst [vmem:[#allocation2] sm:$0xff] %v590
      %597 = vst [vmem:[#allocation2 + $0x8] sm:$0xff] %v591
      %598 = vst [vmem:[#allocation2 + $0x10] sm:$0xf] %v592
      %599 = vst [vmem:[#allocation2 + $0x14] sm:$0xff] %v593
      %600 = vst [vmem:[#allocation2 + $0x1c] sm:$0xff] %v594
      %601 = vst [vmem:[#allocation2 + $0x24] sm:$0xf] %v595
      %v602 = vld [vmem:[%s1] sm:$0x7]
      %v603 = vld [vmem:[#allocation2] sm:$0xff]
      %v604 = vld [vmem:[#allocation2 + $0x8] sm:$0xff]
      %v605 = vld [vmem:[#allocation2 + $0x14] sm:$0xff]
      %v606 = vld [vmem:[#allocation2 + $0x1c] sm:$0xff]
      %611 = vrot.lane.b32.xlu0 %v603, 19
      %v612 = vpop.permute.xlu0 %611
      %613 = vrot.lane.b32.xlu0 %v604, 19
      %v614 = vpop.permute.xlu0 %613
      %615 = vrot.lane.b32.xlu0 %v605, 19
      %v616 = vpop.permute.xlu0 %615
      %617 = vrot.lane.b32.xlu0 %v606, 19
      %v618 = vpop.permute.xlu0 %617
      %v619 = vrot.slane %v612, 4
      %v620 = vrot.slane %v614, 4
      %v621 = vrot.slane %v616, 4
      %v622 = vrot.slane %v618, 4
      %vm623 = vcmask 1043456
      %v624 = vsel %vm623, %v619, %v620
      %vm625 = vcmask 154624
      %v626 = vsel %vm625, %v612, %v624
      %v627 = vsel %vm625, %v614, %v620
      %v628 = vsel %vm623, %v621, %v622
      %v629 = vsel %vm625, %v616, %v628
      %v630 = vsel %vm625, %v618, %v622
      %635 = vst [vmem:[#allocation3] sm:$0xff] %v626
      %636 = vst [vmem:[#allocation3 + $0x8] sm:$0xf] %v627
      %637 = vst [vmem:[#allocation3 + $0xc] sm:$0xff] %v629
      %638 = vst [vmem:[#allocation3 + $0x14] sm:$0xf] %v630
      %v639 = vld [vmem:[#allocation2] sm:$0xff]
      %v640 = vld [vmem:[#allocation2 + $0x8] sm:$0xff]
      %v641 = vld [vmem:[#allocation2 + $0x14] sm:$0xff]
      %v642 = vld [vmem:[#allocation2 + $0x1c] sm:$0xff]
      %647 = vrot.lane.b32.xlu0 %v639, 18
      %v648 = vpop.permute.xlu0 %647
      %649 = vrot.lane.b32.xlu0 %v640, 18
      %v650 = vpop.permute.xlu0 %649
      %651 = vrot.lane.b32.xlu0 %v641, 18
      %v652 = vpop.permute.xlu0 %651
      %653 = vrot.lane.b32.xlu0 %v642, 18
      %v654 = vpop.permute.xlu0 %653
      %v655 = vrot.slane %v648, 4
      %v656 = vrot.slane %v650, 4
      %v657 = vrot.slane %v652, 4
      %v658 = vrot.slane %v654, 4
      %v659 = vsel %vm623, %v655, %v656
      %vm660 = vcmask 146432
      %v661 = vsel %vm660, %v648, %v659
      %v662 = vsel %vm660, %v650, %v656
      %v663 = vsel %vm623, %v657, %v658
      %v664 = vsel %vm660, %v652, %v663
      %v665 = vsel %vm660, %v654, %v658
      %670 = vst [vmem:[#allocation3 + $0x18] sm:$0xff] %v661
      %671 = vst [vmem:[#allocation3 + $0x20] sm:$0xf] %v662
      %672 = vst [vmem:[#allocation3 + $0x24] sm:$0xff] %v664
      %673 = vst [vmem:[#allocation3 + $0x2c] sm:$0xf] %v665
      %v674 = vld [vmem:[#allocation2] sm:$0xff]
      %v675 = vld [vmem:[#allocation2 + $0x8] sm:$0xff]
      %v676 = vld [vmem:[#allocation2 + $0x14] sm:$0xff]
      %v677 = vld [vmem:[#allocation2 + $0x1c] sm:$0xff]
      %682 = vrot.lane.b32.xlu0 %v674, 17
      %v683 = vpop.permute.xlu0 %682
      %684 = vrot.lane.b32.xlu0 %v675, 17
      %v685 = vpop.permute.xlu0 %684
      %686 = vrot.lane.b32.xlu0 %v676, 17
      %v687 = vpop.permute.xlu0 %686
      %688 = vrot.lane.b32.xlu0 %v677, 17
      %v689 = vpop.permute.xlu0 %688
      %v690 = vrot.slane %v683, 4
      %v691 = vrot.slane %v685, 4
      %v692 = vrot.slane %v687, 4
      %v693 = vrot.slane %v689, 4
      %v694 = vsel %vm623, %v690, %v691
      %vm695 = vcmask 138240
      %v696 = vsel %vm695, %v683, %v694
      %v697 = vsel %vm695, %v685, %v691
      %v698 = vsel %vm623, %v692, %v693
      %v699 = vsel %vm695, %v687, %v698
      %v700 = vsel %vm695, %v689, %v693
      %705 = vst [vmem:[#allocation3 + $0x30] sm:$0xff] %v696
      %706 = vst [vmem:[#allocation3 + $0x38] sm:$0xf] %v697
      %707 = vst [vmem:[#allocation3 + $0x3c] sm:$0xff] %v699
      %708 = vst [vmem:[#allocation3 + $0x44] sm:$0xf] %v700
      %v709 = vld [vmem:[#allocation2] sm:$0xff]
      %v710 = vld [vmem:[#allocation2 + $0x8] sm:$0xff]
      %v711 = vld [vmem:[#allocation2 + $0x14] sm:$0xff]
      %v712 = vld [vmem:[#allocation2 + $0x1c] sm:$0xff]
      %717 = vrot.lane.b32.xlu0 %v709, 1
      %v718 = vpop.permute.xlu0 %717
      %719 = vrot.lane.b32.xlu0 %v710, 1
      %v720 = vpop.permute.xlu0 %719
      %721 = vrot.lane.b32.xlu0 %v711, 1
      %v722 = vpop.permute.xlu0 %721
      %723 = vrot.lane.b32.xlu0 %v712, 1
      %v724 = vpop.permute.xlu0 %723
      %v725 = vrot.slane %v718, 4
      %v726 = vrot.slane %v720, 4
      %v727 = vrot.slane %v722, 4
      %v728 = vrot.slane %v724, 4
      %v729 = vsel %vm623, %v725, %v726
      %vm730 = vcmask 7168
      %v731 = vsel %vm730, %v718, %v729
      %v732 = vsel %vm730, %v720, %v726
      %v733 = vsel %vm623, %v727, %v728
      %v734 = vsel %vm730, %v722, %v733
      %v735 = vsel %vm730, %v724, %v728
      %740 = vst [vmem:[#allocation3 + $0x48] sm:$0xff] %v731
      %741 = vst [vmem:[#allocation3 + $0x50] sm:$0xf] %v732
      %742 = vst [vmem:[#allocation3 + $0x54] sm:$0xff] %v734
      %743 = vst [vmem:[#allocation3 + $0x5c] sm:$0xf] %v735
      %v744 = vld [vmem:[#allocation2 + $0x4] sm:$0xff]
      %v745 = vld [vmem:[#allocation2 + $0xc] sm:$0xf]
      %v746 = vld [vmem:[#allocation2 + $0x18] sm:$0xff]
      %v747 = vld [vmem:[#allocation2 + $0x20] sm:$0xf]
      %748 = vst [vmem:[#allocation3 + $0x60] sm:$0xff] %v744
      %749 = vst [vmem:[#allocation3 + $0x68] sm:$0xf] %v745
      %750 = vst [vmem:[#allocation3 + $0x6c] sm:$0xff] %v746
      %751 = vst [vmem:[#allocation3 + $0x74] sm:$0xf] %v747
      %v752 = vld [vmem:[#allocation2 + $0x4] sm:$0xff]
      %v753 = vld [vmem:[#allocation2 + $0xc] sm:$0xff]
      %v754 = vld [vmem:[#allocation2 + $0x18] sm:$0xff]
      %v755 = vld [vmem:[#allocation2 + $0x20] sm:$0xff]
      %760 = vrot.lane.b32.xlu0 %v752, 127
      %v761 = vpop.permute.xlu0 %760
      %762 = vrot.lane.b32.xlu0 %v753, 127
      %v763 = vpop.permute.xlu0 %762
      %764 = vrot.lane.b32.xlu0 %v754, 127
      %v765 = vpop.permute.xlu0 %764
      %766 = vrot.lane.b32.xlu0 %v755, 127
      %v767 = vpop.permute.xlu0 %766
      %v768 = vrot.slane %v761, 4
      %v769 = vrot.slane %v763, 4
      %v770 = vrot.slane %v765, 4
      %v771 = vrot.slane %v767, 4
      %v772 = vsel %vm623, %v768, %v769
      %vm773 = vcmask 1039360
      %v774 = vsel %vm773, %v761, %v772
      %v775 = vsel %vm773, %v763, %v769
      %v776 = vsel %vm623, %v770, %v771
      %v777 = vsel %vm773, %v765, %v776
      %v778 = vsel %vm773, %v767, %v771
      %783 = vst [vmem:[#allocation3 + $0x78] sm:$0xff] %v774
      %784 = vst [vmem:[#allocation3 + $0x80] sm:$0xf] %v775
      %785 = vst [vmem:[#allocation3 + $0x84] sm:$0xff] %v777
      %786 = vst [vmem:[#allocation3 + $0x8c] sm:$0xf] %v778
      %v787 = vld [vmem:[#allocation2 + $0x4] sm:$0xff]
      %v788 = vld [vmem:[#allocation2 + $0xc] sm:$0xff]
      %v789 = vld [vmem:[#allocation2 + $0x18] sm:$0xff]
      %v790 = vld [vmem:[#allocation2 + $0x20] sm:$0xff]
      %795 = vrot.lane.b32.xlu0 %v787, 111
      %v796 = vpop.permute.xlu0 %795
      %797 = vrot.lane.b32.xlu0 %v788, 111
      %v798 = vpop.permute.xlu0 %797
      %799 = vrot.lane.b32.xlu0 %v789, 111
      %v800 = vpop.permute.xlu0 %799
      %801 = vrot.lane.b32.xlu0 %v790, 111
      %v802 = vpop.permute.xlu0 %801
      %v803 = vrot.slane %v796, 4
      %v804 = vrot.slane %v798, 4
      %v805 = vrot.slane %v800, 4
      %v806 = vrot.slane %v802, 4
      %v807 = vsel %vm623, %v803, %v804
      %vm808 = vcmask 908288
      %v809 = vsel %vm808, %v796, %v807
      %v810 = vsel %vm808, %v798, %v804
      %v811 = vsel %vm623, %v805, %v806
      %v812 = vsel %vm808, %v800, %v811
      %v813 = vsel %vm808, %v802, %v806
      %818 = vst [vmem:[#allocation3 + $0x90] sm:$0xff] %v809
      %819 = vst [vmem:[#allocation3 + $0x98] sm:$0xf] %v810
      %820 = vst [vmem:[#allocation3 + $0x9c] sm:$0xff] %v812
      %821 = vst [vmem:[#allocation3 + $0xa4] sm:$0xf] %v813
      %v822 = vld [vmem:[#allocation2 + $0x4] sm:$0xff]
      %v823 = vld [vmem:[#allocation2 + $0xc] sm:$0xff]
      %v824 = vld [vmem:[#allocation2 + $0x18] sm:$0xff]
      %v825 = vld [vmem:[#allocation2 + $0x20] sm:$0xff]
      %830 = vrot.lane.b32.xlu0 %v822, 110
      %v831 = vpop.permute.xlu0 %830
      %832 = vrot.lane.b32.xlu0 %v823, 110
      %v833 = vpop.permute.xlu0 %832
      %834 = vrot.lane.b32.xlu0 %v824, 110
      %v835 = vpop.permute.xlu0 %834
      %836 = vrot.lane.b32.xlu0 %v825, 110
      %v837 = vpop.permute.xlu0 %836
      %v838 = vrot.slane %v831, 4
      %v839 = vrot.slane %v833, 4
      %v840 = vrot.slane %v835, 4
      %v841 = vrot.slane %v837, 4
      %v842 = vsel %vm623, %v838, %v839
      %vm843 = vcmask 900096
      %v844 = vsel %vm843, %v831, %v842
      %v845 = vsel %vm843, %v833, %v839
      %v846 = vsel %vm623, %v840, %v841
      %v847 = vsel %vm843, %v835, %v846
      %v848 = vsel %vm843, %v837, %v841
      %853 = vst [vmem:[#allocation3 + $0xa8] sm:$0xff] %v844
      %854 = vst [vmem:[#allocation3 + $0xb0] sm:$0xf] %v845
      %855 = vst [vmem:[#allocation3 + $0xb4] sm:$0xff] %v847
      %856 = vst [vmem:[#allocation3 + $0xbc] sm:$0xf] %v848
      %v857 = vld [vmem:[#allocation2 + $0x4] sm:$0xff]
      %v858 = vld [vmem:[#allocation2 + $0xc] sm:$0xff]
      %v859 = vld [vmem:[#allocation2 + $0x18] sm:$0xff]
      %v860 = vld [vmem:[#allocation2 + $0x20] sm:$0xff]
      %865 = vrot.lane.b32.xlu0 %v857, 109
      %v866 = vpop.permute.xlu0 %865
      %867 = vrot.lane.b32.xlu0 %v858, 109
      %v868 = vpop.permute.xlu0 %867
      %869 = vrot.lane.b32.xlu0 %v859, 109
      %v870 = vpop.permute.xlu0 %869
      %871 = vrot.lane.b32.xlu0 %v860, 109
      %v872 = vpop.permute.xlu0 %871
      %v873 = vrot.slane %v866, 4
      %v874 = vrot.slane %v868, 4
      %v875 = vrot.slane %v870, 4
      %v876 = vrot.slane %v872, 4
      %v877 = vsel %vm623, %v873, %v874
      %vm878 = vcmask 891904
      %v879 = vsel %vm878, %v866, %v877
      %v880 = vsel %vm878, %v868, %v874
      %v881 = vsel %vm623, %v875, %v876
      %v882 = vsel %vm878, %v870, %v881
      %v883 = vsel %vm878, %v872, %v876
      %888 = vst [vmem:[#allocation3 + $0xc0] sm:$0xff] %v879
      %889 = vst [vmem:[#allocation3 + $0xc8] sm:$0xf] %v880
      %890 = vst [vmem:[#allocation3 + $0xcc] sm:$0xff] %v882
      %891 = vst [vmem:[#allocation3 + $0xd4] sm:$0xf] %v883
      %v892 = vld [vmem:[%s3] sm:$0xff]
      %v893 = vld [vmem:[%s3 + $0x8] sm:$0xff]
      %v894 = vld [vmem:[%s3 + $0x10] sm:$0xff]
      %v895 = vld [vmem:[%s3 + $0x18] sm:$0xff]
      %v896 = vld [vmem:[#allocation3] sm:$0xff]
      %v897 = vld [vmem:[#allocation3 + $0x8] sm:$0xf]
      %v898 = vld [vmem:[#allocation3 + $0xc] sm:$0xff]
      %v899 = vld [vmem:[#allocation3 + $0x14] sm:$0xf]
      %v900 = vld [vmem:[#allocation3 + $0x18] sm:$0xff]
      %v901 = vld [vmem:[#allocation3 + $0x20] sm:$0xf]
      %v902 = vld [vmem:[#allocation3 + $0x24] sm:$0xff]
      %v903 = vld [vmem:[#allocation3 + $0x2c] sm:$0xf]
      %v904 = vld [vmem:[#allocation3 + $0x30] sm:$0xff]
      %v905 = vld [vmem:[#allocation3 + $0x38] sm:$0xf]
      %v906 = vld [vmem:[#allocation3 + $0x3c] sm:$0xff]
      %v907 = vld [vmem:[#allocation3 + $0x44] sm:$0xf]
      %v908 = vld [vmem:[#allocation3 + $0x48] sm:$0xff]
      %v909 = vld [vmem:[#allocation3 + $0x50] sm:$0xf]
      %v910 = vld [vmem:[#allocation3 + $0x54] sm:$0xff]
      %v911 = vld [vmem:[#allocation3 + $0x5c] sm:$0xf]
      %v912 = vld [vmem:[#allocation3 + $0x60] sm:$0xff]
      %v913 = vld [vmem:[#allocation3 + $0x68] sm:$0xf]
      %v914 = vld [vmem:[#allocation3 + $0x6c] sm:$0xff]
      %v915 = vld [vmem:[#allocation3 + $0x74] sm:$0xf]
      %v916 = vld [vmem:[#allocation3 + $0x78] sm:$0xff]
      %v917 = vld [vmem:[#allocation3 + $0x80] sm:$0xf]
      %v918 = vld [vmem:[#allocation3 + $0x84] sm:$0xff]
      %v919 = vld [vmem:[#allocation3 + $0x8c] sm:$0xf]
      %v920 = vld [vmem:[#allocation3 + $0x90] sm:$0xff]
      %v921 = vld [vmem:[#allocation3 + $0x98] sm:$0xf]
      %v922 = vld [vmem:[#allocation3 + $0x9c] sm:$0xff]
      %v923 = vld [vmem:[#allocation3 + $0xa4] sm:$0xf]
      %v924 = vld [vmem:[#allocation3 + $0xa8] sm:$0xff]
      %v925 = vld [vmem:[#allocation3 + $0xb0] sm:$0xf]
      %v926 = vld [vmem:[#allocation3 + $0xb4] sm:$0xff]
      %v927 = vld [vmem:[#allocation3 + $0xbc] sm:$0xf]
      %v928 = vld [vmem:[#allocation3 + $0xc0] sm:$0xff]
      %v929 = vld [vmem:[#allocation3 + $0xc8] sm:$0xf]
      %v930 = vld [vmem:[#allocation3 + $0xcc] sm:$0xff]
      %v931 = vld [vmem:[#allocation3 + $0xd4] sm:$0xf]
      %v932 = vld [vmem:[%s4] sm:$0xff]
      %v933 = vld [vmem:[%s4 + $0x8] sm:$0xff]
      %v934 = vld [vmem:[%s4 + $0x10] sm:$0xff]
      %v935 = vld [vmem:[%s4 + $0x18] sm:$0xff]
      %937 = vset.pattern.permute.xlu0 0
      %938 = vperm.xlu0 %937, %v932
      %v939 = vpop.permute.xlu0 %938
      %942 = vset.pattern.permute.xlu0 0
      %943 = vperm.xlu0 %942, %v933
      %v944 = vpop.permute.xlu0 %943
      %947 = vset.pattern.permute.xlu0 0
      %948 = vperm.xlu0 %947, %v934
      %v949 = vpop.permute.xlu0 %948
      %952 = vset.pattern.permute.xlu0 0
      %953 = vperm.xlu0 %952, %v935
      %v954 = vpop.permute.xlu0 %953
      %v960 = vunpack.c.l.b16 %v892
      %v961 = vunpack.c.h.b16 %v892
      %v962 = vunpack.c.l.b16 %v893
      %v963 = vunpack.c.h.b16 %v893
      %v964 = vunpack.c.l.b16 %v894
      %v965 = vunpack.c.h.b16 %v894
      %v966 = vunpack.c.l.b16 %v895
      %v967 = vunpack.c.h.b16 %v895
      %v968 = vpack.c.b16 %v962, %v960
      %v969 = vpack.c.b16 %v963, %v961
      %v970 = vpack.c.b16 %v966, %v964
      %v971 = vpack.c.b16 %v967, %v965
      %v1010 = vunpack.c.l.b16 %v896
      %v1011 = vunpack.c.h.b16 %v896
      %v1012 = vunpack.c.l.b16 %v897
      %v1013 = vunpack.c.l.b16 %v898
      %v1014 = vunpack.c.h.b16 %v898
      %v1015 = vunpack.c.l.b16 %v899
      %v1016 = vunpack.c.l.b16 %v900
      %v1017 = vunpack.c.h.b16 %v900
      %v1018 = vunpack.c.l.b16 %v901
      %v1019 = vunpack.c.l.b16 %v902
      %v1020 = vunpack.c.h.b16 %v902
      %v1021 = vunpack.c.l.b16 %v903
      %v1022 = vunpack.c.l.b16 %v904
      %v1023 = vunpack.c.h.b16 %v904
      %v1024 = vunpack.c.l.b16 %v905
      %v1025 = vunpack.c.l.b16 %v906
      %v1026 = vunpack.c.h.b16 %v906
      %v1027 = vunpack.c.l.b16 %v907
      %v1028 = vunpack.c.l.b16 %v908
      %v1029 = vunpack.c.h.b16 %v908
      %v1030 = vunpack.c.l.b16 %v909
      %v1031 = vunpack.c.l.b16 %v910
      %v1032 = vunpack.c.h.b16 %v910
      %v1033 = vunpack.c.l.b16 %v911
      %v1034 = vunpack.c.l.b16 %v912
      %v1035 = vunpack.c.h.b16 %v912
      %v1036 = vunpack.c.l.b16 %v913
      %v1037 = vunpack.c.l.b16 %v914
      %v1038 = vunpack.c.h.b16 %v914
      %v1039 = vunpack.c.l.b16 %v915
      %v1040 = vunpack.c.l.b16 %v916
      %v1041 = vunpack.c.h.b16 %v916
      %v1042 = vunpack.c.l.b16 %v917
      %v1043 = vunpack.c.l.b16 %v918
      %v1044 = vunpack.c.h.b16 %v918
      %v1045 = vunpack.c.l.b16 %v919
      %v1046 = vunpack.c.l.b16 %v920
      %v1047 = vunpack.c.h.b16 %v920
      %v1048 = vunpack.c.l.b16 %v921
      %v1049 = vunpack.c.l.b16 %v922
      %v1050 = vunpack.c.h.b16 %v922
      %v1051 = vunpack.c.l.b16 %v923
      %v1052 = vunpack.c.l.b16 %v924
      %v1053 = vunpack.c.h.b16 %v924
      %v1054 = vunpack.c.l.b16 %v925
      %v1055 = vunpack.c.l.b16 %v926
      %v1056 = vunpack.c.h.b16 %v926
      %v1057 = vunpack.c.l.b16 %v927
      %v1058 = vunpack.c.l.b16 %v928
      %v1059 = vunpack.c.h.b16 %v928
      %v1060 = vunpack.c.l.b16 %v929
      %v1061 = vunpack.c.l.b16 %v930
      %v1062 = vunpack.c.h.b16 %v930
      %v1063 = vunpack.c.l.b16 %v931
      %v1064 = vpack.c.b16 %v1013, %v1010
      %v1065 = vpack.c.b16 %v1014, %v1011
      %v1066 = vpack.c.b16 %v1015, %v1012
      %v1067 = vpack.c.b16 %v1019, %v1016
      %v1068 = vpack.c.b16 %v1020, %v1017
      %v1069 = vpack.c.b16 %v1021, %v1018
      %v1070 = vpack.c.b16 %v1025, %v1022
      %v1071 = vpack.c.b16 %v1026, %v1023
      %v1072 = vpack.c.b16 %v1027, %v1024
      %v1073 = vpack.c.b16 %v1031, %v1028
      %v1074 = vpack.c.b16 %v1032, %v1029
      %v1075 = vpack.c.b16 %v1033, %v1030
      %v1076 = vpack.c.b16 %v1037, %v1034
      %v1077 = vpack.c.b16 %v1038, %v1035
      %v1078 = vpack.c.b16 %v1039, %v1036
      %v1079 = vpack.c.b16 %v1043, %v1040
      %v1080 = vpack.c.b16 %v1044, %v1041
      %v1081 = vpack.c.b16 %v1045, %v1042
      %v1082 = vpack.c.b16 %v1049, %v1046
      %v1083 = vpack.c.b16 %v1050, %v1047
      %v1084 = vpack.c.b16 %v1051, %v1048
      %v1085 = vpack.c.b16 %v1055, %v1052
      %v1086 = vpack.c.b16 %v1056, %v1053
      %v1087 = vpack.c.b16 %v1057, %v1054
      %v1088 = vpack.c.b16 %v1061, %v1058
      %v1089 = vpack.c.b16 %v1062, %v1059
      %v1090 = vpack.c.b16 %v1063, %v1060
      %vm1118 = vcmask 130048
      %v1120 = vsel %vm1118, %v969, 0
      %v1123 = vsel %vm1118, %v971, 0
      %1125 = vmatpush.bf16.msra.mxu0 %v1085
      %1126 = vmatpush.bf16.msra.mxu0 %v1082
      %1127 = vmatpush.bf16.msra.mxu0 %v1079
      %1128 = vmatpush.bf16.msra.mxu0 %v1076
      %1129 = vmatpush.bf16.msra.mxu0 %v1073
      %1130 = vmatpush.bf16.msra.mxu0 %v1070
      %1131 = vmatpush.bf16.msra.mxu0 %v1067
      %1132 = vmatpush.bf16.msra.mxu0 %v1064
      %1133 = vmatmul.bf16.gmra.mxu0 %v968
      %v1134 = vpop.f32.mrf.mxu0
      %v1135 = vadd.f32 %v939, %v1134
      %v1136 = vpop.f32.mrf.mxu0
      %v1137 = vadd.f32 %v944, %v1136
      %1138 = vmatmul.bf16.gmra.mxu0 %v970
      %v1139 = vpop.f32.mrf.mxu0
      %v1140 = vadd.f32 %v949, %v1139
      %v1141 = vpop.f32.mrf.mxu0
      %v1142 = vadd.f32 %v954, %v1141
      %1143 = vdwg.mxu0
      %1144 = vmatpush.bf16.msra.mxu0 0
      %1145 = vmatpush.bf16.msra.mxu0 0
      %1146 = vmatpush.bf16.msra.mxu0 0
      %1147 = vmatpush.bf16.msra.mxu0 0
      %1148 = vmatpush.bf16.msra.mxu0 0
      %1149 = vmatpush.bf16.msra.mxu0 0
      %1150 = vmatpush.bf16.msra.mxu0 0
      %1151 = vmatpush.bf16.msra.mxu0 %v1088
      %1152 = vmatmul.bf16.gmra.mxu0 %v1120
      %v1153 = vpop.f32.mrf.mxu0
      %v1154 = vadd.f32 %v1135, %v1153
      %v1155 = vpop.f32.mrf.mxu0
      %v1156 = vadd.f32 %v1137, %v1155
      %1157 = vmatmul.bf16.gmra.mxu0 %v1123
      %v1158 = vpop.f32.mrf.mxu0
      %v1159 = vadd.f32 %v1140, %v1158
      %v1160 = vpop.f32.mrf.mxu0
      %v1161 = vadd.f32 %v1142, %v1160
      %1162 = vdwg.mxu0
      %1163 = vmatpush.bf16.msra.mxu0 %v1086
      %1164 = vmatpush.bf16.msra.mxu0 %v1083
      %1165 = vmatpush.bf16.msra.mxu0 %v1080
      %1166 = vmatpush.bf16.msra.mxu0 %v1077
      %1167 = vmatpush.bf16.msra.mxu0 %v1074
      %1168 = vmatpush.bf16.msra.mxu0 %v1071
      %1169 = vmatpush.bf16.msra.mxu0 %v1068
      %1170 = vmatpush.bf16.msra.mxu0 %v1065
      %1171 = vmatmul.bf16.gmra.mxu0 %v968
      %v1172 = vpop.f32.mrf.mxu0
      %v1173 = vadd.f32 %v939, %v1172
      %v1174 = vpop.f32.mrf.mxu0
      %v1175 = vadd.f32 %v944, %v1174
      %1176 = vmatmul.bf16.gmra.mxu0 %v970
      %v1177 = vpop.f32.mrf.mxu0
      %v1178 = vadd.f32 %v949, %v1177
      %v1179 = vpop.f32.mrf.mxu0
      %v1180 = vadd.f32 %v954, %v1179
      %1181 = vdwg.mxu0
      %1182 = vmatpush.bf16.msra.mxu0 0
      %1183 = vmatpush.bf16.msra.mxu0 0
      %1184 = vmatpush.bf16.msra.mxu0 0
      %1185 = vmatpush.bf16.msra.mxu0 0
      %1186 = vmatpush.bf16.msra.mxu0 0
      %1187 = vmatpush.bf16.msra.mxu0 0
      %1188 = vmatpush.bf16.msra.mxu0 0
      %1189 = vmatpush.bf16.msra.mxu0 %v1089
      %1190 = vmatmul.bf16.gmra.mxu0 %v1120
      %v1191 = vpop.f32.mrf.mxu0
      %v1192 = vadd.f32 %v1173, %v1191
      %v1193 = vpop.f32.mrf.mxu0
      %v1194 = vadd.f32 %v1175, %v1193
      %1195 = vmatmul.bf16.gmra.mxu0 %v1123
      %v1196 = vpop.f32.mrf.mxu0
      %v1197 = vadd.f32 %v1178, %v1196
      %v1198 = vpop.f32.mrf.mxu0
      %v1199 = vadd.f32 %v1180, %v1198
      %1200 = vdwg.mxu0
      %1201 = vmatpush.bf16.msra.mxu0 %v1087
      %1202 = vmatpush.bf16.msra.mxu0 %v1084
      %1203 = vmatpush.bf16.msra.mxu0 %v1081
      %1204 = vmatpush.bf16.msra.mxu0 %v1078
      %1205 = vmatpush.bf16.msra.mxu0 %v1075
      %1206 = vmatpush.bf16.msra.mxu0 %v1072
      %1207 = vmatpush.bf16.msra.mxu0 %v1069
      %1208 = vmatpush.bf16.msra.mxu0 %v1066
      %1209 = vmatmul.bf16.gmra.mxu0 %v968
      %v1210 = vpop.f32.mrf.mxu0
      %v1211 = vadd.f32 %v939, %v1210
      %v1212 = vpop.f32.mrf.mxu0
      %v1213 = vadd.f32 %v944, %v1212
      %1214 = vmatmul.bf16.gmra.mxu0 %v970
      %v1215 = vpop.f32.mrf.mxu0
      %v1216 = vadd.f32 %v949, %v1215
      %v1217 = vpop.f32.mrf.mxu0
      %v1218 = vadd.f32 %v954, %v1217
      %1219 = vdwg.mxu0
      %1220 = vmatpush.bf16.msra.mxu0 0
      %1221 = vmatpush.bf16.msra.mxu0 0
      %1222 = vmatpush.bf16.msra.mxu0 0
      %1223 = vmatpush.bf16.msra.mxu0 0
      %1224 = vmatpush.bf16.msra.mxu0 0
      %1225 = vmatpush.bf16.msra.mxu0 0
      %1226 = vmatpush.bf16.msra.mxu0 0
      %1227 = vmatpush.bf16.msra.mxu0 %v1090
      %1228 = vmatmul.bf16.gmra.mxu0 %v1120
      %v1229 = vpop.f32.mrf.mxu0
      %v1230 = vadd.f32 %v1211, %v1229
      %v1231 = vpop.f32.mrf.mxu0
      %v1232 = vadd.f32 %v1213, %v1231
      %1233 = vmatmul.bf16.gmra.mxu0 %v1123
      %v1234 = vpop.f32.mrf.mxu0
      %v1235 = vadd.f32 %v1216, %v1234
      %v1236 = vpop.f32.mrf.mxu0
      %v1237 = vadd.f32 %v1218, %v1236
      %1238 = vdwg.mxu0
      %v1239 = vmax.f32 %v1154, 0.0
      %v1240 = vmax.f32 %v1192, 0.0
      %v1241 = vmax.f32 %v1230, 0.0
      %v1242 = vmax.f32 %v1156, 0.0
      %v1243 = vmax.f32 %v1194, 0.0
      %v1244 = vmax.f32 %v1232, 0.0
      %v1245 = vmax.f32 %v1159, 0.0
      %v1246 = vmax.f32 %v1197, 0.0
      %v1247 = vmax.f32 %v1235, 0.0
      %v1248 = vmax.f32 %v1161, 0.0
      %v1249 = vmax.f32 %v1199, 0.0
      %v1250 = vmax.f32 %v1237, 0.0
      %v1252 = vperm.slane %v602, 0
      %v1253 = vperm.slane %v602, 1
      %v1254 = vperm.slane %v602, 2
      %v1258 = vmul.f32 %v1239, %v1252
      %v1259 = vmul.f32 %v1240, %v1253
      %v1260 = vmul.f32 %v1241, %v1254
      %v1261 = vmul.f32 %v1242, %v1252
      %v1262 = vmul.f32 %v1243, %v1253
      %v1263 = vmul.f32 %v1244, %v1254
      %v1264 = vmul.f32 %v1245, %v1252
      %v1265 = vmul.f32 %v1246, %v1253
      %v1266 = vmul.f32 %v1247, %v1254
      %v1267 = vmul.f32 %v1248, %v1252
      %v1268 = vmul.f32 %v1249, %v1253
      %v1269 = vmul.f32 %v1250, %v1254
      %v1270 = vpack.c.bf16 %v1259, %v1258
      %v1271 = vpack.c.bf16 %v1260, %v1260
      %v1272 = vpack.c.bf16 %v1262, %v1261
      %v1273 = vpack.c.bf16 %v1263, %v1263
      %v1274 = vpack.c.bf16 %v1265, %v1264
      %v1275 = vpack.c.bf16 %v1266, %v1266
      %v1276 = vpack.c.bf16 %v1268, %v1267
      %v1277 = vpack.c.bf16 %v1269, %v1269
      %1278 = vst [vmem:[#allocation2 + $0x2c] sm:$0xff] %v1270
      %1279 = vst [vmem:[#allocation2 + $0x34] sm:$0xf] %v1271
      %1280 = vst [vmem:[#allocation2 + $0x40] sm:$0xff] %v1272
      %1281 = vst [vmem:[#allocation2 + $0x48] sm:$0xf] %v1273
      %1282 = vst [vmem:[#allocation2 + $0x54] sm:$0xff] %v1274
      %1283 = vst [vmem:[#allocation2 + $0x5c] sm:$0xf] %v1275
      %1284 = vst [vmem:[#allocation2 + $0x68] sm:$0xff] %v1276
      %1285 = vst [vmem:[#allocation2 + $0x70] sm:$0xf] %v1277
      %v1286 = vld [vmem:[#allocation2 + $0x28] sm:$0xff]
      %v1287 = vld [vmem:[#allocation2 + $0x30] sm:$0xff]
      %v1288 = vld [vmem:[#allocation2 + $0x3c] sm:$0xff]
      %v1289 = vld [vmem:[#allocation2 + $0x44] sm:$0xff]
      %v1290 = vld [vmem:[#allocation2 + $0x50] sm:$0xff]
      %v1291 = vld [vmem:[#allocation2 + $0x58] sm:$0xff]
      %v1292 = vld [vmem:[#allocation2 + $0x64] sm:$0xff]
      %v1293 = vld [vmem:[#allocation2 + $0x6c] sm:$0xff]
      %1302 = vrot.lane.b32.xlu0 %v1286, 19
      %v1303 = vpop.permute.xlu0 %1302
      %1304 = vrot.lane.b32.xlu0 %v1287, 19
      %v1305 = vpop.permute.xlu0 %1304
      %1306 = vrot.lane.b32.xlu0 %v1288, 19
      %v1307 = vpop.permute.xlu0 %1306
      %1308 = vrot.lane.b32.xlu0 %v1289, 19
      %v1309 = vpop.permute.xlu0 %1308
      %1310 = vrot.lane.b32.xlu0 %v1290, 19
      %v1311 = vpop.permute.xlu0 %1310
      %1312 = vrot.lane.b32.xlu0 %v1291, 19
      %v1313 = vpop.permute.xlu0 %1312
      %1314 = vrot.lane.b32.xlu0 %v1292, 19
      %v1315 = vpop.permute.xlu0 %1314
      %1316 = vrot.lane.b32.xlu0 %v1293, 19
      %v1317 = vpop.permute.xlu0 %1316
      %v1318 = vrot.slane %v1303, 4
      %v1319 = vrot.slane %v1305, 4
      %v1320 = vrot.slane %v1307, 4
      %v1321 = vrot.slane %v1309, 4
      %v1322 = vrot.slane %v1311, 4
      %v1323 = vrot.slane %v1313, 4
      %v1324 = vrot.slane %v1315, 4
      %v1325 = vrot.slane %v1317, 4
      %v1326 = vsel %vm623, %v1318, %v1319
      %v1327 = vsel %vm625, %v1303, %v1326
      %v1328 = vsel %vm625, %v1305, %v1319
      %v1329 = vsel %vm623, %v1320, %v1321
      %v1330 = vsel %vm625, %v1307, %v1329
      %v1331 = vsel %vm625, %v1309, %v1321
      %v1332 = vsel %vm623, %v1322, %v1323
      %v1333 = vsel %vm625, %v1311, %v1332
      %v1334 = vsel %vm625, %v1313, %v1323
      %v1335 = vsel %vm623, %v1324, %v1325
      %v1336 = vsel %vm625, %v1315, %v1335
      %v1337 = vsel %vm625, %v1317, %v1325
      %1346 = vst [vmem:[#allocation3] sm:$0xff] %v1327
      %1347 = vst [vmem:[#allocation3 + $0x8] sm:$0xf] %v1328
      %1348 = vst [vmem:[#allocation3 + $0xc] sm:$0xff] %v1330
      %1349 = vst [vmem:[#allocation3 + $0x14] sm:$0xf] %v1331
      %1350 = vst [vmem:[#allocation3 + $0x18] sm:$0xff] %v1333
      %1351 = vst [vmem:[#allocation3 + $0x20] sm:$0xf] %v1334
      %1352 = vst [vmem:[#allocation3 + $0x24] sm:$0xff] %v1336
      %1353 = vst [vmem:[#allocation3 + $0x2c] sm:$0xf] %v1337
      %v1354 = vld [vmem:[#allocation2 + $0x28] sm:$0xff]
      %v1355 = vld [vmem:[#allocation2 + $0x30] sm:$0xff]
      %v1356 = vld [vmem:[#allocation2 + $0x3c] sm:$0xff]
      %v1357 = vld [vmem:[#allocation2 + $0x44] sm:$0xff]
      %v1358 = vld [vmem:[#allocation2 + $0x50] sm:$0xff]
      %v1359 = vld [vmem:[#allocation2 + $0x58] sm:$0xff]
      %v1360 = vld [vmem:[#allocation2 + $0x64] sm:$0xff]
      %v1361 = vld [vmem:[#allocation2 + $0x6c] sm:$0xff]
      %1370 = vrot.lane.b32.xlu0 %v1354, 18
      %v1371 = vpop.permute.xlu0 %1370
      %1372 = vrot.lane.b32.xlu0 %v1355, 18
      %v1373 = vpop.permute.xlu0 %1372
      %1374 = vrot.lane.b32.xlu0 %v1356, 18
      %v1375 = vpop.permute.xlu0 %1374
      %1376 = vrot.lane.b32.xlu0 %v1357, 18
      %v1377 = vpop.permute.xlu0 %1376
      %1378 = vrot.lane.b32.xlu0 %v1358, 18
      %v1379 = vpop.permute.xlu0 %1378
      %1380 = vrot.lane.b32.xlu0 %v1359, 18
      %v1381 = vpop.permute.xlu0 %1380
      %1382 = vrot.lane.b32.xlu0 %v1360, 18
      %v1383 = vpop.permute.xlu0 %1382
      %1384 = vrot.lane.b32.xlu0 %v1361, 18
      %v1385 = vpop.permute.xlu0 %1384
      %v1386 = vrot.slane %v1371, 4
      %v1387 = vrot.slane %v1373, 4
      %v1388 = vrot.slane %v1375, 4
      %v1389 = vrot.slane %v1377, 4
      %v1390 = vrot.slane %v1379, 4
      %v1391 = vrot.slane %v1381, 4
      %v1392 = vrot.slane %v1383, 4
      %v1393 = vrot.slane %v1385, 4
      %v1394 = vsel %vm623, %v1386, %v1387
      %v1395 = vsel %vm660, %v1371, %v1394
      %v1396 = vsel %vm660, %v1373, %v1387
      %v1397 = vsel %vm623, %v1388, %v1389
      %v1398 = vsel %vm660, %v1375, %v1397
      %v1399 = vsel %vm660, %v1377, %v1389
      %v1400 = vsel %vm623, %v1390, %v1391
      %v1401 = vsel %vm660, %v1379, %v1400
      %v1402 = vsel %vm660, %v1381, %v1391
      %v1403 = vsel %vm623, %v1392, %v1393
      %v1404 = vsel %vm660, %v1383, %v1403
      %v1405 = vsel %vm660, %v1385, %v1393
      %1414 = vst [vmem:[#allocation3 + $0x30] sm:$0xff] %v1395
      %1415 = vst [vmem:[#allocation3 + $0x38] sm:$0xf] %v1396
      %1416 = vst [vmem:[#allocation3 + $0x3c] sm:$0xff] %v1398
      %1417 = vst [vmem:[#allocation3 + $0x44] sm:$0xf] %v1399
      %1418 = vst [vmem:[#allocation3 + $0x48] sm:$0xff] %v1401
      %1419 = vst [vmem:[#allocation3 + $0x50] sm:$0xf] %v1402
      %1420 = vst [vmem:[#allocation3 + $0x54] sm:$0xff] %v1404
      %1421 = vst [vmem:[#allocation3 + $0x5c] sm:$0xf] %v1405
      %v1422 = vld [vmem:[#allocation2 + $0x28] sm:$0xff]
      %v1423 = vld [vmem:[#allocation2 + $0x30] sm:$0xff]
      %v1424 = vld [vmem:[#allocation2 + $0x3c] sm:$0xff]
      %v1425 = vld [vmem:[#allocation2 + $0x44] sm:$0xff]
      %v1426 = vld [vmem:[#allocation2 + $0x50] sm:$0xff]
      %v1427 = vld [vmem:[#allocation2 + $0x58] sm:$0xff]
      %v1428 = vld [vmem:[#allocation2 + $0x64] sm:$0xff]
      %v1429 = vld [vmem:[#allocation2 + $0x6c] sm:$0xff]
      %1438 = vrot.lane.b32.xlu0 %v1422, 17
      %v1439 = vpop.permute.xlu0 %1438
      %1440 = vrot.lane.b32.xlu0 %v1423, 17
      %v1441 = vpop.permute.xlu0 %1440
      %1442 = vrot.lane.b32.xlu0 %v1424, 17
      %v1443 = vpop.permute.xlu0 %1442
      %1444 = vrot.lane.b32.xlu0 %v1425, 17
      %v1445 = vpop.permute.xlu0 %1444
      %1446 = vrot.lane.b32.xlu0 %v1426, 17
      %v1447 = vpop.permute.xlu0 %1446
      %1448 = vrot.lane.b32.xlu0 %v1427, 17
      %v1449 = vpop.permute.xlu0 %1448
      %1450 = vrot.lane.b32.xlu0 %v1428, 17
      %v1451 = vpop.permute.xlu0 %1450
      %1452 = vrot.lane.b32.xlu0 %v1429, 17
      %v1453 = vpop.permute.xlu0 %1452
      %v1454 = vrot.slane %v1439, 4
      %v1455 = vrot.slane %v1441, 4
      %v1456 = vrot.slane %v1443, 4
      %v1457 = vrot.slane %v1445, 4
      %v1458 = vrot.slane %v1447, 4
      %v1459 = vrot.slane %v1449, 4
      %v1460 = vrot.slane %v1451, 4
      %v1461 = vrot.slane %v1453, 4
      %v1462 = vsel %vm623, %v1454, %v1455
      %v1463 = vsel %vm695, %v1439, %v1462
      %v1464 = vsel %vm695, %v1441, %v1455
      %v1465 = vsel %vm623, %v1456, %v1457
      %v1466 = vsel %vm695, %v1443, %v1465
      %v1467 = vsel %vm695, %v1445, %v1457
      %v1468 = vsel %vm623, %v1458, %v1459
      %v1469 = vsel %vm695, %v1447, %v1468
      %v1470 = vsel %vm695, %v1449, %v1459
      %v1471 = vsel %vm623, %v1460, %v1461
      %v1472 = vsel %vm695, %v1451, %v1471
      %v1473 = vsel %vm695, %v1453, %v1461
      %1482 = vst [vmem:[#allocation3 + $0x60] sm:$0xff] %v1463
      %1483 = vst [vmem:[#allocation3 + $0x68] sm:$0xf] %v1464
      %1484 = vst [vmem:[#allocation3 + $0x6c] sm:$0xff] %v1466
      %1485 = vst [vmem:[#allocation3 + $0x74] sm:$0xf] %v1467
      %1486 = vst [vmem:[#allocation3 + $0x78] sm:$0xff] %v1469
      %1487 = vst [vmem:[#allocation3 + $0x80] sm:$0xf] %v1470
      %1488 = vst [vmem:[#allocation3 + $0x84] sm:$0xff] %v1472
      %1489 = vst [vmem:[#allocation3 + $0x8c] sm:$0xf] %v1473
      %v1490 = vld [vmem:[#allocation2 + $0x28] sm:$0xff]
      %v1491 = vld [vmem:[#allocation2 + $0x30] sm:$0xff]
      %v1492 = vld [vmem:[#allocation2 + $0x3c] sm:$0xff]
      %v1493 = vld [vmem:[#allocation2 + $0x44] sm:$0xff]
      %v1494 = vld [vmem:[#allocation2 + $0x50] sm:$0xff]
      %v1495 = vld [vmem:[#allocation2 + $0x58] sm:$0xff]
      %v1496 = vld [vmem:[#allocation2 + $0x64] sm:$0xff]
      %v1497 = vld [vmem:[#allocation2 + $0x6c] sm:$0xff]
      %1506 = vrot.lane.b32.xlu0 %v1490, 1
      %v1507 = vpop.permute.xlu0 %1506
      %1508 = vrot.lane.b32.xlu0 %v1491, 1
      %v1509 = vpop.permute.xlu0 %1508
      %1510 = vrot.lane.b32.xlu0 %v1492, 1
      %v1511 = vpop.permute.xlu0 %1510
      %1512 = vrot.lane.b32.xlu0 %v1493, 1
      %v1513 = vpop.permute.xlu0 %1512
      %1514 = vrot.lane.b32.xlu0 %v1494, 1
      %v1515 = vpop.permute.xlu0 %1514
      %1516 = vrot.lane.b32.xlu0 %v1495, 1
      %v1517 = vpop.permute.xlu0 %1516
      %1518 = vrot.lane.b32.xlu0 %v1496, 1
      %v1519 = vpop.permute.xlu0 %1518
      %1520 = vrot.lane.b32.xlu0 %v1497, 1
      %v1521 = vpop.permute.xlu0 %1520
      %v1522 = vrot.slane %v1507, 4
      %v1523 = vrot.slane %v1509, 4
      %v1524 = vrot.slane %v1511, 4
      %v1525 = vrot.slane %v1513, 4
      %v1526 = vrot.slane %v1515, 4
      %v1527 = vrot.slane %v1517, 4
      %v1528 = vrot.slane %v1519, 4
      %v1529 = vrot.slane %v1521, 4
      %v1530 = vsel %vm623, %v1522, %v1523
      %v1531 = vsel %vm730, %v1507, %v1530
      %v1532 = vsel %vm730, %v1509, %v1523
      %v1533 = vsel %vm623, %v1524, %v1525
      %v1534 = vsel %vm730, %v1511, %v1533
      %v1535 = vsel %vm730, %v1513, %v1525
      %v1536 = vsel %vm623, %v1526, %v1527
      %v1537 = vsel %vm730, %v1515, %v1536
      %v1538 = vsel %vm730, %v1517, %v1527
      %v1539 = vsel %vm623, %v1528, %v1529
      %v1540 = vsel %vm730, %v1519, %v1539
      %v1541 = vsel %vm730, %v1521, %v1529
      %1550 = vst [vmem:[#allocation3 + $0x90] sm:$0xff] %v1531
      %1551 = vst [vmem:[#allocation3 + $0x98] sm:$0xf] %v1532
      %1552 = vst [vmem:[#allocation3 + $0x9c] sm:$0xff] %v1534
      %1553 = vst [vmem:[#allocation3 + $0xa4] sm:$0xf] %v1535
      %1554 = vst [vmem:[#allocation3 + $0xa8] sm:$0xff] %v1537
      %1555 = vst [vmem:[#allocation3 + $0xb0] sm:$0xf] %v1538
      %1556 = vst [vmem:[#allocation3 + $0xb4] sm:$0xff] %v1540
      %1557 = vst [vmem:[#allocation3 + $0xbc] sm:$0xf] %v1541
      %v1558 = vld [vmem:[#allocation2 + $0x2c] sm:$0xff]
      %v1559 = vld [vmem:[#allocation2 + $0x34] sm:$0xf]
      %v1560 = vld [vmem:[#allocation2 + $0x40] sm:$0xff]
      %v1561 = vld [vmem:[#allocation2 + $0x48] sm:$0xf]
      %v1562 = vld [vmem:[#allocation2 + $0x54] sm:$0xff]
      %v1563 = vld [vmem:[#allocation2 + $0x5c] sm:$0xf]
      %v1564 = vld [vmem:[#allocation2 + $0x68] sm:$0xff]
      %v1565 = vld [vmem:[#allocation2 + $0x70] sm:$0xf]
      %1566 = vst [vmem:[#allocation3 + $0xc0] sm:$0xff] %v1558
      %1567 = vst [vmem:[#allocation3 + $0xc8] sm:$0xf] %v1559
      %1568 = vst [vmem:[#allocation3 + $0xcc] sm:$0xff] %v1560
      %1569 = vst [vmem:[#allocation3 + $0xd4] sm:$0xf] %v1561
      %1570 = vst [vmem:[#allocation3 + $0xd8] sm:$0xff] %v1562
      %1571 = vst [vmem:[#allocation3 + $0xe0] sm:$0xf] %v1563
      %1572 = vst [vmem:[#allocation3 + $0xe4] sm:$0xff] %v1564
      %1573 = vst [vmem:[#allocation3 + $0xec] sm:$0xf] %v1565
      %v1574 = vld [vmem:[#allocation2 + $0x2c] sm:$0xff]
      %v1575 = vld [vmem:[#allocation2 + $0x34] sm:$0xff]
      %v1576 = vld [vmem:[#allocation2 + $0x40] sm:$0xff]
      %v1577 = vld [vmem:[#allocation2 + $0x48] sm:$0xff]
      %v1578 = vld [vmem:[#allocation2 + $0x54] sm:$0xff]
      %v1579 = vld [vmem:[#allocation2 + $0x5c] sm:$0xff]
      %v1580 = vld [vmem:[#allocation2 + $0x68] sm:$0xff]
      %v1581 = vld [vmem:[#allocation2 + $0x70] sm:$0xff]
      %1590 = vrot.lane.b32.xlu0 %v1574, 127
      %v1591 = vpop.permute.xlu0 %1590
      %1592 = vrot.lane.b32.xlu0 %v1575, 127
      %v1593 = vpop.permute.xlu0 %1592
      %1594 = vrot.lane.b32.xlu0 %v1576, 127
      %v1595 = vpop.permute.xlu0 %1594
      %1596 = vrot.lane.b32.xlu0 %v1577, 127
      %v1597 = vpop.permute.xlu0 %1596
      %1598 = vrot.lane.b32.xlu0 %v1578, 127
      %v1599 = vpop.permute.xlu0 %1598
      %1600 = vrot.lane.b32.xlu0 %v1579, 127
      %v1601 = vpop.permute.xlu0 %1600
      %1602 = vrot.lane.b32.xlu0 %v1580, 127
      %v1603 = vpop.permute.xlu0 %1602
      %1604 = vrot.lane.b32.xlu0 %v1581, 127
      %v1605 = vpop.permute.xlu0 %1604
      %v1606 = vrot.slane %v1591, 4
      %v1607 = vrot.slane %v1593, 4
      %v1608 = vrot.slane %v1595, 4
      %v1609 = vrot.slane %v1597, 4
      %v1610 = vrot.slane %v1599, 4
      %v1611 = vrot.slane %v1601, 4
      %v1612 = vrot.slane %v1603, 4
      %v1613 = vrot.slane %v1605, 4
      %v1614 = vsel %vm623, %v1606, %v1607
      %v1615 = vsel %vm773, %v1591, %v1614
      %v1616 = vsel %vm773, %v1593, %v1607
      %v1617 = vsel %vm623, %v1608, %v1609
      %v1618 = vsel %vm773, %v1595, %v1617
      %v1619 = vsel %vm773, %v1597, %v1609
      %v1620 = vsel %vm623, %v1610, %v1611
      %v1621 = vsel %vm773, %v1599, %v1620
      %v1622 = vsel %vm773, %v1601, %v1611
      %v1623 = vsel %vm623, %v1612, %v1613
      %v1624 = vsel %vm773, %v1603, %v1623
      %v1625 = vsel %vm773, %v1605, %v1613
      %1634 = vst [vmem:[#allocation3 + $0xf0] sm:$0xff] %v1615
      %1635 = vst [vmem:[#allocation3 + $0xf8] sm:$0xf] %v1616
      %1636 = vst [vmem:[#allocation3 + $0xfc] sm:$0xff] %v1618
      %1637 = vst [vmem:[#allocation3 + $0x104] sm:$0xf] %v1619
      %1638 = vst [vmem:[#allocation3 + $0x108] sm:$0xff] %v1621
      %1639 = vst [vmem:[#allocation3 + $0x110] sm:$0xf] %v1622
      %1640 = vst [vmem:[#allocation3 + $0x114] sm:$0xff] %v1624
      %1641 = vst [vmem:[#allocation3 + $0x11c] sm:$0xf] %v1625
      %v1642 = vld [vmem:[#allocation2 + $0x2c] sm:$0xff]
      %v1643 = vld [vmem:[#allocation2 + $0x34] sm:$0xff]
      %v1644 = vld [vmem:[#allocation2 + $0x40] sm:$0xff]
      %v1645 = vld [vmem:[#allocation2 + $0x48] sm:$0xff]
      %v1646 = vld [vmem:[#allocation2 + $0x54] sm:$0xff]
      %v1647 = vld [vmem:[#allocation2 + $0x5c] sm:$0xff]
      %v1648 = vld [vmem:[#allocation2 + $0x68] sm:$0xff]
      %v1649 = vld [vmem:[#allocation2 + $0x70] sm:$0xff]
      %1658 = vrot.lane.b32.xlu0 %v1642, 111
      %v1659 = vpop.permute.xlu0 %1658
      %1660 = vrot.lane.b32.xlu0 %v1643, 111
      %v1661 = vpop.permute.xlu0 %1660
      %1662 = vrot.lane.b32.xlu0 %v1644, 111
      %v1663 = vpop.permute.xlu0 %1662
      %1664 = vrot.lane.b32.xlu0 %v1645, 111
      %v1665 = vpop.permute.xlu0 %1664
      %1666 = vrot.lane.b32.xlu0 %v1646, 111
      %v1667 = vpop.permute.xlu0 %1666
      %1668 = vrot.lane.b32.xlu0 %v1647, 111
      %v1669 = vpop.permute.xlu0 %1668
      %1670 = vrot.lane.b32.xlu0 %v1648, 111
      %v1671 = vpop.permute.xlu0 %1670
      %1672 = vrot.lane.b32.xlu0 %v1649, 111
      %v1673 = vpop.permute.xlu0 %1672
      %v1674 = vrot.slane %v1659, 4
      %v1675 = vrot.slane %v1661, 4
      %v1676 = vrot.slane %v1663, 4
      %v1677 = vrot.slane %v1665, 4
      %v1678 = vrot.slane %v1667, 4
      %v1679 = vrot.slane %v1669, 4
      %v1680 = vrot.slane %v1671, 4
      %v1681 = vrot.slane %v1673, 4
      %v1682 = vsel %vm623, %v1674, %v1675
      %v1683 = vsel %vm808, %v1659, %v1682
      %v1684 = vsel %vm808, %v1661, %v1675
      %v1685 = vsel %vm623, %v1676, %v1677
      %v1686 = vsel %vm808, %v1663, %v1685
      %v1687 = vsel %vm808, %v1665, %v1677
      %v1688 = vsel %vm623, %v1678, %v1679
      %v1689 = vsel %vm808, %v1667, %v1688
      %v1690 = vsel %vm808, %v1669, %v1679
      %v1691 = vsel %vm623, %v1680, %v1681
      %v1692 = vsel %vm808, %v1671, %v1691
      %v1693 = vsel %vm808, %v1673, %v1681
      %1702 = vst [vmem:[#allocation3 + $0x120] sm:$0xff] %v1683
      %1703 = vst [vmem:[#allocation3 + $0x128] sm:$0xf] %v1684
      %1704 = vst [vmem:[#allocation3 + $0x12c] sm:$0xff] %v1686
      %1705 = vst [vmem:[#allocation3 + $0x134] sm:$0xf] %v1687
      %1706 = vst [vmem:[#allocation3 + $0x138] sm:$0xff] %v1689
      %1707 = vst [vmem:[#allocation3 + $0x140] sm:$0xf] %v1690
      %1708 = vst [vmem:[#allocation3 + $0x144] sm:$0xff] %v1692
      %1709 = vst [vmem:[#allocation3 + $0x14c] sm:$0xf] %v1693
      %v1710 = vld [vmem:[#allocation2 + $0x2c] sm:$0xff]
      %v1711 = vld [vmem:[#allocation2 + $0x34] sm:$0xff]
      %v1712 = vld [vmem:[#allocation2 + $0x40] sm:$0xff]
      %v1713 = vld [vmem:[#allocation2 + $0x48] sm:$0xff]
      %v1714 = vld [vmem:[#allocation2 + $0x54] sm:$0xff]
      %v1715 = vld [vmem:[#allocation2 + $0x5c] sm:$0xff]
      %v1716 = vld [vmem:[#allocation2 + $0x68] sm:$0xff]
      %v1717 = vld [vmem:[#allocation2 + $0x70] sm:$0xff]
      %1726 = vrot.lane.b32.xlu0 %v1710, 110
      %v1727 = vpop.permute.xlu0 %1726
      %1728 = vrot.lane.b32.xlu0 %v1711, 110
      %v1729 = vpop.permute.xlu0 %1728
      %1730 = vrot.lane.b32.xlu0 %v1712, 110
      %v1731 = vpop.permute.xlu0 %1730
      %1732 = vrot.lane.b32.xlu0 %v1713, 110
      %v1733 = vpop.permute.xlu0 %1732
      %1734 = vrot.lane.b32.xlu0 %v1714, 110
      %v1735 = vpop.permute.xlu0 %1734
      %1736 = vrot.lane.b32.xlu0 %v1715, 110
      %v1737 = vpop.permute.xlu0 %1736
      %1738 = vrot.lane.b32.xlu0 %v1716, 110
      %v1739 = vpop.permute.xlu0 %1738
      %1740 = vrot.lane.b32.xlu0 %v1717, 110
      %v1741 = vpop.permute.xlu0 %1740
      %v1742 = vrot.slane %v1727, 4
      %v1743 = vrot.slane %v1729, 4
      %v1744 = vrot.slane %v1731, 4
      %v1745 = vrot.slane %v1733, 4
      %v1746 = vrot.slane %v1735, 4
      %v1747 = vrot.slane %v1737, 4
      %v1748 = vrot.slane %v1739, 4
      %v1749 = vrot.slane %v1741, 4
      %v1750 = vsel %vm623, %v1742, %v1743
      %v1751 = vsel %vm843, %v1727, %v1750
      %v1752 = vsel %vm843, %v1729, %v1743
      %v1753 = vsel %vm623, %v1744, %v1745
      %v1754 = vsel %vm843, %v1731, %v1753
      %v1755 = vsel %vm843, %v1733, %v1745
      %v1756 = vsel %vm623, %v1746, %v1747
      %v1757 = vsel %vm843, %v1735, %v1756
      %v1758 = vsel %vm843, %v1737, %v1747
      %v1759 = vsel %vm623, %v1748, %v1749
      %v1760 = vsel %vm843, %v1739, %v1759
      %v1761 = vsel %vm843, %v1741, %v1749
      %1770 = vst [vmem:[#allocation3 + $0x150] sm:$0xff] %v1751
      %1771 = vst [vmem:[#allocation3 + $0x158] sm:$0xf] %v1752
      %1772 = vst [vmem:[#allocation3 + $0x15c] sm:$0xff] %v1754
      %1773 = vst [vmem:[#allocation3 + $0x164] sm:$0xf] %v1755
      %1774 = vst [vmem:[#allocation3 + $0x168] sm:$0xff] %v1757
      %1775 = vst [vmem:[#allocation3 + $0x170] sm:$0xf] %v1758
      %1776 = vst [vmem:[#allocation3 + $0x174] sm:$0xff] %v1760
      %1777 = vst [vmem:[#allocation3 + $0x17c] sm:$0xf] %v1761
      %v1778 = vld [vmem:[#allocation2 + $0x2c] sm:$0xff]
      %v1779 = vld [vmem:[#allocation2 + $0x34] sm:$0xff]
      %v1780 = vld [vmem:[#allocation2 + $0x40] sm:$0xff]
      %v1781 = vld [vmem:[#allocation2 + $0x48] sm:$0xff]
      %v1782 = vld [vmem:[#allocation2 + $0x54] sm:$0xff]
      %v1783 = vld [vmem:[#allocation2 + $0x5c] sm:$0xff]
      %v1784 = vld [vmem:[#allocation2 + $0x68] sm:$0xff]
      %v1785 = vld [vmem:[#allocation2 + $0x70] sm:$0xff]
      %1794 = vrot.lane.b32.xlu0 %v1778, 109
      %v1795 = vpop.permute.xlu0 %1794
      %1796 = vrot.lane.b32.xlu0 %v1779, 109
      %v1797 = vpop.permute.xlu0 %1796
      %1798 = vrot.lane.b32.xlu0 %v1780, 109
      %v1799 = vpop.permute.xlu0 %1798
      %1800 = vrot.lane.b32.xlu0 %v1781, 109
      %v1801 = vpop.permute.xlu0 %1800
      %1802 = vrot.lane.b32.xlu0 %v1782, 109
      %v1803 = vpop.permute.xlu0 %1802
      %1804 = vrot.lane.b32.xlu0 %v1783, 109
      %v1805 = vpop.permute.xlu0 %1804
      %1806 = vrot.lane.b32.xlu0 %v1784, 109
      %v1807 = vpop.permute.xlu0 %1806
      %1808 = vrot.lane.b32.xlu0 %v1785, 109
      %v1809 = vpop.permute.xlu0 %1808
      %v1810 = vrot.slane %v1795, 4
      %v1811 = vrot.slane %v1797, 4
      %v1812 = vrot.slane %v1799, 4
      %v1813 = vrot.slane %v1801, 4
      %v1814 = vrot.slane %v1803, 4
      %v1815 = vrot.slane %v1805, 4
      %v1816 = vrot.slane %v1807, 4
      %v1817 = vrot.slane %v1809, 4
      %v1818 = vsel %vm623, %v1810, %v1811
      %v1819 = vsel %vm878, %v1795, %v1818
      %v1820 = vsel %vm878, %v1797, %v1811
      %v1821 = vsel %vm623, %v1812, %v1813
      %v1822 = vsel %vm878, %v1799, %v1821
      %v1823 = vsel %vm878, %v1801, %v1813
      %v1824 = vsel %vm623, %v1814, %v1815
      %v1825 = vsel %vm878, %v1803, %v1824
      %v1826 = vsel %vm878, %v1805, %v1815
      %v1827 = vsel %vm623, %v1816, %v1817
      %v1828 = vsel %vm878, %v1807, %v1827
      %v1829 = vsel %vm878, %v1809, %v1817
      %1838 = vst [vmem:[#allocation3 + $0x180] sm:$0xff] %v1819
      %1839 = vst [vmem:[#allocation3 + $0x188] sm:$0xf] %v1820
      %1840 = vst [vmem:[#allocation3 + $0x18c] sm:$0xff] %v1822
      %1841 = vst [vmem:[#allocation3 + $0x194] sm:$0xf] %v1823
      %1842 = vst [vmem:[#allocation3 + $0x198] sm:$0xff] %v1825
      %1843 = vst [vmem:[#allocation3 + $0x1a0] sm:$0xf] %v1826
      %1844 = vst [vmem:[#allocation3 + $0x1a4] sm:$0xff] %v1828
      %1845 = vst [vmem:[#allocation3 + $0x1ac] sm:$0xf] %v1829
      %v1846 = vld [vmem:[%s5] sm:$0xff]
      %v1847 = vld [vmem:[%s5 + $0x8] sm:$0xf]
      %v1848 = vld [vmem:[%s5 + $0xc] sm:$0xff]
      %v1849 = vld [vmem:[%s5 + $0x14] sm:$0xf]
      %v1850 = vld [vmem:[%s5 + $0x18] sm:$0xff]
      %v1851 = vld [vmem:[%s5 + $0x20] sm:$0xf]
      %v1852 = vld [vmem:[%s5 + $0x24] sm:$0xff]
      %v1853 = vld [vmem:[%s5 + $0x2c] sm:$0xf]
      %v1854 = vld [vmem:[#allocation3] sm:$0xff]
      %v1855 = vld [vmem:[#allocation3 + $0x8] sm:$0xf]
      %v1856 = vld [vmem:[#allocation3 + $0xc] sm:$0xff]
      %v1857 = vld [vmem:[#allocation3 + $0x14] sm:$0xf]
      %v1858 = vld [vmem:[#allocation3 + $0x18] sm:$0xff]
      %v1859 = vld [vmem:[#allocation3 + $0x20] sm:$0xf]
      %v1860 = vld [vmem:[#allocation3 + $0x24] sm:$0xff]
      %v1861 = vld [vmem:[#allocation3 + $0x2c] sm:$0xf]
      %v1862 = vld [vmem:[#allocation3 + $0x30] sm:$0xff]
      %v1863 = vld [vmem:[#allocation3 + $0x38] sm:$0xf]
      %v1864 = vld [vmem:[#allocation3 + $0x3c] sm:$0xff]
      %v1865 = vld [vmem:[#allocation3 + $0x44] sm:$0xf]
      %v1866 = vld [vmem:[#allocation3 + $0x48] sm:$0xff]
      %v1867 = vld [vmem:[#allocation3 + $0x50] sm:$0xf]
      %v1868 = vld [vmem:[#allocation3 + $0x54] sm:$0xff]
      %v1869 = vld [vmem:[#allocation3 + $0x5c] sm:$0xf]
      %v1870 = vld [vmem:[#allocation3 + $0x60] sm:$0xff]
      %v1871 = vld [vmem:[#allocation3 + $0x68] sm:$0xf]
      %v1872 = vld [vmem:[#allocation3 + $0x6c] sm:$0xff]
      %v1873 = vld [vmem:[#allocation3 + $0x74] sm:$0xf]
      %v1874 = vld [vmem:[#allocation3 + $0x78] sm:$0xff]
      %v1875 = vld [vmem:[#allocation3 + $0x80] sm:$0xf]
      %v1876 = vld [vmem:[#allocation3 + $0x84] sm:$0xff]
      %v1877 = vld [vmem:[#allocation3 + $0x8c] sm:$0xf]
      %v1878 = vld [vmem:[#allocation3 + $0x90] sm:$0xff]
      %v1879 = vld [vmem:[#allocation3 + $0x98] sm:$0xf]
      %v1880 = vld [vmem:[#allocation3 + $0x9c] sm:$0xff]
      %v1881 = vld [vmem:[#allocation3 + $0xa4] sm:$0xf]
      %v1882 = vld [vmem:[#allocation3 + $0xa8] sm:$0xff]
      %v1883 = vld [vmem:[#allocation3 + $0xb0] sm:$0xf]
      %v1884 = vld [vmem:[#allocation3 + $0xb4] sm:$0xff]
      %v1885 = vld [vmem:[#allocation3 + $0xbc] sm:$0xf]
      %v1886 = vld [vmem:[#allocation3 + $0xc0] sm:$0xff]
      %v1887 = vld [vmem:[#allocation3 + $0xc8] sm:$0xf]
      %v1888 = vld [vmem:[#allocation3 + $0xcc] sm:$0xff]
      %v1889 = vld [vmem:[#allocation3 + $0xd4] sm:$0xf]
      %v1890 = vld [vmem:[#allocation3 + $0xd8] sm:$0xff]
      %v1891 = vld [vmem:[#allocation3 + $0xe0] sm:$0xf]
      %v1892 = vld [vmem:[#allocation3 + $0xe4] sm:$0xff]
      %v1893 = vld [vmem:[#allocation3 + $0xec] sm:$0xf]
      %v1894 = vld [vmem:[#allocation3 + $0xf0] sm:$0xff]
      %v1895 = vld [vmem:[#allocation3 + $0xf8] sm:$0xf]
      %v1896 = vld [vmem:[#allocation3 + $0xfc] sm:$0xff]
      %v1897 = vld [vmem:[#allocation3 + $0x104] sm:$0xf]
      %v1898 = vld [vmem:[#allocation3 + $0x108] sm:$0xff]
      %v1899 = vld [vmem:[#allocation3 + $0x110] sm:$0xf]
      %v1900 = vld [vmem:[#allocation3 + $0x114] sm:$0xff]
      %v1901 = vld [vmem:[#allocation3 + $0x11c] sm:$0xf]
      %v1902 = vld [vmem:[#allocation3 + $0x120] sm:$0xff]
      %v1903 = vld [vmem:[#allocation3 + $0x128] sm:$0xf]
      %v1904 = vld [vmem:[#allocation3 + $0x12c] sm:$0xff]
      %v1905 = vld [vmem:[#allocation3 + $0x134] sm:$0xf]
      %v1906 = vld [vmem:[#allocation3 + $0x138] sm:$0xff]
      %v1907 = vld [vmem:[#allocation3 + $0x140] sm:$0xf]
      %v1908 = vld [vmem:[#allocation3 + $0x144] sm:$0xff]
      %v1909 = vld [vmem:[#allocation3 + $0x14c] sm:$0xf]
      %v1910 = vld [vmem:[#allocation3 + $0x150] sm:$0xff]
      %v1911 = vld [vmem:[#allocation3 + $0x158] sm:$0xf]
      %v1912 = vld [vmem:[#allocation3 + $0x15c] sm:$0xff]
      %v1913 = vld [vmem:[#allocation3 + $0x164] sm:$0xf]
      %v1914 = vld [vmem:[#allocation3 + $0x168] sm:$0xff]
      %v1915 = vld [vmem:[#allocation3 + $0x170] sm:$0xf]
      %v1916 = vld [vmem:[#allocation3 + $0x174] sm:$0xff]
      %v1917 = vld [vmem:[#allocation3 + $0x17c] sm:$0xf]
      %v1918 = vld [vmem:[#allocation3 + $0x180] sm:$0xff]
      %v1919 = vld [vmem:[#allocation3 + $0x188] sm:$0xf]
      %v1920 = vld [vmem:[#allocation3 + $0x18c] sm:$0xff]
      %v1921 = vld [vmem:[#allocation3 + $0x194] sm:$0xf]
      %v1922 = vld [vmem:[#allocation3 + $0x198] sm:$0xff]
      %v1923 = vld [vmem:[#allocation3 + $0x1a0] sm:$0xf]
      %v1924 = vld [vmem:[#allocation3 + $0x1a4] sm:$0xff]
      %v1925 = vld [vmem:[#allocation3 + $0x1ac] sm:$0xf]
      %v1926 = vld [vmem:[%s6] sm:$0xff]
      %v1927 = vld [vmem:[%s6 + $0x8] sm:$0xff]
      %v1928 = vld [vmem:[%s6 + $0x10] sm:$0xff]
      %v1929 = vld [vmem:[%s6 + $0x18] sm:$0xff]
      %1931 = vset.pattern.permute.xlu0 0
      %1932 = vperm.xlu0 %1931, %v1926
      %v1933 = vpop.permute.xlu0 %1932
      %1936 = vset.pattern.permute.xlu0 0
      %1937 = vperm.xlu0 %1936, %v1927
      %v1938 = vpop.permute.xlu0 %1937
      %1941 = vset.pattern.permute.xlu0 0
      %1942 = vperm.xlu0 %1941, %v1928
      %v1943 = vpop.permute.xlu0 %1942
      %1946 = vset.pattern.permute.xlu0 0
      %1947 = vperm.xlu0 %1946, %v1929
      %v1948 = vpop.permute.xlu0 %1947
      %v1958 = vunpack.c.l.b16 %v1846
      %v1959 = vunpack.c.h.b16 %v1846
      %v1960 = vunpack.c.l.b16 %v1847
      %v1961 = vunpack.c.l.b16 %v1848
      %v1962 = vunpack.c.h.b16 %v1848
      %v1963 = vunpack.c.l.b16 %v1849
      %v1964 = vunpack.c.l.b16 %v1850
      %v1965 = vunpack.c.h.b16 %v1850
      %v1966 = vunpack.c.l.b16 %v1851
      %v1967 = vunpack.c.l.b16 %v1852
      %v1968 = vunpack.c.h.b16 %v1852
      %v1969 = vunpack.c.l.b16 %v1853
      %v1970 = vpack.c.b16 %v1961, %v1958
      %v1971 = vpack.c.b16 %v1962, %v1959
      %v1972 = vpack.c.b16 %v1963, %v1960
      %v1973 = vpack.c.b16 %v1967, %v1964
      %v1974 = vpack.c.b16 %v1968, %v1965
      %v1975 = vpack.c.b16 %v1969, %v1966
      %v2052 = vunpack.c.l.b16 %v1854
      %v2053 = vunpack.c.h.b16 %v1854
      %v2054 = vunpack.c.l.b16 %v1855
      %v2055 = vunpack.c.l.b16 %v1856
      %v2056 = vunpack.c.h.b16 %v1856
      %v2057 = vunpack.c.l.b16 %v1857
      %v2058 = vunpack.c.l.b16 %v1858
      %v2059 = vunpack.c.h.b16 %v1858
      %v2060 = vunpack.c.l.b16 %v1859
      %v2061 = vunpack.c.l.b16 %v1860
      %v2062 = vunpack.c.h.b16 %v1860
      %v2063 = vunpack.c.l.b16 %v1861
      %v2064 = vunpack.c.l.b16 %v1862
      %v2065 = vunpack.c.h.b16 %v1862
      %v2066 = vunpack.c.l.b16 %v1863
      %v2067 = vunpack.c.l.b16 %v1864
      %v2068 = vunpack.c.h.b16 %v1864
      %v2069 = vunpack.c.l.b16 %v1865
      %v2070 = vunpack.c.l.b16 %v1866
      %v2071 = vunpack.c.h.b16 %v1866
      %v2072 = vunpack.c.l.b16 %v1867
      %v2073 = vunpack.c.l.b16 %v1868
      %v2074 = vunpack.c.h.b16 %v1868
      %v2075 = vunpack.c.l.b16 %v1869
      %v2076 = vunpack.c.l.b16 %v1870
      %v2077 = vunpack.c.h.b16 %v1870
      %v2078 = vunpack.c.l.b16 %v1871
      %v2079 = vunpack.c.l.b16 %v1872
      %v2080 = vunpack.c.h.b16 %v1872
      %v2081 = vunpack.c.l.b16 %v1873
      %v2082 = vunpack.c.l.b16 %v1874
      %v2083 = vunpack.c.h.b16 %v1874
      %v2084 = vunpack.c.l.b16 %v1875
      %v2085 = vunpack.c.l.b16 %v1876
      %v2086 = vunpack.c.h.b16 %v1876
      %v2087 = vunpack.c.l.b16 %v1877
      %v2088 = vunpack.c.l.b16 %v1878
      %v2089 = vunpack.c.h.b16 %v1878
      %v2090 = vunpack.c.l.b16 %v1879
      %v2091 = vunpack.c.l.b16 %v1880
      %v2092 = vunpack.c.h.b16 %v1880
      %v2093 = vunpack.c.l.b16 %v1881
      %v2094 = vunpack.c.l.b16 %v1882
      %v2095 = vunpack.c.h.b16 %v1882
      %v2096 = vunpack.c.l.b16 %v1883
      %v2097 = vunpack.c.l.b16 %v1884
      %v2098 = vunpack.c.h.b16 %v1884
      %v2099 = vunpack.c.l.b16 %v1885
      %v2100 = vunpack.c.l.b16 %v1886
      %v2101 = vunpack.c.h.b16 %v1886
      %v2102 = vunpack.c.l.b16 %v1887
      %v2103 = vunpack.c.l.b16 %v1888
      %v2104 = vunpack.c.h.b16 %v1888
      %v2105 = vunpack.c.l.b16 %v1889
      %v2106 = vunpack.c.l.b16 %v1890
      %v2107 = vunpack.c.h.b16 %v1890
      %v2108 = vunpack.c.l.b16 %v1891
      %v2109 = vunpack.c.l.b16 %v1892
      %v2110 = vunpack.c.h.b16 %v1892
      %v2111 = vunpack.c.l.b16 %v1893
      %v2112 = vunpack.c.l.b16 %v1894
      %v2113 = vunpack.c.h.b16 %v1894
      %v2114 = vunpack.c.l.b16 %v1895
      %v2115 = vunpack.c.l.b16 %v1896
      %v2116 = vunpack.c.h.b16 %v1896
      %v2117 = vunpack.c.l.b16 %v1897
      %v2118 = vunpack.c.l.b16 %v1898
      %v2119 = vunpack.c.h.b16 %v1898
      %v2120 = vunpack.c.l.b16 %v1899
      %v2121 = vunpack.c.l.b16 %v1900
      %v2122 = vunpack.c.h.b16 %v1900
      %v2123 = vunpack.c.l.b16 %v1901
      %v2124 = vunpack.c.l.b16 %v1902
      %v2125 = vunpack.c.h.b16 %v1902
      %v2126 = vunpack.c.l.b16 %v1903
      %v2127 = vunpack.c.l.b16 %v1904
      %v2128 = vunpack.c.h.b16 %v1904
      %v2129 = vunpack.c.l.b16 %v1905
      %v2130 = vunpack.c.l.b16 %v1906
      %v2131 = vunpack.c.h.b16 %v1906
      %v2132 = vunpack.c.l.b16 %v1907
      %v2133 = vunpack.c.l.b16 %v1908
      %v2134 = vunpack.c.h.b16 %v1908
      %v2135 = vunpack.c.l.b16 %v1909
      %v2136 = vunpack.c.l.b16 %v1910
      %v2137 = vunpack.c.h.b16 %v1910
      %v2138 = vunpack.c.l.b16 %v1911
      %v2139 = vunpack.c.l.b16 %v1912
      %v2140 = vunpack.c.h.b16 %v1912
      %v2141 = vunpack.c.l.b16 %v1913
      %v2142 = vunpack.c.l.b16 %v1914
      %v2143 = vunpack.c.h.b16 %v1914
      %v2144 = vunpack.c.l.b16 %v1915
      %v2145 = vunpack.c.l.b16 %v1916
      %v2146 = vunpack.c.h.b16 %v1916
      %v2147 = vunpack.c.l.b16 %v1917
      %v2148 = vunpack.c.l.b16 %v1918
      %v2149 = vunpack.c.h.b16 %v1918
      %v2150 = vunpack.c.l.b16 %v1919
      %v2151 = vunpack.c.l.b16 %v1920
      %v2152 = vunpack.c.h.b16 %v1920
      %v2153 = vunpack.c.l.b16 %v1921
      %v2154 = vunpack.c.l.b16 %v1922
      %v2155 = vunpack.c.h.b16 %v1922
      %v2156 = vunpack.c.l.b16 %v1923
      %v2157 = vunpack.c.l.b16 %v1924
      %v2158 = vunpack.c.h.b16 %v1924
      %v2159 = vunpack.c.l.b16 %v1925
      %v2160 = vpack.c.b16 %v2055, %v2052
      %v2161 = vpack.c.b16 %v2056, %v2053
      %v2162 = vpack.c.b16 %v2057, %v2054
      %v2163 = vpack.c.b16 %v2061, %v2058
      %v2164 = vpack.c.b16 %v2062, %v2059
      %v2165 = vpack.c.b16 %v2063, %v2060
      %v2166 = vpack.c.b16 %v2067, %v2064
      %v2167 = vpack.c.b16 %v2068, %v2065
      %v2168 = vpack.c.b16 %v2069, %v2066
      %v2169 = vpack.c.b16 %v2073, %v2070
      %v2170 = vpack.c.b16 %v2074, %v2071
      %v2171 = vpack.c.b16 %v2075, %v2072
      %v2172 = vpack.c.b16 %v2079, %v2076
      %v2173 = vpack.c.b16 %v2080, %v2077
      %v2174 = vpack.c.b16 %v2081, %v2078
      %v2175 = vpack.c.b16 %v2085, %v2082
      %v2176 = vpack.c.b16 %v2086, %v2083
      %v2177 = vpack.c.b16 %v2087, %v2084
      %v2178 = vpack.c.b16 %v2091, %v2088
      %v2179 = vpack.c.b16 %v2092, %v2089
      %v2180 = vpack.c.b16 %v2093, %v2090
      %v2181 = vpack.c.b16 %v2097, %v2094
      %v2182 = vpack.c.b16 %v2098, %v2095
      %v2183 = vpack.c.b16 %v2099, %v2096
      %v2184 = vpack.c.b16 %v2103, %v2100
      %v2185 = vpack.c.b16 %v2104, %v2101
      %v2186 = vpack.c.b16 %v2105, %v2102
      %v2187 = vpack.c.b16 %v2109, %v2106
      %v2188 = vpack.c.b16 %v2110, %v2107
      %v2189 = vpack.c.b16 %v2111, %v2108
      %v2190 = vpack.c.b16 %v2115, %v2112
      %v2191 = vpack.c.b16 %v2116, %v2113
      %v2192 = vpack.c.b16 %v2117, %v2114
      %v2193 = vpack.c.b16 %v2121, %v2118
      %v2194 = vpack.c.b16 %v2122, %v2119
      %v2195 = vpack.c.b16 %v2123, %v2120
      %v2196 = vpack.c.b16 %v2127, %v2124
      %v2197 = vpack.c.b16 %v2128, %v2125
      %v2198 = vpack.c.b16 %v2129, %v2126
      %v2199 = vpack.c.b16 %v2133, %v2130
      %v2200 = vpack.c.b16 %v2134, %v2131
      %v2201 = vpack.c.b16 %v2135, %v2132
      %v2202 = vpack.c.b16 %v2139, %v2136
      %v2203 = vpack.c.b16 %v2140, %v2137
      %v2204 = vpack.c.b16 %v2141, %v2138
      %v2205 = vpack.c.b16 %v2145, %v2142
      %v2206 = vpack.c.b16 %v2146, %v2143
      %v2207 = vpack.c.b16 %v2147, %v2144
      %v2208 = vpack.c.b16 %v2151, %v2148
      %v2209 = vpack.c.b16 %v2152, %v2149
      %v2210 = vpack.c.b16 %v2153, %v2150
      %v2211 = vpack.c.b16 %v2157, %v2154
      %v2212 = vpack.c.b16 %v2158, %v2155
      %v2213 = vpack.c.b16 %v2159, %v2156
      %vm2268 = vcmask 261120
      %v2270 = vsel %vm2268, %v1972, 0
      %v2273 = vsel %vm2268, %v1975, 0
      %2275 = vmatpush.bf16.msra.mxu0 %v2181
      %2276 = vmatpush.bf16.msra.mxu0 %v2178
      %2277 = vmatpush.bf16.msra.mxu0 %v2175
      %2278 = vmatpush.bf16.msra.mxu0 %v2172
      %2279 = vmatpush.bf16.msra.mxu0 %v2169
      %2280 = vmatpush.bf16.msra.mxu0 %v2166
      %2281 = vmatpush.bf16.msra.mxu0 %v2163
      %2282 = vmatpush.bf16.msra.mxu0 %v2160
      %2283 = vmatmul.bf16.gmra.mxu0 %v1970
      %v2284 = vpop.f32.mrf.mxu0
      %v2285 = vadd.f32 %v1933, %v2284
      %v2286 = vpop.f32.mrf.mxu0
      %v2287 = vadd.f32 %v1938, %v2286
      %2288 = vmatmul.bf16.gmra.mxu0 %v1973
      %v2289 = vpop.f32.mrf.mxu0
      %v2290 = vadd.f32 %v1943, %v2289
      %v2291 = vpop.f32.mrf.mxu0
      %v2292 = vadd.f32 %v1948, %v2291
      %2293 = vdwg.mxu0
      %2294 = vmatpush.bf16.msra.mxu0 %v2205
      %2295 = vmatpush.bf16.msra.mxu0 %v2202
      %2296 = vmatpush.bf16.msra.mxu0 %v2199
      %2297 = vmatpush.bf16.msra.mxu0 %v2196
      %2298 = vmatpush.bf16.msra.mxu0 %v2193
      %2299 = vmatpush.bf16.msra.mxu0 %v2190
      %2300 = vmatpush.bf16.msra.mxu0 %v2187
      %2301 = vmatpush.bf16.msra.mxu0 %v2184
      %2302 = vmatmul.bf16.gmra.mxu0 %v1971
      %v2303 = vpop.f32.mrf.mxu0
      %v2304 = vadd.f32 %v2285, %v2303
      %v2305 = vpop.f32.mrf.mxu0
      %v2306 = vadd.f32 %v2287, %v2305
      %2307 = vmatmul.bf16.gmra.mxu0 %v1974
      %v2308 = vpop.f32.mrf.mxu0
      %v2309 = vadd.f32 %v2290, %v2308
      %v2310 = vpop.f32.mrf.mxu0
      %v2311 = vadd.f32 %v2292, %v2310
      %2312 = vdwg.mxu0
      %2313 = vmatpush.bf16.msra.mxu0 0
      %2314 = vmatpush.bf16.msra.mxu0 0
      %2315 = vmatpush.bf16.msra.mxu0 0
      %2316 = vmatpush.bf16.msra.mxu0 0
      %2317 = vmatpush.bf16.msra.mxu0 0
      %2318 = vmatpush.bf16.msra.mxu0 0
      %2319 = vmatpush.bf16.msra.mxu0 %v2211
      %2320 = vmatpush.bf16.msra.mxu0 %v2208
      %2321 = vmatmul.bf16.gmra.mxu0 %v2270
      %v2322 = vpop.f32.mrf.mxu0
      %v2323 = vadd.f32 %v2304, %v2322
      %v2324 = vpop.f32.mrf.mxu0
      %v2325 = vadd.f32 %v2306, %v2324
      %2326 = vmatmul.bf16.gmra.mxu0 %v2273
      %v2327 = vpop.f32.mrf.mxu0
      %v2328 = vadd.f32 %v2309, %v2327
      %v2329 = vpop.f32.mrf.mxu0
      %v2330 = vadd.f32 %v2311, %v2329
      %2331 = vdwg.mxu0
      %2332 = vmatpush.bf16.msra.mxu0 %v2182
      %2333 = vmatpush.bf16.msra.mxu0 %v2179
      %2334 = vmatpush.bf16.msra.mxu0 %v2176
      %2335 = vmatpush.bf16.msra.mxu0 %v2173
      %2336 = vmatpush.bf16.msra.mxu0 %v2170
      %2337 = vmatpush.bf16.msra.mxu0 %v2167
      %2338 = vmatpush.bf16.msra.mxu0 %v2164
      %2339 = vmatpush.bf16.msra.mxu0 %v2161
      %2340 = vmatmul.bf16.gmra.mxu0 %v1970
      %v2341 = vpop.f32.mrf.mxu0
      %v2342 = vadd.f32 %v1933, %v2341
      %v2343 = vpop.f32.mrf.mxu0
      %v2344 = vadd.f32 %v1938, %v2343
      %2345 = vmatmul.bf16.gmra.mxu0 %v1973
      %v2346 = vpop.f32.mrf.mxu0
      %v2347 = vadd.f32 %v1943, %v2346
      %v2348 = vpop.f32.mrf.mxu0
      %v2349 = vadd.f32 %v1948, %v2348
      %2350 = vdwg.mxu0
      %2351 = vmatpush.bf16.msra.mxu0 %v2206
      %2352 = vmatpush.bf16.msra.mxu0 %v2203
      %2353 = vmatpush.bf16.msra.mxu0 %v2200
      %2354 = vmatpush.bf16.msra.mxu0 %v2197
      %2355 = vmatpush.bf16.msra.mxu0 %v2194
      %2356 = vmatpush.bf16.msra.mxu0 %v2191
      %2357 = vmatpush.bf16.msra.mxu0 %v2188
      %2358 = vmatpush.bf16.msra.mxu0 %v2185
      %2359 = vmatmul.bf16.gmra.mxu0 %v1971
      %v2360 = vpop.f32.mrf.mxu0
      %v2361 = vadd.f32 %v2342, %v2360
      %v2362 = vpop.f32.mrf.mxu0
      %v2363 = vadd.f32 %v2344, %v2362
      %2364 = vmatmul.bf16.gmra.mxu0 %v1974
      %v2365 = vpop.f32.mrf.mxu0
      %v2366 = vadd.f32 %v2347, %v2365
      %v2367 = vpop.f32.mrf.mxu0
      %v2368 = vadd.f32 %v2349, %v2367
      %2369 = vdwg.mxu0
      %2370 = vmatpush.bf16.msra.mxu0 0
      %2371 = vmatpush.bf16.msra.mxu0 0
      %2372 = vmatpush.bf16.msra.mxu0 0
      %2373 = vmatpush.bf16.msra.mxu0 0
      %2374 = vmatpush.bf16.msra.mxu0 0
      %2375 = vmatpush.bf16.msra.mxu0 0
      %2376 = vmatpush.bf16.msra.mxu0 %v2212
      %2377 = vmatpush.bf16.msra.mxu0 %v2209
      %2378 = vmatmul.bf16.gmra.mxu0 %v2270
      %v2379 = vpop.f32.mrf.mxu0
      %v2380 = vadd.f32 %v2361, %v2379
      %v2381 = vpop.f32.mrf.mxu0
      %v2382 = vadd.f32 %v2363, %v2381
      %2383 = vmatmul.bf16.gmra.mxu0 %v2273
      %v2384 = vpop.f32.mrf.mxu0
      %v2385 = vadd.f32 %v2366, %v2384
      %v2386 = vpop.f32.mrf.mxu0
      %v2387 = vadd.f32 %v2368, %v2386
      %2388 = vdwg.mxu0
      %2389 = vmatpush.bf16.msra.mxu0 %v2183
      %2390 = vmatpush.bf16.msra.mxu0 %v2180
      %2391 = vmatpush.bf16.msra.mxu0 %v2177
      %2392 = vmatpush.bf16.msra.mxu0 %v2174
      %2393 = vmatpush.bf16.msra.mxu0 %v2171
      %2394 = vmatpush.bf16.msra.mxu0 %v2168
      %2395 = vmatpush.bf16.msra.mxu0 %v2165
      %2396 = vmatpush.bf16.msra.mxu0 %v2162
      %2397 = vmatmul.bf16.gmra.mxu0 %v1970
      %v2398 = vpop.f32.mrf.mxu0
      %v2399 = vadd.f32 %v1933, %v2398
      %v2400 = vpop.f32.mrf.mxu0
      %v2401 = vadd.f32 %v1938, %v2400
      %2402 = vmatmul.bf16.gmra.mxu0 %v1973
      %v2403 = vpop.f32.mrf.mxu0
      %v2404 = vadd.f32 %v1943, %v2403
      %v2405 = vpop.f32.mrf.mxu0
      %v2406 = vadd.f32 %v1948, %v2405
      %2407 = vdwg.mxu0
      %2408 = vmatpush.bf16.msra.mxu0 %v2207
      %2409 = vmatpush.bf16.msra.mxu0 %v2204
      %2410 = vmatpush.bf16.msra.mxu0 %v2201
      %2411 = vmatpush.bf16.msra.mxu0 %v2198
      %2412 = vmatpush.bf16.msra.mxu0 %v2195
      %2413 = vmatpush.bf16.msra.mxu0 %v2192
      %2414 = vmatpush.bf16.msra.mxu0 %v2189
      %2415 = vmatpush.bf16.msra.mxu0 %v2186
      %2416 = vmatmul.bf16.gmra.mxu0 %v1971
      %v2417 = vpop.f32.mrf.mxu0
      %v2418 = vadd.f32 %v2399, %v2417
      %v2419 = vpop.f32.mrf.mxu0
      %v2420 = vadd.f32 %v2401, %v2419
      %2421 = vmatmul.bf16.gmra.mxu0 %v1974
      %v2422 = vpop.f32.mrf.mxu0
      %v2423 = vadd.f32 %v2404, %v2422
      %v2424 = vpop.f32.mrf.mxu0
      %v2425 = vadd.f32 %v2406, %v2424
      %2426 = vdwg.mxu0
      %2427 = vmatpush.bf16.msra.mxu0 0
      %2428 = vmatpush.bf16.msra.mxu0 0
      %2429 = vmatpush.bf16.msra.mxu0 0
      %2430 = vmatpush.bf16.msra.mxu0 0
      %2431 = vmatpush.bf16.msra.mxu0 0
      %2432 = vmatpush.bf16.msra.mxu0 0
      %2433 = vmatpush.bf16.msra.mxu0 %v2213
      %2434 = vmatpush.bf16.msra.mxu0 %v2210
      %2435 = vmatmul.bf16.gmra.mxu0 %v2270
      %v2436 = vpop.f32.mrf.mxu0
      %v2437 = vadd.f32 %v2418, %v2436
      %v2438 = vpop.f32.mrf.mxu0
      %v2439 = vadd.f32 %v2420, %v2438
      %2440 = vmatmul.bf16.gmra.mxu0 %v2273
      %v2441 = vpop.f32.mrf.mxu0
      %v2442 = vadd.f32 %v2423, %v2441
      %v2443 = vpop.f32.mrf.mxu0
      %v2444 = vadd.f32 %v2425, %v2443
      %2445 = vdwg.mxu0
      %v2446 = vmax.f32 %v2323, 0.0
      %v2447 = vmax.f32 %v2380, 0.0
      %v2448 = vmax.f32 %v2437, 0.0
      %v2449 = vmax.f32 %v2325, 0.0
      %v2450 = vmax.f32 %v2382, 0.0
      %v2451 = vmax.f32 %v2439, 0.0
      %v2452 = vmax.f32 %v2328, 0.0
      %v2453 = vmax.f32 %v2385, 0.0
      %v2454 = vmax.f32 %v2442, 0.0
      %v2455 = vmax.f32 %v2330, 0.0
      %v2456 = vmax.f32 %v2387, 0.0
      %v2457 = vmax.f32 %v2444, 0.0
      %v2458 = vmul.f32 %v2446, %v1252
      %v2459 = vmul.f32 %v2447, %v1253
      %v2460 = vmul.f32 %v2448, %v1254
      %v2461 = vmul.f32 %v2449, %v1252
      %v2462 = vmul.f32 %v2450, %v1253
      %v2463 = vmul.f32 %v2451, %v1254
      %v2464 = vmul.f32 %v2452, %v1252
      %v2465 = vmul.f32 %v2453, %v1253
      %v2466 = vmul.f32 %v2454, %v1254
      %v2467 = vmul.f32 %v2455, %v1252
      %v2468 = vmul.f32 %v2456, %v1253
      %v2469 = vmul.f32 %v2457, %v1254
      %v2470 = vpack.c.bf16 %v2459, %v2458
      %v2471 = vpack.c.bf16 %v2460, %v2460
      %v2472 = vpack.c.bf16 %v2462, %v2461
      %v2473 = vpack.c.bf16 %v2463, %v2463
      %v2474 = vpack.c.bf16 %v2465, %v2464
      %v2475 = vpack.c.bf16 %v2466, %v2466
      %v2476 = vpack.c.bf16 %v2468, %v2467
      %v2477 = vpack.c.bf16 %v2469, %v2469
      %2478 = vst [vmem:[#allocation2 + $0x7c] sm:$0xff] %v2470
      %2479 = vst [vmem:[#allocation2 + $0x84] sm:$0xf] %v2471
      %2480 = vst [vmem:[#allocation2 + $0x90] sm:$0xff] %v2472
      %2481 = vst [vmem:[#allocation2 + $0x98] sm:$0xf] %v2473
      %2482 = vst [vmem:[#allocation2 + $0xa4] sm:$0xff] %v2474
      %2483 = vst [vmem:[#allocation2 + $0xac] sm:$0xf] %v2475
      %2484 = vst [vmem:[#allocation2 + $0xb8] sm:$0xff] %v2476
      %2485 = vst [vmem:[#allocation2 + $0xc0] sm:$0xf] %v2477
      %v2486 = vld [vmem:[#allocation2 + $0x28] sm:$0xff]
      %v2487 = vld [vmem:[#allocation2 + $0x30] sm:$0xff]
      %v2488 = vld [vmem:[#allocation2 + $0x3c] sm:$0xff]
      %v2489 = vld [vmem:[#allocation2 + $0x44] sm:$0xff]
      %v2490 = vld [vmem:[#allocation2 + $0x50] sm:$0xff]
      %v2491 = vld [vmem:[#allocation2 + $0x58] sm:$0xff]
      %v2492 = vld [vmem:[#allocation2 + $0x64] sm:$0xff]
      %v2493 = vld [vmem:[#allocation2 + $0x6c] sm:$0xff]
      %v2494 = vld [vmem:[#allocation2 + $0x78] sm:$0xff]
      %v2495 = vld [vmem:[#allocation2 + $0x80] sm:$0xff]
      %v2496 = vld [vmem:[#allocation2 + $0x8c] sm:$0xff]
      %v2497 = vld [vmem:[#allocation2 + $0x94] sm:$0xff]
      %v2498 = vld [vmem:[#allocation2 + $0xa0] sm:$0xff]
      %v2499 = vld [vmem:[#allocation2 + $0xa8] sm:$0xff]
      %v2500 = vld [vmem:[#allocation2 + $0xb4] sm:$0xff]
      %v2501 = vld [vmem:[#allocation2 + $0xbc] sm:$0xff]
      %2518 = vrot.lane.b32.xlu0 %v2486, 19
      %v2519 = vpop.permute.xlu0 %2518
      %2520 = vrot.lane.b32.xlu0 %v2487, 19
      %v2521 = vpop.permute.xlu0 %2520
      %2522 = vrot.lane.b32.xlu0 %v2488, 19
      %v2523 = vpop.permute.xlu0 %2522
      %2524 = vrot.lane.b32.xlu0 %v2489, 19
      %v2525 = vpop.permute.xlu0 %2524
      %2526 = vrot.lane.b32.xlu0 %v2490, 19
      %v2527 = vpop.permute.xlu0 %2526
      %2528 = vrot.lane.b32.xlu0 %v2491, 19
      %v2529 = vpop.permute.xlu0 %2528
      %2530 = vrot.lane.b32.xlu0 %v2492, 19
      %v2531 = vpop.permute.xlu0 %2530
      %2532 = vrot.lane.b32.xlu0 %v2493, 19
      %v2533 = vpop.permute.xlu0 %2532
      %2534 = vrot.lane.b32.xlu0 %v2494, 19
      %v2535 = vpop.permute.xlu0 %2534
      %2536 = vrot.lane.b32.xlu0 %v2495, 19
      %v2537 = vpop.permute.xlu0 %2536
      %2538 = vrot.lane.b32.xlu0 %v2496, 19
      %v2539 = vpop.permute.xlu0 %2538
      %2540 = vrot.lane.b32.xlu0 %v2497, 19
      %v2541 = vpop.permute.xlu0 %2540
      %2542 = vrot.lane.b32.xlu0 %v2498, 19
      %v2543 = vpop.permute.xlu0 %2542
      %2544 = vrot.lane.b32.xlu0 %v2499, 19
      %v2545 = vpop.permute.xlu0 %2544
      %2546 = vrot.lane.b32.xlu0 %v2500, 19
      %v2547 = vpop.permute.xlu0 %2546
      %2548 = vrot.lane.b32.xlu0 %v2501, 19
      %v2549 = vpop.permute.xlu0 %2548
      %v2550 = vrot.slane %v2519, 4
      %v2551 = vrot.slane %v2521, 4
      %v2552 = vrot.slane %v2523, 4
      %v2553 = vrot.slane %v2525, 4
      %v2554 = vrot.slane %v2527, 4
      %v2555 = vrot.slane %v2529, 4
      %v2556 = vrot.slane %v2531, 4
      %v2557 = vrot.slane %v2533, 4
      %v2558 = vrot.slane %v2535, 4
      %v2559 = vrot.slane %v2537, 4
      %v2560 = vrot.slane %v2539, 4
      %v2561 = vrot.slane %v2541, 4
      %v2562 = vrot.slane %v2543, 4
      %v2563 = vrot.slane %v2545, 4
      %v2564 = vrot.slane %v2547, 4
      %v2565 = vrot.slane %v2549, 4
      %v2566 = vsel %vm623, %v2550, %v2551
      %v2567 = vsel %vm625, %v2519, %v2566
      %v2568 = vsel %vm625, %v2521, %v2551
      %v2569 = vsel %vm623, %v2552, %v2553
      %v2570 = vsel %vm625, %v2523, %v2569
      %v2571 = vsel %vm625, %v2525, %v2553
      %v2572 = vsel %vm623, %v2554, %v2555
      %v2573 = vsel %vm625, %v2527, %v2572
      %v2574 = vsel %vm625, %v2529, %v2555
      %v2575 = vsel %vm623, %v2556, %v2557
      %v2576 = vsel %vm625, %v2531, %v2575
      %v2577 = vsel %vm625, %v2533, %v2557
      %v2578 = vsel %vm623, %v2558, %v2559
      %v2579 = vsel %vm625, %v2535, %v2578
      %v2580 = vsel %vm625, %v2537, %v2559
      %v2581 = vsel %vm623, %v2560, %v2561
      %v2582 = vsel %vm625, %v2539, %v2581
      %v2583 = vsel %vm625, %v2541, %v2561
      %v2584 = vsel %vm623, %v2562, %v2563
      %v2585 = vsel %vm625, %v2543, %v2584
      %v2586 = vsel %vm625, %v2545, %v2563
      %v2587 = vsel %vm623, %v2564, %v2565
      %v2588 = vsel %vm625, %v2547, %v2587
      %v2589 = vsel %vm625, %v2549, %v2565
      %2606 = vst [vmem:[#allocation3] sm:$0xff] %v2567
      %2607 = vst [vmem:[#allocation3 + $0x8] sm:$0xf] %v2568
      %2608 = vst [vmem:[#allocation3 + $0xc] sm:$0xff] %v2570
      %2609 = vst [vmem:[#allocation3 + $0x14] sm:$0xf] %v2571
      %2610 = vst [vmem:[#allocation3 + $0x18] sm:$0xff] %v2573
      %2611 = vst [vmem:[#allocation3 + $0x20] sm:$0xf] %v2574
      %2612 = vst [vmem:[#allocation3 + $0x24] sm:$0xff] %v2576
      %2613 = vst [vmem:[#allocation3 + $0x2c] sm:$0xf] %v2577
      %2614 = vst [vmem:[#allocation3 + $0x30] sm:$0xff] %v2579
      %2615 = vst [vmem:[#allocation3 + $0x38] sm:$0xf] %v2580
      %2616 = vst [vmem:[#allocation3 + $0x3c] sm:$0xff] %v2582
      %2617 = vst [vmem:[#allocation3 + $0x44] sm:$0xf] %v2583
      %2618 = vst [vmem:[#allocation3 + $0x48] sm:$0xff] %v2585
      %2619 = vst [vmem:[#allocation3 + $0x50] sm:$0xf] %v2586
      %2620 = vst [vmem:[#allocation3 + $0x54] sm:$0xff] %v2588
      %2621 = vst [vmem:[#allocation3 + $0x5c] sm:$0xf] %v2589
      %v2622 = vld [vmem:[#allocation2 + $0x28] sm:$0xff]
      %v2623 = vld [vmem:[#allocation2 + $0x30] sm:$0xff]
      %v2624 = vld [vmem:[#allocation2 + $0x3c] sm:$0xff]
      %v2625 = vld [vmem:[#allocation2 + $0x44] sm:$0xff]
      %v2626 = vld [vmem:[#allocation2 + $0x50] sm:$0xff]
      %v2627 = vld [vmem:[#allocation2 + $0x58] sm:$0xff]
      %v2628 = vld [vmem:[#allocation2 + $0x64] sm:$0xff]
      %v2629 = vld [vmem:[#allocation2 + $0x6c] sm:$0xff]
      %v2630 = vld [vmem:[#allocation2 + $0x78] sm:$0xff]
      %v2631 = vld [vmem:[#allocation2 + $0x80] sm:$0xff]
      %v2632 = vld [vmem:[#allocation2 + $0x8c] sm:$0xff]
      %v2633 = vld [vmem:[#allocation2 + $0x94] sm:$0xff]
      %v2634 = vld [vmem:[#allocation2 + $0xa0] sm:$0xff]
      %v2635 = vld [vmem:[#allocation2 + $0xa8] sm:$0xff]
      %v2636 = vld [vmem:[#allocation2 + $0xb4] sm:$0xff]
      %v2637 = vld [vmem:[#allocation2 + $0xbc] sm:$0xff]
      %2654 = vrot.lane.b32.xlu0 %v2622, 18
      %v2655 = vpop.permute.xlu0 %2654
      %2656 = vrot.lane.b32.xlu0 %v2623, 18
      %v2657 = vpop.permute.xlu0 %2656
      %2658 = vrot.lane.b32.xlu0 %v2624, 18
      %v2659 = vpop.permute.xlu0 %2658
      %2660 = vrot.lane.b32.xlu0 %v2625, 18
      %v2661 = vpop.permute.xlu0 %2660
      %2662 = vrot.lane.b32.xlu0 %v2626, 18
      %v2663 = vpop.permute.xlu0 %2662
      %2664 = vrot.lane.b32.xlu0 %v2627, 18
      %v2665 = vpop.permute.xlu0 %2664
      %2666 = vrot.lane.b32.xlu0 %v2628, 18
      %v2667 = vpop.permute.xlu0 %2666
      %2668 = vrot.lane.b32.xlu0 %v2629, 18
      %v2669 = vpop.permute.xlu0 %2668
      %2670 = vrot.lane.b32.xlu0 %v2630, 18
      %v2671 = vpop.permute.xlu0 %2670
      %2672 = vrot.lane.b32.xlu0 %v2631, 18
      %v2673 = vpop.permute.xlu0 %2672
      %2674 = vrot.lane.b32.xlu0 %v2632, 18
      %v2675 = vpop.permute.xlu0 %2674
      %2676 = vrot.lane.b32.xlu0 %v2633, 18
      %v2677 = vpop.permute.xlu0 %2676
      %2678 = vrot.lane.b32.xlu0 %v2634, 18
      %v2679 = vpop.permute.xlu0 %2678
      %2680 = vrot.lane.b32.xlu0 %v2635, 18
      %v2681 = vpop.permute.xlu0 %2680
      %2682 = vrot.lane.b32.xlu0 %v2636, 18
      %v2683 = vpop.permute.xlu0 %2682
      %2684 = vrot.lane.b32.xlu0 %v2637, 18
      %v2685 = vpop.permute.xlu0 %2684
      %v2686 = vrot.slane %v2655, 4
      %v2687 = vrot.slane %v2657, 4
      %v2688 = vrot.slane %v2659, 4
      %v2689 = vrot.slane %v2661, 4
      %v2690 = vrot.slane %v2663, 4
      %v2691 = vrot.slane %v2665, 4
      %v2692 = vrot.slane %v2667, 4
      %v2693 = vrot.slane %v2669, 4
      %v2694 = vrot.slane %v2671, 4
      %v2695 = vrot.slane %v2673, 4
      %v2696 = vrot.slane %v2675, 4
      %v2697 = vrot.slane %v2677, 4
      %v2698 = vrot.slane %v2679, 4
      %v2699 = vrot.slane %v2681, 4
      %v2700 = vrot.slane %v2683, 4
      %v2701 = vrot.slane %v2685, 4
      %v2702 = vsel %vm623, %v2686, %v2687
      %v2703 = vsel %vm660, %v2655, %v2702
      %v2704 = vsel %vm660, %v2657, %v2687
      %v2705 = vsel %vm623, %v2688, %v2689
      %v2706 = vsel %vm660, %v2659, %v2705
      %v2707 = vsel %vm660, %v2661, %v2689
      %v2708 = vsel %vm623, %v2690, %v2691
      %v2709 = vsel %vm660, %v2663, %v2708
      %v2710 = vsel %vm660, %v2665, %v2691
      %v2711 = vsel %vm623, %v2692, %v2693
      %v2712 = vsel %vm660, %v2667, %v2711
      %v2713 = vsel %vm660, %v2669, %v2693
      %v2714 = vsel %vm623, %v2694, %v2695
      %v2715 = vsel %vm660, %v2671, %v2714
      %v2716 = vsel %vm660, %v2673, %v2695
      %v2717 = vsel %vm623, %v2696, %v2697
      %v2718 = vsel %vm660, %v2675, %v2717
      %v2719 = vsel %vm660, %v2677, %v2697
      %v2720 = vsel %vm623, %v2698, %v2699
      %v2721 = vsel %vm660, %v2679, %v2720
      %v2722 = vsel %vm660, %v2681, %v2699
      %v2723 = vsel %vm623, %v2700, %v2701
      %v2724 = vsel %vm660, %v2683, %v2723
      %v2725 = vsel %vm660, %v2685, %v2701
      %2742 = vst [vmem:[#allocation3 + $0x60] sm:$0xff] %v2703
      %2743 = vst [vmem:[#allocation3 + $0x68] sm:$0xf] %v2704
      %2744 = vst [vmem:[#allocation3 + $0x6c] sm:$0xff] %v2706
      %2745 = vst [vmem:[#allocation3 + $0x74] sm:$0xf] %v2707
      %2746 = vst [vmem:[#allocation3 + $0x78] sm:$0xff] %v2709
      %2747 = vst [vmem:[#allocation3 + $0x80] sm:$0xf] %v2710
      %2748 = vst [vmem:[#allocation3 + $0x84] sm:$0xff] %v2712
      %2749 = vst [vmem:[#allocation3 + $0x8c] sm:$0xf] %v2713
      %2750 = vst [vmem:[#allocation3 + $0x90] sm:$0xff] %v2715
      %2751 = vst [vmem:[#allocation3 + $0x98] sm:$0xf] %v2716
      %2752 = vst [vmem:[#allocation3 + $0x9c] sm:$0xff] %v2718
      %2753 = vst [vmem:[#allocation3 + $0xa4] sm:$0xf] %v2719
      %2754 = vst [vmem:[#allocation3 + $0xa8] sm:$0xff] %v2721
      %2755 = vst [vmem:[#allocation3 + $0xb0] sm:$0xf] %v2722
      %2756 = vst [vmem:[#allocation3 + $0xb4] sm:$0xff] %v2724
      %2757 = vst [vmem:[#allocation3 + $0xbc] sm:$0xf] %v2725
      %v2758 = vld [vmem:[#allocation2 + $0x28] sm:$0xff]
      %v2759 = vld [vmem:[#allocation2 + $0x30] sm:$0xff]
      %v2760 = vld [vmem:[#allocation2 + $0x3c] sm:$0xff]
      %v2761 = vld [vmem:[#allocation2 + $0x44] sm:$0xff]
      %v2762 = vld [vmem:[#allocation2 + $0x50] sm:$0xff]
      %v2763 = vld [vmem:[#allocation2 + $0x58] sm:$0xff]
      %v2764 = vld [vmem:[#allocation2 + $0x64] sm:$0xff]
      %v2765 = vld [vmem:[#allocation2 + $0x6c] sm:$0xff]
      %v2766 = vld [vmem:[#allocation2 + $0x78] sm:$0xff]
      %v2767 = vld [vmem:[#allocation2 + $0x80] sm:$0xff]
      %v2768 = vld [vmem:[#allocation2 + $0x8c] sm:$0xff]
      %v2769 = vld [vmem:[#allocation2 + $0x94] sm:$0xff]
      %v2770 = vld [vmem:[#allocation2 + $0xa0] sm:$0xff]
      %v2771 = vld [vmem:[#allocation2 + $0xa8] sm:$0xff]
      %v2772 = vld [vmem:[#allocation2 + $0xb4] sm:$0xff]
      %v2773 = vld [vmem:[#allocation2 + $0xbc] sm:$0xff]
      %2790 = vrot.lane.b32.xlu0 %v2758, 17
      %v2791 = vpop.permute.xlu0 %2790
      %2792 = vrot.lane.b32.xlu0 %v2759, 17
      %v2793 = vpop.permute.xlu0 %2792
      %2794 = vrot.lane.b32.xlu0 %v2760, 17
      %v2795 = vpop.permute.xlu0 %2794
      %2796 = vrot.lane.b32.xlu0 %v2761, 17
      %v2797 = vpop.permute.xlu0 %2796
      %2798 = vrot.lane.b32.xlu0 %v2762, 17
      %v2799 = vpop.permute.xlu0 %2798
      %2800 = vrot.lane.b32.xlu0 %v2763, 17
      %v2801 = vpop.permute.xlu0 %2800
      %2802 = vrot.lane.b32.xlu0 %v2764, 17
      %v2803 = vpop.permute.xlu0 %2802
      %2804 = vrot.lane.b32.xlu0 %v2765, 17
      %v2805 = vpop.permute.xlu0 %2804
      %2806 = vrot.lane.b32.xlu0 %v2766, 17
      %v2807 = vpop.permute.xlu0 %2806
      %2808 = vrot.lane.b32.xlu0 %v2767, 17
      %v2809 = vpop.permute.xlu0 %2808
      %2810 = vrot.lane.b32.xlu0 %v2768, 17
      %v2811 = vpop.permute.xlu0 %2810
      %2812 = vrot.lane.b32.xlu0 %v2769, 17
      %v2813 = vpop.permute.xlu0 %2812
      %2814 = vrot.lane.b32.xlu0 %v2770, 17
      %v2815 = vpop.permute.xlu0 %2814
      %2816 = vrot.lane.b32.xlu0 %v2771, 17
      %v2817 = vpop.permute.xlu0 %2816
      %2818 = vrot.lane.b32.xlu0 %v2772, 17
      %v2819 = vpop.permute.xlu0 %2818
      %2820 = vrot.lane.b32.xlu0 %v2773, 17
      %v2821 = vpop.permute.xlu0 %2820
      %v2822 = vrot.slane %v2791, 4
      %v2823 = vrot.slane %v2793, 4
      %v2824 = vrot.slane %v2795, 4
      %v2825 = vrot.slane %v2797, 4
      %v2826 = vrot.slane %v2799, 4
      %v2827 = vrot.slane %v2801, 4
      %v2828 = vrot.slane %v2803, 4
      %v2829 = vrot.slane %v2805, 4
      %v2830 = vrot.slane %v2807, 4
      %v2831 = vrot.slane %v2809, 4
      %v2832 = vrot.slane %v2811, 4
      %v2833 = vrot.slane %v2813, 4
      %v2834 = vrot.slane %v2815, 4
      %v2835 = vrot.slane %v2817, 4
      %v2836 = vrot.slane %v2819, 4
      %v2837 = vrot.slane %v2821, 4
      %v2838 = vsel %vm623, %v2822, %v2823
      %v2839 = vsel %vm695, %v2791, %v2838
      %v2840 = vsel %vm695, %v2793, %v2823
      %v2841 = vsel %vm623, %v2824, %v2825
      %v2842 = vsel %vm695, %v2795, %v2841
      %v2843 = vsel %vm695, %v2797, %v2825
      %v2844 = vsel %vm623, %v2826, %v2827
      %v2845 = vsel %vm695, %v2799, %v2844
      %v2846 = vsel %vm695, %v2801, %v2827
      %v2847 = vsel %vm623, %v2828, %v2829
      %v2848 = vsel %vm695, %v2803, %v2847
      %v2849 = vsel %vm695, %v2805, %v2829
      %v2850 = vsel %vm623, %v2830, %v2831
      %v2851 = vsel %vm695, %v2807, %v2850
      %v2852 = vsel %vm695, %v2809, %v2831
      %v2853 = vsel %vm623, %v2832, %v2833
      %v2854 = vsel %vm695, %v2811, %v2853
      %v2855 = vsel %vm695, %v2813, %v2833
      %v2856 = vsel %vm623, %v2834, %v2835
      %v2857 = vsel %vm695, %v2815, %v2856
      %v2858 = vsel %vm695, %v2817, %v2835
      %v2859 = vsel %vm623, %v2836, %v2837
      %v2860 = vsel %vm695, %v2819, %v2859
      %v2861 = vsel %vm695, %v2821, %v2837
      %2878 = vst [vmem:[#allocation3 + $0xc0] sm:$0xff] %v2839
      %2879 = vst [vmem:[#allocation3 + $0xc8] sm:$0xf] %v2840
      %2880 = vst [vmem:[#allocation3 + $0xcc] sm:$0xff] %v2842
      %2881 = vst [vmem:[#allocation3 + $0xd4] sm:$0xf] %v2843
      %2882 = vst [vmem:[#allocation3 + $0xd8] sm:$0xff] %v2845
      %2883 = vst [vmem:[#allocation3 + $0xe0] sm:$0xf] %v2846
      %2884 = vst [vmem:[#allocation3 + $0xe4] sm:$0xff] %v2848
      %2885 = vst [vmem:[#allocation3 + $0xec] sm:$0xf] %v2849
      %2886 = vst [vmem:[#allocation3 + $0xf0] sm:$0xff] %v2851
      %2887 = vst [vmem:[#allocation3 + $0xf8] sm:$0xf] %v2852
      %2888 = vst [vmem:[#allocation3 + $0xfc] sm:$0xff] %v2854
      %2889 = vst [vmem:[#allocation3 + $0x104] sm:$0xf] %v2855
      %2890 = vst [vmem:[#allocation3 + $0x108] sm:$0xff] %v2857
      %2891 = vst [vmem:[#allocation3 + $0x110] sm:$0xf] %v2858
      %2892 = vst [vmem:[#allocation3 + $0x114] sm:$0xff] %v2860
      %2893 = vst [vmem:[#allocation3 + $0x11c] sm:$0xf] %v2861
      %v2894 = vld [vmem:[#allocation2 + $0x28] sm:$0xff]
      %v2895 = vld [vmem:[#allocation2 + $0x30] sm:$0xff]
      %v2896 = vld [vmem:[#allocation2 + $0x3c] sm:$0xff]
      %v2897 = vld [vmem:[#allocation2 + $0x44] sm:$0xff]
      %v2898 = vld [vmem:[#allocation2 + $0x50] sm:$0xff]
      %v2899 = vld [vmem:[#allocation2 + $0x58] sm:$0xff]
      %v2900 = vld [vmem:[#allocation2 + $0x64] sm:$0xff]
      %v2901 = vld [vmem:[#allocation2 + $0x6c] sm:$0xff]
      %v2902 = vld [vmem:[#allocation2 + $0x78] sm:$0xff]
      %v2903 = vld [vmem:[#allocation2 + $0x80] sm:$0xff]
      %v2904 = vld [vmem:[#allocation2 + $0x8c] sm:$0xff]
      %v2905 = vld [vmem:[#allocation2 + $0x94] sm:$0xff]
      %v2906 = vld [vmem:[#allocation2 + $0xa0] sm:$0xff]
      %v2907 = vld [vmem:[#allocation2 + $0xa8] sm:$0xff]
      %v2908 = vld [vmem:[#allocation2 + $0xb4] sm:$0xff]
      %v2909 = vld [vmem:[#allocation2 + $0xbc] sm:$0xff]
      %2926 = vrot.lane.b32.xlu0 %v2894, 1
      %v2927 = vpop.permute.xlu0 %2926
      %2928 = vrot.lane.b32.xlu0 %v2895, 1
      %v2929 = vpop.permute.xlu0 %2928
      %2930 = vrot.lane.b32.xlu0 %v2896, 1
      %v2931 = vpop.permute.xlu0 %2930
      %2932 = vrot.lane.b32.xlu0 %v2897, 1
      %v2933 = vpop.permute.xlu0 %2932
      %2934 = vrot.lane.b32.xlu0 %v2898, 1
      %v2935 = vpop.permute.xlu0 %2934
      %2936 = vrot.lane.b32.xlu0 %v2899, 1
      %v2937 = vpop.permute.xlu0 %2936
      %2938 = vrot.lane.b32.xlu0 %v2900, 1
      %v2939 = vpop.permute.xlu0 %2938
      %2940 = vrot.lane.b32.xlu0 %v2901, 1
      %v2941 = vpop.permute.xlu0 %2940
      %2942 = vrot.lane.b32.xlu0 %v2902, 1
      %v2943 = vpop.permute.xlu0 %2942
      %2944 = vrot.lane.b32.xlu0 %v2903, 1
      %v2945 = vpop.permute.xlu0 %2944
      %2946 = vrot.lane.b32.xlu0 %v2904, 1
      %v2947 = vpop.permute.xlu0 %2946
      %2948 = vrot.lane.b32.xlu0 %v2905, 1
      %v2949 = vpop.permute.xlu0 %2948
      %2950 = vrot.lane.b32.xlu0 %v2906, 1
      %v2951 = vpop.permute.xlu0 %2950
      %2952 = vrot.lane.b32.xlu0 %v2907, 1
      %v2953 = vpop.permute.xlu0 %2952
      %2954 = vrot.lane.b32.xlu0 %v2908, 1
      %v2955 = vpop.permute.xlu0 %2954
      %2956 = vrot.lane.b32.xlu0 %v2909, 1
      %v2957 = vpop.permute.xlu0 %2956
      %v2958 = vrot.slane %v2927, 4
      %v2959 = vrot.slane %v2929, 4
      %v2960 = vrot.slane %v2931, 4
      %v2961 = vrot.slane %v2933, 4
      %v2962 = vrot.slane %v2935, 4
      %v2963 = vrot.slane %v2937, 4
      %v2964 = vrot.slane %v2939, 4
      %v2965 = vrot.slane %v2941, 4
      %v2966 = vrot.slane %v2943, 4
      %v2967 = vrot.slane %v2945, 4
      %v2968 = vrot.slane %v2947, 4
      %v2969 = vrot.slane %v2949, 4
      %v2970 = vrot.slane %v2951, 4
      %v2971 = vrot.slane %v2953, 4
      %v2972 = vrot.slane %v2955, 4
      %v2973 = vrot.slane %v2957, 4
      %v2974 = vsel %vm623, %v2958, %v2959
      %v2975 = vsel %vm730, %v2927, %v2974
      %v2976 = vsel %vm730, %v2929, %v2959
      %v2977 = vsel %vm623, %v2960, %v2961
      %v2978 = vsel %vm730, %v2931, %v2977
      %v2979 = vsel %vm730, %v2933, %v2961
      %v2980 = vsel %vm623, %v2962, %v2963
      %v2981 = vsel %vm730, %v2935, %v2980
      %v2982 = vsel %vm730, %v2937, %v2963
      %v2983 = vsel %vm623, %v2964, %v2965
      %v2984 = vsel %vm730, %v2939, %v2983
      %v2985 = vsel %vm730, %v2941, %v2965
      %v2986 = vsel %vm623, %v2966, %v2967
      %v2987 = vsel %vm730, %v2943, %v2986
      %v2988 = vsel %vm730, %v2945, %v2967
      %v2989 = vsel %vm623, %v2968, %v2969
      %v2990 = vsel %vm730, %v2947, %v2989
      %v2991 = vsel %vm730, %v2949, %v2969
      %v2992 = vsel %vm623, %v2970, %v2971
      %v2993 = vsel %vm730, %v2951, %v2992
      %v2994 = vsel %vm730, %v2953, %v2971
      %v2995 = vsel %vm623, %v2972, %v2973
      %v2996 = vsel %vm730, %v2955, %v2995
      %v2997 = vsel %vm730, %v2957, %v2973
      %3014 = vst [vmem:[#allocation3 + $0x120] sm:$0xff] %v2975
      %3015 = vst [vmem:[#allocation3 + $0x128] sm:$0xf] %v2976
      %3016 = vst [vmem:[#allocation3 + $0x12c] sm:$0xff] %v2978
      %3017 = vst [vmem:[#allocation3 + $0x134] sm:$0xf] %v2979
      %3018 = vst [vmem:[#allocation3 + $0x138] sm:$0xff] %v2981
      %3019 = vst [vmem:[#allocation3 + $0x140] sm:$0xf] %v2982
      %3020 = vst [vmem:[#allocation3 + $0x144] sm:$0xff] %v2984
      %3021 = vst [vmem:[#allocation3 + $0x14c] sm:$0xf] %v2985
      %3022 = vst [vmem:[#allocation3 + $0x150] sm:$0xff] %v2987
      %3023 = vst [vmem:[#allocation3 + $0x158] sm:$0xf] %v2988
      %3024 = vst [vmem:[#allocation3 + $0x15c] sm:$0xff] %v2990
      %3025 = vst [vmem:[#allocation3 + $0x164] sm:$0xf] %v2991
      %3026 = vst [vmem:[#allocation3 + $0x168] sm:$0xff] %v2993
      %3027 = vst [vmem:[#allocation3 + $0x170] sm:$0xf] %v2994
      %3028 = vst [vmem:[#allocation3 + $0x174] sm:$0xff] %v2996
      %3029 = vst [vmem:[#allocation3 + $0x17c] sm:$0xf] %v2997
      %v3030 = vld [vmem:[#allocation2 + $0x2c] sm:$0xff]
      %v3031 = vld [vmem:[#allocation2 + $0x34] sm:$0xf]
      %v3032 = vld [vmem:[#allocation2 + $0x40] sm:$0xff]
      %v3033 = vld [vmem:[#allocation2 + $0x48] sm:$0xf]
      %v3034 = vld [vmem:[#allocation2 + $0x54] sm:$0xff]
      %v3035 = vld [vmem:[#allocation2 + $0x5c] sm:$0xf]
      %v3036 = vld [vmem:[#allocation2 + $0x68] sm:$0xff]
      %v3037 = vld [vmem:[#allocation2 + $0x70] sm:$0xf]
      %v3038 = vld [vmem:[#allocation2 + $0x7c] sm:$0xff]
      %v3039 = vld [vmem:[#allocation2 + $0x84] sm:$0xf]
      %v3040 = vld [vmem:[#allocation2 + $0x90] sm:$0xff]
      %v3041 = vld [vmem:[#allocation2 + $0x98] sm:$0xf]
      %v3042 = vld [vmem:[#allocation2 + $0xa4] sm:$0xff]
      %v3043 = vld [vmem:[#allocation2 + $0xac] sm:$0xf]
      %v3044 = vld [vmem:[#allocation2 + $0xb8] sm:$0xff]
      %v3045 = vld [vmem:[#allocation2 + $0xc0] sm:$0xf]
      %3046 = vst [vmem:[#allocation3 + $0x180] sm:$0xff] %v3030
      %3047 = vst [vmem:[#allocation3 + $0x188] sm:$0xf] %v3031
      %3048 = vst [vmem:[#allocation3 + $0x18c] sm:$0xff] %v3032
      %3049 = vst [vmem:[#allocation3 + $0x194] sm:$0xf] %v3033
      %3050 = vst [vmem:[#allocation3 + $0x198] sm:$0xff] %v3034
      %3051 = vst [vmem:[#allocation3 + $0x1a0] sm:$0xf] %v3035
      %3052 = vst [vmem:[#allocation3 + $0x1a4] sm:$0xff] %v3036
      %3053 = vst [vmem:[#allocation3 + $0x1ac] sm:$0xf] %v3037
      %3054 = vst [vmem:[#allocation3 + $0x1b0] sm:$0xff] %v3038
      %3055 = vst [vmem:[#allocation3 + $0x1b8] sm:$0xf] %v3039
      %3056 = vst [vmem:[#allocation3 + $0x1bc] sm:$0xff] %v3040
      %3057 = vst [vmem:[#allocation3 + $0x1c4] sm:$0xf] %v3041
      %3058 = vst [vmem:[#allocation3 + $0x1c8] sm:$0xff] %v3042
      %3059 = vst [vmem:[#allocation3 + $0x1d0] sm:$0xf] %v3043
      %3060 = vst [vmem:[#allocation3 + $0x1d4] sm:$0xff] %v3044
      %3061 = vst [vmem:[#allocation3 + $0x1dc] sm:$0xf] %v3045
      %v3062 = vld [vmem:[#allocation2 + $0x2c] sm:$0xff]
      %v3063 = vld [vmem:[#allocation2 + $0x34] sm:$0xff]
      %v3064 = vld [vmem:[#allocation2 + $0x40] sm:$0xff]
      %v3065 = vld [vmem:[#allocation2 + $0x48] sm:$0xff]
      %v3066 = vld [vmem:[#allocation2 + $0x54] sm:$0xff]
      %v3067 = vld [vmem:[#allocation2 + $0x5c] sm:$0xff]
      %v3068 = vld [vmem:[#allocation2 + $0x68] sm:$0xff]
      %v3069 = vld [vmem:[#allocation2 + $0x70] sm:$0xff]
      %v3070 = vld [vmem:[#allocation2 + $0x7c] sm:$0xff]
      %v3071 = vld [vmem:[#allocation2 + $0x84] sm:$0xff]
      %v3072 = vld [vmem:[#allocation2 + $0x90] sm:$0xff]
      %v3073 = vld [vmem:[#allocation2 + $0x98] sm:$0xff]
      %v3074 = vld [vmem:[#allocation2 + $0xa4] sm:$0xff]
      %v3075 = vld [vmem:[#allocation2 + $0xac] sm:$0xff]
      %v3076 = vld [vmem:[#allocation2 + $0xb8] sm:$0xff]
      %v3077 = vld [vmem:[#allocation2 + $0xc0] sm:$0xff]
      %3094 = vrot.lane.b32.xlu0 %v3062, 127
      %v3095 = vpop.permute.xlu0 %3094
      %3096 = vrot.lane.b32.xlu0 %v3063, 127
      %v3097 = vpop.permute.xlu0 %3096
      %3098 = vrot.lane.b32.xlu0 %v3064, 127
      %v3099 = vpop.permute.xlu0 %3098
      %3100 = vrot.lane.b32.xlu0 %v3065, 127
      %v3101 = vpop.permute.xlu0 %3100
      %3102 = vrot.lane.b32.xlu0 %v3066, 127
      %v3103 = vpop.permute.xlu0 %3102
      %3104 = vrot.lane.b32.xlu0 %v3067, 127
      %v3105 = vpop.permute.xlu0 %3104
      %3106 = vrot.lane.b32.xlu0 %v3068, 127
      %v3107 = vpop.permute.xlu0 %3106
      %3108 = vrot.lane.b32.xlu0 %v3069, 127
      %v3109 = vpop.permute.xlu0 %3108
      %3110 = vrot.lane.b32.xlu0 %v3070, 127
      %v3111 = vpop.permute.xlu0 %3110
      %3112 = vrot.lane.b32.xlu0 %v3071, 127
      %v3113 = vpop.permute.xlu0 %3112
      %3114 = vrot.lane.b32.xlu0 %v3072, 127
      %v3115 = vpop.permute.xlu0 %3114
      %3116 = vrot.lane.b32.xlu0 %v3073, 127
      %v3117 = vpop.permute.xlu0 %3116
      %3118 = vrot.lane.b32.xlu0 %v3074, 127
      %v3119 = vpop.permute.xlu0 %3118
      %3120 = vrot.lane.b32.xlu0 %v3075, 127
      %v3121 = vpop.permute.xlu0 %3120
      %3122 = vrot.lane.b32.xlu0 %v3076, 127
      %v3123 = vpop.permute.xlu0 %3122
      %3124 = vrot.lane.b32.xlu0 %v3077, 127
      %v3125 = vpop.permute.xlu0 %3124
      %v3126 = vrot.slane %v3095, 4
      %v3127 = vrot.slane %v3097, 4
      %v3128 = vrot.slane %v3099, 4
      %v3129 = vrot.slane %v3101, 4
      %v3130 = vrot.slane %v3103, 4
      %v3131 = vrot.slane %v3105, 4
      %v3132 = vrot.slane %v3107, 4
      %v3133 = vrot.slane %v3109, 4
      %v3134 = vrot.slane %v3111, 4
      %v3135 = vrot.slane %v3113, 4
      %v3136 = vrot.slane %v3115, 4
      %v3137 = vrot.slane %v3117, 4
      %v3138 = vrot.slane %v3119, 4
      %v3139 = vrot.slane %v3121, 4
      %v3140 = vrot.slane %v3123, 4
      %v3141 = vrot.slane %v3125, 4
      %v3142 = vsel %vm623, %v3126, %v3127
      %v3143 = vsel %vm773, %v3095, %v3142
      %v3144 = vsel %vm773, %v3097, %v3127
      %v3145 = vsel %vm623, %v3128, %v3129
      %v3146 = vsel %vm773, %v3099, %v3145
      %v3147 = vsel %vm773, %v3101, %v3129
      %v3148 = vsel %vm623, %v3130, %v3131
      %v3149 = vsel %vm773, %v3103, %v3148
      %v3150 = vsel %vm773, %v3105, %v3131
      %v3151 = vsel %vm623, %v3132, %v3133
      %v3152 = vsel %vm773, %v3107, %v3151
      %v3153 = vsel %vm773, %v3109, %v3133
      %v3154 = vsel %vm623, %v3134, %v3135
      %v3155 = vsel %vm773, %v3111, %v3154
      %v3156 = vsel %vm773, %v3113, %v3135
      %v3157 = vsel %vm623, %v3136, %v3137
      %v3158 = vsel %vm773, %v3115, %v3157
      %v3159 = vsel %vm773, %v3117, %v3137
      %v3160 = vsel %vm623, %v3138, %v3139
      %v3161 = vsel %vm773, %v3119, %v3160
      %v3162 = vsel %vm773, %v3121, %v3139
      %v3163 = vsel %vm623, %v3140, %v3141
      %v3164 = vsel %vm773, %v3123, %v3163
      %v3165 = vsel %vm773, %v3125, %v3141
      %3182 = vst [vmem:[#allocation3 + $0x1e0] sm:$0xff] %v3143
      %3183 = vst [vmem:[#allocation3 + $0x1e8] sm:$0xf] %v3144
      %3184 = vst [vmem:[#allocation3 + $0x1ec] sm:$0xff] %v3146
      %3185 = vst [vmem:[#allocation3 + $0x1f4] sm:$0xf] %v3147
      %3186 = vst [vmem:[#allocation3 + $0x1f8] sm:$0xff] %v3149
      %3187 = vst [vmem:[#allocation3 + $0x200] sm:$0xf] %v3150
      %3188 = vst [vmem:[#allocation3 + $0x204] sm:$0xff] %v3152
      %3189 = vst [vmem:[#allocation3 + $0x20c] sm:$0xf] %v3153
      %3190 = vst [vmem:[#allocation3 + $0x210] sm:$0xff] %v3155
      %3191 = vst [vmem:[#allocation3 + $0x218] sm:$0xf] %v3156
      %3192 = vst [vmem:[#allocation3 + $0x21c] sm:$0xff] %v3158
      %3193 = vst [vmem:[#allocation3 + $0x224] sm:$0xf] %v3159
      %3194 = vst [vmem:[#allocation3 + $0x228] sm:$0xff] %v3161
      %3195 = vst [vmem:[#allocation3 + $0x230] sm:$0xf] %v3162
      %3196 = vst [vmem:[#allocation3 + $0x234] sm:$0xff] %v3164
      %3197 = vst [vmem:[#allocation3 + $0x23c] sm:$0xf] %v3165
      %v3198 = vld [vmem:[#allocation2 + $0x2c] sm:$0xff]
      %v3199 = vld [vmem:[#allocation2 + $0x34] sm:$0xff]
      %v3200 = vld [vmem:[#allocation2 + $0x40] sm:$0xff]
      %v3201 = vld [vmem:[#allocation2 + $0x48] sm:$0xff]
      %v3202 = vld [vmem:[#allocation2 + $0x54] sm:$0xff]
      %v3203 = vld [vmem:[#allocation2 + $0x5c] sm:$0xff]
      %v3204 = vld [vmem:[#allocation2 + $0x68] sm:$0xff]
      %v3205 = vld [vmem:[#allocation2 + $0x70] sm:$0xff]
      %v3206 = vld [vmem:[#allocation2 + $0x7c] sm:$0xff]
      %v3207 = vld [vmem:[#allocation2 + $0x84] sm:$0xff]
      %v3208 = vld [vmem:[#allocation2 + $0x90] sm:$0xff]
      %v3209 = vld [vmem:[#allocation2 + $0x98] sm:$0xff]
      %v3210 = vld [vmem:[#allocation2 + $0xa4] sm:$0xff]
      %v3211 = vld [vmem:[#allocation2 + $0xac] sm:$0xff]
      %v3212 = vld [vmem:[#allocation2 + $0xb8] sm:$0xff]
      %v3213 = vld [vmem:[#allocation2 + $0xc0] sm:$0xff]
      %3230 = vrot.lane.b32.xlu0 %v3198, 111
      %v3231 = vpop.permute.xlu0 %3230
      %3232 = vrot.lane.b32.xlu0 %v3199, 111
      %v3233 = vpop.permute.xlu0 %3232
      %3234 = vrot.lane.b32.xlu0 %v3200, 111
      %v3235 = vpop.permute.xlu0 %3234
      %3236 = vrot.lane.b32.xlu0 %v3201, 111
      %v3237 = vpop.permute.xlu0 %3236
      %3238 = vrot.lane.b32.xlu0 %v3202, 111
      %v3239 = vpop.permute.xlu0 %3238
      %3240 = vrot.lane.b32.xlu0 %v3203, 111
      %v3241 = vpop.permute.xlu0 %3240
      %3242 = vrot.lane.b32.xlu0 %v3204, 111
      %v3243 = vpop.permute.xlu0 %3242
      %3244 = vrot.lane.b32.xlu0 %v3205, 111
      %v3245 = vpop.permute.xlu0 %3244
      %3246 = vrot.lane.b32.xlu0 %v3206, 111
      %v3247 = vpop.permute.xlu0 %3246
      %3248 = vrot.lane.b32.xlu0 %v3207, 111
      %v3249 = vpop.permute.xlu0 %3248
      %3250 = vrot.lane.b32.xlu0 %v3208, 111
      %v3251 = vpop.permute.xlu0 %3250
      %3252 = vrot.lane.b32.xlu0 %v3209, 111
      %v3253 = vpop.permute.xlu0 %3252
      %3254 = vrot.lane.b32.xlu0 %v3210, 111
      %v3255 = vpop.permute.xlu0 %3254
      %3256 = vrot.lane.b32.xlu0 %v3211, 111
      %v3257 = vpop.permute.xlu0 %3256
      %3258 = vrot.lane.b32.xlu0 %v3212, 111
      %v3259 = vpop.permute.xlu0 %3258
      %3260 = vrot.lane.b32.xlu0 %v3213, 111
      %v3261 = vpop.permute.xlu0 %3260
      %v3262 = vrot.slane %v3231, 4
      %v3263 = vrot.slane %v3233, 4
      %v3264 = vrot.slane %v3235, 4
      %v3265 = vrot.slane %v3237, 4
      %v3266 = vrot.slane %v3239, 4
      %v3267 = vrot.slane %v3241, 4
      %v3268 = vrot.slane %v3243, 4
      %v3269 = vrot.slane %v3245, 4
      %v3270 = vrot.slane %v3247, 4
      %v3271 = vrot.slane %v3249, 4
      %v3272 = vrot.slane %v3251, 4
      %v3273 = vrot.slane %v3253, 4
      %v3274 = vrot.slane %v3255, 4
      %v3275 = vrot.slane %v3257, 4
      %v3276 = vrot.slane %v3259, 4
      %v3277 = vrot.slane %v3261, 4
      %v3278 = vsel %vm623, %v3262, %v3263
      %v3279 = vsel %vm808, %v3231, %v3278
      %v3280 = vsel %vm808, %v3233, %v3263
      %v3281 = vsel %vm623, %v3264, %v3265
      %v3282 = vsel %vm808, %v3235, %v3281
      %v3283 = vsel %vm808, %v3237, %v3265
      %v3284 = vsel %vm623, %v3266, %v3267
      %v3285 = vsel %vm808, %v3239, %v3284
      %v3286 = vsel %vm808, %v3241, %v3267
      %v3287 = vsel %vm623, %v3268, %v3269
      %v3288 = vsel %vm808, %v3243, %v3287
      %v3289 = vsel %vm808, %v3245, %v3269
      %v3290 = vsel %vm623, %v3270, %v3271
      %v3291 = vsel %vm808, %v3247, %v3290
      %v3292 = vsel %vm808, %v3249, %v3271
      %v3293 = vsel %vm623, %v3272, %v3273
      %v3294 = vsel %vm808, %v3251, %v3293
      %v3295 = vsel %vm808, %v3253, %v3273
      %v3296 = vsel %vm623, %v3274, %v3275
      %v3297 = vsel %vm808, %v3255, %v3296
      %v3298 = vsel %vm808, %v3257, %v3275
      %v3299 = vsel %vm623, %v3276, %v3277
      %v3300 = vsel %vm808, %v3259, %v3299
      %v3301 = vsel %vm808, %v3261, %v3277
      %3318 = vst [vmem:[#allocation3 + $0x240] sm:$0xff] %v3279
      %3319 = vst [vmem:[#allocation3 + $0x248] sm:$0xf] %v3280
      %3320 = vst [vmem:[#allocation3 + $0x24c] sm:$0xff] %v3282
      %3321 = vst [vmem:[#allocation3 + $0x254] sm:$0xf] %v3283
      %3322 = vst [vmem:[#allocation3 + $0x258] sm:$0xff] %v3285
      %3323 = vst [vmem:[#allocation3 + $0x260] sm:$0xf] %v3286
      %3324 = vst [vmem:[#allocation3 + $0x264] sm:$0xff] %v3288
      %3325 = vst [vmem:[#allocation3 + $0x26c] sm:$0xf] %v3289
      %3326 = vst [vmem:[#allocation3 + $0x270] sm:$0xff] %v3291
      %3327 = vst [vmem:[#allocation3 + $0x278] sm:$0xf] %v3292
      %3328 = vst [vmem:[#allocation3 + $0x27c] sm:$0xff] %v3294
      %3329 = vst [vmem:[#allocation3 + $0x284] sm:$0xf] %v3295
      %3330 = vst [vmem:[#allocation3 + $0x288] sm:$0xff] %v3297
      %3331 = vst [vmem:[#allocation3 + $0x290] sm:$0xf] %v3298
      %3332 = vst [vmem:[#allocation3 + $0x294] sm:$0xff] %v3300
      %3333 = vst [vmem:[#allocation3 + $0x29c] sm:$0xf] %v3301
      %v3334 = vld [vmem:[#allocation2 + $0x2c] sm:$0xff]
      %v3335 = vld [vmem:[#allocation2 + $0x34] sm:$0xff]
      %v3336 = vld [vmem:[#allocation2 + $0x40] sm:$0xff]
      %v3337 = vld [vmem:[#allocation2 + $0x48] sm:$0xff]
      %v3338 = vld [vmem:[#allocation2 + $0x54] sm:$0xff]
      %v3339 = vld [vmem:[#allocation2 + $0x5c] sm:$0xff]
      %v3340 = vld [vmem:[#allocation2 + $0x68] sm:$0xff]
      %v3341 = vld [vmem:[#allocation2 + $0x70] sm:$0xff]
      %v3342 = vld [vmem:[#allocation2 + $0x7c] sm:$0xff]
      %v3343 = vld [vmem:[#allocation2 + $0x84] sm:$0xff]
      %v3344 = vld [vmem:[#allocation2 + $0x90] sm:$0xff]
      %v3345 = vld [vmem:[#allocation2 + $0x98] sm:$0xff]
      %v3346 = vld [vmem:[#allocation2 + $0xa4] sm:$0xff]
      %v3347 = vld [vmem:[#allocation2 + $0xac] sm:$0xff]
      %v3348 = vld [vmem:[#allocation2 + $0xb8] sm:$0xff]
      %v3349 = vld [vmem:[#allocation2 + $0xc0] sm:$0xff]
      %3366 = vrot.lane.b32.xlu0 %v3334, 110
      %v3367 = vpop.permute.xlu0 %3366
      %3368 = vrot.lane.b32.xlu0 %v3335, 110
      %v3369 = vpop.permute.xlu0 %3368
      %3370 = vrot.lane.b32.xlu0 %v3336, 110
      %v3371 = vpop.permute.xlu0 %3370
      %3372 = vrot.lane.b32.xlu0 %v3337, 110
      %v3373 = vpop.permute.xlu0 %3372
      %3374 = vrot.lane.b32.xlu0 %v3338, 110
      %v3375 = vpop.permute.xlu0 %3374
      %3376 = vrot.lane.b32.xlu0 %v3339, 110
      %v3377 = vpop.permute.xlu0 %3376
      %3378 = vrot.lane.b32.xlu0 %v3340, 110
      %v3379 = vpop.permute.xlu0 %3378
      %3380 = vrot.lane.b32.xlu0 %v3341, 110
      %v3381 = vpop.permute.xlu0 %3380
      %3382 = vrot.lane.b32.xlu0 %v3342, 110
      %v3383 = vpop.permute.xlu0 %3382
      %3384 = vrot.lane.b32.xlu0 %v3343, 110
      %v3385 = vpop.permute.xlu0 %3384
      %3386 = vrot.lane.b32.xlu0 %v3344, 110
      %v3387 = vpop.permute.xlu0 %3386
      %3388 = vrot.lane.b32.xlu0 %v3345, 110
      %v3389 = vpop.permute.xlu0 %3388
      %3390 = vrot.lane.b32.xlu0 %v3346, 110
      %v3391 = vpop.permute.xlu0 %3390
      %3392 = vrot.lane.b32.xlu0 %v3347, 110
      %v3393 = vpop.permute.xlu0 %3392
      %3394 = vrot.lane.b32.xlu0 %v3348, 110
      %v3395 = vpop.permute.xlu0 %3394
      %3396 = vrot.lane.b32.xlu0 %v3349, 110
      %v3397 = vpop.permute.xlu0 %3396
      %v3398 = vrot.slane %v3367, 4
      %v3399 = vrot.slane %v3369, 4
      %v3400 = vrot.slane %v3371, 4
      %v3401 = vrot.slane %v3373, 4
      %v3402 = vrot.slane %v3375, 4
      %v3403 = vrot.slane %v3377, 4
      %v3404 = vrot.slane %v3379, 4
      %v3405 = vrot.slane %v3381, 4
      %v3406 = vrot.slane %v3383, 4
      %v3407 = vrot.slane %v3385, 4
      %v3408 = vrot.slane %v3387, 4
      %v3409 = vrot.slane %v3389, 4
      %v3410 = vrot.slane %v3391, 4
      %v3411 = vrot.slane %v3393, 4
      %v3412 = vrot.slane %v3395, 4
      %v3413 = vrot.slane %v3397, 4
      %v3414 = vsel %vm623, %v3398, %v3399
      %v3415 = vsel %vm843, %v3367, %v3414
      %v3416 = vsel %vm843, %v3369, %v3399
      %v3417 = vsel %vm623, %v3400, %v3401
      %v3418 = vsel %vm843, %v3371, %v3417
      %v3419 = vsel %vm843, %v3373, %v3401
      %v3420 = vsel %vm623, %v3402, %v3403
      %v3421 = vsel %vm843, %v3375, %v3420
      %v3422 = vsel %vm843, %v3377, %v3403
      %v3423 = vsel %vm623, %v3404, %v3405
      %v3424 = vsel %vm843, %v3379, %v3423
      %v3425 = vsel %vm843, %v3381, %v3405
      %v3426 = vsel %vm623, %v3406, %v3407
      %v3427 = vsel %vm843, %v3383, %v3426
      %v3428 = vsel %vm843, %v3385, %v3407
      %v3429 = vsel %vm623, %v3408, %v3409
      %v3430 = vsel %vm843, %v3387, %v3429
      %v3431 = vsel %vm843, %v3389, %v3409
      %v3432 = vsel %vm623, %v3410, %v3411
      %v3433 = vsel %vm843, %v3391, %v3432
      %v3434 = vsel %vm843, %v3393, %v3411
      %v3435 = vsel %vm623, %v3412, %v3413
      %v3436 = vsel %vm843, %v3395, %v3435
      %v3437 = vsel %vm843, %v3397, %v3413
      %3454 = vst [vmem:[#allocation3 + $0x2a0] sm:$0xff] %v3415
      %3455 = vst [vmem:[#allocation3 + $0x2a8] sm:$0xf] %v3416
      %3456 = vst [vmem:[#allocation3 + $0x2ac] sm:$0xff] %v3418
      %3457 = vst [vmem:[#allocation3 + $0x2b4] sm:$0xf] %v3419
      %3458 = vst [vmem:[#allocation3 + $0x2b8] sm:$0xff] %v3421
      %3459 = vst [vmem:[#allocation3 + $0x2c0] sm:$0xf] %v3422
      %3460 = vst [vmem:[#allocation3 + $0x2c4] sm:$0xff] %v3424
      %3461 = vst [vmem:[#allocation3 + $0x2cc] sm:$0xf] %v3425
      %3462 = vst [vmem:[#allocation3 + $0x2d0] sm:$0xff] %v3427
      %3463 = vst [vmem:[#allocation3 + $0x2d8] sm:$0xf] %v3428
      %3464 = vst [vmem:[#allocation3 + $0x2dc] sm:$0xff] %v3430
      %3465 = vst [vmem:[#allocation3 + $0x2e4] sm:$0xf] %v3431
      %3466 = vst [vmem:[#allocation3 + $0x2e8] sm:$0xff] %v3433
      %3467 = vst [vmem:[#allocation3 + $0x2f0] sm:$0xf] %v3434
      %3468 = vst [vmem:[#allocation3 + $0x2f4] sm:$0xff] %v3436
      %3469 = vst [vmem:[#allocation3 + $0x2fc] sm:$0xf] %v3437
      %v3470 = vld [vmem:[#allocation2 + $0x2c] sm:$0xff]
      %v3471 = vld [vmem:[#allocation2 + $0x34] sm:$0xff]
      %v3472 = vld [vmem:[#allocation2 + $0x40] sm:$0xff]
      %v3473 = vld [vmem:[#allocation2 + $0x48] sm:$0xff]
      %v3474 = vld [vmem:[#allocation2 + $0x54] sm:$0xff]
      %v3475 = vld [vmem:[#allocation2 + $0x5c] sm:$0xff]
      %v3476 = vld [vmem:[#allocation2 + $0x68] sm:$0xff]
      %v3477 = vld [vmem:[#allocation2 + $0x70] sm:$0xff]
      %v3478 = vld [vmem:[#allocation2 + $0x7c] sm:$0xff]
      %v3479 = vld [vmem:[#allocation2 + $0x84] sm:$0xff]
      %v3480 = vld [vmem:[#allocation2 + $0x90] sm:$0xff]
      %v3481 = vld [vmem:[#allocation2 + $0x98] sm:$0xff]
      %v3482 = vld [vmem:[#allocation2 + $0xa4] sm:$0xff]
      %v3483 = vld [vmem:[#allocation2 + $0xac] sm:$0xff]
      %v3484 = vld [vmem:[#allocation2 + $0xb8] sm:$0xff]
      %v3485 = vld [vmem:[#allocation2 + $0xc0] sm:$0xff]
      %3502 = vrot.lane.b32.xlu0 %v3470, 109
      %v3503 = vpop.permute.xlu0 %3502
      %3504 = vrot.lane.b32.xlu0 %v3471, 109
      %v3505 = vpop.permute.xlu0 %3504
      %3506 = vrot.lane.b32.xlu0 %v3472, 109
      %v3507 = vpop.permute.xlu0 %3506
      %3508 = vrot.lane.b32.xlu0 %v3473, 109
      %v3509 = vpop.permute.xlu0 %3508
      %3510 = vrot.lane.b32.xlu0 %v3474, 109
      %v3511 = vpop.permute.xlu0 %3510
      %3512 = vrot.lane.b32.xlu0 %v3475, 109
      %v3513 = vpop.permute.xlu0 %3512
      %3514 = vrot.lane.b32.xlu0 %v3476, 109
      %v3515 = vpop.permute.xlu0 %3514
      %3516 = vrot.lane.b32.xlu0 %v3477, 109
      %v3517 = vpop.permute.xlu0 %3516
      %3518 = vrot.lane.b32.xlu0 %v3478, 109
      %v3519 = vpop.permute.xlu0 %3518
      %3520 = vrot.lane.b32.xlu0 %v3479, 109
      %v3521 = vpop.permute.xlu0 %3520
      %3522 = vrot.lane.b32.xlu0 %v3480, 109
      %v3523 = vpop.permute.xlu0 %3522
      %3524 = vrot.lane.b32.xlu0 %v3481, 109
      %v3525 = vpop.permute.xlu0 %3524
      %3526 = vrot.lane.b32.xlu0 %v3482, 109
      %v3527 = vpop.permute.xlu0 %3526
      %3528 = vrot.lane.b32.xlu0 %v3483, 109
      %v3529 = vpop.permute.xlu0 %3528
      %3530 = vrot.lane.b32.xlu0 %v3484, 109
      %v3531 = vpop.permute.xlu0 %3530
      %3532 = vrot.lane.b32.xlu0 %v3485, 109
      %v3533 = vpop.permute.xlu0 %3532
      %v3534 = vrot.slane %v3503, 4
      %v3535 = vrot.slane %v3505, 4
      %v3536 = vrot.slane %v3507, 4
      %v3537 = vrot.slane %v3509, 4
      %v3538 = vrot.slane %v3511, 4
      %v3539 = vrot.slane %v3513, 4
      %v3540 = vrot.slane %v3515, 4
      %v3541 = vrot.slane %v3517, 4
      %v3542 = vrot.slane %v3519, 4
      %v3543 = vrot.slane %v3521, 4
      %v3544 = vrot.slane %v3523, 4
      %v3545 = vrot.slane %v3525, 4
      %v3546 = vrot.slane %v3527, 4
      %v3547 = vrot.slane %v3529, 4
      %v3548 = vrot.slane %v3531, 4
      %v3549 = vrot.slane %v3533, 4
      %v3550 = vsel %vm623, %v3534, %v3535
      %v3551 = vsel %vm878, %v3503, %v3550
      %v3552 = vsel %vm878, %v3505, %v3535
      %v3553 = vsel %vm623, %v3536, %v3537
      %v3554 = vsel %vm878, %v3507, %v3553
      %v3555 = vsel %vm878, %v3509, %v3537
      %v3556 = vsel %vm623, %v3538, %v3539
      %v3557 = vsel %vm878, %v3511, %v3556
      %v3558 = vsel %vm878, %v3513, %v3539
      %v3559 = vsel %vm623, %v3540, %v3541
      %v3560 = vsel %vm878, %v3515, %v3559
      %v3561 = vsel %vm878, %v3517, %v3541
      %v3562 = vsel %vm623, %v3542, %v3543
      %v3563 = vsel %vm878, %v3519, %v3562
      %v3564 = vsel %vm878, %v3521, %v3543
      %v3565 = vsel %vm623, %v3544, %v3545
      %v3566 = vsel %vm878, %v3523, %v3565
      %v3567 = vsel %vm878, %v3525, %v3545
      %v3568 = vsel %vm623, %v3546, %v3547
      %v3569 = vsel %vm878, %v3527, %v3568
      %v3570 = vsel %vm878, %v3529, %v3547
      %v3571 = vsel %vm623, %v3548, %v3549
      %v3572 = vsel %vm878, %v3531, %v3571
      %v3573 = vsel %vm878, %v3533, %v3549
      %3590 = vst [vmem:[#allocation3 + $0x300] sm:$0xff] %v3551
      %3591 = vst [vmem:[#allocation3 + $0x308] sm:$0xf] %v3552
      %3592 = vst [vmem:[#allocation3 + $0x30c] sm:$0xff] %v3554
      %3593 = vst [vmem:[#allocation3 + $0x314] sm:$0xf] %v3555
      %3594 = vst [vmem:[#allocation3 + $0x318] sm:$0xff] %v3557
      %3595 = vst [vmem:[#allocation3 + $0x320] sm:$0xf] %v3558
      %3596 = vst [vmem:[#allocation3 + $0x324] sm:$0xff] %v3560
      %3597 = vst [vmem:[#allocation3 + $0x32c] sm:$0xf] %v3561
      %3598 = vst [vmem:[#allocation3 + $0x330] sm:$0xff] %v3563
      %3599 = vst [vmem:[#allocation3 + $0x338] sm:$0xf] %v3564
      %3600 = vst [vmem:[#allocation3 + $0x33c] sm:$0xff] %v3566
      %3601 = vst [vmem:[#allocation3 + $0x344] sm:$0xf] %v3567
      %3602 = vst [vmem:[#allocation3 + $0x348] sm:$0xff] %v3569
      %3603 = vst [vmem:[#allocation3 + $0x350] sm:$0xf] %v3570
      %3604 = vst [vmem:[#allocation3 + $0x354] sm:$0xff] %v3572
      %3605 = vst [vmem:[#allocation3 + $0x35c] sm:$0xf] %v3573
      %v3606 = vld [vmem:[%s7] sm:$0xff]
      %v3607 = vld [vmem:[%s7 + $0x8] sm:$0xff]
      %v3608 = vld [vmem:[%s7 + $0x10] sm:$0xf]
      %v3609 = vld [vmem:[%s7 + $0x14] sm:$0xff]
      %v3610 = vld [vmem:[%s7 + $0x1c] sm:$0xff]
      %v3611 = vld [vmem:[%s7 + $0x24] sm:$0xf]
      %v3612 = vld [vmem:[%s7 + $0x28] sm:$0xff]
      %v3613 = vld [vmem:[%s7 + $0x30] sm:$0xff]
      %v3614 = vld [vmem:[%s7 + $0x38] sm:$0xf]
      %v3615 = vld [vmem:[%s7 + $0x3c] sm:$0xff]
      %v3616 = vld [vmem:[%s7 + $0x44] sm:$0xff]
      %v3617 = vld [vmem:[%s7 + $0x4c] sm:$0xf]
      %v3618 = vld [vmem:[#allocation3] sm:$0xff]
      %v3619 = vld [vmem:[#allocation3 + $0x8] sm:$0xf]
      %v3620 = vld [vmem:[#allocation3 + $0xc] sm:$0xff]
      %v3621 = vld [vmem:[#allocation3 + $0x14] sm:$0xf]
      %v3622 = vld [vmem:[#allocation3 + $0x18] sm:$0xff]
      %v3623 = vld [vmem:[#allocation3 + $0x20] sm:$0xf]
      %v3624 = vld [vmem:[#allocation3 + $0x24] sm:$0xff]
      %v3625 = vld [vmem:[#allocation3 + $0x2c] sm:$0xf]
      %v3626 = vld [vmem:[#allocation3 + $0x30] sm:$0xff]
      %v3627 = vld [vmem:[#allocation3 + $0x38] sm:$0xf]
      %v3628 = vld [vmem:[#allocation3 + $0x3c] sm:$0xff]
      %v3629 = vld [vmem:[#allocation3 + $0x44] sm:$0xf]
      %v3630 = vld [vmem:[#allocation3 + $0x48] sm:$0xff]
      %v3631 = vld [vmem:[#allocation3 + $0x50] sm:$0xf]
      %v3632 = vld [vmem:[#allocation3 + $0x54] sm:$0xff]
      %v3633 = vld [vmem:[#allocation3 + $0x5c] sm:$0xf]
      %v3634 = vld [vmem:[#allocation3 + $0x60] sm:$0xff]
      %v3635 = vld [vmem:[#allocation3 + $0x68] sm:$0xf]
      %v3636 = vld [vmem:[#allocation3 + $0x6c] sm:$0xff]
      %v3637 = vld [vmem:[#allocation3 + $0x74] sm:$0xf]
      %v3638 = vld [vmem:[#allocation3 + $0x78] sm:$0xff]
      %v3639 = vld [vmem:[#allocation3 + $0x80] sm:$0xf]
      %v3640 = vld [vmem:[#allocation3 + $0x84] sm:$0xff]
      %v3641 = vld [vmem:[#allocation3 + $0x8c] sm:$0xf]
      %v3642 = vld [vmem:[#allocation3 + $0x90] sm:$0xff]
      %v3643 = vld [vmem:[#allocation3 + $0x98] sm:$0xf]
      %v3644 = vld [vmem:[#allocation3 + $0x9c] sm:$0xff]
      %v3645 = vld [vmem:[#allocation3 + $0xa4] sm:$0xf]
      %v3646 = vld [vmem:[#allocation3 + $0xa8] sm:$0xff]
      %v3647 = vld [vmem:[#allocation3 + $0xb0] sm:$0xf]
      %v3648 = vld [vmem:[#allocation3 + $0xb4] sm:$0xff]
      %v3649 = vld [vmem:[#allocation3 + $0xbc] sm:$0xf]
      %v3650 = vld [vmem:[#allocation3 + $0xc0] sm:$0xff]
      %v3651 = vld [vmem:[#allocation3 + $0xc8] sm:$0xf]
      %v3652 = vld [vmem:[#allocation3 + $0xcc] sm:$0xff]
      %v3653 = vld [vmem:[#allocation3 + $0xd4] sm:$0xf]
      %v3654 = vld [vmem:[#allocation3 + $0xd8] sm:$0xff]
      %v3655 = vld [vmem:[#allocation3 + $0xe0] sm:$0xf]
      %v3656 = vld [vmem:[#allocation3 + $0xe4] sm:$0xff]
      %v3657 = vld [vmem:[#allocation3 + $0xec] sm:$0xf]
      %v3658 = vld [vmem:[#allocation3 + $0xf0] sm:$0xff]
      %v3659 = vld [vmem:[#allocation3 + $0xf8] sm:$0xf]
      %v3660 = vld [vmem:[#allocation3 + $0xfc] sm:$0xff]
      %v3661 = vld [vmem:[#allocation3 + $0x104] sm:$0xf]
      %v3662 = vld [vmem:[#allocation3 + $0x108] sm:$0xff]
      %v3663 = vld [vmem:[#allocation3 + $0x110] sm:$0xf]
      %v3664 = vld [vmem:[#allocation3 + $0x114] sm:$0xff]
      %v3665 = vld [vmem:[#allocation3 + $0x11c] sm:$0xf]
      %v3666 = vld [vmem:[#allocation3 + $0x120] sm:$0xff]
      %v3667 = vld [vmem:[#allocation3 + $0x128] sm:$0xf]
      %v3668 = vld [vmem:[#allocation3 + $0x12c] sm:$0xff]
      %v3669 = vld [vmem:[#allocation3 + $0x134] sm:$0xf]
      %v3670 = vld [vmem:[#allocation3 + $0x138] sm:$0xff]
      %v3671 = vld [vmem:[#allocation3 + $0x140] sm:$0xf]
      %v3672 = vld [vmem:[#allocation3 + $0x144] sm:$0xff]
      %v3673 = vld [vmem:[#allocation3 + $0x14c] sm:$0xf]
      %v3674 = vld [vmem:[#allocation3 + $0x150] sm:$0xff]
      %v3675 = vld [vmem:[#allocation3 + $0x158] sm:$0xf]
      %v3676 = vld [vmem:[#allocation3 + $0x15c] sm:$0xff]
      %v3677 = vld [vmem:[#allocation3 + $0x164] sm:$0xf]
      %v3678 = vld [vmem:[#allocation3 + $0x168] sm:$0xff]
      %v3679 = vld [vmem:[#allocation3 + $0x170] sm:$0xf]
      %v3680 = vld [vmem:[#allocation3 + $0x174] sm:$0xff]
      %v3681 = vld [vmem:[#allocation3 + $0x17c] sm:$0xf]
      %v3682 = vld [vmem:[#allocation3 + $0x180] sm:$0xff]
      %v3683 = vld [vmem:[#allocation3 + $0x188] sm:$0xf]
      %v3684 = vld [vmem:[#allocation3 + $0x18c] sm:$0xff]
      %v3685 = vld [vmem:[#allocation3 + $0x194] sm:$0xf]
      %v3686 = vld [vmem:[#allocation3 + $0x198] sm:$0xff]
      %v3687 = vld [vmem:[#allocation3 + $0x1a0] sm:$0xf]
      %v3688 = vld [vmem:[#allocation3 + $0x1a4] sm:$0xff]
      %v3689 = vld [vmem:[#allocation3 + $0x1ac] sm:$0xf]
      %v3690 = vld [vmem:[#allocation3 + $0x1b0] sm:$0xff]
      %v3691 = vld [vmem:[#allocation3 + $0x1b8] sm:$0xf]
      %v3692 = vld [vmem:[#allocation3 + $0x1bc] sm:$0xff]
      %v3693 = vld [vmem:[#allocation3 + $0x1c4] sm:$0xf]
      %v3694 = vld [vmem:[#allocation3 + $0x1c8] sm:$0xff]
      %v3695 = vld [vmem:[#allocation3 + $0x1d0] sm:$0xf]
      %v3696 = vld [vmem:[#allocation3 + $0x1d4] sm:$0xff]
      %v3697 = vld [vmem:[#allocation3 + $0x1dc] sm:$0xf]
      %v3698 = vld [vmem:[#allocation3 + $0x1e0] sm:$0xff]
      %v3699 = vld [vmem:[#allocation3 + $0x1e8] sm:$0xf]
      %v3700 = vld [vmem:[#allocation3 + $0x1ec] sm:$0xff]
      %v3701 = vld [vmem:[#allocation3 + $0x1f4] sm:$0xf]
      %v3702 = vld [vmem:[#allocation3 + $0x1f8] sm:$0xff]
      %v3703 = vld [vmem:[#allocation3 + $0x200] sm:$0xf]
      %v3704 = vld [vmem:[#allocation3 + $0x204] sm:$0xff]
      %v3705 = vld [vmem:[#allocation3 + $0x20c] sm:$0xf]
      %v3706 = vld [vmem:[#allocation3 + $0x210] sm:$0xff]
      %v3707 = vld [vmem:[#allocation3 + $0x218] sm:$0xf]
      %v3708 = vld [vmem:[#allocation3 + $0x21c] sm:$0xff]
      %v3709 = vld [vmem:[#allocation3 + $0x224] sm:$0xf]
      %v3710 = vld [vmem:[#allocation3 + $0x228] sm:$0xff]
      %v3711 = vld [vmem:[#allocation3 + $0x230] sm:$0xf]
      %v3712 = vld [vmem:[#allocation3 + $0x234] sm:$0xff]
      %v3713 = vld [vmem:[#allocation3 + $0x23c] sm:$0xf]
      %v3714 = vld [vmem:[#allocation3 + $0x240] sm:$0xff]
      %v3715 = vld [vmem:[#allocation3 + $0x248] sm:$0xf]
      %v3716 = vld [vmem:[#allocation3 + $0x24c] sm:$0xff]
      %v3717 = vld [vmem:[#allocation3 + $0x254] sm:$0xf]
      %v3718 = vld [vmem:[#allocation3 + $0x258] sm:$0xff]
      %v3719 = vld [vmem:[#allocation3 + $0x260] sm:$0xf]
      %v3720 = vld [vmem:[#allocation3 + $0x264] sm:$0xff]
      %v3721 = vld [vmem:[#allocation3 + $0x26c] sm:$0xf]
      %v3722 = vld [vmem:[#allocation3 + $0x270] sm:$0xff]
      %v3723 = vld [vmem:[#allocation3 + $0x278] sm:$0xf]
      %v3724 = vld [vmem:[#allocation3 + $0x27c] sm:$0xff]
      %v3725 = vld [vmem:[#allocation3 + $0x284] sm:$0xf]
      %v3726 = vld [vmem:[#allocation3 + $0x288] sm:$0xff]
      %v3727 = vld [vmem:[#allocation3 + $0x290] sm:$0xf]
      %v3728 = vld [vmem:[#allocation3 + $0x294] sm:$0xff]
      %v3729 = vld [vmem:[#allocation3 + $0x29c] sm:$0xf]
      %v3730 = vld [vmem:[#allocation3 + $0x2a0] sm:$0xff]
      %v3731 = vld [vmem:[#allocation3 + $0x2a8] sm:$0xf]
      %v3732 = vld [vmem:[#allocation3 + $0x2ac] sm:$0xff]
      %v3733 = vld [vmem:[#allocation3 + $0x2b4] sm:$0xf]
      %v3734 = vld [vmem:[#allocation3 + $0x2b8] sm:$0xff]
      %v3735 = vld [vmem:[#allocation3 + $0x2c0] sm:$0xf]
      %v3736 = vld [vmem:[#allocation3 + $0x2c4] sm:$0xff]
      %v3737 = vld [vmem:[#allocation3 + $0x2cc] sm:$0xf]
      %v3738 = vld [vmem:[#allocation3 + $0x2d0] sm:$0xff]
      %v3739 = vld [vmem:[#allocation3 + $0x2d8] sm:$0xf]
      %v3740 = vld [vmem:[#allocation3 + $0x2dc] sm:$0xff]
      %v3741 = vld [vmem:[#allocation3 + $0x2e4] sm:$0xf]
      %v3742 = vld [vmem:[#allocation3 + $0x2e8] sm:$0xff]
      %v3743 = vld [vmem:[#allocation3 + $0x2f0] sm:$0xf]
      %v3744 = vld [vmem:[#allocation3 + $0x2f4] sm:$0xff]
      %v3745 = vld [vmem:[#allocation3 + $0x2fc] sm:$0xf]
      %v3746 = vld [vmem:[#allocation3 + $0x300] sm:$0xff]
      %v3747 = vld [vmem:[#allocation3 + $0x308] sm:$0xf]
      %v3748 = vld [vmem:[#allocation3 + $0x30c] sm:$0xff]
      %v3749 = vld [vmem:[#allocation3 + $0x314] sm:$0xf]
      %v3750 = vld [vmem:[#allocation3 + $0x318] sm:$0xff]
      %v3751 = vld [vmem:[#allocation3 + $0x320] sm:$0xf]
      %v3752 = vld [vmem:[#allocation3 + $0x324] sm:$0xff]
      %v3753 = vld [vmem:[#allocation3 + $0x32c] sm:$0xf]
      %v3754 = vld [vmem:[#allocation3 + $0x330] sm:$0xff]
      %v3755 = vld [vmem:[#allocation3 + $0x338] sm:$0xf]
      %v3756 = vld [vmem:[#allocation3 + $0x33c] sm:$0xff]
      %v3757 = vld [vmem:[#allocation3 + $0x344] sm:$0xf]
      %v3758 = vld [vmem:[#allocation3 + $0x348] sm:$0xff]
      %v3759 = vld [vmem:[#allocation3 + $0x350] sm:$0xf]
      %v3760 = vld [vmem:[#allocation3 + $0x354] sm:$0xff]
      %v3761 = vld [vmem:[#allocation3 + $0x35c] sm:$0xf]
      %v3762 = vld [vmem:[%s8] sm:$0xff]
      %v3763 = vld [vmem:[%s8 + $0x8] sm:$0xff]
      %v3764 = vld [vmem:[%s8 + $0x10] sm:$0xff]
      %v3765 = vld [vmem:[%s8 + $0x18] sm:$0xff]
      %3767 = vset.pattern.permute.xlu0 0
      %3768 = vperm.xlu0 %3767, %v3762
      %v3769 = vpop.permute.xlu0 %3768
      %3772 = vset.pattern.permute.xlu0 0
      %3773 = vperm.xlu0 %3772, %v3763
      %v3774 = vpop.permute.xlu0 %3773
      %3777 = vset.pattern.permute.xlu0 0
      %3778 = vperm.xlu0 %3777, %v3764
      %v3779 = vpop.permute.xlu0 %3778
      %3782 = vset.pattern.permute.xlu0 0
      %3783 = vperm.xlu0 %3782, %v3765
      %v3784 = vpop.permute.xlu0 %3783
      %v3798 = vunpack.c.l.b16 %v3606
      %v3799 = vunpack.c.h.b16 %v3606
      %v3800 = vunpack.c.l.b16 %v3607
      %v3801 = vunpack.c.h.b16 %v3607
      %v3802 = vunpack.c.l.b16 %v3608
      %v3803 = vunpack.c.l.b16 %v3609
      %v3804 = vunpack.c.h.b16 %v3609
      %v3805 = vunpack.c.l.b16 %v3610
      %v3806 = vunpack.c.h.b16 %v3610
      %v3807 = vunpack.c.l.b16 %v3611
      %v3808 = vunpack.c.l.b16 %v3612
      %v3809 = vunpack.c.h.b16 %v3612
      %v3810 = vunpack.c.l.b16 %v3613
      %v3811 = vunpack.c.h.b16 %v3613
      %v3812 = vunpack.c.l.b16 %v3614
      %v3813 = vunpack.c.l.b16 %v3615
      %v3814 = vunpack.c.h.b16 %v3615
      %v3815 = vunpack.c.l.b16 %v3616
      %v3816 = vunpack.c.h.b16 %v3616
      %v3817 = vunpack.c.l.b16 %v3617
      %v3818 = vpack.c.b16 %v3803, %v3798
      %v3819 = vpack.c.b16 %v3804, %v3799
      %v3820 = vpack.c.b16 %v3805, %v3800
      %v3821 = vpack.c.b16 %v3806, %v3801
      %v3822 = vpack.c.b16 %v3807, %v3802
      %v3823 = vpack.c.b16 %v3813, %v3808
      %v3824 = vpack.c.b16 %v3814, %v3809
      %v3825 = vpack.c.b16 %v3815, %v3810
      %v3826 = vpack.c.b16 %v3816, %v3811
      %v3827 = vpack.c.b16 %v3817, %v3812
      %v3980 = vunpack.c.l.b16 %v3618
      %v3981 = vunpack.c.h.b16 %v3618
      %v3982 = vunpack.c.l.b16 %v3619
      %v3983 = vunpack.c.l.b16 %v3620
      %v3984 = vunpack.c.h.b16 %v3620
      %v3985 = vunpack.c.l.b16 %v3621
      %v3986 = vunpack.c.l.b16 %v3622
      %v3987 = vunpack.c.h.b16 %v3622
      %v3988 = vunpack.c.l.b16 %v3623
      %v3989 = vunpack.c.l.b16 %v3624
      %v3990 = vunpack.c.h.b16 %v3624
      %v3991 = vunpack.c.l.b16 %v3625
      %v3992 = vunpack.c.l.b16 %v3626
      %v3993 = vunpack.c.h.b16 %v3626
      %v3994 = vunpack.c.l.b16 %v3627
      %v3995 = vunpack.c.l.b16 %v3628
      %v3996 = vunpack.c.h.b16 %v3628
      %v3997 = vunpack.c.l.b16 %v3629
      %v3998 = vunpack.c.l.b16 %v3630
      %v3999 = vunpack.c.h.b16 %v3630
      %v4000 = vunpack.c.l.b16 %v3631
      %v4001 = vunpack.c.l.b16 %v3632
      %v4002 = vunpack.c.h.b16 %v3632
      %v4003 = vunpack.c.l.b16 %v3633
      %v4004 = vunpack.c.l.b16 %v3634
      %v4005 = vunpack.c.h.b16 %v3634
      %v4006 = vunpack.c.l.b16 %v3635
      %v4007 = vunpack.c.l.b16 %v3636
      %v4008 = vunpack.c.h.b16 %v3636
      %v4009 = vunpack.c.l.b16 %v3637
      %v4010 = vunpack.c.l.b16 %v3638
      %v4011 = vunpack.c.h.b16 %v3638
      %v4012 = vunpack.c.l.b16 %v3639
      %v4013 = vunpack.c.l.b16 %v3640
      %v4014 = vunpack.c.h.b16 %v3640
      %v4015 = vunpack.c.l.b16 %v3641
      %v4016 = vunpack.c.l.b16 %v3642
      %v4017 = vunpack.c.h.b16 %v3642
      %v4018 = vunpack.c.l.b16 %v3643
      %v4019 = vunpack.c.l.b16 %v3644
      %v4020 = vunpack.c.h.b16 %v3644
      %v4021 = vunpack.c.l.b16 %v3645
      %v4022 = vunpack.c.l.b16 %v3646
      %v4023 = vunpack.c.h.b16 %v3646
      %v4024 = vunpack.c.l.b16 %v3647
      %v4025 = vunpack.c.l.b16 %v3648
      %v4026 = vunpack.c.h.b16 %v3648
      %v4027 = vunpack.c.l.b16 %v3649
      %v4028 = vunpack.c.l.b16 %v3650
      %v4029 = vunpack.c.h.b16 %v3650
      %v4030 = vunpack.c.l.b16 %v3651
      %v4031 = vunpack.c.l.b16 %v3652
      %v4032 = vunpack.c.h.b16 %v3652
      %v4033 = vunpack.c.l.b16 %v3653
      %v4034 = vunpack.c.l.b16 %v3654
      %v4035 = vunpack.c.h.b16 %v3654
      %v4036 = vunpack.c.l.b16 %v3655
      %v4037 = vunpack.c.l.b16 %v3656
      %v4038 = vunpack.c.h.b16 %v3656
      %v4039 = vunpack.c.l.b16 %v3657
      %v4040 = vunpack.c.l.b16 %v3658
      %v4041 = vunpack.c.h.b16 %v3658
      %v4042 = vunpack.c.l.b16 %v3659
      %v4043 = vunpack.c.l.b16 %v3660
      %v4044 = vunpack.c.h.b16 %v3660
      %v4045 = vunpack.c.l.b16 %v3661
      %v4046 = vunpack.c.l.b16 %v3662
      %v4047 = vunpack.c.h.b16 %v3662
      %v4048 = vunpack.c.l.b16 %v3663
      %v4049 = vunpack.c.l.b16 %v3664
      %v4050 = vunpack.c.h.b16 %v3664
      %v4051 = vunpack.c.l.b16 %v3665
      %v4052 = vunpack.c.l.b16 %v3666
      %v4053 = vunpack.c.h.b16 %v3666
      %v4054 = vunpack.c.l.b16 %v3667
      %v4055 = vunpack.c.l.b16 %v3668
      %v4056 = vunpack.c.h.b16 %v3668
      %v4057 = vunpack.c.l.b16 %v3669
      %v4058 = vunpack.c.l.b16 %v3670
      %v4059 = vunpack.c.h.b16 %v3670
      %v4060 = vunpack.c.l.b16 %v3671
      %v4061 = vunpack.c.l.b16 %v3672
      %v4062 = vunpack.c.h.b16 %v3672
      %v4063 = vunpack.c.l.b16 %v3673
      %v4064 = vunpack.c.l.b16 %v3674
      %v4065 = vunpack.c.h.b16 %v3674
      %v4066 = vunpack.c.l.b16 %v3675
      %v4067 = vunpack.c.l.b16 %v3676
      %v4068 = vunpack.c.h.b16 %v3676
      %v4069 = vunpack.c.l.b16 %v3677
      %v4070 = vunpack.c.l.b16 %v3678
      %v4071 = vunpack.c.h.b16 %v3678
      %v4072 = vunpack.c.l.b16 %v3679
      %v4073 = vunpack.c.l.b16 %v3680
      %v4074 = vunpack.c.h.b16 %v3680
      %v4075 = vunpack.c.l.b16 %v3681
      %v4076 = vunpack.c.l.b16 %v3682
      %v4077 = vunpack.c.h.b16 %v3682
      %v4078 = vunpack.c.l.b16 %v3683
      %v4079 = vunpack.c.l.b16 %v3684
      %v4080 = vunpack.c.h.b16 %v3684
      %v4081 = vunpack.c.l.b16 %v3685
      %v4082 = vunpack.c.l.b16 %v3686
      %v4083 = vunpack.c.h.b16 %v3686
      %v4084 = vunpack.c.l.b16 %v3687
      %v4085 = vunpack.c.l.b16 %v3688
      %v4086 = vunpack.c.h.b16 %v3688
      %v4087 = vunpack.c.l.b16 %v3689
      %v4088 = vunpack.c.l.b16 %v3690
      %v4089 = vunpack.c.h.b16 %v3690
      %v4090 = vunpack.c.l.b16 %v3691
      %v4091 = vunpack.c.l.b16 %v3692
      %v4092 = vunpack.c.h.b16 %v3692
      %v4093 = vunpack.c.l.b16 %v3693
      %v4094 = vunpack.c.l.b16 %v3694
      %v4095 = vunpack.c.h.b16 %v3694
      %v4096 = vunpack.c.l.b16 %v3695
      %v4097 = vunpack.c.l.b16 %v3696
      %v4098 = vunpack.c.h.b16 %v3696
      %v4099 = vunpack.c.l.b16 %v3697
      %v4100 = vunpack.c.l.b16 %v3698
      %v4101 = vunpack.c.h.b16 %v3698
      %v4102 = vunpack.c.l.b16 %v3699
      %v4103 = vunpack.c.l.b16 %v3700
      %v4104 = vunpack.c.h.b16 %v3700
      %v4105 = vunpack.c.l.b16 %v3701
      %v4106 = vunpack.c.l.b16 %v3702
      %v4107 = vunpack.c.h.b16 %v3702
      %v4108 = vunpack.c.l.b16 %v3703
      %v4109 = vunpack.c.l.b16 %v3704
      %v4110 = vunpack.c.h.b16 %v3704
      %v4111 = vunpack.c.l.b16 %v3705
      %v4112 = vunpack.c.l.b16 %v3706
      %v4113 = vunpack.c.h.b16 %v3706
      %v4114 = vunpack.c.l.b16 %v3707
      %v4115 = vunpack.c.l.b16 %v3708
      %v4116 = vunpack.c.h.b16 %v3708
      %v4117 = vunpack.c.l.b16 %v3709
      %v4118 = vunpack.c.l.b16 %v3710
      %v4119 = vunpack.c.h.b16 %v3710
      %v4120 = vunpack.c.l.b16 %v3711
      %v4121 = vunpack.c.l.b16 %v3712
      %v4122 = vunpack.c.h.b16 %v3712
      %v4123 = vunpack.c.l.b16 %v3713
      %v4124 = vunpack.c.l.b16 %v3714
      %v4125 = vunpack.c.h.b16 %v3714
      %v4126 = vunpack.c.l.b16 %v3715
      %v4127 = vunpack.c.l.b16 %v3716
      %v4128 = vunpack.c.h.b16 %v3716
      %v4129 = vunpack.c.l.b16 %v3717
      %v4130 = vunpack.c.l.b16 %v3718
      %v4131 = vunpack.c.h.b16 %v3718
      %v4132 = vunpack.c.l.b16 %v3719
      %v4133 = vunpack.c.l.b16 %v3720
      %v4134 = vunpack.c.h.b16 %v3720
      %v4135 = vunpack.c.l.b16 %v3721
      %v4136 = vunpack.c.l.b16 %v3722
      %v4137 = vunpack.c.h.b16 %v3722
      %v4138 = vunpack.c.l.b16 %v3723
      %v4139 = vunpack.c.l.b16 %v3724
      %v4140 = vunpack.c.h.b16 %v3724
      %v4141 = vunpack.c.l.b16 %v3725
      %v4142 = vunpack.c.l.b16 %v3726
      %v4143 = vunpack.c.h.b16 %v3726
      %v4144 = vunpack.c.l.b16 %v3727
      %v4145 = vunpack.c.l.b16 %v3728
      %v4146 = vunpack.c.h.b16 %v3728
      %v4147 = vunpack.c.l.b16 %v3729
      %v4148 = vunpack.c.l.b16 %v3730
      %v4149 = vunpack.c.h.b16 %v3730
      %v4150 = vunpack.c.l.b16 %v3731
      %v4151 = vunpack.c.l.b16 %v3732
      %v4152 = vunpack.c.h.b16 %v3732
      %v4153 = vunpack.c.l.b16 %v3733
      %v4154 = vunpack.c.l.b16 %v3734
      %v4155 = vunpack.c.h.b16 %v3734
      %v4156 = vunpack.c.l.b16 %v3735
      %v4157 = vunpack.c.l.b16 %v3736
      %v4158 = vunpack.c.h.b16 %v3736
      %v4159 = vunpack.c.l.b16 %v3737
      %v4160 = vunpack.c.l.b16 %v3738
      %v4161 = vunpack.c.h.b16 %v3738
      %v4162 = vunpack.c.l.b16 %v3739
      %v4163 = vunpack.c.l.b16 %v3740
      %v4164 = vunpack.c.h.b16 %v3740
      %v4165 = vunpack.c.l.b16 %v3741
      %v4166 = vunpack.c.l.b16 %v3742
      %v4167 = vunpack.c.h.b16 %v3742
      %v4168 = vunpack.c.l.b16 %v3743
      %v4169 = vunpack.c.l.b16 %v3744
      %v4170 = vunpack.c.h.b16 %v3744
      %v4171 = vunpack.c.l.b16 %v3745
      %v4172 = vunpack.c.l.b16 %v3746
      %v4173 = vunpack.c.h.b16 %v3746
      %v4174 = vunpack.c.l.b16 %v3747
      %v4175 = vunpack.c.l.b16 %v3748
      %v4176 = vunpack.c.h.b16 %v3748
      %v4177 = vunpack.c.l.b16 %v3749
      %v4178 = vunpack.c.l.b16 %v3750
      %v4179 = vunpack.c.h.b16 %v3750
      %v4180 = vunpack.c.l.b16 %v3751
      %v4181 = vunpack.c.l.b16 %v3752
      %v4182 = vunpack.c.h.b16 %v3752
      %v4183 = vunpack.c.l.b16 %v3753
      %v4184 = vunpack.c.l.b16 %v3754
      %v4185 = vunpack.c.h.b16 %v3754
      %v4186 = vunpack.c.l.b16 %v3755
      %v4187 = vunpack.c.l.b16 %v3756
      %v4188 = vunpack.c.h.b16 %v3756
      %v4189 = vunpack.c.l.b16 %v3757
      %v4190 = vunpack.c.l.b16 %v3758
      %v4191 = vunpack.c.h.b16 %v3758
      %v4192 = vunpack.c.l.b16 %v3759
      %v4193 = vunpack.c.l.b16 %v3760
      %v4194 = vunpack.c.h.b16 %v3760
      %v4195 = vunpack.c.l.b16 %v3761
      %v4196 = vpack.c.b16 %v3983, %v3980
      %v4197 = vpack.c.b16 %v3984, %v3981
      %v4198 = vpack.c.b16 %v3985, %v3982
      %v4199 = vpack.c.b16 %v3989, %v3986
      %v4200 = vpack.c.b16 %v3990, %v3987
      %v4201 = vpack.c.b16 %v3991, %v3988
      %v4202 = vpack.c.b16 %v3995, %v3992
      %v4203 = vpack.c.b16 %v3996, %v3993
      %v4204 = vpack.c.b16 %v3997, %v3994
      %v4205 = vpack.c.b16 %v4001, %v3998
      %v4206 = vpack.c.b16 %v4002, %v3999
      %v4207 = vpack.c.b16 %v4003, %v4000
      %v4208 = vpack.c.b16 %v4007, %v4004
      %v4209 = vpack.c.b16 %v4008, %v4005
      %v4210 = vpack.c.b16 %v4009, %v4006
      %v4211 = vpack.c.b16 %v4013, %v4010
      %v4212 = vpack.c.b16 %v4014, %v4011
      %v4213 = vpack.c.b16 %v4015, %v4012
      %v4214 = vpack.c.b16 %v4019, %v4016
      %v4215 = vpack.c.b16 %v4020, %v4017
      %v4216 = vpack.c.b16 %v4021, %v4018
      %v4217 = vpack.c.b16 %v4025, %v4022
      %v4218 = vpack.c.b16 %v4026, %v4023
      %v4219 = vpack.c.b16 %v4027, %v4024
      %v4220 = vpack.c.b16 %v4031, %v4028
      %v4221 = vpack.c.b16 %v4032, %v4029
      %v4222 = vpack.c.b16 %v4033, %v4030
      %v4223 = vpack.c.b16 %v4037, %v4034
      %v4224 = vpack.c.b16 %v4038, %v4035
      %v4225 = vpack.c.b16 %v4039, %v4036
      %v4226 = vpack.c.b16 %v4043, %v4040
      %v4227 = vpack.c.b16 %v4044, %v4041
      %v4228 = vpack.c.b16 %v4045, %v4042
      %v4229 = vpack.c.b16 %v4049, %v4046
      %v4230 = vpack.c.b16 %v4050, %v4047
      %v4231 = vpack.c.b16 %v4051, %v4048
      %v4232 = vpack.c.b16 %v4055, %v4052
      %v4233 = vpack.c.b16 %v4056, %v4053
      %v4234 = vpack.c.b16 %v4057, %v4054
      %v4235 = vpack.c.b16 %v4061, %v4058
      %v4236 = vpack.c.b16 %v4062, %v4059
      %v4237 = vpack.c.b16 %v4063, %v4060
      %v4238 = vpack.c.b16 %v4067, %v4064
      %v4239 = vpack.c.b16 %v4068, %v4065
      %v4240 = vpack.c.b16 %v4069, %v4066
      %v4241 = vpack.c.b16 %v4073, %v4070
      %v4242 = vpack.c.b16 %v4074, %v4071
      %v4243 = vpack.c.b16 %v4075, %v4072
      %v4244 = vpack.c.b16 %v4079, %v4076
      %v4245 = vpack.c.b16 %v4080, %v4077
      %v4246 = vpack.c.b16 %v4081, %v4078
      %v4247 = vpack.c.b16 %v4085, %v4082
      %v4248 = vpack.c.b16 %v4086, %v4083
      %v4249 = vpack.c.b16 %v4087, %v4084
      %v4250 = vpack.c.b16 %v4091, %v4088
      %v4251 = vpack.c.b16 %v4092, %v4089
      %v4252 = vpack.c.b16 %v4093, %v4090
      %v4253 = vpack.c.b16 %v4097, %v4094
      %v4254 = vpack.c.b16 %v4098, %v4095
      %v4255 = vpack.c.b16 %v4099, %v4096
      %v4256 = vpack.c.b16 %v4103, %v4100
      %v4257 = vpack.c.b16 %v4104, %v4101
      %v4258 = vpack.c.b16 %v4105, %v4102
      %v4259 = vpack.c.b16 %v4109, %v4106
      %v4260 = vpack.c.b16 %v4110, %v4107
      %v4261 = vpack.c.b16 %v4111, %v4108
      %v4262 = vpack.c.b16 %v4115, %v4112
      %v4263 = vpack.c.b16 %v4116, %v4113
      %v4264 = vpack.c.b16 %v4117, %v4114
      %v4265 = vpack.c.b16 %v4121, %v4118
      %v4266 = vpack.c.b16 %v4122, %v4119
      %v4267 = vpack.c.b16 %v4123, %v4120
      %v4268 = vpack.c.b16 %v4127, %v4124
      %v4269 = vpack.c.b16 %v4128, %v4125
      %v4270 = vpack.c.b16 %v4129, %v4126
      %v4271 = vpack.c.b16 %v4133, %v4130
      %v4272 = vpack.c.b16 %v4134, %v4131
      %v4273 = vpack.c.b16 %v4135, %v4132
      %v4274 = vpack.c.b16 %v4139, %v4136
      %v4275 = vpack.c.b16 %v4140, %v4137
      %v4276 = vpack.c.b16 %v4141, %v4138
      %v4277 = vpack.c.b16 %v4145, %v4142
      %v4278 = vpack.c.b16 %v4146, %v4143
      %v4279 = vpack.c.b16 %v4147, %v4144
      %v4280 = vpack.c.b16 %v4151, %v4148
      %v4281 = vpack.c.b16 %v4152, %v4149
      %v4282 = vpack.c.b16 %v4153, %v4150
      %v4283 = vpack.c.b16 %v4157, %v4154
      %v4284 = vpack.c.b16 %v4158, %v4155
      %v4285 = vpack.c.b16 %v4159, %v4156
      %v4286 = vpack.c.b16 %v4163, %v4160
      %v4287 = vpack.c.b16 %v4164, %v4161
      %v4288 = vpack.c.b16 %v4165, %v4162
      %v4289 = vpack.c.b16 %v4169, %v4166
      %v4290 = vpack.c.b16 %v4170, %v4167
      %v4291 = vpack.c.b16 %v4171, %v4168
      %v4292 = vpack.c.b16 %v4175, %v4172
      %v4293 = vpack.c.b16 %v4176, %v4173
      %v4294 = vpack.c.b16 %v4177, %v4174
      %v4295 = vpack.c.b16 %v4181, %v4178
      %v4296 = vpack.c.b16 %v4182, %v4179
      %v4297 = vpack.c.b16 %v4183, %v4180
      %v4298 = vpack.c.b16 %v4187, %v4184
      %v4299 = vpack.c.b16 %v4188, %v4185
      %v4300 = vpack.c.b16 %v4189, %v4186
      %v4301 = vpack.c.b16 %v4193, %v4190
      %v4302 = vpack.c.b16 %v4194, %v4191
      %v4303 = vpack.c.b16 %v4195, %v4192
      %vm4412 = vcmask 523264
      %v4414 = vsel %vm4412, %v3822, 0
      %v4417 = vsel %vm4412, %v3827, 0
      %4419 = vmatpush.bf16.msra.mxu0 %v4217
      %4420 = vmatpush.bf16.msra.mxu0 %v4214
      %4421 = vmatpush.bf16.msra.mxu0 %v4211
      %4422 = vmatpush.bf16.msra.mxu0 %v4208
      %4423 = vmatpush.bf16.msra.mxu0 %v4205
      %4424 = vmatpush.bf16.msra.mxu0 %v4202
      %4425 = vmatpush.bf16.msra.mxu0 %v4199
      %4426 = vmatpush.bf16.msra.mxu0 %v4196
      %4427 = vmatmul.bf16.gmra.mxu0 %v3818
      %v4428 = vpop.f32.mrf.mxu0
      %v4429 = vadd.f32 %v3769, %v4428
      %v4430 = vpop.f32.mrf.mxu0
      %v4431 = vadd.f32 %v3774, %v4430
      %4432 = vmatmul.bf16.gmra.mxu0 %v3823
      %v4433 = vpop.f32.mrf.mxu0
      %v4434 = vadd.f32 %v3779, %v4433
      %v4435 = vpop.f32.mrf.mxu0
      %v4436 = vadd.f32 %v3784, %v4435
      %4437 = vdwg.mxu0
      %4438 = vmatpush.bf16.msra.mxu0 %v4241
      %4439 = vmatpush.bf16.msra.mxu0 %v4238
      %4440 = vmatpush.bf16.msra.mxu0 %v4235
      %4441 = vmatpush.bf16.msra.mxu0 %v4232
      %4442 = vmatpush.bf16.msra.mxu0 %v4229
      %4443 = vmatpush.bf16.msra.mxu0 %v4226
      %4444 = vmatpush.bf16.msra.mxu0 %v4223
      %4445 = vmatpush.bf16.msra.mxu0 %v4220
      %4446 = vmatmul.bf16.gmra.mxu0 %v3819
      %v4447 = vpop.f32.mrf.mxu0
      %v4448 = vadd.f32 %v4429, %v4447
      %v4449 = vpop.f32.mrf.mxu0
      %v4450 = vadd.f32 %v4431, %v4449
      %4451 = vmatmul.bf16.gmra.mxu0 %v3824
      %v4452 = vpop.f32.mrf.mxu0
      %v4453 = vadd.f32 %v4434, %v4452
      %v4454 = vpop.f32.mrf.mxu0
      %v4455 = vadd.f32 %v4436, %v4454
      %4456 = vdwg.mxu0
      %4457 = vmatpush.bf16.msra.mxu0 %v4265
      %4458 = vmatpush.bf16.msra.mxu0 %v4262
      %4459 = vmatpush.bf16.msra.mxu0 %v4259
      %4460 = vmatpush.bf16.msra.mxu0 %v4256
      %4461 = vmatpush.bf16.msra.mxu0 %v4253
      %4462 = vmatpush.bf16.msra.mxu0 %v4250
      %4463 = vmatpush.bf16.msra.mxu0 %v4247
      %4464 = vmatpush.bf16.msra.mxu0 %v4244
      %4465 = vmatmul.bf16.gmra.mxu0 %v3820
      %v4466 = vpop.f32.mrf.mxu0
      %v4467 = vadd.f32 %v4448, %v4466
      %v4468 = vpop.f32.mrf.mxu0
      %v4469 = vadd.f32 %v4450, %v4468
      %4470 = vmatmul.bf16.gmra.mxu0 %v3825
      %v4471 = vpop.f32.mrf.mxu0
      %v4472 = vadd.f32 %v4453, %v4471
      %v4473 = vpop.f32.mrf.mxu0
      %v4474 = vadd.f32 %v4455, %v4473
      %4475 = vdwg.mxu0
      %4476 = vmatpush.bf16.msra.mxu0 %v4289
      %4477 = vmatpush.bf16.msra.mxu0 %v4286
      %4478 = vmatpush.bf16.msra.mxu0 %v4283
      %4479 = vmatpush.bf16.msra.mxu0 %v4280
      %4480 = vmatpush.bf16.msra.mxu0 %v4277
      %4481 = vmatpush.bf16.msra.mxu0 %v4274
      %4482 = vmatpush.bf16.msra.mxu0 %v4271
      %4483 = vmatpush.bf16.msra.mxu0 %v4268
      %4484 = vmatmul.bf16.gmra.mxu0 %v3821
      %v4485 = vpop.f32.mrf.mxu0
      %v4486 = vadd.f32 %v4467, %v4485
      %v4487 = vpop.f32.mrf.mxu0
      %v4488 = vadd.f32 %v4469, %v4487
      %4489 = vmatmul.bf16.gmra.mxu0 %v3826
      %v4490 = vpop.f32.mrf.mxu0
      %v4491 = vadd.f32 %v4472, %v4490
      %v4492 = vpop.f32.mrf.mxu0
      %v4493 = vadd.f32 %v4474, %v4492
      %4494 = vdwg.mxu0
      %4495 = vmatpush.bf16.msra.mxu0 0
      %4496 = vmatpush.bf16.msra.mxu0 0
      %4497 = vmatpush.bf16.msra.mxu0 0
      %4498 = vmatpush.bf16.msra.mxu0 0
      %4499 = vmatpush.bf16.msra.mxu0 %v4301
      %4500 = vmatpush.bf16.msra.mxu0 %v4298
      %4501 = vmatpush.bf16.msra.mxu0 %v4295
      %4502 = vmatpush.bf16.msra.mxu0 %v4292
      %4503 = vmatmul.bf16.gmra.mxu0 %v4414
      %v4504 = vpop.f32.mrf.mxu0
      %v4505 = vadd.f32 %v4486, %v4504
      %v4506 = vpop.f32.mrf.mxu0
      %v4507 = vadd.f32 %v4488, %v4506
      %4508 = vmatmul.bf16.gmra.mxu0 %v4417
      %v4509 = vpop.f32.mrf.mxu0
      %v4510 = vadd.f32 %v4491, %v4509
      %v4511 = vpop.f32.mrf.mxu0
      %v4512 = vadd.f32 %v4493, %v4511
      %4513 = vdwg.mxu0
      %4514 = vmatpush.bf16.msra.mxu0 %v4218
      %4515 = vmatpush.bf16.msra.mxu0 %v4215
      %4516 = vmatpush.bf16.msra.mxu0 %v4212
      %4517 = vmatpush.bf16.msra.mxu0 %v4209
      %4518 = vmatpush.bf16.msra.mxu0 %v4206
      %4519 = vmatpush.bf16.msra.mxu0 %v4203
      %4520 = vmatpush.bf16.msra.mxu0 %v4200
      %4521 = vmatpush.bf16.msra.mxu0 %v4197
      %4522 = vmatmul.bf16.gmra.mxu0 %v3818
      %v4523 = vpop.f32.mrf.mxu0
      %v4524 = vadd.f32 %v3769, %v4523
      %v4525 = vpop.f32.mrf.mxu0
      %v4526 = vadd.f32 %v3774, %v4525
      %4527 = vmatmul.bf16.gmra.mxu0 %v3823
      %v4528 = vpop.f32.mrf.mxu0
      %v4529 = vadd.f32 %v3779, %v4528
      %v4530 = vpop.f32.mrf.mxu0
      %v4531 = vadd.f32 %v3784, %v4530
      %4532 = vdwg.mxu0
      %4533 = vmatpush.bf16.msra.mxu0 %v4242
      %4534 = vmatpush.bf16.msra.mxu0 %v4239
      %4535 = vmatpush.bf16.msra.mxu0 %v4236
      %4536 = vmatpush.bf16.msra.mxu0 %v4233
      %4537 = vmatpush.bf16.msra.mxu0 %v4230
      %4538 = vmatpush.bf16.msra.mxu0 %v4227
      %4539 = vmatpush.bf16.msra.mxu0 %v4224
      %4540 = vmatpush.bf16.msra.mxu0 %v4221
      %4541 = vmatmul.bf16.gmra.mxu0 %v3819
      %v4542 = vpop.f32.mrf.mxu0
      %v4543 = vadd.f32 %v4524, %v4542
      %v4544 = vpop.f32.mrf.mxu0
      %v4545 = vadd.f32 %v4526, %v4544
      %4546 = vmatmul.bf16.gmra.mxu0 %v3824
      %v4547 = vpop.f32.mrf.mxu0
      %v4548 = vadd.f32 %v4529, %v4547
      %v4549 = vpop.f32.mrf.mxu0
      %v4550 = vadd.f32 %v4531, %v4549
      %4551 = vdwg.mxu0
      %4552 = vmatpush.bf16.msra.mxu0 %v4266
      %4553 = vmatpush.bf16.msra.mxu0 %v4263
      %4554 = vmatpush.bf16.msra.mxu0 %v4260
      %4555 = vmatpush.bf16.msra.mxu0 %v4257
      %4556 = vmatpush.bf16.msra.mxu0 %v4254
      %4557 = vmatpush.bf16.msra.mxu0 %v4251
      %4558 = vmatpush.bf16.msra.mxu0 %v4248
      %4559 = vmatpush.bf16.msra.mxu0 %v4245
      %4560 = vmatmul.bf16.gmra.mxu0 %v3820
      %v4561 = vpop.f32.mrf.mxu0
      %v4562 = vadd.f32 %v4543, %v4561
      %v4563 = vpop.f32.mrf.mxu0
      %v4564 = vadd.f32 %v4545, %v4563
      %4565 = vmatmul.bf16.gmra.mxu0 %v3825
      %v4566 = vpop.f32.mrf.mxu0
      %v4567 = vadd.f32 %v4548, %v4566
      %v4568 = vpop.f32.mrf.mxu0
      %v4569 = vadd.f32 %v4550, %v4568
      %4570 = vdwg.mxu0
      %4571 = vmatpush.bf16.msra.mxu0 %v4290
      %4572 = vmatpush.bf16.msra.mxu0 %v4287
      %4573 = vmatpush.bf16.msra.mxu0 %v4284
      %4574 = vmatpush.bf16.msra.mxu0 %v4281
      %4575 = vmatpush.bf16.msra.mxu0 %v4278
      %4576 = vmatpush.bf16.msra.mxu0 %v4275
      %4577 = vmatpush.bf16.msra.mxu0 %v4272
      %4578 = vmatpush.bf16.msra.mxu0 %v4269
      %4579 = vmatmul.bf16.gmra.mxu0 %v3821
      %v4580 = vpop.f32.mrf.mxu0
      %v4581 = vadd.f32 %v4562, %v4580
      %v4582 = vpop.f32.mrf.mxu0
      %v4583 = vadd.f32 %v4564, %v4582
      %4584 = vmatmul.bf16.gmra.mxu0 %v3826
      %v4585 = vpop.f32.mrf.mxu0
      %v4586 = vadd.f32 %v4567, %v4585
      %v4587 = vpop.f32.mrf.mxu0
      %v4588 = vadd.f32 %v4569, %v4587
      %4589 = vdwg.mxu0
      %4590 = vmatpush.bf16.msra.mxu0 0
      %4591 = vmatpush.bf16.msra.mxu0 0
      %4592 = vmatpush.bf16.msra.mxu0 0
      %4593 = vmatpush.bf16.msra.mxu0 0
      %4594 = vmatpush.bf16.msra.mxu0 %v4302
      %4595 = vmatpush.bf16.msra.mxu0 %v4299
      %4596 = vmatpush.bf16.msra.mxu0 %v4296
      %4597 = vmatpush.bf16.msra.mxu0 %v4293
      %4598 = vmatmul.bf16.gmra.mxu0 %v4414
      %v4599 = vpop.f32.mrf.mxu0
      %v4600 = vadd.f32 %v4581, %v4599
      %v4601 = vpop.f32.mrf.mxu0
      %v4602 = vadd.f32 %v4583, %v4601
      %4603 = vmatmul.bf16.gmra.mxu0 %v4417
      %v4604 = vpop.f32.mrf.mxu0
      %v4605 = vadd.f32 %v4586, %v4604
      %v4606 = vpop.f32.mrf.mxu0
      %v4607 = vadd.f32 %v4588, %v4606
      %4608 = vdwg.mxu0
      %4609 = vmatpush.bf16.msra.mxu0 %v4219
      %4610 = vmatpush.bf16.msra.mxu0 %v4216
      %4611 = vmatpush.bf16.msra.mxu0 %v4213
      %4612 = vmatpush.bf16.msra.mxu0 %v4210
      %4613 = vmatpush.bf16.msra.mxu0 %v4207
      %4614 = vmatpush.bf16.msra.mxu0 %v4204
      %4615 = vmatpush.bf16.msra.mxu0 %v4201
      %4616 = vmatpush.bf16.msra.mxu0 %v4198
      %4617 = vmatmul.bf16.gmra.mxu0 %v3818
      %v4618 = vpop.f32.mrf.mxu0
      %v4619 = vadd.f32 %v3769, %v4618
      %v4620 = vpop.f32.mrf.mxu0
      %v4621 = vadd.f32 %v3774, %v4620
      %4622 = vmatmul.bf16.gmra.mxu0 %v3823
      %v4623 = vpop.f32.mrf.mxu0
      %v4624 = vadd.f32 %v3779, %v4623
      %v4625 = vpop.f32.mrf.mxu0
      %v4626 = vadd.f32 %v3784, %v4625
      %4627 = vdwg.mxu0
      %4628 = vmatpush.bf16.msra.mxu0 %v4243
      %4629 = vmatpush.bf16.msra.mxu0 %v4240
      %4630 = vmatpush.bf16.msra.mxu0 %v4237
      %4631 = vmatpush.bf16.msra.mxu0 %v4234
      %4632 = vmatpush.bf16.msra.mxu0 %v4231
      %4633 = vmatpush.bf16.msra.mxu0 %v4228
      %4634 = vmatpush.bf16.msra.mxu0 %v4225
      %4635 = vmatpush.bf16.msra.mxu0 %v4222
      %4636 = vmatmul.bf16.gmra.mxu0 %v3819
      %v4637 = vpop.f32.mrf.mxu0
      %v4638 = vadd.f32 %v4619, %v4637
      %v4639 = vpop.f32.mrf.mxu0
      %v4640 = vadd.f32 %v4621, %v4639
      %4641 = vmatmul.bf16.gmra.mxu0 %v3824
      %v4642 = vpop.f32.mrf.mxu0
      %v4643 = vadd.f32 %v4624, %v4642
      %v4644 = vpop.f32.mrf.mxu0
      %v4645 = vadd.f32 %v4626, %v4644
      %4646 = vdwg.mxu0
      %4647 = vmatpush.bf16.msra.mxu0 %v4267
      %4648 = vmatpush.bf16.msra.mxu0 %v4264
      %4649 = vmatpush.bf16.msra.mxu0 %v4261
      %4650 = vmatpush.bf16.msra.mxu0 %v4258
      %4651 = vmatpush.bf16.msra.mxu0 %v4255
      %4652 = vmatpush.bf16.msra.mxu0 %v4252
      %4653 = vmatpush.bf16.msra.mxu0 %v4249
      %4654 = vmatpush.bf16.msra.mxu0 %v4246
      %4655 = vmatmul.bf16.gmra.mxu0 %v3820
      %v4656 = vpop.f32.mrf.mxu0
      %v4657 = vadd.f32 %v4638, %v4656
      %v4658 = vpop.f32.mrf.mxu0
      %v4659 = vadd.f32 %v4640, %v4658
      %4660 = vmatmul.bf16.gmra.mxu0 %v3825
      %v4661 = vpop.f32.mrf.mxu0
      %v4662 = vadd.f32 %v4643, %v4661
      %v4663 = vpop.f32.mrf.mxu0
      %v4664 = vadd.f32 %v4645, %v4663
      %4665 = vdwg.mxu0
      %4666 = vmatpush.bf16.msra.mxu0 %v4291
      %4667 = vmatpush.bf16.msra.mxu0 %v4288
      %4668 = vmatpush.bf16.msra.mxu0 %v4285
      %4669 = vmatpush.bf16.msra.mxu0 %v4282
      %4670 = vmatpush.bf16.msra.mxu0 %v4279
      %4671 = vmatpush.bf16.msra.mxu0 %v4276
      %4672 = vmatpush.bf16.msra.mxu0 %v4273
      %4673 = vmatpush.bf16.msra.mxu0 %v4270
      %4674 = vmatmul.bf16.gmra.mxu0 %v3821
      %v4675 = vpop.f32.mrf.mxu0
      %v4676 = vadd.f32 %v4657, %v4675
      %v4677 = vpop.f32.mrf.mxu0
      %v4678 = vadd.f32 %v4659, %v4677
      %4679 = vmatmul.bf16.gmra.mxu0 %v3826
      %v4680 = vpop.f32.mrf.mxu0
      %v4681 = vadd.f32 %v4662, %v4680
      %v4682 = vpop.f32.mrf.mxu0
      %v4683 = vadd.f32 %v4664, %v4682
      %4684 = vdwg.mxu0
      %4685 = vmatpush.bf16.msra.mxu0 0
      %4686 = vmatpush.bf16.msra.mxu0 0
      %4687 = vmatpush.bf16.msra.mxu0 0
      %4688 = vmatpush.bf16.msra.mxu0 0
      %4689 = vmatpush.bf16.msra.mxu0 %v4303
      %4690 = vmatpush.bf16.msra.mxu0 %v4300
      %4691 = vmatpush.bf16.msra.mxu0 %v4297
      %4692 = vmatpush.bf16.msra.mxu0 %v4294
      %4693 = vmatmul.bf16.gmra.mxu0 %v4414
      %v4694 = vpop.f32.mrf.mxu0
      %v4695 = vadd.f32 %v4676, %v4694
      %v4696 = vpop.f32.mrf.mxu0
      %v4697 = vadd.f32 %v4678, %v4696
      %4698 = vmatmul.bf16.gmra.mxu0 %v4417
      %v4699 = vpop.f32.mrf.mxu0
      %v4700 = vadd.f32 %v4681, %v4699
      %v4701 = vpop.f32.mrf.mxu0
      %v4702 = vadd.f32 %v4683, %v4701
      %4703 = vdwg.mxu0
      %v4704 = vmax.f32 %v4505, 0.0
      %v4705 = vmax.f32 %v4600, 0.0
      %v4706 = vmax.f32 %v4695, 0.0
      %v4707 = vmax.f32 %v4507, 0.0
      %v4708 = vmax.f32 %v4602, 0.0
      %v4709 = vmax.f32 %v4697, 0.0
      %v4710 = vmax.f32 %v4510, 0.0
      %v4711 = vmax.f32 %v4605, 0.0
      %v4712 = vmax.f32 %v4700, 0.0
      %v4713 = vmax.f32 %v4512, 0.0
      %v4714 = vmax.f32 %v4607, 0.0
      %v4715 = vmax.f32 %v4702, 0.0
      %v4716 = vmul.f32 %v4704, %v1252
      %v4717 = vmul.f32 %v4705, %v1253
      %v4718 = vmul.f32 %v4706, %v1254
      %v4719 = vmul.f32 %v4707, %v1252
      %v4720 = vmul.f32 %v4708, %v1253
      %v4721 = vmul.f32 %v4709, %v1254
      %v4722 = vmul.f32 %v4710, %v1252
      %v4723 = vmul.f32 %v4711, %v1253
      %v4724 = vmul.f32 %v4712, %v1254
      %v4725 = vmul.f32 %v4713, %v1252
      %v4726 = vmul.f32 %v4714, %v1253
      %v4727 = vmul.f32 %v4715, %v1254
      %v4728 = vpack.c.bf16 %v4717, %v4716
      %v4729 = vpack.c.bf16 %v4718, %v4718
      %v4730 = vpack.c.bf16 %v4720, %v4719
      %v4731 = vpack.c.bf16 %v4721, %v4721
      %v4732 = vpack.c.bf16 %v4723, %v4722
      %v4733 = vpack.c.bf16 %v4724, %v4724
      %v4734 = vpack.c.bf16 %v4726, %v4725
      %v4735 = vpack.c.bf16 %v4727, %v4727
      %4736 = vst [vmem:[#allocation2 + $0xcc] sm:$0xff] %v4728
      %4737 = vst [vmem:[#allocation2 + $0xd4] sm:$0xf] %v4729
      %4738 = vst [vmem:[#allocation2 + $0xe0] sm:$0xff] %v4730
      %4739 = vst [vmem:[#allocation2 + $0xe8] sm:$0xf] %v4731
      %4740 = vst [vmem:[#allocation2 + $0xf4] sm:$0xff] %v4732
      %4741 = vst [vmem:[#allocation2 + $0xfc] sm:$0xf] %v4733
      %4742 = vst [vmem:[#allocation2 + $0x108] sm:$0xff] %v4734
      %4743 = vst [vmem:[#allocation2 + $0x110] sm:$0xf] %v4735
      %v4744 = vld [vmem:[#allocation2 + $0x78] sm:$0xff]
      %v4745 = vld [vmem:[#allocation2 + $0x80] sm:$0xff]
      %v4746 = vld [vmem:[#allocation2 + $0x8c] sm:$0xff]
      %v4747 = vld [vmem:[#allocation2 + $0x94] sm:$0xff]
      %v4748 = vld [vmem:[#allocation2 + $0xa0] sm:$0xff]
      %v4749 = vld [vmem:[#allocation2 + $0xa8] sm:$0xff]
      %v4750 = vld [vmem:[#allocation2 + $0xb4] sm:$0xff]
      %v4751 = vld [vmem:[#allocation2 + $0xbc] sm:$0xff]
      %v4752 = vld [vmem:[#allocation2 + $0xc8] sm:$0xff]
      %v4753 = vld [vmem:[#allocation2 + $0xd0] sm:$0xff]
      %v4754 = vld [vmem:[#allocation2 + $0xdc] sm:$0xff]
      %v4755 = vld [vmem:[#allocation2 + $0xe4] sm:$0xff]
      %v4756 = vld [vmem:[#allocation2 + $0xf0] sm:$0xff]
      %v4757 = vld [vmem:[#allocation2 + $0xf8] sm:$0xff]
      %v4758 = vld [vmem:[#allocation2 + $0x104] sm:$0xff]
      %v4759 = vld [vmem:[#allocation2 + $0x10c] sm:$0xff]
      %4776 = vrot.lane.b32.xlu0 %v4744, 19
      %v4777 = vpop.permute.xlu0 %4776
      %4778 = vrot.lane.b32.xlu0 %v4745, 19
      %v4779 = vpop.permute.xlu0 %4778
      %4780 = vrot.lane.b32.xlu0 %v4746, 19
      %v4781 = vpop.permute.xlu0 %4780
      %4782 = vrot.lane.b32.xlu0 %v4747, 19
      %v4783 = vpop.permute.xlu0 %4782
      %4784 = vrot.lane.b32.xlu0 %v4748, 19
      %v4785 = vpop.permute.xlu0 %4784
      %4786 = vrot.lane.b32.xlu0 %v4749, 19
      %v4787 = vpop.permute.xlu0 %4786
      %4788 = vrot.lane.b32.xlu0 %v4750, 19
      %v4789 = vpop.permute.xlu0 %4788
      %4790 = vrot.lane.b32.xlu0 %v4751, 19
      %v4791 = vpop.permute.xlu0 %4790
      %4792 = vrot.lane.b32.xlu0 %v4752, 19
      %v4793 = vpop.permute.xlu0 %4792
      %4794 = vrot.lane.b32.xlu0 %v4753, 19
      %v4795 = vpop.permute.xlu0 %4794
      %4796 = vrot.lane.b32.xlu0 %v4754, 19
      %v4797 = vpop.permute.xlu0 %4796
      %4798 = vrot.lane.b32.xlu0 %v4755, 19
      %v4799 = vpop.permute.xlu0 %4798
      %4800 = vrot.lane.b32.xlu0 %v4756, 19
      %v4801 = vpop.permute.xlu0 %4800
      %4802 = vrot.lane.b32.xlu0 %v4757, 19
      %v4803 = vpop.permute.xlu0 %4802
      %4804 = vrot.lane.b32.xlu0 %v4758, 19
      %v4805 = vpop.permute.xlu0 %4804
      %4806 = vrot.lane.b32.xlu0 %v4759, 19
      %v4807 = vpop.permute.xlu0 %4806
      %v4808 = vrot.slane %v4777, 4
      %v4809 = vrot.slane %v4779, 4
      %v4810 = vrot.slane %v4781, 4
      %v4811 = vrot.slane %v4783, 4
      %v4812 = vrot.slane %v4785, 4
      %v4813 = vrot.slane %v4787, 4
      %v4814 = vrot.slane %v4789, 4
      %v4815 = vrot.slane %v4791, 4
      %v4816 = vrot.slane %v4793, 4
      %v4817 = vrot.slane %v4795, 4
      %v4818 = vrot.slane %v4797, 4
      %v4819 = vrot.slane %v4799, 4
      %v4820 = vrot.slane %v4801, 4
      %v4821 = vrot.slane %v4803, 4
      %v4822 = vrot.slane %v4805, 4
      %v4823 = vrot.slane %v4807, 4
      %v4824 = vsel %vm623, %v4808, %v4809
      %v4825 = vsel %vm625, %v4777, %v4824
      %v4826 = vsel %vm625, %v4779, %v4809
      %v4827 = vsel %vm623, %v4810, %v4811
      %v4828 = vsel %vm625, %v4781, %v4827
      %v4829 = vsel %vm625, %v4783, %v4811
      %v4830 = vsel %vm623, %v4812, %v4813
      %v4831 = vsel %vm625, %v4785, %v4830
      %v4832 = vsel %vm625, %v4787, %v4813
      %v4833 = vsel %vm623, %v4814, %v4815
      %v4834 = vsel %vm625, %v4789, %v4833
      %v4835 = vsel %vm625, %v4791, %v4815
      %v4836 = vsel %vm623, %v4816, %v4817
      %v4837 = vsel %vm625, %v4793, %v4836
      %v4838 = vsel %vm625, %v4795, %v4817
      %v4839 = vsel %vm623, %v4818, %v4819
      %v4840 = vsel %vm625, %v4797, %v4839
      %v4841 = vsel %vm625, %v4799, %v4819
      %v4842 = vsel %vm623, %v4820, %v4821
      %v4843 = vsel %vm625, %v4801, %v4842
      %v4844 = vsel %vm625, %v4803, %v4821
      %v4845 = vsel %vm623, %v4822, %v4823
      %v4846 = vsel %vm625, %v4805, %v4845
      %v4847 = vsel %vm625, %v4807, %v4823
      %4864 = vst [vmem:[#allocation3] sm:$0xff] %v4825
      %4865 = vst [vmem:[#allocation3 + $0x8] sm:$0xf] %v4826
      %4866 = vst [vmem:[#allocation3 + $0xc] sm:$0xff] %v4828
      %4867 = vst [vmem:[#allocation3 + $0x14] sm:$0xf] %v4829
      %4868 = vst [vmem:[#allocation3 + $0x18] sm:$0xff] %v4831
      %4869 = vst [vmem:[#allocation3 + $0x20] sm:$0xf] %v4832
      %4870 = vst [vmem:[#allocation3 + $0x24] sm:$0xff] %v4834
      %4871 = vst [vmem:[#allocation3 + $0x2c] sm:$0xf] %v4835
      %4872 = vst [vmem:[#allocation3 + $0x30] sm:$0xff] %v4837
      %4873 = vst [vmem:[#allocation3 + $0x38] sm:$0xf] %v4838
      %4874 = vst [vmem:[#allocation3 + $0x3c] sm:$0xff] %v4840
      %4875 = vst [vmem:[#allocation3 + $0x44] sm:$0xf] %v4841
      %4876 = vst [vmem:[#allocation3 + $0x48] sm:$0xff] %v4843
      %4877 = vst [vmem:[#allocation3 + $0x50] sm:$0xf] %v4844
      %4878 = vst [vmem:[#allocation3 + $0x54] sm:$0xff] %v4846
      %4879 = vst [vmem:[#allocation3 + $0x5c] sm:$0xf] %v4847
      %v4880 = vld [vmem:[#allocation2 + $0x78] sm:$0xff]
      %v4881 = vld [vmem:[#allocation2 + $0x80] sm:$0xff]
      %v4882 = vld [vmem:[#allocation2 + $0x8c] sm:$0xff]
      %v4883 = vld [vmem:[#allocation2 + $0x94] sm:$0xff]
      %v4884 = vld [vmem:[#allocation2 + $0xa0] sm:$0xff]
      %v4885 = vld [vmem:[#allocation2 + $0xa8] sm:$0xff]
      %v4886 = vld [vmem:[#allocation2 + $0xb4] sm:$0xff]
      %v4887 = vld [vmem:[#allocation2 + $0xbc] sm:$0xff]
      %v4888 = vld [vmem:[#allocation2 + $0xc8] sm:$0xff]
      %v4889 = vld [vmem:[#allocation2 + $0xd0] sm:$0xff]
      %v4890 = vld [vmem:[#allocation2 + $0xdc] sm:$0xff]
      %v4891 = vld [vmem:[#allocation2 + $0xe4] sm:$0xff]
      %v4892 = vld [vmem:[#allocation2 + $0xf0] sm:$0xff]
      %v4893 = vld [vmem:[#allocation2 + $0xf8] sm:$0xff]
      %v4894 = vld [vmem:[#allocation2 + $0x104] sm:$0xff]
      %v4895 = vld [vmem:[#allocation2 + $0x10c] sm:$0xff]
      %4912 = vrot.lane.b32.xlu0 %v4880, 18
      %v4913 = vpop.permute.xlu0 %4912
      %4914 = vrot.lane.b32.xlu0 %v4881, 18
      %v4915 = vpop.permute.xlu0 %4914
      %4916 = vrot.lane.b32.xlu0 %v4882, 18
      %v4917 = vpop.permute.xlu0 %4916
      %4918 = vrot.lane.b32.xlu0 %v4883, 18
      %v4919 = vpop.permute.xlu0 %4918
      %4920 = vrot.lane.b32.xlu0 %v4884, 18
      %v4921 = vpop.permute.xlu0 %4920
      %4922 = vrot.lane.b32.xlu0 %v4885, 18
      %v4923 = vpop.permute.xlu0 %4922
      %4924 = vrot.lane.b32.xlu0 %v4886, 18
      %v4925 = vpop.permute.xlu0 %4924
      %4926 = vrot.lane.b32.xlu0 %v4887, 18
      %v4927 = vpop.permute.xlu0 %4926
      %4928 = vrot.lane.b32.xlu0 %v4888, 18
      %v4929 = vpop.permute.xlu0 %4928
      %4930 = vrot.lane.b32.xlu0 %v4889, 18
      %v4931 = vpop.permute.xlu0 %4930
      %4932 = vrot.lane.b32.xlu0 %v4890, 18
      %v4933 = vpop.permute.xlu0 %4932
      %4934 = vrot.lane.b32.xlu0 %v4891, 18
      %v4935 = vpop.permute.xlu0 %4934
      %4936 = vrot.lane.b32.xlu0 %v4892, 18
      %v4937 = vpop.permute.xlu0 %4936
      %4938 = vrot.lane.b32.xlu0 %v4893, 18
      %v4939 = vpop.permute.xlu0 %4938
      %4940 = vrot.lane.b32.xlu0 %v4894, 18
      %v4941 = vpop.permute.xlu0 %4940
      %4942 = vrot.lane.b32.xlu0 %v4895, 18
      %v4943 = vpop.permute.xlu0 %4942
      %v4944 = vrot.slane %v4913, 4
      %v4945 = vrot.slane %v4915, 4
      %v4946 = vrot.slane %v4917, 4
      %v4947 = vrot.slane %v4919, 4
      %v4948 = vrot.slane %v4921, 4
      %v4949 = vrot.slane %v4923, 4
      %v4950 = vrot.slane %v4925, 4
      %v4951 = vrot.slane %v4927, 4
      %v4952 = vrot.slane %v4929, 4
      %v4953 = vrot.slane %v4931, 4
      %v4954 = vrot.slane %v4933, 4
      %v4955 = vrot.slane %v4935, 4
      %v4956 = vrot.slane %v4937, 4
      %v4957 = vrot.slane %v4939, 4
      %v4958 = vrot.slane %v4941, 4
      %v4959 = vrot.slane %v4943, 4
      %v4960 = vsel %vm623, %v4944, %v4945
      %v4961 = vsel %vm660, %v4913, %v4960
      %v4962 = vsel %vm660, %v4915, %v4945
      %v4963 = vsel %vm623, %v4946, %v4947
      %v4964 = vsel %vm660, %v4917, %v4963
      %v4965 = vsel %vm660, %v4919, %v4947
      %v4966 = vsel %vm623, %v4948, %v4949
      %v4967 = vsel %vm660, %v4921, %v4966
      %v4968 = vsel %vm660, %v4923, %v4949
      %v4969 = vsel %vm623, %v4950, %v4951
      %v4970 = vsel %vm660, %v4925, %v4969
      %v4971 = vsel %vm660, %v4927, %v4951
      %v4972 = vsel %vm623, %v4952, %v4953
      %v4973 = vsel %vm660, %v4929, %v4972
      %v4974 = vsel %vm660, %v4931, %v4953
      %v4975 = vsel %vm623, %v4954, %v4955
      %v4976 = vsel %vm660, %v4933, %v4975
      %v4977 = vsel %vm660, %v4935, %v4955
      %v4978 = vsel %vm623, %v4956, %v4957
      %v4979 = vsel %vm660, %v4937, %v4978
      %v4980 = vsel %vm660, %v4939, %v4957
      %v4981 = vsel %vm623, %v4958, %v4959
      %v4982 = vsel %vm660, %v4941, %v4981
      %v4983 = vsel %vm660, %v4943, %v4959
      %5000 = vst [vmem:[#allocation3 + $0x60] sm:$0xff] %v4961
      %5001 = vst [vmem:[#allocation3 + $0x68] sm:$0xf] %v4962
      %5002 = vst [vmem:[#allocation3 + $0x6c] sm:$0xff] %v4964
      %5003 = vst [vmem:[#allocation3 + $0x74] sm:$0xf] %v4965
      %5004 = vst [vmem:[#allocation3 + $0x78] sm:$0xff] %v4967
      %5005 = vst [vmem:[#allocation3 + $0x80] sm:$0xf] %v4968
      %5006 = vst [vmem:[#allocation3 + $0x84] sm:$0xff] %v4970
      %5007 = vst [vmem:[#allocation3 + $0x8c] sm:$0xf] %v4971
      %5008 = vst [vmem:[#allocation3 + $0x90] sm:$0xff] %v4973
      %5009 = vst [vmem:[#allocation3 + $0x98] sm:$0xf] %v4974
      %5010 = vst [vmem:[#allocation3 + $0x9c] sm:$0xff] %v4976
      %5011 = vst [vmem:[#allocation3 + $0xa4] sm:$0xf] %v4977
      %5012 = vst [vmem:[#allocation3 + $0xa8] sm:$0xff] %v4979
      %5013 = vst [vmem:[#allocation3 + $0xb0] sm:$0xf] %v4980
      %5014 = vst [vmem:[#allocation3 + $0xb4] sm:$0xff] %v4982
      %5015 = vst [vmem:[#allocation3 + $0xbc] sm:$0xf] %v4983
      %v5016 = vld [vmem:[#allocation2 + $0x78] sm:$0xff]
      %v5017 = vld [vmem:[#allocation2 + $0x80] sm:$0xff]
      %v5018 = vld [vmem:[#allocation2 + $0x8c] sm:$0xff]
      %v5019 = vld [vmem:[#allocation2 + $0x94] sm:$0xff]
      %v5020 = vld [vmem:[#allocation2 + $0xa0] sm:$0xff]
      %v5021 = vld [vmem:[#allocation2 + $0xa8] sm:$0xff]
      %v5022 = vld [vmem:[#allocation2 + $0xb4] sm:$0xff]
      %v5023 = vld [vmem:[#allocation2 + $0xbc] sm:$0xff]
      %v5024 = vld [vmem:[#allocation2 + $0xc8] sm:$0xff]
      %v5025 = vld [vmem:[#allocation2 + $0xd0] sm:$0xff]
      %v5026 = vld [vmem:[#allocation2 + $0xdc] sm:$0xff]
      %v5027 = vld [vmem:[#allocation2 + $0xe4] sm:$0xff]
      %v5028 = vld [vmem:[#allocation2 + $0xf0] sm:$0xff]
      %v5029 = vld [vmem:[#allocation2 + $0xf8] sm:$0xff]
      %v5030 = vld [vmem:[#allocation2 + $0x104] sm:$0xff]
      %v5031 = vld [vmem:[#allocation2 + $0x10c] sm:$0xff]
      %5048 = vrot.lane.b32.xlu0 %v5016, 17
      %v5049 = vpop.permute.xlu0 %5048
      %5050 = vrot.lane.b32.xlu0 %v5017, 17
      %v5051 = vpop.permute.xlu0 %5050
      %5052 = vrot.lane.b32.xlu0 %v5018, 17
      %v5053 = vpop.permute.xlu0 %5052
      %5054 = vrot.lane.b32.xlu0 %v5019, 17
      %v5055 = vpop.permute.xlu0 %5054
      %5056 = vrot.lane.b32.xlu0 %v5020, 17
      %v5057 = vpop.permute.xlu0 %5056
      %5058 = vrot.lane.b32.xlu0 %v5021, 17
      %v5059 = vpop.permute.xlu0 %5058
      %5060 = vrot.lane.b32.xlu0 %v5022, 17
      %v5061 = vpop.permute.xlu0 %5060
      %5062 = vrot.lane.b32.xlu0 %v5023, 17
      %v5063 = vpop.permute.xlu0 %5062
      %5064 = vrot.lane.b32.xlu0 %v5024, 17
      %v5065 = vpop.permute.xlu0 %5064
      %5066 = vrot.lane.b32.xlu0 %v5025, 17
      %v5067 = vpop.permute.xlu0 %5066
      %5068 = vrot.lane.b32.xlu0 %v5026, 17
      %v5069 = vpop.permute.xlu0 %5068
      %5070 = vrot.lane.b32.xlu0 %v5027, 17
      %v5071 = vpop.permute.xlu0 %5070
      %5072 = vrot.lane.b32.xlu0 %v5028, 17
      %v5073 = vpop.permute.xlu0 %5072
      %5074 = vrot.lane.b32.xlu0 %v5029, 17
      %v5075 = vpop.permute.xlu0 %5074
      %5076 = vrot.lane.b32.xlu0 %v5030, 17
      %v5077 = vpop.permute.xlu0 %5076
      %5078 = vrot.lane.b32.xlu0 %v5031, 17
      %v5079 = vpop.permute.xlu0 %5078
      %v5080 = vrot.slane %v5049, 4
      %v5081 = vrot.slane %v5051, 4
      %v5082 = vrot.slane %v5053, 4
      %v5083 = vrot.slane %v5055, 4
      %v5084 = vrot.slane %v5057, 4
      %v5085 = vrot.slane %v5059, 4
      %v5086 = vrot.slane %v5061, 4
      %v5087 = vrot.slane %v5063, 4
      %v5088 = vrot.slane %v5065, 4
      %v5089 = vrot.slane %v5067, 4
      %v5090 = vrot.slane %v5069, 4
      %v5091 = vrot.slane %v5071, 4
      %v5092 = vrot.slane %v5073, 4
      %v5093 = vrot.slane %v5075, 4
      %v5094 = vrot.slane %v5077, 4
      %v5095 = vrot.slane %v5079, 4
      %v5096 = vsel %vm623, %v5080, %v5081
      %v5097 = vsel %vm695, %v5049, %v5096
      %v5098 = vsel %vm695, %v5051, %v5081
      %v5099 = vsel %vm623, %v5082, %v5083
      %v5100 = vsel %vm695, %v5053, %v5099
      %v5101 = vsel %vm695, %v5055, %v5083
      %v5102 = vsel %vm623, %v5084, %v5085
      %v5103 = vsel %vm695, %v5057, %v5102
      %v5104 = vsel %vm695, %v5059, %v5085
      %v5105 = vsel %vm623, %v5086, %v5087
      %v5106 = vsel %vm695, %v5061, %v5105
      %v5107 = vsel %vm695, %v5063, %v5087
      %v5108 = vsel %vm623, %v5088, %v5089
      %v5109 = vsel %vm695, %v5065, %v5108
      %v5110 = vsel %vm695, %v5067, %v5089
      %v5111 = vsel %vm623, %v5090, %v5091
      %v5112 = vsel %vm695, %v5069, %v5111
      %v5113 = vsel %vm695, %v5071, %v5091
      %v5114 = vsel %vm623, %v5092, %v5093
      %v5115 = vsel %vm695, %v5073, %v5114
      %v5116 = vsel %vm695, %v5075, %v5093
      %v5117 = vsel %vm623, %v5094, %v5095
      %v5118 = vsel %vm695, %v5077, %v5117
      %v5119 = vsel %vm695, %v5079, %v5095
      %5136 = vst [vmem:[#allocation3 + $0xc0] sm:$0xff] %v5097
      %5137 = vst [vmem:[#allocation3 + $0xc8] sm:$0xf] %v5098
      %5138 = vst [vmem:[#allocation3 + $0xcc] sm:$0xff] %v5100
      %5139 = vst [vmem:[#allocation3 + $0xd4] sm:$0xf] %v5101
      %5140 = vst [vmem:[#allocation3 + $0xd8] sm:$0xff] %v5103
      %5141 = vst [vmem:[#allocation3 + $0xe0] sm:$0xf] %v5104
      %5142 = vst [vmem:[#allocation3 + $0xe4] sm:$0xff] %v5106
      %5143 = vst [vmem:[#allocation3 + $0xec] sm:$0xf] %v5107
      %5144 = vst [vmem:[#allocation3 + $0xf0] sm:$0xff] %v5109
      %5145 = vst [vmem:[#allocation3 + $0xf8] sm:$0xf] %v5110
      %5146 = vst [vmem:[#allocation3 + $0xfc] sm:$0xff] %v5112
      %5147 = vst [vmem:[#allocation3 + $0x104] sm:$0xf] %v5113
      %5148 = vst [vmem:[#allocation3 + $0x108] sm:$0xff] %v5115
      %5149 = vst [vmem:[#allocation3 + $0x110] sm:$0xf] %v5116
      %5150 = vst [vmem:[#allocation3 + $0x114] sm:$0xff] %v5118
      %5151 = vst [vmem:[#allocation3 + $0x11c] sm:$0xf] %v5119
      %v5152 = vld [vmem:[#allocation2 + $0x78] sm:$0xff]
      %v5153 = vld [vmem:[#allocation2 + $0x80] sm:$0xff]
      %v5154 = vld [vmem:[#allocation2 + $0x8c] sm:$0xff]
      %v5155 = vld [vmem:[#allocation2 + $0x94] sm:$0xff]
      %v5156 = vld [vmem:[#allocation2 + $0xa0] sm:$0xff]
      %v5157 = vld [vmem:[#allocation2 + $0xa8] sm:$0xff]
      %v5158 = vld [vmem:[#allocation2 + $0xb4] sm:$0xff]
      %v5159 = vld [vmem:[#allocation2 + $0xbc] sm:$0xff]
      %v5160 = vld [vmem:[#allocation2 + $0xc8] sm:$0xff]
      %v5161 = vld [vmem:[#allocation2 + $0xd0] sm:$0xff]
      %v5162 = vld [vmem:[#allocation2 + $0xdc] sm:$0xff]
      %v5163 = vld [vmem:[#allocation2 + $0xe4] sm:$0xff]
      %v5164 = vld [vmem:[#allocation2 + $0xf0] sm:$0xff]
      %v5165 = vld [vmem:[#allocation2 + $0xf8] sm:$0xff]
      %v5166 = vld [vmem:[#allocation2 + $0x104] sm:$0xff]
      %v5167 = vld [vmem:[#allocation2 + $0x10c] sm:$0xff]
      %5184 = vrot.lane.b32.xlu0 %v5152, 1
      %v5185 = vpop.permute.xlu0 %5184
      %5186 = vrot.lane.b32.xlu0 %v5153, 1
      %v5187 = vpop.permute.xlu0 %5186
      %5188 = vrot.lane.b32.xlu0 %v5154, 1
      %v5189 = vpop.permute.xlu0 %5188
      %5190 = vrot.lane.b32.xlu0 %v5155, 1
      %v5191 = vpop.permute.xlu0 %5190
      %5192 = vrot.lane.b32.xlu0 %v5156, 1
      %v5193 = vpop.permute.xlu0 %5192
      %5194 = vrot.lane.b32.xlu0 %v5157, 1
      %v5195 = vpop.permute.xlu0 %5194
      %5196 = vrot.lane.b32.xlu0 %v5158, 1
      %v5197 = vpop.permute.xlu0 %5196
      %5198 = vrot.lane.b32.xlu0 %v5159, 1
      %v5199 = vpop.permute.xlu0 %5198
      %5200 = vrot.lane.b32.xlu0 %v5160, 1
      %v5201 = vpop.permute.xlu0 %5200
      %5202 = vrot.lane.b32.xlu0 %v5161, 1
      %v5203 = vpop.permute.xlu0 %5202
      %5204 = vrot.lane.b32.xlu0 %v5162, 1
      %v5205 = vpop.permute.xlu0 %5204
      %5206 = vrot.lane.b32.xlu0 %v5163, 1
      %v5207 = vpop.permute.xlu0 %5206
      %5208 = vrot.lane.b32.xlu0 %v5164, 1
      %v5209 = vpop.permute.xlu0 %5208
      %5210 = vrot.lane.b32.xlu0 %v5165, 1
      %v5211 = vpop.permute.xlu0 %5210
      %5212 = vrot.lane.b32.xlu0 %v5166, 1
      %v5213 = vpop.permute.xlu0 %5212
      %5214 = vrot.lane.b32.xlu0 %v5167, 1
      %v5215 = vpop.permute.xlu0 %5214
      %v5216 = vrot.slane %v5185, 4
      %v5217 = vrot.slane %v5187, 4
      %v5218 = vrot.slane %v5189, 4
      %v5219 = vrot.slane %v5191, 4
      %v5220 = vrot.slane %v5193, 4
      %v5221 = vrot.slane %v5195, 4
      %v5222 = vrot.slane %v5197, 4
      %v5223 = vrot.slane %v5199, 4
      %v5224 = vrot.slane %v5201, 4
      %v5225 = vrot.slane %v5203, 4
      %v5226 = vrot.slane %v5205, 4
      %v5227 = vrot.slane %v5207, 4
      %v5228 = vrot.slane %v5209, 4
      %v5229 = vrot.slane %v5211, 4
      %v5230 = vrot.slane %v5213, 4
      %v5231 = vrot.slane %v5215, 4
      %v5232 = vsel %vm623, %v5216, %v5217
      %v5233 = vsel %vm730, %v5185, %v5232
      %v5234 = vsel %vm730, %v5187, %v5217
      %v5235 = vsel %vm623, %v5218, %v5219
      %v5236 = vsel %vm730, %v5189, %v5235
      %v5237 = vsel %vm730, %v5191, %v5219
      %v5238 = vsel %vm623, %v5220, %v5221
      %v5239 = vsel %vm730, %v5193, %v5238
      %v5240 = vsel %vm730, %v5195, %v5221
      %v5241 = vsel %vm623, %v5222, %v5223
      %v5242 = vsel %vm730, %v5197, %v5241
      %v5243 = vsel %vm730, %v5199, %v5223
      %v5244 = vsel %vm623, %v5224, %v5225
      %v5245 = vsel %vm730, %v5201, %v5244
      %v5246 = vsel %vm730, %v5203, %v5225
      %v5247 = vsel %vm623, %v5226, %v5227
      %v5248 = vsel %vm730, %v5205, %v5247
      %v5249 = vsel %vm730, %v5207, %v5227
      %v5250 = vsel %vm623, %v5228, %v5229
      %v5251 = vsel %vm730, %v5209, %v5250
      %v5252 = vsel %vm730, %v5211, %v5229
      %v5253 = vsel %vm623, %v5230, %v5231
      %v5254 = vsel %vm730, %v5213, %v5253
      %v5255 = vsel %vm730, %v5215, %v5231
      %5272 = vst [vmem:[#allocation3 + $0x120] sm:$0xff] %v5233
      %5273 = vst [vmem:[#allocation3 + $0x128] sm:$0xf] %v5234
      %5274 = vst [vmem:[#allocation3 + $0x12c] sm:$0xff] %v5236
      %5275 = vst [vmem:[#allocation3 + $0x134] sm:$0xf] %v5237
      %5276 = vst [vmem:[#allocation3 + $0x138] sm:$0xff] %v5239
      %5277 = vst [vmem:[#allocation3 + $0x140] sm:$0xf] %v5240
      %5278 = vst [vmem:[#allocation3 + $0x144] sm:$0xff] %v5242
      %5279 = vst [vmem:[#allocation3 + $0x14c] sm:$0xf] %v5243
      %5280 = vst [vmem:[#allocation3 + $0x150] sm:$0xff] %v5245
      %5281 = vst [vmem:[#allocation3 + $0x158] sm:$0xf] %v5246
      %5282 = vst [vmem:[#allocation3 + $0x15c] sm:$0xff] %v5248
      %5283 = vst [vmem:[#allocation3 + $0x164] sm:$0xf] %v5249
      %5284 = vst [vmem:[#allocation3 + $0x168] sm:$0xff] %v5251
      %5285 = vst [vmem:[#allocation3 + $0x170] sm:$0xf] %v5252
      %5286 = vst [vmem:[#allocation3 + $0x174] sm:$0xff] %v5254
      %5287 = vst [vmem:[#allocation3 + $0x17c] sm:$0xf] %v5255
      %v5288 = vld [vmem:[#allocation2 + $0x7c] sm:$0xff]
      %v5289 = vld [vmem:[#allocation2 + $0x84] sm:$0xf]
      %v5290 = vld [vmem:[#allocation2 + $0x90] sm:$0xff]
      %v5291 = vld [vmem:[#allocation2 + $0x98] sm:$0xf]
      %v5292 = vld [vmem:[#allocation2 + $0xa4] sm:$0xff]
      %v5293 = vld [vmem:[#allocation2 + $0xac] sm:$0xf]
      %v5294 = vld [vmem:[#allocation2 + $0xb8] sm:$0xff]
      %v5295 = vld [vmem:[#allocation2 + $0xc0] sm:$0xf]
      %v5296 = vld [vmem:[#allocation2 + $0xcc] sm:$0xff]
      %v5297 = vld [vmem:[#allocation2 + $0xd4] sm:$0xf]
      %v5298 = vld [vmem:[#allocation2 + $0xe0] sm:$0xff]
      %v5299 = vld [vmem:[#allocation2 + $0xe8] sm:$0xf]
      %v5300 = vld [vmem:[#allocation2 + $0xf4] sm:$0xff]
      %v5301 = vld [vmem:[#allocation2 + $0xfc] sm:$0xf]
      %v5302 = vld [vmem:[#allocation2 + $0x108] sm:$0xff]
      %v5303 = vld [vmem:[#allocation2 + $0x110] sm:$0xf]
      %5304 = vst [vmem:[#allocation3 + $0x180] sm:$0xff] %v5288
      %5305 = vst [vmem:[#allocation3 + $0x188] sm:$0xf] %v5289
      %5306 = vst [vmem:[#allocation3 + $0x18c] sm:$0xff] %v5290
      %5307 = vst [vmem:[#allocation3 + $0x194] sm:$0xf] %v5291
      %5308 = vst [vmem:[#allocation3 + $0x198] sm:$0xff] %v5292
      %5309 = vst [vmem:[#allocation3 + $0x1a0] sm:$0xf] %v5293
      %5310 = vst [vmem:[#allocation3 + $0x1a4] sm:$0xff] %v5294
      %5311 = vst [vmem:[#allocation3 + $0x1ac] sm:$0xf] %v5295
      %5312 = vst [vmem:[#allocation3 + $0x1b0] sm:$0xff] %v5296
      %5313 = vst [vmem:[#allocation3 + $0x1b8] sm:$0xf] %v5297
      %5314 = vst [vmem:[#allocation3 + $0x1bc] sm:$0xff] %v5298
      %5315 = vst [vmem:[#allocation3 + $0x1c4] sm:$0xf] %v5299
      %5316 = vst [vmem:[#allocation3 + $0x1c8] sm:$0xff] %v5300
      %5317 = vst [vmem:[#allocation3 + $0x1d0] sm:$0xf] %v5301
      %5318 = vst [vmem:[#allocation3 + $0x1d4] sm:$0xff] %v5302
      %5319 = vst [vmem:[#allocation3 + $0x1dc] sm:$0xf] %v5303
      %v5320 = vld [vmem:[#allocation2 + $0x7c] sm:$0xff]
      %v5321 = vld [vmem:[#allocation2 + $0x84] sm:$0xff]
      %v5322 = vld [vmem:[#allocation2 + $0x90] sm:$0xff]
      %v5323 = vld [vmem:[#allocation2 + $0x98] sm:$0xff]
      %v5324 = vld [vmem:[#allocation2 + $0xa4] sm:$0xff]
      %v5325 = vld [vmem:[#allocation2 + $0xac] sm:$0xff]
      %v5326 = vld [vmem:[#allocation2 + $0xb8] sm:$0xff]
      %v5327 = vld [vmem:[#allocation2 + $0xc0] sm:$0xff]
      %v5328 = vld [vmem:[#allocation2 + $0xcc] sm:$0xff]
      %v5329 = vld [vmem:[#allocation2 + $0xd4] sm:$0xff]
      %v5330 = vld [vmem:[#allocation2 + $0xe0] sm:$0xff]
      %v5331 = vld [vmem:[#allocation2 + $0xe8] sm:$0xff]
      %v5332 = vld [vmem:[#allocation2 + $0xf4] sm:$0xff]
      %v5333 = vld [vmem:[#allocation2 + $0xfc] sm:$0xff]
      %v5334 = vld [vmem:[#allocation2 + $0x108] sm:$0xff]
      %v5335 = vld [vmem:[#allocation2 + $0x110] sm:$0xff]
      %5352 = vrot.lane.b32.xlu0 %v5320, 127
      %v5353 = vpop.permute.xlu0 %5352
      %5354 = vrot.lane.b32.xlu0 %v5321, 127
      %v5355 = vpop.permute.xlu0 %5354
      %5356 = vrot.lane.b32.xlu0 %v5322, 127
      %v5357 = vpop.permute.xlu0 %5356
      %5358 = vrot.lane.b32.xlu0 %v5323, 127
      %v5359 = vpop.permute.xlu0 %5358
      %5360 = vrot.lane.b32.xlu0 %v5324, 127
      %v5361 = vpop.permute.xlu0 %5360
      %5362 = vrot.lane.b32.xlu0 %v5325, 127
      %v5363 = vpop.permute.xlu0 %5362
      %5364 = vrot.lane.b32.xlu0 %v5326, 127
      %v5365 = vpop.permute.xlu0 %5364
      %5366 = vrot.lane.b32.xlu0 %v5327, 127
      %v5367 = vpop.permute.xlu0 %5366
      %5368 = vrot.lane.b32.xlu0 %v5328, 127
      %v5369 = vpop.permute.xlu0 %5368
      %5370 = vrot.lane.b32.xlu0 %v5329, 127
      %v5371 = vpop.permute.xlu0 %5370
      %5372 = vrot.lane.b32.xlu0 %v5330, 127
      %v5373 = vpop.permute.xlu0 %5372
      %5374 = vrot.lane.b32.xlu0 %v5331, 127
      %v5375 = vpop.permute.xlu0 %5374
      %5376 = vrot.lane.b32.xlu0 %v5332, 127
      %v5377 = vpop.permute.xlu0 %5376
      %5378 = vrot.lane.b32.xlu0 %v5333, 127
      %v5379 = vpop.permute.xlu0 %5378
      %5380 = vrot.lane.b32.xlu0 %v5334, 127
      %v5381 = vpop.permute.xlu0 %5380
      %5382 = vrot.lane.b32.xlu0 %v5335, 127
      %v5383 = vpop.permute.xlu0 %5382
      %v5384 = vrot.slane %v5353, 4
      %v5385 = vrot.slane %v5355, 4
      %v5386 = vrot.slane %v5357, 4
      %v5387 = vrot.slane %v5359, 4
      %v5388 = vrot.slane %v5361, 4
      %v5389 = vrot.slane %v5363, 4
      %v5390 = vrot.slane %v5365, 4
      %v5391 = vrot.slane %v5367, 4
      %v5392 = vrot.slane %v5369, 4
      %v5393 = vrot.slane %v5371, 4
      %v5394 = vrot.slane %v5373, 4
      %v5395 = vrot.slane %v5375, 4
      %v5396 = vrot.slane %v5377, 4
      %v5397 = vrot.slane %v5379, 4
      %v5398 = vrot.slane %v5381, 4
      %v5399 = vrot.slane %v5383, 4
      %v5400 = vsel %vm623, %v5384, %v5385
      %v5401 = vsel %vm773, %v5353, %v5400
      %v5402 = vsel %vm773, %v5355, %v5385
      %v5403 = vsel %vm623, %v5386, %v5387
      %v5404 = vsel %vm773, %v5357, %v5403
      %v5405 = vsel %vm773, %v5359, %v5387
      %v5406 = vsel %vm623, %v5388, %v5389
      %v5407 = vsel %vm773, %v5361, %v5406
      %v5408 = vsel %vm773, %v5363, %v5389
      %v5409 = vsel %vm623, %v5390, %v5391
      %v5410 = vsel %vm773, %v5365, %v5409
      %v5411 = vsel %vm773, %v5367, %v5391
      %v5412 = vsel %vm623, %v5392, %v5393
      %v5413 = vsel %vm773, %v5369, %v5412
      %v5414 = vsel %vm773, %v5371, %v5393
      %v5415 = vsel %vm623, %v5394, %v5395
      %v5416 = vsel %vm773, %v5373, %v5415
      %v5417 = vsel %vm773, %v5375, %v5395
      %v5418 = vsel %vm623, %v5396, %v5397
      %v5419 = vsel %vm773, %v5377, %v5418
      %v5420 = vsel %vm773, %v5379, %v5397
      %v5421 = vsel %vm623, %v5398, %v5399
      %v5422 = vsel %vm773, %v5381, %v5421
      %v5423 = vsel %vm773, %v5383, %v5399
      %5440 = vst [vmem:[#allocation3 + $0x1e0] sm:$0xff] %v5401
      %5441 = vst [vmem:[#allocation3 + $0x1e8] sm:$0xf] %v5402
      %5442 = vst [vmem:[#allocation3 + $0x1ec] sm:$0xff] %v5404
      %5443 = vst [vmem:[#allocation3 + $0x1f4] sm:$0xf] %v5405
      %5444 = vst [vmem:[#allocation3 + $0x1f8] sm:$0xff] %v5407
      %5445 = vst [vmem:[#allocation3 + $0x200] sm:$0xf] %v5408
      %5446 = vst [vmem:[#allocation3 + $0x204] sm:$0xff] %v5410
      %5447 = vst [vmem:[#allocation3 + $0x20c] sm:$0xf] %v5411
      %5448 = vst [vmem:[#allocation3 + $0x210] sm:$0xff] %v5413
      %5449 = vst [vmem:[#allocation3 + $0x218] sm:$0xf] %v5414
      %5450 = vst [vmem:[#allocation3 + $0x21c] sm:$0xff] %v5416
      %5451 = vst [vmem:[#allocation3 + $0x224] sm:$0xf] %v5417
      %5452 = vst [vmem:[#allocation3 + $0x228] sm:$0xff] %v5419
      %5453 = vst [vmem:[#allocation3 + $0x230] sm:$0xf] %v5420
      %5454 = vst [vmem:[#allocation3 + $0x234] sm:$0xff] %v5422
      %5455 = vst [vmem:[#allocation3 + $0x23c] sm:$0xf] %v5423
      %v5456 = vld [vmem:[#allocation2 + $0x7c] sm:$0xff]
      %v5457 = vld [vmem:[#allocation2 + $0x84] sm:$0xff]
      %v5458 = vld [vmem:[#allocation2 + $0x90] sm:$0xff]
      %v5459 = vld [vmem:[#allocation2 + $0x98] sm:$0xff]
      %v5460 = vld [vmem:[#allocation2 + $0xa4] sm:$0xff]
      %v5461 = vld [vmem:[#allocation2 + $0xac] sm:$0xff]
      %v5462 = vld [vmem:[#allocation2 + $0xb8] sm:$0xff]
      %v5463 = vld [vmem:[#allocation2 + $0xc0] sm:$0xff]
      %v5464 = vld [vmem:[#allocation2 + $0xcc] sm:$0xff]
      %v5465 = vld [vmem:[#allocation2 + $0xd4] sm:$0xff]
      %v5466 = vld [vmem:[#allocation2 + $0xe0] sm:$0xff]
      %v5467 = vld [vmem:[#allocation2 + $0xe8] sm:$0xff]
      %v5468 = vld [vmem:[#allocation2 + $0xf4] sm:$0xff]
      %v5469 = vld [vmem:[#allocation2 + $0xfc] sm:$0xff]
      %v5470 = vld [vmem:[#allocation2 + $0x108] sm:$0xff]
      %v5471 = vld [vmem:[#allocation2 + $0x110] sm:$0xff]
      %5488 = vrot.lane.b32.xlu0 %v5456, 111
      %v5489 = vpop.permute.xlu0 %5488
      %5490 = vrot.lane.b32.xlu0 %v5457, 111
      %v5491 = vpop.permute.xlu0 %5490
      %5492 = vrot.lane.b32.xlu0 %v5458, 111
      %v5493 = vpop.permute.xlu0 %5492
      %5494 = vrot.lane.b32.xlu0 %v5459, 111
      %v5495 = vpop.permute.xlu0 %5494
      %5496 = vrot.lane.b32.xlu0 %v5460, 111
      %v5497 = vpop.permute.xlu0 %5496
      %5498 = vrot.lane.b32.xlu0 %v5461, 111
      %v5499 = vpop.permute.xlu0 %5498
      %5500 = vrot.lane.b32.xlu0 %v5462, 111
      %v5501 = vpop.permute.xlu0 %5500
      %5502 = vrot.lane.b32.xlu0 %v5463, 111
      %v5503 = vpop.permute.xlu0 %5502
      %5504 = vrot.lane.b32.xlu0 %v5464, 111
      %v5505 = vpop.permute.xlu0 %5504
      %5506 = vrot.lane.b32.xlu0 %v5465, 111
      %v5507 = vpop.permute.xlu0 %5506
      %5508 = vrot.lane.b32.xlu0 %v5466, 111
      %v5509 = vpop.permute.xlu0 %5508
      %5510 = vrot.lane.b32.xlu0 %v5467, 111
      %v5511 = vpop.permute.xlu0 %5510
      %5512 = vrot.lane.b32.xlu0 %v5468, 111
      %v5513 = vpop.permute.xlu0 %5512
      %5514 = vrot.lane.b32.xlu0 %v5469, 111
      %v5515 = vpop.permute.xlu0 %5514
      %5516 = vrot.lane.b32.xlu0 %v5470, 111
      %v5517 = vpop.permute.xlu0 %5516
      %5518 = vrot.lane.b32.xlu0 %v5471, 111
      %v5519 = vpop.permute.xlu0 %5518
      %v5520 = vrot.slane %v5489, 4
      %v5521 = vrot.slane %v5491, 4
      %v5522 = vrot.slane %v5493, 4
      %v5523 = vrot.slane %v5495, 4
      %v5524 = vrot.slane %v5497, 4
      %v5525 = vrot.slane %v5499, 4
      %v5526 = vrot.slane %v5501, 4
      %v5527 = vrot.slane %v5503, 4
      %v5528 = vrot.slane %v5505, 4
      %v5529 = vrot.slane %v5507, 4
      %v5530 = vrot.slane %v5509, 4
      %v5531 = vrot.slane %v5511, 4
      %v5532 = vrot.slane %v5513, 4
      %v5533 = vrot.slane %v5515, 4
      %v5534 = vrot.slane %v5517, 4
      %v5535 = vrot.slane %v5519, 4
      %v5536 = vsel %vm623, %v5520, %v5521
      %v5537 = vsel %vm808, %v5489, %v5536
      %v5538 = vsel %vm808, %v5491, %v5521
      %v5539 = vsel %vm623, %v5522, %v5523
      %v5540 = vsel %vm808, %v5493, %v5539
      %v5541 = vsel %vm808, %v5495, %v5523
      %v5542 = vsel %vm623, %v5524, %v5525
      %v5543 = vsel %vm808, %v5497, %v5542
      %v5544 = vsel %vm808, %v5499, %v5525
      %v5545 = vsel %vm623, %v5526, %v5527
      %v5546 = vsel %vm808, %v5501, %v5545
      %v5547 = vsel %vm808, %v5503, %v5527
      %v5548 = vsel %vm623, %v5528, %v5529
      %v5549 = vsel %vm808, %v5505, %v5548
      %v5550 = vsel %vm808, %v5507, %v5529
      %v5551 = vsel %vm623, %v5530, %v5531
      %v5552 = vsel %vm808, %v5509, %v5551
      %v5553 = vsel %vm808, %v5511, %v5531
      %v5554 = vsel %vm623, %v5532, %v5533
      %v5555 = vsel %vm808, %v5513, %v5554
      %v5556 = vsel %vm808, %v5515, %v5533
      %v5557 = vsel %vm623, %v5534, %v5535
      %v5558 = vsel %vm808, %v5517, %v5557
      %v5559 = vsel %vm808, %v5519, %v5535
      %5576 = vst [vmem:[#allocation3 + $0x240] sm:$0xff] %v5537
      %5577 = vst [vmem:[#allocation3 + $0x248] sm:$0xf] %v5538
      %5578 = vst [vmem:[#allocation3 + $0x24c] sm:$0xff] %v5540
      %5579 = vst [vmem:[#allocation3 + $0x254] sm:$0xf] %v5541
      %5580 = vst [vmem:[#allocation3 + $0x258] sm:$0xff] %v5543
      %5581 = vst [vmem:[#allocation3 + $0x260] sm:$0xf] %v5544
      %5582 = vst [vmem:[#allocation3 + $0x264] sm:$0xff] %v5546
      %5583 = vst [vmem:[#allocation3 + $0x26c] sm:$0xf] %v5547
      %5584 = vst [vmem:[#allocation3 + $0x270] sm:$0xff] %v5549
      %5585 = vst [vmem:[#allocation3 + $0x278] sm:$0xf] %v5550
      %5586 = vst [vmem:[#allocation3 + $0x27c] sm:$0xff] %v5552
      %5587 = vst [vmem:[#allocation3 + $0x284] sm:$0xf] %v5553
      %5588 = vst [vmem:[#allocation3 + $0x288] sm:$0xff] %v5555
      %5589 = vst [vmem:[#allocation3 + $0x290] sm:$0xf] %v5556
      %5590 = vst [vmem:[#allocation3 + $0x294] sm:$0xff] %v5558
      %5591 = vst [vmem:[#allocation3 + $0x29c] sm:$0xf] %v5559
      %v5592 = vld [vmem:[#allocation2 + $0x7c] sm:$0xff]
      %v5593 = vld [vmem:[#allocation2 + $0x84] sm:$0xff]
      %v5594 = vld [vmem:[#allocation2 + $0x90] sm:$0xff]
      %v5595 = vld [vmem:[#allocation2 + $0x98] sm:$0xff]
      %v5596 = vld [vmem:[#allocation2 + $0xa4] sm:$0xff]
      %v5597 = vld [vmem:[#allocation2 + $0xac] sm:$0xff]
      %v5598 = vld [vmem:[#allocation2 + $0xb8] sm:$0xff]
      %v5599 = vld [vmem:[#allocation2 + $0xc0] sm:$0xff]
      %v5600 = vld [vmem:[#allocation2 + $0xcc] sm:$0xff]
      %v5601 = vld [vmem:[#allocation2 + $0xd4] sm:$0xff]
      %v5602 = vld [vmem:[#allocation2 + $0xe0] sm:$0xff]
      %v5603 = vld [vmem:[#allocation2 + $0xe8] sm:$0xff]
      %v5604 = vld [vmem:[#allocation2 + $0xf4] sm:$0xff]
      %v5605 = vld [vmem:[#allocation2 + $0xfc] sm:$0xff]
      %v5606 = vld [vmem:[#allocation2 + $0x108] sm:$0xff]
      %v5607 = vld [vmem:[#allocation2 + $0x110] sm:$0xff]
      %5624 = vrot.lane.b32.xlu0 %v5592, 110
      %v5625 = vpop.permute.xlu0 %5624
      %5626 = vrot.lane.b32.xlu0 %v5593, 110
      %v5627 = vpop.permute.xlu0 %5626
      %5628 = vrot.lane.b32.xlu0 %v5594, 110
      %v5629 = vpop.permute.xlu0 %5628
      %5630 = vrot.lane.b32.xlu0 %v5595, 110
      %v5631 = vpop.permute.xlu0 %5630
      %5632 = vrot.lane.b32.xlu0 %v5596, 110
      %v5633 = vpop.permute.xlu0 %5632
      %5634 = vrot.lane.b32.xlu0 %v5597, 110
      %v5635 = vpop.permute.xlu0 %5634
      %5636 = vrot.lane.b32.xlu0 %v5598, 110
      %v5637 = vpop.permute.xlu0 %5636
      %5638 = vrot.lane.b32.xlu0 %v5599, 110
      %v5639 = vpop.permute.xlu0 %5638
      %5640 = vrot.lane.b32.xlu0 %v5600, 110
      %v5641 = vpop.permute.xlu0 %5640
      %5642 = vrot.lane.b32.xlu0 %v5601, 110
      %v5643 = vpop.permute.xlu0 %5642
      %5644 = vrot.lane.b32.xlu0 %v5602, 110
      %v5645 = vpop.permute.xlu0 %5644
      %5646 = vrot.lane.b32.xlu0 %v5603, 110
      %v5647 = vpop.permute.xlu0 %5646
      %5648 = vrot.lane.b32.xlu0 %v5604, 110
      %v5649 = vpop.permute.xlu0 %5648
      %5650 = vrot.lane.b32.xlu0 %v5605, 110
      %v5651 = vpop.permute.xlu0 %5650
      %5652 = vrot.lane.b32.xlu0 %v5606, 110
      %v5653 = vpop.permute.xlu0 %5652
      %5654 = vrot.lane.b32.xlu0 %v5607, 110
      %v5655 = vpop.permute.xlu0 %5654
      %v5656 = vrot.slane %v5625, 4
      %v5657 = vrot.slane %v5627, 4
      %v5658 = vrot.slane %v5629, 4
      %v5659 = vrot.slane %v5631, 4
      %v5660 = vrot.slane %v5633, 4
      %v5661 = vrot.slane %v5635, 4
      %v5662 = vrot.slane %v5637, 4
      %v5663 = vrot.slane %v5639, 4
      %v5664 = vrot.slane %v5641, 4
      %v5665 = vrot.slane %v5643, 4
      %v5666 = vrot.slane %v5645, 4
      %v5667 = vrot.slane %v5647, 4
      %v5668 = vrot.slane %v5649, 4
      %v5669 = vrot.slane %v5651, 4
      %v5670 = vrot.slane %v5653, 4
      %v5671 = vrot.slane %v5655, 4
      %v5672 = vsel %vm623, %v5656, %v5657
      %v5673 = vsel %vm843, %v5625, %v5672
      %v5674 = vsel %vm843, %v5627, %v5657
      %v5675 = vsel %vm623, %v5658, %v5659
      %v5676 = vsel %vm843, %v5629, %v5675
      %v5677 = vsel %vm843, %v5631, %v5659
      %v5678 = vsel %vm623, %v5660, %v5661
      %v5679 = vsel %vm843, %v5633, %v5678
      %v5680 = vsel %vm843, %v5635, %v5661
      %v5681 = vsel %vm623, %v5662, %v5663
      %v5682 = vsel %vm843, %v5637, %v5681
      %v5683 = vsel %vm843, %v5639, %v5663
      %v5684 = vsel %vm623, %v5664, %v5665
      %v5685 = vsel %vm843, %v5641, %v5684
      %v5686 = vsel %vm843, %v5643, %v5665
      %v5687 = vsel %vm623, %v5666, %v5667
      %v5688 = vsel %vm843, %v5645, %v5687
      %v5689 = vsel %vm843, %v5647, %v5667
      %v5690 = vsel %vm623, %v5668, %v5669
      %v5691 = vsel %vm843, %v5649, %v5690
      %v5692 = vsel %vm843, %v5651, %v5669
      %v5693 = vsel %vm623, %v5670, %v5671
      %v5694 = vsel %vm843, %v5653, %v5693
      %v5695 = vsel %vm843, %v5655, %v5671
      %5712 = vst [vmem:[#allocation3 + $0x2a0] sm:$0xff] %v5673
      %5713 = vst [vmem:[#allocation3 + $0x2a8] sm:$0xf] %v5674
      %5714 = vst [vmem:[#allocation3 + $0x2ac] sm:$0xff] %v5676
      %5715 = vst [vmem:[#allocation3 + $0x2b4] sm:$0xf] %v5677
      %5716 = vst [vmem:[#allocation3 + $0x2b8] sm:$0xff] %v5679
      %5717 = vst [vmem:[#allocation3 + $0x2c0] sm:$0xf] %v5680
      %5718 = vst [vmem:[#allocation3 + $0x2c4] sm:$0xff] %v5682
      %5719 = vst [vmem:[#allocation3 + $0x2cc] sm:$0xf] %v5683
      %5720 = vst [vmem:[#allocation3 + $0x2d0] sm:$0xff] %v5685
      %5721 = vst [vmem:[#allocation3 + $0x2d8] sm:$0xf] %v5686
      %5722 = vst [vmem:[#allocation3 + $0x2dc] sm:$0xff] %v5688
      %5723 = vst [vmem:[#allocation3 + $0x2e4] sm:$0xf] %v5689
      %5724 = vst [vmem:[#allocation3 + $0x2e8] sm:$0xff] %v5691
      %5725 = vst [vmem:[#allocation3 + $0x2f0] sm:$0xf] %v5692
      %5726 = vst [vmem:[#allocation3 + $0x2f4] sm:$0xff] %v5694
      %5727 = vst [vmem:[#allocation3 + $0x2fc] sm:$0xf] %v5695
      %v5728 = vld [vmem:[#allocation2 + $0x7c] sm:$0xff]
      %v5729 = vld [vmem:[#allocation2 + $0x84] sm:$0xff]
      %v5730 = vld [vmem:[#allocation2 + $0x90] sm:$0xff]
      %v5731 = vld [vmem:[#allocation2 + $0x98] sm:$0xff]
      %v5732 = vld [vmem:[#allocation2 + $0xa4] sm:$0xff]
      %v5733 = vld [vmem:[#allocation2 + $0xac] sm:$0xff]
      %v5734 = vld [vmem:[#allocation2 + $0xb8] sm:$0xff]
      %v5735 = vld [vmem:[#allocation2 + $0xc0] sm:$0xff]
      %v5736 = vld [vmem:[#allocation2 + $0xcc] sm:$0xff]
      %v5737 = vld [vmem:[#allocation2 + $0xd4] sm:$0xff]
      %v5738 = vld [vmem:[#allocation2 + $0xe0] sm:$0xff]
      %v5739 = vld [vmem:[#allocation2 + $0xe8] sm:$0xff]
      %v5740 = vld [vmem:[#allocation2 + $0xf4] sm:$0xff]
      %v5741 = vld [vmem:[#allocation2 + $0xfc] sm:$0xff]
      %v5742 = vld [vmem:[#allocation2 + $0x108] sm:$0xff]
      %v5743 = vld [vmem:[#allocation2 + $0x110] sm:$0xff]
      %5760 = vrot.lane.b32.xlu0 %v5728, 109
      %v5761 = vpop.permute.xlu0 %5760
      %5762 = vrot.lane.b32.xlu0 %v5729, 109
      %v5763 = vpop.permute.xlu0 %5762
      %5764 = vrot.lane.b32.xlu0 %v5730, 109
      %v5765 = vpop.permute.xlu0 %5764
      %5766 = vrot.lane.b32.xlu0 %v5731, 109
      %v5767 = vpop.permute.xlu0 %5766
      %5768 = vrot.lane.b32.xlu0 %v5732, 109
      %v5769 = vpop.permute.xlu0 %5768
      %5770 = vrot.lane.b32.xlu0 %v5733, 109
      %v5771 = vpop.permute.xlu0 %5770
      %5772 = vrot.lane.b32.xlu0 %v5734, 109
      %v5773 = vpop.permute.xlu0 %5772
      %5774 = vrot.lane.b32.xlu0 %v5735, 109
      %v5775 = vpop.permute.xlu0 %5774
      %5776 = vrot.lane.b32.xlu0 %v5736, 109
      %v5777 = vpop.permute.xlu0 %5776
      %5778 = vrot.lane.b32.xlu0 %v5737, 109
      %v5779 = vpop.permute.xlu0 %5778
      %5780 = vrot.lane.b32.xlu0 %v5738, 109
      %v5781 = vpop.permute.xlu0 %5780
      %5782 = vrot.lane.b32.xlu0 %v5739, 109
      %v5783 = vpop.permute.xlu0 %5782
      %5784 = vrot.lane.b32.xlu0 %v5740, 109
      %v5785 = vpop.permute.xlu0 %5784
      %5786 = vrot.lane.b32.xlu0 %v5741, 109
      %v5787 = vpop.permute.xlu0 %5786
      %5788 = vrot.lane.b32.xlu0 %v5742, 109
      %v5789 = vpop.permute.xlu0 %5788
      %5790 = vrot.lane.b32.xlu0 %v5743, 109
      %v5791 = vpop.permute.xlu0 %5790
      %v5792 = vrot.slane %v5761, 4
      %v5793 = vrot.slane %v5763, 4
      %v5794 = vrot.slane %v5765, 4
      %v5795 = vrot.slane %v5767, 4
      %v5796 = vrot.slane %v5769, 4
      %v5797 = vrot.slane %v5771, 4
      %v5798 = vrot.slane %v5773, 4
      %v5799 = vrot.slane %v5775, 4
      %v5800 = vrot.slane %v5777, 4
      %v5801 = vrot.slane %v5779, 4
      %v5802 = vrot.slane %v5781, 4
      %v5803 = vrot.slane %v5783, 4
      %v5804 = vrot.slane %v5785, 4
      %v5805 = vrot.slane %v5787, 4
      %v5806 = vrot.slane %v5789, 4
      %v5807 = vrot.slane %v5791, 4
      %v5808 = vsel %vm623, %v5792, %v5793
      %v5809 = vsel %vm878, %v5761, %v5808
      %v5810 = vsel %vm878, %v5763, %v5793
      %v5811 = vsel %vm623, %v5794, %v5795
      %v5812 = vsel %vm878, %v5765, %v5811
      %v5813 = vsel %vm878, %v5767, %v5795
      %v5814 = vsel %vm623, %v5796, %v5797
      %v5815 = vsel %vm878, %v5769, %v5814
      %v5816 = vsel %vm878, %v5771, %v5797
      %v5817 = vsel %vm623, %v5798, %v5799
      %v5818 = vsel %vm878, %v5773, %v5817
      %v5819 = vsel %vm878, %v5775, %v5799
      %v5820 = vsel %vm623, %v5800, %v5801
      %v5821 = vsel %vm878, %v5777, %v5820
      %v5822 = vsel %vm878, %v5779, %v5801
      %v5823 = vsel %vm623, %v5802, %v5803
      %v5824 = vsel %vm878, %v5781, %v5823
      %v5825 = vsel %vm878, %v5783, %v5803
      %v5826 = vsel %vm623, %v5804, %v5805
      %v5827 = vsel %vm878, %v5785, %v5826
      %v5828 = vsel %vm878, %v5787, %v5805
      %v5829 = vsel %vm623, %v5806, %v5807
      %v5830 = vsel %vm878, %v5789, %v5829
      %v5831 = vsel %vm878, %v5791, %v5807
      %5848 = vst [vmem:[#allocation3 + $0x300] sm:$0xff] %v5809
      %5849 = vst [vmem:[#allocation3 + $0x308] sm:$0xf] %v5810
      %5850 = vst [vmem:[#allocation3 + $0x30c] sm:$0xff] %v5812
      %5851 = vst [vmem:[#allocation3 + $0x314] sm:$0xf] %v5813
      %5852 = vst [vmem:[#allocation3 + $0x318] sm:$0xff] %v5815
      %5853 = vst [vmem:[#allocation3 + $0x320] sm:$0xf] %v5816
      %5854 = vst [vmem:[#allocation3 + $0x324] sm:$0xff] %v5818
      %5855 = vst [vmem:[#allocation3 + $0x32c] sm:$0xf] %v5819
      %5856 = vst [vmem:[#allocation3 + $0x330] sm:$0xff] %v5821
      %5857 = vst [vmem:[#allocation3 + $0x338] sm:$0xf] %v5822
      %5858 = vst [vmem:[#allocation3 + $0x33c] sm:$0xff] %v5824
      %5859 = vst [vmem:[#allocation3 + $0x344] sm:$0xf] %v5825
      %5860 = vst [vmem:[#allocation3 + $0x348] sm:$0xff] %v5827
      %5861 = vst [vmem:[#allocation3 + $0x350] sm:$0xf] %v5828
      %5862 = vst [vmem:[#allocation3 + $0x354] sm:$0xff] %v5830
      %5863 = vst [vmem:[#allocation3 + $0x35c] sm:$0xf] %v5831
      %v5864 = vld [vmem:[%s9] sm:$0xff]
      %v5865 = vld [vmem:[%s9 + $0x8] sm:$0xff]
      %v5866 = vld [vmem:[%s9 + $0x10] sm:$0xf]
      %v5867 = vld [vmem:[%s9 + $0x14] sm:$0xff]
      %v5868 = vld [vmem:[%s9 + $0x1c] sm:$0xff]
      %v5869 = vld [vmem:[%s9 + $0x24] sm:$0xf]
      %v5870 = vld [vmem:[%s9 + $0x28] sm:$0xff]
      %v5871 = vld [vmem:[%s9 + $0x30] sm:$0xff]
      %v5872 = vld [vmem:[%s9 + $0x38] sm:$0xf]
      %v5873 = vld [vmem:[%s9 + $0x3c] sm:$0xff]
      %v5874 = vld [vmem:[%s9 + $0x44] sm:$0xff]
      %v5875 = vld [vmem:[%s9 + $0x4c] sm:$0xf]
      %v5876 = vld [vmem:[#allocation3] sm:$0xff]
      %v5877 = vld [vmem:[#allocation3 + $0x8] sm:$0xf]
      %v5878 = vld [vmem:[#allocation3 + $0xc] sm:$0xff]
      %v5879 = vld [vmem:[#allocation3 + $0x14] sm:$0xf]
      %v5880 = vld [vmem:[#allocation3 + $0x18] sm:$0xff]
      %v5881 = vld [vmem:[#allocation3 + $0x20] sm:$0xf]
      %v5882 = vld [vmem:[#allocation3 + $0x24] sm:$0xff]
      %v5883 = vld [vmem:[#allocation3 + $0x2c] sm:$0xf]
      %v5884 = vld [vmem:[#allocation3 + $0x30] sm:$0xff]
      %v5885 = vld [vmem:[#allocation3 + $0x38] sm:$0xf]
      %v5886 = vld [vmem:[#allocation3 + $0x3c] sm:$0xff]
      %v5887 = vld [vmem:[#allocation3 + $0x44] sm:$0xf]
      %v5888 = vld [vmem:[#allocation3 + $0x48] sm:$0xff]
      %v5889 = vld [vmem:[#allocation3 + $0x50] sm:$0xf]
      %v5890 = vld [vmem:[#allocation3 + $0x54] sm:$0xff]
      %v5891 = vld [vmem:[#allocation3 + $0x5c] sm:$0xf]
      %v5892 = vld [vmem:[#allocation3 + $0x60] sm:$0xff]
      %v5893 = vld [vmem:[#allocation3 + $0x68] sm:$0xf]
      %v5894 = vld [vmem:[#allocation3 + $0x6c] sm:$0xff]
      %v5895 = vld [vmem:[#allocation3 + $0x74] sm:$0xf]
      %v5896 = vld [vmem:[#allocation3 + $0x78] sm:$0xff]
      %v5897 = vld [vmem:[#allocation3 + $0x80] sm:$0xf]
      %v5898 = vld [vmem:[#allocation3 + $0x84] sm:$0xff]
      %v5899 = vld [vmem:[#allocation3 + $0x8c] sm:$0xf]
      %v5900 = vld [vmem:[#allocation3 + $0x90] sm:$0xff]
      %v5901 = vld [vmem:[#allocation3 + $0x98] sm:$0xf]
      %v5902 = vld [vmem:[#allocation3 + $0x9c] sm:$0xff]
      %v5903 = vld [vmem:[#allocation3 + $0xa4] sm:$0xf]
      %v5904 = vld [vmem:[#allocation3 + $0xa8] sm:$0xff]
      %v5905 = vld [vmem:[#allocation3 + $0xb0] sm:$0xf]
      %v5906 = vld [vmem:[#allocation3 + $0xb4] sm:$0xff]
      %v5907 = vld [vmem:[#allocation3 + $0xbc] sm:$0xf]
      %v5908 = vld [vmem:[#allocation3 + $0xc0] sm:$0xff]
      %v5909 = vld [vmem:[#allocation3 + $0xc8] sm:$0xf]
      %v5910 = vld [vmem:[#allocation3 + $0xcc] sm:$0xff]
      %v5911 = vld [vmem:[#allocation3 + $0xd4] sm:$0xf]
      %v5912 = vld [vmem:[#allocation3 + $0xd8] sm:$0xff]
      %v5913 = vld [vmem:[#allocation3 + $0xe0] sm:$0xf]
      %v5914 = vld [vmem:[#allocation3 + $0xe4] sm:$0xff]
      %v5915 = vld [vmem:[#allocation3 + $0xec] sm:$0xf]
      %v5916 = vld [vmem:[#allocation3 + $0xf0] sm:$0xff]
      %v5917 = vld [vmem:[#allocation3 + $0xf8] sm:$0xf]
      %v5918 = vld [vmem:[#allocation3 + $0xfc] sm:$0xff]
      %v5919 = vld [vmem:[#allocation3 + $0x104] sm:$0xf]
      %v5920 = vld [vmem:[#allocation3 + $0x108] sm:$0xff]
      %v5921 = vld [vmem:[#allocation3 + $0x110] sm:$0xf]
      %v5922 = vld [vmem:[#allocation3 + $0x114] sm:$0xff]
      %v5923 = vld [vmem:[#allocation3 + $0x11c] sm:$0xf]
      %v5924 = vld [vmem:[#allocation3 + $0x120] sm:$0xff]
      %v5925 = vld [vmem:[#allocation3 + $0x128] sm:$0xf]
      %v5926 = vld [vmem:[#allocation3 + $0x12c] sm:$0xff]
      %v5927 = vld [vmem:[#allocation3 + $0x134] sm:$0xf]
      %v5928 = vld [vmem:[#allocation3 + $0x138] sm:$0xff]
      %v5929 = vld [vmem:[#allocation3 + $0x140] sm:$0xf]
      %v5930 = vld [vmem:[#allocation3 + $0x144] sm:$0xff]
      %v5931 = vld [vmem:[#allocation3 + $0x14c] sm:$0xf]
      %v5932 = vld [vmem:[#allocation3 + $0x150] sm:$0xff]
      %v5933 = vld [vmem:[#allocation3 + $0x158] sm:$0xf]
      %v5934 = vld [vmem:[#allocation3 + $0x15c] sm:$0xff]
      %v5935 = vld [vmem:[#allocation3 + $0x164] sm:$0xf]
      %v5936 = vld [vmem:[#allocation3 + $0x168] sm:$0xff]
      %v5937 = vld [vmem:[#allocation3 + $0x170] sm:$0xf]
      %v5938 = vld [vmem:[#allocation3 + $0x174] sm:$0xff]
      %v5939 = vld [vmem:[#allocation3 + $0x17c] sm:$0xf]
      %v5940 = vld [vmem:[#allocation3 + $0x180] sm:$0xff]
      %v5941 = vld [vmem:[#allocation3 + $0x188] sm:$0xf]
      %v5942 = vld [vmem:[#allocation3 + $0x18c] sm:$0xff]
      %v5943 = vld [vmem:[#allocation3 + $0x194] sm:$0xf]
      %v5944 = vld [vmem:[#allocation3 + $0x198] sm:$0xff]
      %v5945 = vld [vmem:[#allocation3 + $0x1a0] sm:$0xf]
      %v5946 = vld [vmem:[#allocation3 + $0x1a4] sm:$0xff]
      %v5947 = vld [vmem:[#allocation3 + $0x1ac] sm:$0xf]
      %v5948 = vld [vmem:[#allocation3 + $0x1b0] sm:$0xff]
      %v5949 = vld [vmem:[#allocation3 + $0x1b8] sm:$0xf]
      %v5950 = vld [vmem:[#allocation3 + $0x1bc] sm:$0xff]
      %v5951 = vld [vmem:[#allocation3 + $0x1c4] sm:$0xf]
      %v5952 = vld [vmem:[#allocation3 + $0x1c8] sm:$0xff]
      %v5953 = vld [vmem:[#allocation3 + $0x1d0] sm:$0xf]
      %v5954 = vld [vmem:[#allocation3 + $0x1d4] sm:$0xff]
      %v5955 = vld [vmem:[#allocation3 + $0x1dc] sm:$0xf]
      %v5956 = vld [vmem:[#allocation3 + $0x1e0] sm:$0xff]
      %v5957 = vld [vmem:[#allocation3 + $0x1e8] sm:$0xf]
      %v5958 = vld [vmem:[#allocation3 + $0x1ec] sm:$0xff]
      %v5959 = vld [vmem:[#allocation3 + $0x1f4] sm:$0xf]
      %v5960 = vld [vmem:[#allocation3 + $0x1f8] sm:$0xff]
      %v5961 = vld [vmem:[#allocation3 + $0x200] sm:$0xf]
      %v5962 = vld [vmem:[#allocation3 + $0x204] sm:$0xff]
      %v5963 = vld [vmem:[#allocation3 + $0x20c] sm:$0xf]
      %v5964 = vld [vmem:[#allocation3 + $0x210] sm:$0xff]
      %v5965 = vld [vmem:[#allocation3 + $0x218] sm:$0xf]
      %v5966 = vld [vmem:[#allocation3 + $0x21c] sm:$0xff]
      %v5967 = vld [vmem:[#allocation3 + $0x224] sm:$0xf]
      %v5968 = vld [vmem:[#allocation3 + $0x228] sm:$0xff]
      %v5969 = vld [vmem:[#allocation3 + $0x230] sm:$0xf]
      %v5970 = vld [vmem:[#allocation3 + $0x234] sm:$0xff]
      %v5971 = vld [vmem:[#allocation3 + $0x23c] sm:$0xf]
      %v5972 = vld [vmem:[#allocation3 + $0x240] sm:$0xff]
      %v5973 = vld [vmem:[#allocation3 + $0x248] sm:$0xf]
      %v5974 = vld [vmem:[#allocation3 + $0x24c] sm:$0xff]
      %v5975 = vld [vmem:[#allocation3 + $0x254] sm:$0xf]
      %v5976 = vld [vmem:[#allocation3 + $0x258] sm:$0xff]
      %v5977 = vld [vmem:[#allocation3 + $0x260] sm:$0xf]
      %v5978 = vld [vmem:[#allocation3 + $0x264] sm:$0xff]
      %v5979 = vld [vmem:[#allocation3 + $0x26c] sm:$0xf]
      %v5980 = vld [vmem:[#allocation3 + $0x270] sm:$0xff]
      %v5981 = vld [vmem:[#allocation3 + $0x278] sm:$0xf]
      %v5982 = vld [vmem:[#allocation3 + $0x27c] sm:$0xff]
      %v5983 = vld [vmem:[#allocation3 + $0x284] sm:$0xf]
      %v5984 = vld [vmem:[#allocation3 + $0x288] sm:$0xff]
      %v5985 = vld [vmem:[#allocation3 + $0x290] sm:$0xf]
      %v5986 = vld [vmem:[#allocation3 + $0x294] sm:$0xff]
      %v5987 = vld [vmem:[#allocation3 + $0x29c] sm:$0xf]
      %v5988 = vld [vmem:[#allocation3 + $0x2a0] sm:$0xff]
      %v5989 = vld [vmem:[#allocation3 + $0x2a8] sm:$0xf]
      %v5990 = vld [vmem:[#allocation3 + $0x2ac] sm:$0xff]
      %v5991 = vld [vmem:[#allocation3 + $0x2b4] sm:$0xf]
      %v5992 = vld [vmem:[#allocation3 + $0x2b8] sm:$0xff]
      %v5993 = vld [vmem:[#allocation3 + $0x2c0] sm:$0xf]
      %v5994 = vld [vmem:[#allocation3 + $0x2c4] sm:$0xff]
      %v5995 = vld [vmem:[#allocation3 + $0x2cc] sm:$0xf]
      %v5996 = vld [vmem:[#allocation3 + $0x2d0] sm:$0xff]
      %v5997 = vld [vmem:[#allocation3 + $0x2d8] sm:$0xf]
      %v5998 = vld [vmem:[#allocation3 + $0x2dc] sm:$0xff]
      %v5999 = vld [vmem:[#allocation3 + $0x2e4] sm:$0xf]
      %v6000 = vld [vmem:[#allocation3 + $0x2e8] sm:$0xff]
      %v6001 = vld [vmem:[#allocation3 + $0x2f0] sm:$0xf]
      %v6002 = vld [vmem:[#allocation3 + $0x2f4] sm:$0xff]
      %v6003 = vld [vmem:[#allocation3 + $0x2fc] sm:$0xf]
      %v6004 = vld [vmem:[#allocation3 + $0x300] sm:$0xff]
      %v6005 = vld [vmem:[#allocation3 + $0x308] sm:$0xf]
      %v6006 = vld [vmem:[#allocation3 + $0x30c] sm:$0xff]
      %v6007 = vld [vmem:[#allocation3 + $0x314] sm:$0xf]
      %v6008 = vld [vmem:[#allocation3 + $0x318] sm:$0xff]
      %v6009 = vld [vmem:[#allocation3 + $0x320] sm:$0xf]
      %v6010 = vld [vmem:[#allocation3 + $0x324] sm:$0xff]
      %v6011 = vld [vmem:[#allocation3 + $0x32c] sm:$0xf]
      %v6012 = vld [vmem:[#allocation3 + $0x330] sm:$0xff]
      %v6013 = vld [vmem:[#allocation3 + $0x338] sm:$0xf]
      %v6014 = vld [vmem:[#allocation3 + $0x33c] sm:$0xff]
      %v6015 = vld [vmem:[#allocation3 + $0x344] sm:$0xf]
      %v6016 = vld [vmem:[#allocation3 + $0x348] sm:$0xff]
      %v6017 = vld [vmem:[#allocation3 + $0x350] sm:$0xf]
      %v6018 = vld [vmem:[#allocation3 + $0x354] sm:$0xff]
      %v6019 = vld [vmem:[#allocation3 + $0x35c] sm:$0xf]
      %v6020 = vld [vmem:[%s10] sm:$0xff]
      %v6021 = vld [vmem:[%s10 + $0x8] sm:$0xff]
      %v6022 = vld [vmem:[%s10 + $0x10] sm:$0xff]
      %v6023 = vld [vmem:[%s10 + $0x18] sm:$0xff]
      %6025 = vset.pattern.permute.xlu0 0
      %6026 = vperm.xlu0 %6025, %v6020
      %v6027 = vpop.permute.xlu0 %6026
      %6030 = vset.pattern.permute.xlu0 0
      %6031 = vperm.xlu0 %6030, %v6021
      %v6032 = vpop.permute.xlu0 %6031
      %6035 = vset.pattern.permute.xlu0 0
      %6036 = vperm.xlu0 %6035, %v6022
      %v6037 = vpop.permute.xlu0 %6036
      %6040 = vset.pattern.permute.xlu0 0
      %6041 = vperm.xlu0 %6040, %v6023
      %v6042 = vpop.permute.xlu0 %6041
      %v6056 = vunpack.c.l.b16 %v5864
      %v6057 = vunpack.c.h.b16 %v5864
      %v6058 = vunpack.c.l.b16 %v5865
      %v6059 = vunpack.c.h.b16 %v5865
      %v6060 = vunpack.c.l.b16 %v5866
      %v6061 = vunpack.c.l.b16 %v5867
      %v6062 = vunpack.c.h.b16 %v5867
      %v6063 = vunpack.c.l.b16 %v5868
      %v6064 = vunpack.c.h.b16 %v5868
      %v6065 = vunpack.c.l.b16 %v5869
      %v6066 = vunpack.c.l.b16 %v5870
      %v6067 = vunpack.c.h.b16 %v5870
      %v6068 = vunpack.c.l.b16 %v5871
      %v6069 = vunpack.c.h.b16 %v5871
      %v6070 = vunpack.c.l.b16 %v5872
      %v6071 = vunpack.c.l.b16 %v5873
      %v6072 = vunpack.c.h.b16 %v5873
      %v6073 = vunpack.c.l.b16 %v5874
      %v6074 = vunpack.c.h.b16 %v5874
      %v6075 = vunpack.c.l.b16 %v5875
      %v6076 = vpack.c.b16 %v6061, %v6056
      %v6077 = vpack.c.b16 %v6062, %v6057
      %v6078 = vpack.c.b16 %v6063, %v6058
      %v6079 = vpack.c.b16 %v6064, %v6059
      %v6080 = vpack.c.b16 %v6065, %v6060
      %v6081 = vpack.c.b16 %v6071, %v6066
      %v6082 = vpack.c.b16 %v6072, %v6067
      %v6083 = vpack.c.b16 %v6073, %v6068
      %v6084 = vpack.c.b16 %v6074, %v6069
      %v6085 = vpack.c.b16 %v6075, %v6070
      %v6238 = vunpack.c.l.b16 %v5876
      %v6239 = vunpack.c.h.b16 %v5876
      %v6240 = vunpack.c.l.b16 %v5877
      %v6241 = vunpack.c.l.b16 %v5878
      %v6242 = vunpack.c.h.b16 %v5878
      %v6243 = vunpack.c.l.b16 %v5879
      %v6244 = vunpack.c.l.b16 %v5880
      %v6245 = vunpack.c.h.b16 %v5880
      %v6246 = vunpack.c.l.b16 %v5881
      %v6247 = vunpack.c.l.b16 %v5882
      %v6248 = vunpack.c.h.b16 %v5882
      %v6249 = vunpack.c.l.b16 %v5883
      %v6250 = vunpack.c.l.b16 %v5884
      %v6251 = vunpack.c.h.b16 %v5884
      %v6252 = vunpack.c.l.b16 %v5885
      %v6253 = vunpack.c.l.b16 %v5886
      %v6254 = vunpack.c.h.b16 %v5886
      %v6255 = vunpack.c.l.b16 %v5887
      %v6256 = vunpack.c.l.b16 %v5888
      %v6257 = vunpack.c.h.b16 %v5888
      %v6258 = vunpack.c.l.b16 %v5889
      %v6259 = vunpack.c.l.b16 %v5890
      %v6260 = vunpack.c.h.b16 %v5890
      %v6261 = vunpack.c.l.b16 %v5891
      %v6262 = vunpack.c.l.b16 %v5892
      %v6263 = vunpack.c.h.b16 %v5892
      %v6264 = vunpack.c.l.b16 %v5893
      %v6265 = vunpack.c.l.b16 %v5894
      %v6266 = vunpack.c.h.b16 %v5894
      %v6267 = vunpack.c.l.b16 %v5895
      %v6268 = vunpack.c.l.b16 %v5896
      %v6269 = vunpack.c.h.b16 %v5896
      %v6270 = vunpack.c.l.b16 %v5897
      %v6271 = vunpack.c.l.b16 %v5898
      %v6272 = vunpack.c.h.b16 %v5898
      %v6273 = vunpack.c.l.b16 %v5899
      %v6274 = vunpack.c.l.b16 %v5900
      %v6275 = vunpack.c.h.b16 %v5900
      %v6276 = vunpack.c.l.b16 %v5901
      %v6277 = vunpack.c.l.b16 %v5902
      %v6278 = vunpack.c.h.b16 %v5902
      %v6279 = vunpack.c.l.b16 %v5903
      %v6280 = vunpack.c.l.b16 %v5904
      %v6281 = vunpack.c.h.b16 %v5904
      %v6282 = vunpack.c.l.b16 %v5905
      %v6283 = vunpack.c.l.b16 %v5906
      %v6284 = vunpack.c.h.b16 %v5906
      %v6285 = vunpack.c.l.b16 %v5907
      %v6286 = vunpack.c.l.b16 %v5908
      %v6287 = vunpack.c.h.b16 %v5908
      %v6288 = vunpack.c.l.b16 %v5909
      %v6289 = vunpack.c.l.b16 %v5910
      %v6290 = vunpack.c.h.b16 %v5910
      %v6291 = vunpack.c.l.b16 %v5911
      %v6292 = vunpack.c.l.b16 %v5912
      %v6293 = vunpack.c.h.b16 %v5912
      %v6294 = vunpack.c.l.b16 %v5913
      %v6295 = vunpack.c.l.b16 %v5914
      %v6296 = vunpack.c.h.b16 %v5914
      %v6297 = vunpack.c.l.b16 %v5915
      %v6298 = vunpack.c.l.b16 %v5916
      %v6299 = vunpack.c.h.b16 %v5916
      %v6300 = vunpack.c.l.b16 %v5917
      %v6301 = vunpack.c.l.b16 %v5918
      %v6302 = vunpack.c.h.b16 %v5918
      %v6303 = vunpack.c.l.b16 %v5919
      %v6304 = vunpack.c.l.b16 %v5920
      %v6305 = vunpack.c.h.b16 %v5920
      %v6306 = vunpack.c.l.b16 %v5921
      %v6307 = vunpack.c.l.b16 %v5922
      %v6308 = vunpack.c.h.b16 %v5922
      %v6309 = vunpack.c.l.b16 %v5923
      %v6310 = vunpack.c.l.b16 %v5924
      %v6311 = vunpack.c.h.b16 %v5924
      %v6312 = vunpack.c.l.b16 %v5925
      %v6313 = vunpack.c.l.b16 %v5926
      %v6314 = vunpack.c.h.b16 %v5926
      %v6315 = vunpack.c.l.b16 %v5927
      %v6316 = vunpack.c.l.b16 %v5928
      %v6317 = vunpack.c.h.b16 %v5928
      %v6318 = vunpack.c.l.b16 %v5929
      %v6319 = vunpack.c.l.b16 %v5930
      %v6320 = vunpack.c.h.b16 %v5930
      %v6321 = vunpack.c.l.b16 %v5931
      %v6322 = vunpack.c.l.b16 %v5932
      %v6323 = vunpack.c.h.b16 %v5932
      %v6324 = vunpack.c.l.b16 %v5933
      %v6325 = vunpack.c.l.b16 %v5934
      %v6326 = vunpack.c.h.b16 %v5934
      %v6327 = vunpack.c.l.b16 %v5935
      %v6328 = vunpack.c.l.b16 %v5936
      %v6329 = vunpack.c.h.b16 %v5936
      %v6330 = vunpack.c.l.b16 %v5937
      %v6331 = vunpack.c.l.b16 %v5938
      %v6332 = vunpack.c.h.b16 %v5938
      %v6333 = vunpack.c.l.b16 %v5939
      %v6334 = vunpack.c.l.b16 %v5940
      %v6335 = vunpack.c.h.b16 %v5940
      %v6336 = vunpack.c.l.b16 %v5941
      %v6337 = vunpack.c.l.b16 %v5942
      %v6338 = vunpack.c.h.b16 %v5942
      %v6339 = vunpack.c.l.b16 %v5943
      %v6340 = vunpack.c.l.b16 %v5944
      %v6341 = vunpack.c.h.b16 %v5944
      %v6342 = vunpack.c.l.b16 %v5945
      %v6343 = vunpack.c.l.b16 %v5946
      %v6344 = vunpack.c.h.b16 %v5946
      %v6345 = vunpack.c.l.b16 %v5947
      %v6346 = vunpack.c.l.b16 %v5948
      %v6347 = vunpack.c.h.b16 %v5948
      %v6348 = vunpack.c.l.b16 %v5949
      %v6349 = vunpack.c.l.b16 %v5950
      %v6350 = vunpack.c.h.b16 %v5950
      %v6351 = vunpack.c.l.b16 %v5951
      %v6352 = vunpack.c.l.b16 %v5952
      %v6353 = vunpack.c.h.b16 %v5952
      %v6354 = vunpack.c.l.b16 %v5953
      %v6355 = vunpack.c.l.b16 %v5954
      %v6356 = vunpack.c.h.b16 %v5954
      %v6357 = vunpack.c.l.b16 %v5955
      %v6358 = vunpack.c.l.b16 %v5956
      %v6359 = vunpack.c.h.b16 %v5956
      %v6360 = vunpack.c.l.b16 %v5957
      %v6361 = vunpack.c.l.b16 %v5958
      %v6362 = vunpack.c.h.b16 %v5958
      %v6363 = vunpack.c.l.b16 %v5959
      %v6364 = vunpack.c.l.b16 %v5960
      %v6365 = vunpack.c.h.b16 %v5960
      %v6366 = vunpack.c.l.b16 %v5961
      %v6367 = vunpack.c.l.b16 %v5962
      %v6368 = vunpack.c.h.b16 %v5962
      %v6369 = vunpack.c.l.b16 %v5963
      %v6370 = vunpack.c.l.b16 %v5964
      %v6371 = vunpack.c.h.b16 %v5964
      %v6372 = vunpack.c.l.b16 %v5965
      %v6373 = vunpack.c.l.b16 %v5966
      %v6374 = vunpack.c.h.b16 %v5966
      %v6375 = vunpack.c.l.b16 %v5967
      %v6376 = vunpack.c.l.b16 %v5968
      %v6377 = vunpack.c.h.b16 %v5968
      %v6378 = vunpack.c.l.b16 %v5969
      %v6379 = vunpack.c.l.b16 %v5970
      %v6380 = vunpack.c.h.b16 %v5970
      %v6381 = vunpack.c.l.b16 %v5971
      %v6382 = vunpack.c.l.b16 %v5972
      %v6383 = vunpack.c.h.b16 %v5972
      %v6384 = vunpack.c.l.b16 %v5973
      %v6385 = vunpack.c.l.b16 %v5974
      %v6386 = vunpack.c.h.b16 %v5974
      %v6387 = vunpack.c.l.b16 %v5975
      %v6388 = vunpack.c.l.b16 %v5976
      %v6389 = vunpack.c.h.b16 %v5976
      %v6390 = vunpack.c.l.b16 %v5977
      %v6391 = vunpack.c.l.b16 %v5978
      %v6392 = vunpack.c.h.b16 %v5978
      %v6393 = vunpack.c.l.b16 %v5979
      %v6394 = vunpack.c.l.b16 %v5980
      %v6395 = vunpack.c.h.b16 %v5980
      %v6396 = vunpack.c.l.b16 %v5981
      %v6397 = vunpack.c.l.b16 %v5982
      %v6398 = vunpack.c.h.b16 %v5982
      %v6399 = vunpack.c.l.b16 %v5983
      %v6400 = vunpack.c.l.b16 %v5984
      %v6401 = vunpack.c.h.b16 %v5984
      %v6402 = vunpack.c.l.b16 %v5985
      %v6403 = vunpack.c.l.b16 %v5986
      %v6404 = vunpack.c.h.b16 %v5986
      %v6405 = vunpack.c.l.b16 %v5987
      %v6406 = vunpack.c.l.b16 %v5988
      %v6407 = vunpack.c.h.b16 %v5988
      %v6408 = vunpack.c.l.b16 %v5989
      %v6409 = vunpack.c.l.b16 %v5990
      %v6410 = vunpack.c.h.b16 %v5990
      %v6411 = vunpack.c.l.b16 %v5991
      %v6412 = vunpack.c.l.b16 %v5992
      %v6413 = vunpack.c.h.b16 %v5992
      %v6414 = vunpack.c.l.b16 %v5993
      %v6415 = vunpack.c.l.b16 %v5994
      %v6416 = vunpack.c.h.b16 %v5994
      %v6417 = vunpack.c.l.b16 %v5995
      %v6418 = vunpack.c.l.b16 %v5996
      %v6419 = vunpack.c.h.b16 %v5996
      %v6420 = vunpack.c.l.b16 %v5997
      %v6421 = vunpack.c.l.b16 %v5998
      %v6422 = vunpack.c.h.b16 %v5998
      %v6423 = vunpack.c.l.b16 %v5999
      %v6424 = vunpack.c.l.b16 %v6000
      %v6425 = vunpack.c.h.b16 %v6000
      %v6426 = vunpack.c.l.b16 %v6001
      %v6427 = vunpack.c.l.b16 %v6002
      %v6428 = vunpack.c.h.b16 %v6002
      %v6429 = vunpack.c.l.b16 %v6003
      %v6430 = vunpack.c.l.b16 %v6004
      %v6431 = vunpack.c.h.b16 %v6004
      %v6432 = vunpack.c.l.b16 %v6005
      %v6433 = vunpack.c.l.b16 %v6006
      %v6434 = vunpack.c.h.b16 %v6006
      %v6435 = vunpack.c.l.b16 %v6007
      %v6436 = vunpack.c.l.b16 %v6008
      %v6437 = vunpack.c.h.b16 %v6008
      %v6438 = vunpack.c.l.b16 %v6009
      %v6439 = vunpack.c.l.b16 %v6010
      %v6440 = vunpack.c.h.b16 %v6010
      %v6441 = vunpack.c.l.b16 %v6011
      %v6442 = vunpack.c.l.b16 %v6012
      %v6443 = vunpack.c.h.b16 %v6012
      %v6444 = vunpack.c.l.b16 %v6013
      %v6445 = vunpack.c.l.b16 %v6014
      %v6446 = vunpack.c.h.b16 %v6014
      %v6447 = vunpack.c.l.b16 %v6015
      %v6448 = vunpack.c.l.b16 %v6016
      %v6449 = vunpack.c.h.b16 %v6016
      %v6450 = vunpack.c.l.b16 %v6017
      %v6451 = vunpack.c.l.b16 %v6018
      %v6452 = vunpack.c.h.b16 %v6018
      %v6453 = vunpack.c.l.b16 %v6019
      %v6454 = vpack.c.b16 %v6241, %v6238
      %v6455 = vpack.c.b16 %v6242, %v6239
      %v6456 = vpack.c.b16 %v6243, %v6240
      %v6457 = vpack.c.b16 %v6247, %v6244
      %v6458 = vpack.c.b16 %v6248, %v6245
      %v6459 = vpack.c.b16 %v6249, %v6246
      %v6460 = vpack.c.b16 %v6253, %v6250
      %v6461 = vpack.c.b16 %v6254, %v6251
      %v6462 = vpack.c.b16 %v6255, %v6252
      %v6463 = vpack.c.b16 %v6259, %v6256
      %v6464 = vpack.c.b16 %v6260, %v6257
      %v6465 = vpack.c.b16 %v6261, %v6258
      %v6466 = vpack.c.b16 %v6265, %v6262
      %v6467 = vpack.c.b16 %v6266, %v6263
      %v6468 = vpack.c.b16 %v6267, %v6264
      %v6469 = vpack.c.b16 %v6271, %v6268
      %v6470 = vpack.c.b16 %v6272, %v6269
      %v6471 = vpack.c.b16 %v6273, %v6270
      %v6472 = vpack.c.b16 %v6277, %v6274
      %v6473 = vpack.c.b16 %v6278, %v6275
      %v6474 = vpack.c.b16 %v6279, %v6276
      %v6475 = vpack.c.b16 %v6283, %v6280
      %v6476 = vpack.c.b16 %v6284, %v6281
      %v6477 = vpack.c.b16 %v6285, %v6282
      %v6478 = vpack.c.b16 %v6289, %v6286
      %v6479 = vpack.c.b16 %v6290, %v6287
      %v6480 = vpack.c.b16 %v6291, %v6288
      %v6481 = vpack.c.b16 %v6295, %v6292
      %v6482 = vpack.c.b16 %v6296, %v6293
      %v6483 = vpack.c.b16 %v6297, %v6294
      %v6484 = vpack.c.b16 %v6301, %v6298
      %v6485 = vpack.c.b16 %v6302, %v6299
      %v6486 = vpack.c.b16 %v6303, %v6300
      %v6487 = vpack.c.b16 %v6307, %v6304
      %v6488 = vpack.c.b16 %v6308, %v6305
      %v6489 = vpack.c.b16 %v6309, %v6306
      %v6490 = vpack.c.b16 %v6313, %v6310
      %v6491 = vpack.c.b16 %v6314, %v6311
      %v6492 = vpack.c.b16 %v6315, %v6312
      %v6493 = vpack.c.b16 %v6319, %v6316
      %v6494 = vpack.c.b16 %v6320, %v6317
      %v6495 = vpack.c.b16 %v6321, %v6318
      %v6496 = vpack.c.b16 %v6325, %v6322
      %v6497 = vpack.c.b16 %v6326, %v6323
      %v6498 = vpack.c.b16 %v6327, %v6324
      %v6499 = vpack.c.b16 %v6331, %v6328
      %v6500 = vpack.c.b16 %v6332, %v6329
      %v6501 = vpack.c.b16 %v6333, %v6330
      %v6502 = vpack.c.b16 %v6337, %v6334
      %v6503 = vpack.c.b16 %v6338, %v6335
      %v6504 = vpack.c.b16 %v6339, %v6336
      %v6505 = vpack.c.b16 %v6343, %v6340
      %v6506 = vpack.c.b16 %v6344, %v6341
      %v6507 = vpack.c.b16 %v6345, %v6342
      %v6508 = vpack.c.b16 %v6349, %v6346
      %v6509 = vpack.c.b16 %v6350, %v6347
      %v6510 = vpack.c.b16 %v6351, %v6348
      %v6511 = vpack.c.b16 %v6355, %v6352
      %v6512 = vpack.c.b16 %v6356, %v6353
      %v6513 = vpack.c.b16 %v6357, %v6354
      %v6514 = vpack.c.b16 %v6361, %v6358
      %v6515 = vpack.c.b16 %v6362, %v6359
      %v6516 = vpack.c.b16 %v6363, %v6360
      %v6517 = vpack.c.b16 %v6367, %v6364
      %v6518 = vpack.c.b16 %v6368, %v6365
      %v6519 = vpack.c.b16 %v6369, %v6366
      %v6520 = vpack.c.b16 %v6373, %v6370
      %v6521 = vpack.c.b16 %v6374, %v6371
      %v6522 = vpack.c.b16 %v6375, %v6372
      %v6523 = vpack.c.b16 %v6379, %v6376
      %v6524 = vpack.c.b16 %v6380, %v6377
      %v6525 = vpack.c.b16 %v6381, %v6378
      %v6526 = vpack.c.b16 %v6385, %v6382
      %v6527 = vpack.c.b16 %v6386, %v6383
      %v6528 = vpack.c.b16 %v6387, %v6384
      %v6529 = vpack.c.b16 %v6391, %v6388
      %v6530 = vpack.c.b16 %v6392, %v6389
      %v6531 = vpack.c.b16 %v6393, %v6390
      %v6532 = vpack.c.b16 %v6397, %v6394
      %v6533 = vpack.c.b16 %v6398, %v6395
      %v6534 = vpack.c.b16 %v6399, %v6396
      %v6535 = vpack.c.b16 %v6403, %v6400
      %v6536 = vpack.c.b16 %v6404, %v6401
      %v6537 = vpack.c.b16 %v6405, %v6402
      %v6538 = vpack.c.b16 %v6409, %v6406
      %v6539 = vpack.c.b16 %v6410, %v6407
      %v6540 = vpack.c.b16 %v6411, %v6408
      %v6541 = vpack.c.b16 %v6415, %v6412
      %v6542 = vpack.c.b16 %v6416, %v6413
      %v6543 = vpack.c.b16 %v6417, %v6414
      %v6544 = vpack.c.b16 %v6421, %v6418
      %v6545 = vpack.c.b16 %v6422, %v6419
      %v6546 = vpack.c.b16 %v6423, %v6420
      %v6547 = vpack.c.b16 %v6427, %v6424
      %v6548 = vpack.c.b16 %v6428, %v6425
      %v6549 = vpack.c.b16 %v6429, %v6426
      %v6550 = vpack.c.b16 %v6433, %v6430
      %v6551 = vpack.c.b16 %v6434, %v6431
      %v6552 = vpack.c.b16 %v6435, %v6432
      %v6553 = vpack.c.b16 %v6439, %v6436
      %v6554 = vpack.c.b16 %v6440, %v6437
      %v6555 = vpack.c.b16 %v6441, %v6438
      %v6556 = vpack.c.b16 %v6445, %v6442
      %v6557 = vpack.c.b16 %v6446, %v6443
      %v6558 = vpack.c.b16 %v6447, %v6444
      %v6559 = vpack.c.b16 %v6451, %v6448
      %v6560 = vpack.c.b16 %v6452, %v6449
      %v6561 = vpack.c.b16 %v6453, %v6450
      %v6671 = vsel %vm4412, %v6080, 0
      %v6674 = vsel %vm4412, %v6085, 0
      %6676 = vmatpush.bf16.msra.mxu0 %v6475
      %6677 = vmatpush.bf16.msra.mxu0 %v6472
      %6678 = vmatpush.bf16.msra.mxu0 %v6469
      %6679 = vmatpush.bf16.msra.mxu0 %v6466
      %6680 = vmatpush.bf16.msra.mxu0 %v6463
      %6681 = vmatpush.bf16.msra.mxu0 %v6460
      %6682 = vmatpush.bf16.msra.mxu0 %v6457
      %6683 = vmatpush.bf16.msra.mxu0 %v6454
      %6684 = vmatmul.bf16.gmra.mxu0 %v6076
      %v6685 = vpop.f32.mrf.mxu0
      %v6686 = vadd.f32 %v6027, %v6685
      %v6687 = vpop.f32.mrf.mxu0
      %v6688 = vadd.f32 %v6032, %v6687
      %6689 = vmatmul.bf16.gmra.mxu0 %v6081
      %v6690 = vpop.f32.mrf.mxu0
      %v6691 = vadd.f32 %v6037, %v6690
      %v6692 = vpop.f32.mrf.mxu0
      %v6693 = vadd.f32 %v6042, %v6692
      %6694 = vdwg.mxu0
      %6695 = vmatpush.bf16.msra.mxu0 %v6499
      %6696 = vmatpush.bf16.msra.mxu0 %v6496
      %6697 = vmatpush.bf16.msra.mxu0 %v6493
      %6698 = vmatpush.bf16.msra.mxu0 %v6490
      %6699 = vmatpush.bf16.msra.mxu0 %v6487
      %6700 = vmatpush.bf16.msra.mxu0 %v6484
      %6701 = vmatpush.bf16.msra.mxu0 %v6481
      %6702 = vmatpush.bf16.msra.mxu0 %v6478
      %6703 = vmatmul.bf16.gmra.mxu0 %v6077
      %v6704 = vpop.f32.mrf.mxu0
      %v6705 = vadd.f32 %v6686, %v6704
      %v6706 = vpop.f32.mrf.mxu0
      %v6707 = vadd.f32 %v6688, %v6706
      %6708 = vmatmul.bf16.gmra.mxu0 %v6082
      %v6709 = vpop.f32.mrf.mxu0
      %v6710 = vadd.f32 %v6691, %v6709
      %v6711 = vpop.f32.mrf.mxu0
      %v6712 = vadd.f32 %v6693, %v6711
      %6713 = vdwg.mxu0
      %6714 = vmatpush.bf16.msra.mxu0 %v6523
      %6715 = vmatpush.bf16.msra.mxu0 %v6520
      %6716 = vmatpush.bf16.msra.mxu0 %v6517
      %6717 = vmatpush.bf16.msra.mxu0 %v6514
      %6718 = vmatpush.bf16.msra.mxu0 %v6511
      %6719 = vmatpush.bf16.msra.mxu0 %v6508
      %6720 = vmatpush.bf16.msra.mxu0 %v6505
      %6721 = vmatpush.bf16.msra.mxu0 %v6502
      %6722 = vmatmul.bf16.gmra.mxu0 %v6078
      %v6723 = vpop.f32.mrf.mxu0
      %v6724 = vadd.f32 %v6705, %v6723
      %v6725 = vpop.f32.mrf.mxu0
      %v6726 = vadd.f32 %v6707, %v6725
      %6727 = vmatmul.bf16.gmra.mxu0 %v6083
      %v6728 = vpop.f32.mrf.mxu0
      %v6729 = vadd.f32 %v6710, %v6728
      %v6730 = vpop.f32.mrf.mxu0
      %v6731 = vadd.f32 %v6712, %v6730
      %6732 = vdwg.mxu0
      %6733 = vmatpush.bf16.msra.mxu0 %v6547
      %6734 = vmatpush.bf16.msra.mxu0 %v6544
      %6735 = vmatpush.bf16.msra.mxu0 %v6541
      %6736 = vmatpush.bf16.msra.mxu0 %v6538
      %6737 = vmatpush.bf16.msra.mxu0 %v6535
      %6738 = vmatpush.bf16.msra.mxu0 %v6532
      %6739 = vmatpush.bf16.msra.mxu0 %v6529
      %6740 = vmatpush.bf16.msra.mxu0 %v6526
      %6741 = vmatmul.bf16.gmra.mxu0 %v6079
      %v6742 = vpop.f32.mrf.mxu0
      %v6743 = vadd.f32 %v6724, %v6742
      %v6744 = vpop.f32.mrf.mxu0
      %v6745 = vadd.f32 %v6726, %v6744
      %6746 = vmatmul.bf16.gmra.mxu0 %v6084
      %v6747 = vpop.f32.mrf.mxu0
      %v6748 = vadd.f32 %v6729, %v6747
      %v6749 = vpop.f32.mrf.mxu0
      %v6750 = vadd.f32 %v6731, %v6749
      %6751 = vdwg.mxu0
      %6752 = vmatpush.bf16.msra.mxu0 0
      %6753 = vmatpush.bf16.msra.mxu0 0
      %6754 = vmatpush.bf16.msra.mxu0 0
      %6755 = vmatpush.bf16.msra.mxu0 0
      %6756 = vmatpush.bf16.msra.mxu0 %v6559
      %6757 = vmatpush.bf16.msra.mxu0 %v6556
      %6758 = vmatpush.bf16.msra.mxu0 %v6553
      %6759 = vmatpush.bf16.msra.mxu0 %v6550
      %6760 = vmatmul.bf16.gmra.mxu0 %v6671
      %v6761 = vpop.f32.mrf.mxu0
      %v6762 = vadd.f32 %v6743, %v6761
      %v6763 = vpop.f32.mrf.mxu0
      %v6764 = vadd.f32 %v6745, %v6763
      %6765 = vmatmul.bf16.gmra.mxu0 %v6674
      %v6766 = vpop.f32.mrf.mxu0
      %v6767 = vadd.f32 %v6748, %v6766
      %v6768 = vpop.f32.mrf.mxu0
      %v6769 = vadd.f32 %v6750, %v6768
      %6770 = vdwg.mxu0
      %6771 = vmatpush.bf16.msra.mxu0 %v6476
      %6772 = vmatpush.bf16.msra.mxu0 %v6473
      %6773 = vmatpush.bf16.msra.mxu0 %v6470
      %6774 = vmatpush.bf16.msra.mxu0 %v6467
      %6775 = vmatpush.bf16.msra.mxu0 %v6464
      %6776 = vmatpush.bf16.msra.mxu0 %v6461
      %6777 = vmatpush.bf16.msra.mxu0 %v6458
      %6778 = vmatpush.bf16.msra.mxu0 %v6455
      %6779 = vmatmul.bf16.gmra.mxu0 %v6076
      %v6780 = vpop.f32.mrf.mxu0
      %v6781 = vadd.f32 %v6027, %v6780
      %v6782 = vpop.f32.mrf.mxu0
      %v6783 = vadd.f32 %v6032, %v6782
      %6784 = vmatmul.bf16.gmra.mxu0 %v6081
      %v6785 = vpop.f32.mrf.mxu0
      %v6786 = vadd.f32 %v6037, %v6785
      %v6787 = vpop.f32.mrf.mxu0
      %v6788 = vadd.f32 %v6042, %v6787
      %6789 = vdwg.mxu0
      %6790 = vmatpush.bf16.msra.mxu0 %v6500
      %6791 = vmatpush.bf16.msra.mxu0 %v6497
      %6792 = vmatpush.bf16.msra.mxu0 %v6494
      %6793 = vmatpush.bf16.msra.mxu0 %v6491
      %6794 = vmatpush.bf16.msra.mxu0 %v6488
      %6795 = vmatpush.bf16.msra.mxu0 %v6485
      %6796 = vmatpush.bf16.msra.mxu0 %v6482
      %6797 = vmatpush.bf16.msra.mxu0 %v6479
      %6798 = vmatmul.bf16.gmra.mxu0 %v6077
      %v6799 = vpop.f32.mrf.mxu0
      %v6800 = vadd.f32 %v6781, %v6799
      %v6801 = vpop.f32.mrf.mxu0
      %v6802 = vadd.f32 %v6783, %v6801
      %6803 = vmatmul.bf16.gmra.mxu0 %v6082
      %v6804 = vpop.f32.mrf.mxu0
      %v6805 = vadd.f32 %v6786, %v6804
      %v6806 = vpop.f32.mrf.mxu0
      %v6807 = vadd.f32 %v6788, %v6806
      %6808 = vdwg.mxu0
      %6809 = vmatpush.bf16.msra.mxu0 %v6524
      %6810 = vmatpush.bf16.msra.mxu0 %v6521
      %6811 = vmatpush.bf16.msra.mxu0 %v6518
      %6812 = vmatpush.bf16.msra.mxu0 %v6515
      %6813 = vmatpush.bf16.msra.mxu0 %v6512
      %6814 = vmatpush.bf16.msra.mxu0 %v6509
      %6815 = vmatpush.bf16.msra.mxu0 %v6506
      %6816 = vmatpush.bf16.msra.mxu0 %v6503
      %6817 = vmatmul.bf16.gmra.mxu0 %v6078
      %v6818 = vpop.f32.mrf.mxu0
      %v6819 = vadd.f32 %v6800, %v6818
      %v6820 = vpop.f32.mrf.mxu0
      %v6821 = vadd.f32 %v6802, %v6820
      %6822 = vmatmul.bf16.gmra.mxu0 %v6083
      %v6823 = vpop.f32.mrf.mxu0
      %v6824 = vadd.f32 %v6805, %v6823
      %v6825 = vpop.f32.mrf.mxu0
      %v6826 = vadd.f32 %v6807, %v6825
      %6827 = vdwg.mxu0
      %6828 = vmatpush.bf16.msra.mxu0 %v6548
      %6829 = vmatpush.bf16.msra.mxu0 %v6545
      %6830 = vmatpush.bf16.msra.mxu0 %v6542
      %6831 = vmatpush.bf16.msra.mxu0 %v6539
      %6832 = vmatpush.bf16.msra.mxu0 %v6536
      %6833 = vmatpush.bf16.msra.mxu0 %v6533
      %6834 = vmatpush.bf16.msra.mxu0 %v6530
      %6835 = vmatpush.bf16.msra.mxu0 %v6527
      %6836 = vmatmul.bf16.gmra.mxu0 %v6079
      %v6837 = vpop.f32.mrf.mxu0
      %v6838 = vadd.f32 %v6819, %v6837
      %v6839 = vpop.f32.mrf.mxu0
      %v6840 = vadd.f32 %v6821, %v6839
      %6841 = vmatmul.bf16.gmra.mxu0 %v6084
      %v6842 = vpop.f32.mrf.mxu0
      %v6843 = vadd.f32 %v6824, %v6842
      %v6844 = vpop.f32.mrf.mxu0
      %v6845 = vadd.f32 %v6826, %v6844
      %6846 = vdwg.mxu0
      %6847 = vmatpush.bf16.msra.mxu0 0
      %6848 = vmatpush.bf16.msra.mxu0 0
      %6849 = vmatpush.bf16.msra.mxu0 0
      %6850 = vmatpush.bf16.msra.mxu0 0
      %6851 = vmatpush.bf16.msra.mxu0 %v6560
      %6852 = vmatpush.bf16.msra.mxu0 %v6557
      %6853 = vmatpush.bf16.msra.mxu0 %v6554
      %6854 = vmatpush.bf16.msra.mxu0 %v6551
      %6855 = vmatmul.bf16.gmra.mxu0 %v6671
      %v6856 = vpop.f32.mrf.mxu0
      %v6857 = vadd.f32 %v6838, %v6856
      %v6858 = vpop.f32.mrf.mxu0
      %v6859 = vadd.f32 %v6840, %v6858
      %6860 = vmatmul.bf16.gmra.mxu0 %v6674
      %v6861 = vpop.f32.mrf.mxu0
      %v6862 = vadd.f32 %v6843, %v6861
      %v6863 = vpop.f32.mrf.mxu0
      %v6864 = vadd.f32 %v6845, %v6863
      %6865 = vdwg.mxu0
      %6866 = vmatpush.bf16.msra.mxu0 %v6477
      %6867 = vmatpush.bf16.msra.mxu0 %v6474
      %6868 = vmatpush.bf16.msra.mxu0 %v6471
      %6869 = vmatpush.bf16.msra.mxu0 %v6468
      %6870 = vmatpush.bf16.msra.mxu0 %v6465
      %6871 = vmatpush.bf16.msra.mxu0 %v6462
      %6872 = vmatpush.bf16.msra.mxu0 %v6459
      %6873 = vmatpush.bf16.msra.mxu0 %v6456
      %6874 = vmatmul.bf16.gmra.mxu0 %v6076
      %v6875 = vpop.f32.mrf.mxu0
      %v6876 = vadd.f32 %v6027, %v6875
      %v6877 = vpop.f32.mrf.mxu0
      %v6878 = vadd.f32 %v6032, %v6877
      %6879 = vmatmul.bf16.gmra.mxu0 %v6081
      %v6880 = vpop.f32.mrf.mxu0
      %v6881 = vadd.f32 %v6037, %v6880
      %v6882 = vpop.f32.mrf.mxu0
      %v6883 = vadd.f32 %v6042, %v6882
      %6884 = vdwg.mxu0
      %6885 = vmatpush.bf16.msra.mxu0 %v6501
      %6886 = vmatpush.bf16.msra.mxu0 %v6498
      %6887 = vmatpush.bf16.msra.mxu0 %v6495
      %6888 = vmatpush.bf16.msra.mxu0 %v6492
      %6889 = vmatpush.bf16.msra.mxu0 %v6489
      %6890 = vmatpush.bf16.msra.mxu0 %v6486
      %6891 = vmatpush.bf16.msra.mxu0 %v6483
      %6892 = vmatpush.bf16.msra.mxu0 %v6480
      %6893 = vmatmul.bf16.gmra.mxu0 %v6077
      %v6894 = vpop.f32.mrf.mxu0
      %v6895 = vadd.f32 %v6876, %v6894
      %v6896 = vpop.f32.mrf.mxu0
      %v6897 = vadd.f32 %v6878, %v6896
      %6898 = vmatmul.bf16.gmra.mxu0 %v6082
      %v6899 = vpop.f32.mrf.mxu0
      %v6900 = vadd.f32 %v6881, %v6899
      %v6901 = vpop.f32.mrf.mxu0
      %v6902 = vadd.f32 %v6883, %v6901
      %6903 = vdwg.mxu0
      %6904 = vmatpush.bf16.msra.mxu0 %v6525
      %6905 = vmatpush.bf16.msra.mxu0 %v6522
      %6906 = vmatpush.bf16.msra.mxu0 %v6519
      %6907 = vmatpush.bf16.msra.mxu0 %v6516
      %6908 = vmatpush.bf16.msra.mxu0 %v6513
      %6909 = vmatpush.bf16.msra.mxu0 %v6510
      %6910 = vmatpush.bf16.msra.mxu0 %v6507
      %6911 = vmatpush.bf16.msra.mxu0 %v6504
      %6912 = vmatmul.bf16.gmra.mxu0 %v6078
      %v6913 = vpop.f32.mrf.mxu0
      %v6914 = vadd.f32 %v6895, %v6913
      %v6915 = vpop.f32.mrf.mxu0
      %v6916 = vadd.f32 %v6897, %v6915
      %6917 = vmatmul.bf16.gmra.mxu0 %v6083
      %v6918 = vpop.f32.mrf.mxu0
      %v6919 = vadd.f32 %v6900, %v6918
      %v6920 = vpop.f32.mrf.mxu0
      %v6921 = vadd.f32 %v6902, %v6920
      %6922 = vdwg.mxu0
      %6923 = vmatpush.bf16.msra.mxu0 %v6549
      %6924 = vmatpush.bf16.msra.mxu0 %v6546
      %6925 = vmatpush.bf16.msra.mxu0 %v6543
      %6926 = vmatpush.bf16.msra.mxu0 %v6540
      %6927 = vmatpush.bf16.msra.mxu0 %v6537
      %6928 = vmatpush.bf16.msra.mxu0 %v6534
      %6929 = vmatpush.bf16.msra.mxu0 %v6531
      %6930 = vmatpush.bf16.msra.mxu0 %v6528
      %6931 = vmatmul.bf16.gmra.mxu0 %v6079
      %v6932 = vpop.f32.mrf.mxu0
      %v6933 = vadd.f32 %v6914, %v6932
      %v6934 = vpop.f32.mrf.mxu0
      %v6935 = vadd.f32 %v6916, %v6934
      %6936 = vmatmul.bf16.gmra.mxu0 %v6084
      %v6937 = vpop.f32.mrf.mxu0
      %v6938 = vadd.f32 %v6919, %v6937
      %v6939 = vpop.f32.mrf.mxu0
      %v6940 = vadd.f32 %v6921, %v6939
      %6941 = vdwg.mxu0
      %6942 = vmatpush.bf16.msra.mxu0 0
      %6943 = vmatpush.bf16.msra.mxu0 0
      %6944 = vmatpush.bf16.msra.mxu0 0
      %6945 = vmatpush.bf16.msra.mxu0 0
      %6946 = vmatpush.bf16.msra.mxu0 %v6561
      %6947 = vmatpush.bf16.msra.mxu0 %v6558
      %6948 = vmatpush.bf16.msra.mxu0 %v6555
      %6949 = vmatpush.bf16.msra.mxu0 %v6552
      %6950 = vmatmul.bf16.gmra.mxu0 %v6671
      %v6951 = vpop.f32.mrf.mxu0
      %v6952 = vadd.f32 %v6933, %v6951
      %v6953 = vpop.f32.mrf.mxu0
      %v6954 = vadd.f32 %v6935, %v6953
      %6955 = vmatmul.bf16.gmra.mxu0 %v6674
      %v6956 = vpop.f32.mrf.mxu0
      %v6957 = vadd.f32 %v6938, %v6956
      %v6958 = vpop.f32.mrf.mxu0
      %v6959 = vadd.f32 %v6940, %v6958
      %6960 = vdwg.mxu0
      %v6961 = vmax.f32 %v6762, 0.0
      %v6962 = vmax.f32 %v6857, 0.0
      %v6963 = vmax.f32 %v6952, 0.0
      %v6964 = vmax.f32 %v6764, 0.0
      %v6965 = vmax.f32 %v6859, 0.0
      %v6966 = vmax.f32 %v6954, 0.0
      %v6967 = vmax.f32 %v6767, 0.0
      %v6968 = vmax.f32 %v6862, 0.0
      %v6969 = vmax.f32 %v6957, 0.0
      %v6970 = vmax.f32 %v6769, 0.0
      %v6971 = vmax.f32 %v6864, 0.0
      %v6972 = vmax.f32 %v6959, 0.0
      %v6973 = vmul.f32 %v6961, %v1252
      %v6974 = vmul.f32 %v6962, %v1253
      %v6975 = vmul.f32 %v6963, %v1254
      %v6976 = vmul.f32 %v6964, %v1252
      %v6977 = vmul.f32 %v6965, %v1253
      %v6978 = vmul.f32 %v6966, %v1254
      %v6979 = vmul.f32 %v6967, %v1252
      %v6980 = vmul.f32 %v6968, %v1253
      %v6981 = vmul.f32 %v6969, %v1254
      %v6982 = vmul.f32 %v6970, %v1252
      %v6983 = vmul.f32 %v6971, %v1253
      %v6984 = vmul.f32 %v6972, %v1254
      %v6985 = vpack.c.bf16 %v6974, %v6973
      %v6986 = vpack.c.bf16 %v6975, %v6975
      %v6987 = vpack.c.bf16 %v6977, %v6976
      %v6988 = vpack.c.bf16 %v6978, %v6978
      %v6989 = vpack.c.bf16 %v6980, %v6979
      %v6990 = vpack.c.bf16 %v6981, %v6981
      %v6991 = vpack.c.bf16 %v6983, %v6982
      %v6992 = vpack.c.bf16 %v6984, %v6984
      %6993 = vst [vmem:[#allocation2 + $0x11c] sm:$0xff] %v6985
      %6994 = vst [vmem:[#allocation2 + $0x124] sm:$0xf] %v6986
      %6995 = vst [vmem:[#allocation2 + $0x130] sm:$0xff] %v6987
      %6996 = vst [vmem:[#allocation2 + $0x138] sm:$0xf] %v6988
      %6997 = vst [vmem:[#allocation2 + $0x144] sm:$0xff] %v6989
      %6998 = vst [vmem:[#allocation2 + $0x14c] sm:$0xf] %v6990
      %6999 = vst [vmem:[#allocation2 + $0x158] sm:$0xff] %v6991
      %7000 = vst [vmem:[#allocation2 + $0x160] sm:$0xf] %v6992
      %v7001 = vld [vmem:[#allocation2 + $0xc8] sm:$0xff]
      %v7002 = vld [vmem:[#allocation2 + $0xd0] sm:$0xff]
      %v7003 = vld [vmem:[#allocation2 + $0xdc] sm:$0xff]
      %v7004 = vld [vmem:[#allocation2 + $0xe4] sm:$0xff]
      %v7005 = vld [vmem:[#allocation2 + $0xf0] sm:$0xff]
      %v7006 = vld [vmem:[#allocation2 + $0xf8] sm:$0xff]
      %v7007 = vld [vmem:[#allocation2 + $0x104] sm:$0xff]
      %v7008 = vld [vmem:[#allocation2 + $0x10c] sm:$0xff]
      %v7009 = vld [vmem:[#allocation2 + $0x118] sm:$0xff]
      %v7010 = vld [vmem:[#allocation2 + $0x120] sm:$0xff]
      %v7011 = vld [vmem:[#allocation2 + $0x12c] sm:$0xff]
      %v7012 = vld [vmem:[#allocation2 + $0x134] sm:$0xff]
      %v7013 = vld [vmem:[#allocation2 + $0x140] sm:$0xff]
      %v7014 = vld [vmem:[#allocation2 + $0x148] sm:$0xff]
      %v7015 = vld [vmem:[#allocation2 + $0x154] sm:$0xff]
      %v7016 = vld [vmem:[#allocation2 + $0x15c] sm:$0xff]
      %7033 = vrot.lane.b32.xlu0 %v7001, 19
      %v7034 = vpop.permute.xlu0 %7033
      %7035 = vrot.lane.b32.xlu0 %v7002, 19
      %v7036 = vpop.permute.xlu0 %7035
      %7037 = vrot.lane.b32.xlu0 %v7003, 19
      %v7038 = vpop.permute.xlu0 %7037
      %7039 = vrot.lane.b32.xlu0 %v7004, 19
      %v7040 = vpop.permute.xlu0 %7039
      %7041 = vrot.lane.b32.xlu0 %v7005, 19
      %v7042 = vpop.permute.xlu0 %7041
      %7043 = vrot.lane.b32.xlu0 %v7006, 19
      %v7044 = vpop.permute.xlu0 %7043
      %7045 = vrot.lane.b32.xlu0 %v7007, 19
      %v7046 = vpop.permute.xlu0 %7045
      %7047 = vrot.lane.b32.xlu0 %v7008, 19
      %v7048 = vpop.permute.xlu0 %7047
      %7049 = vrot.lane.b32.xlu0 %v7009, 19
      %v7050 = vpop.permute.xlu0 %7049
      %7051 = vrot.lane.b32.xlu0 %v7010, 19
      %v7052 = vpop.permute.xlu0 %7051
      %7053 = vrot.lane.b32.xlu0 %v7011, 19
      %v7054 = vpop.permute.xlu0 %7053
      %7055 = vrot.lane.b32.xlu0 %v7012, 19
      %v7056 = vpop.permute.xlu0 %7055
      %7057 = vrot.lane.b32.xlu0 %v7013, 19
      %v7058 = vpop.permute.xlu0 %7057
      %7059 = vrot.lane.b32.xlu0 %v7014, 19
      %v7060 = vpop.permute.xlu0 %7059
      %7061 = vrot.lane.b32.xlu0 %v7015, 19
      %v7062 = vpop.permute.xlu0 %7061
      %7063 = vrot.lane.b32.xlu0 %v7016, 19
      %v7064 = vpop.permute.xlu0 %7063
      %v7065 = vrot.slane %v7034, 4
      %v7066 = vrot.slane %v7036, 4
      %v7067 = vrot.slane %v7038, 4
      %v7068 = vrot.slane %v7040, 4
      %v7069 = vrot.slane %v7042, 4
      %v7070 = vrot.slane %v7044, 4
      %v7071 = vrot.slane %v7046, 4
      %v7072 = vrot.slane %v7048, 4
      %v7073 = vrot.slane %v7050, 4
      %v7074 = vrot.slane %v7052, 4
      %v7075 = vrot.slane %v7054, 4
      %v7076 = vrot.slane %v7056, 4
      %v7077 = vrot.slane %v7058, 4
      %v7078 = vrot.slane %v7060, 4
      %v7079 = vrot.slane %v7062, 4
      %v7080 = vrot.slane %v7064, 4
      %v7081 = vsel %vm623, %v7065, %v7066
      %v7082 = vsel %vm625, %v7034, %v7081
      %v7083 = vsel %vm625, %v7036, %v7066
      %v7084 = vsel %vm623, %v7067, %v7068
      %v7085 = vsel %vm625, %v7038, %v7084
      %v7086 = vsel %vm625, %v7040, %v7068
      %v7087 = vsel %vm623, %v7069, %v7070
      %v7088 = vsel %vm625, %v7042, %v7087
      %v7089 = vsel %vm625, %v7044, %v7070
      %v7090 = vsel %vm623, %v7071, %v7072
      %v7091 = vsel %vm625, %v7046, %v7090
      %v7092 = vsel %vm625, %v7048, %v7072
      %v7093 = vsel %vm623, %v7073, %v7074
      %v7094 = vsel %vm625, %v7050, %v7093
      %v7095 = vsel %vm625, %v7052, %v7074
      %v7096 = vsel %vm623, %v7075, %v7076
      %v7097 = vsel %vm625, %v7054, %v7096
      %v7098 = vsel %vm625, %v7056, %v7076
      %v7099 = vsel %vm623, %v7077, %v7078
      %v7100 = vsel %vm625, %v7058, %v7099
      %v7101 = vsel %vm625, %v7060, %v7078
      %v7102 = vsel %vm623, %v7079, %v7080
      %v7103 = vsel %vm625, %v7062, %v7102
      %v7104 = vsel %vm625, %v7064, %v7080
      %7121 = vst [vmem:[#allocation3] sm:$0xff] %v7082
      %7122 = vst [vmem:[#allocation3 + $0x8] sm:$0xf] %v7083
      %7123 = vst [vmem:[#allocation3 + $0xc] sm:$0xff] %v7085
      %7124 = vst [vmem:[#allocation3 + $0x14] sm:$0xf] %v7086
      %7125 = vst [vmem:[#allocation3 + $0x18] sm:$0xff] %v7088
      %7126 = vst [vmem:[#allocation3 + $0x20] sm:$0xf] %v7089
      %7127 = vst [vmem:[#allocation3 + $0x24] sm:$0xff] %v7091
      %7128 = vst [vmem:[#allocation3 + $0x2c] sm:$0xf] %v7092
      %7129 = vst [vmem:[#allocation3 + $0x30] sm:$0xff] %v7094
      %7130 = vst [vmem:[#allocation3 + $0x38] sm:$0xf] %v7095
      %7131 = vst [vmem:[#allocation3 + $0x3c] sm:$0xff] %v7097
      %7132 = vst [vmem:[#allocation3 + $0x44] sm:$0xf] %v7098
      %7133 = vst [vmem:[#allocation3 + $0x48] sm:$0xff] %v7100
      %7134 = vst [vmem:[#allocation3 + $0x50] sm:$0xf] %v7101
      %7135 = vst [vmem:[#allocation3 + $0x54] sm:$0xff] %v7103
      %7136 = vst [vmem:[#allocation3 + $0x5c] sm:$0xf] %v7104
      %v7137 = vld [vmem:[#allocation2 + $0xc8] sm:$0xff]
      %v7138 = vld [vmem:[#allocation2 + $0xd0] sm:$0xff]
      %v7139 = vld [vmem:[#allocation2 + $0xdc] sm:$0xff]
      %v7140 = vld [vmem:[#allocation2 + $0xe4] sm:$0xff]
      %v7141 = vld [vmem:[#allocation2 + $0xf0] sm:$0xff]
      %v7142 = vld [vmem:[#allocation2 + $0xf8] sm:$0xff]
      %v7143 = vld [vmem:[#allocation2 + $0x104] sm:$0xff]
      %v7144 = vld [vmem:[#allocation2 + $0x10c] sm:$0xff]
      %v7145 = vld [vmem:[#allocation2 + $0x118] sm:$0xff]
      %v7146 = vld [vmem:[#allocation2 + $0x120] sm:$0xff]
      %v7147 = vld [vmem:[#allocation2 + $0x12c] sm:$0xff]
      %v7148 = vld [vmem:[#allocation2 + $0x134] sm:$0xff]
      %v7149 = vld [vmem:[#allocation2 + $0x140] sm:$0xff]
      %v7150 = vld [vmem:[#allocation2 + $0x148] sm:$0xff]
      %v7151 = vld [vmem:[#allocation2 + $0x154] sm:$0xff]
      %v7152 = vld [vmem:[#allocation2 + $0x15c] sm:$0xff]
      %7169 = vrot.lane.b32.xlu0 %v7137, 18
      %v7170 = vpop.permute.xlu0 %7169
      %7171 = vrot.lane.b32.xlu0 %v7138, 18
      %v7172 = vpop.permute.xlu0 %7171
      %7173 = vrot.lane.b32.xlu0 %v7139, 18
      %v7174 = vpop.permute.xlu0 %7173
      %7175 = vrot.lane.b32.xlu0 %v7140, 18
      %v7176 = vpop.permute.xlu0 %7175
      %7177 = vrot.lane.b32.xlu0 %v7141, 18
      %v7178 = vpop.permute.xlu0 %7177
      %7179 = vrot.lane.b32.xlu0 %v7142, 18
      %v7180 = vpop.permute.xlu0 %7179
      %7181 = vrot.lane.b32.xlu0 %v7143, 18
      %v7182 = vpop.permute.xlu0 %7181
      %7183 = vrot.lane.b32.xlu0 %v7144, 18
      %v7184 = vpop.permute.xlu0 %7183
      %7185 = vrot.lane.b32.xlu0 %v7145, 18
      %v7186 = vpop.permute.xlu0 %7185
      %7187 = vrot.lane.b32.xlu0 %v7146, 18
      %v7188 = vpop.permute.xlu0 %7187
      %7189 = vrot.lane.b32.xlu0 %v7147, 18
      %v7190 = vpop.permute.xlu0 %7189
      %7191 = vrot.lane.b32.xlu0 %v7148, 18
      %v7192 = vpop.permute.xlu0 %7191
      %7193 = vrot.lane.b32.xlu0 %v7149, 18
      %v7194 = vpop.permute.xlu0 %7193
      %7195 = vrot.lane.b32.xlu0 %v7150, 18
      %v7196 = vpop.permute.xlu0 %7195
      %7197 = vrot.lane.b32.xlu0 %v7151, 18
      %v7198 = vpop.permute.xlu0 %7197
      %7199 = vrot.lane.b32.xlu0 %v7152, 18
      %v7200 = vpop.permute.xlu0 %7199
      %v7201 = vrot.slane %v7170, 4
      %v7202 = vrot.slane %v7172, 4
      %v7203 = vrot.slane %v7174, 4
      %v7204 = vrot.slane %v7176, 4
      %v7205 = vrot.slane %v7178, 4
      %v7206 = vrot.slane %v7180, 4
      %v7207 = vrot.slane %v7182, 4
      %v7208 = vrot.slane %v7184, 4
      %v7209 = vrot.slane %v7186, 4
      %v7210 = vrot.slane %v7188, 4
      %v7211 = vrot.slane %v7190, 4
      %v7212 = vrot.slane %v7192, 4
      %v7213 = vrot.slane %v7194, 4
      %v7214 = vrot.slane %v7196, 4
      %v7215 = vrot.slane %v7198, 4
      %v7216 = vrot.slane %v7200, 4
      %v7217 = vsel %vm623, %v7201, %v7202
      %v7218 = vsel %vm660, %v7170, %v7217
      %v7219 = vsel %vm660, %v7172, %v7202
      %v7220 = vsel %vm623, %v7203, %v7204
      %v7221 = vsel %vm660, %v7174, %v7220
      %v7222 = vsel %vm660, %v7176, %v7204
      %v7223 = vsel %vm623, %v7205, %v7206
      %v7224 = vsel %vm660, %v7178, %v7223
      %v7225 = vsel %vm660, %v7180, %v7206
      %v7226 = vsel %vm623, %v7207, %v7208
      %v7227 = vsel %vm660, %v7182, %v7226
      %v7228 = vsel %vm660, %v7184, %v7208
      %v7229 = vsel %vm623, %v7209, %v7210
      %v7230 = vsel %vm660, %v7186, %v7229
      %v7231 = vsel %vm660, %v7188, %v7210
      %v7232 = vsel %vm623, %v7211, %v7212
      %v7233 = vsel %vm660, %v7190, %v7232
      %v7234 = vsel %vm660, %v7192, %v7212
      %v7235 = vsel %vm623, %v7213, %v7214
      %v7236 = vsel %vm660, %v7194, %v7235
      %v7237 = vsel %vm660, %v7196, %v7214
      %v7238 = vsel %vm623, %v7215, %v7216
      %v7239 = vsel %vm660, %v7198, %v7238
      %v7240 = vsel %vm660, %v7200, %v7216
      %7257 = vst [vmem:[#allocation3 + $0x60] sm:$0xff] %v7218
      %7258 = vst [vmem:[#allocation3 + $0x68] sm:$0xf] %v7219
      %7259 = vst [vmem:[#allocation3 + $0x6c] sm:$0xff] %v7221
      %7260 = vst [vmem:[#allocation3 + $0x74] sm:$0xf] %v7222
      %7261 = vst [vmem:[#allocation3 + $0x78] sm:$0xff] %v7224
      %7262 = vst [vmem:[#allocation3 + $0x80] sm:$0xf] %v7225
      %7263 = vst [vmem:[#allocation3 + $0x84] sm:$0xff] %v7227
      %7264 = vst [vmem:[#allocation3 + $0x8c] sm:$0xf] %v7228
      %7265 = vst [vmem:[#allocation3 + $0x90] sm:$0xff] %v7230
      %7266 = vst [vmem:[#allocation3 + $0x98] sm:$0xf] %v7231
      %7267 = vst [vmem:[#allocation3 + $0x9c] sm:$0xff] %v7233
      %7268 = vst [vmem:[#allocation3 + $0xa4] sm:$0xf] %v7234
      %7269 = vst [vmem:[#allocation3 + $0xa8] sm:$0xff] %v7236
      %7270 = vst [vmem:[#allocation3 + $0xb0] sm:$0xf] %v7237
      %7271 = vst [vmem:[#allocation3 + $0xb4] sm:$0xff] %v7239
      %7272 = vst [vmem:[#allocation3 + $0xbc] sm:$0xf] %v7240
      %v7273 = vld [vmem:[#allocation2 + $0xc8] sm:$0xff]
      %v7274 = vld [vmem:[#allocation2 + $0xd0] sm:$0xff]
      %v7275 = vld [vmem:[#allocation2 + $0xdc] sm:$0xff]
      %v7276 = vld [vmem:[#allocation2 + $0xe4] sm:$0xff]
      %v7277 = vld [vmem:[#allocation2 + $0xf0] sm:$0xff]
      %v7278 = vld [vmem:[#allocation2 + $0xf8] sm:$0xff]
      %v7279 = vld [vmem:[#allocation2 + $0x104] sm:$0xff]
      %v7280 = vld [vmem:[#allocation2 + $0x10c] sm:$0xff]
      %v7281 = vld [vmem:[#allocation2 + $0x118] sm:$0xff]
      %v7282 = vld [vmem:[#allocation2 + $0x120] sm:$0xff]
      %v7283 = vld [vmem:[#allocation2 + $0x12c] sm:$0xff]
      %v7284 = vld [vmem:[#allocation2 + $0x134] sm:$0xff]
      %v7285 = vld [vmem:[#allocation2 + $0x140] sm:$0xff]
      %v7286 = vld [vmem:[#allocation2 + $0x148] sm:$0xff]
      %v7287 = vld [vmem:[#allocation2 + $0x154] sm:$0xff]
      %v7288 = vld [vmem:[#allocation2 + $0x15c] sm:$0xff]
      %7305 = vrot.lane.b32.xlu0 %v7273, 17
      %v7306 = vpop.permute.xlu0 %7305
      %7307 = vrot.lane.b32.xlu0 %v7274, 17
      %v7308 = vpop.permute.xlu0 %7307
      %7309 = vrot.lane.b32.xlu0 %v7275, 17
      %v7310 = vpop.permute.xlu0 %7309
      %7311 = vrot.lane.b32.xlu0 %v7276, 17
      %v7312 = vpop.permute.xlu0 %7311
      %7313 = vrot.lane.b32.xlu0 %v7277, 17
      %v7314 = vpop.permute.xlu0 %7313
      %7315 = vrot.lane.b32.xlu0 %v7278, 17
      %v7316 = vpop.permute.xlu0 %7315
      %7317 = vrot.lane.b32.xlu0 %v7279, 17
      %v7318 = vpop.permute.xlu0 %7317
      %7319 = vrot.lane.b32.xlu0 %v7280, 17
      %v7320 = vpop.permute.xlu0 %7319
      %7321 = vrot.lane.b32.xlu0 %v7281, 17
      %v7322 = vpop.permute.xlu0 %7321
      %7323 = vrot.lane.b32.xlu0 %v7282, 17
      %v7324 = vpop.permute.xlu0 %7323
      %7325 = vrot.lane.b32.xlu0 %v7283, 17
      %v7326 = vpop.permute.xlu0 %7325
      %7327 = vrot.lane.b32.xlu0 %v7284, 17
      %v7328 = vpop.permute.xlu0 %7327
      %7329 = vrot.lane.b32.xlu0 %v7285, 17
      %v7330 = vpop.permute.xlu0 %7329
      %7331 = vrot.lane.b32.xlu0 %v7286, 17
      %v7332 = vpop.permute.xlu0 %7331
      %7333 = vrot.lane.b32.xlu0 %v7287, 17
      %v7334 = vpop.permute.xlu0 %7333
      %7335 = vrot.lane.b32.xlu0 %v7288, 17
      %v7336 = vpop.permute.xlu0 %7335
      %v7337 = vrot.slane %v7306, 4
      %v7338 = vrot.slane %v7308, 4
      %v7339 = vrot.slane %v7310, 4
      %v7340 = vrot.slane %v7312, 4
      %v7341 = vrot.slane %v7314, 4
      %v7342 = vrot.slane %v7316, 4
      %v7343 = vrot.slane %v7318, 4
      %v7344 = vrot.slane %v7320, 4
      %v7345 = vrot.slane %v7322, 4
      %v7346 = vrot.slane %v7324, 4
      %v7347 = vrot.slane %v7326, 4
      %v7348 = vrot.slane %v7328, 4
      %v7349 = vrot.slane %v7330, 4
      %v7350 = vrot.slane %v7332, 4
      %v7351 = vrot.slane %v7334, 4
      %v7352 = vrot.slane %v7336, 4
      %v7353 = vsel %vm623, %v7337, %v7338
      %v7354 = vsel %vm695, %v7306, %v7353
      %v7355 = vsel %vm695, %v7308, %v7338
      %v7356 = vsel %vm623, %v7339, %v7340
      %v7357 = vsel %vm695, %v7310, %v7356
      %v7358 = vsel %vm695, %v7312, %v7340
      %v7359 = vsel %vm623, %v7341, %v7342
      %v7360 = vsel %vm695, %v7314, %v7359
      %v7361 = vsel %vm695, %v7316, %v7342
      %v7362 = vsel %vm623, %v7343, %v7344
      %v7363 = vsel %vm695, %v7318, %v7362
      %v7364 = vsel %vm695, %v7320, %v7344
      %v7365 = vsel %vm623, %v7345, %v7346
      %v7366 = vsel %vm695, %v7322, %v7365
      %v7367 = vsel %vm695, %v7324, %v7346
      %v7368 = vsel %vm623, %v7347, %v7348
      %v7369 = vsel %vm695, %v7326, %v7368
      %v7370 = vsel %vm695, %v7328, %v7348
      %v7371 = vsel %vm623, %v7349, %v7350
      %v7372 = vsel %vm695, %v7330, %v7371
      %v7373 = vsel %vm695, %v7332, %v7350
      %v7374 = vsel %vm623, %v7351, %v7352
      %v7375 = vsel %vm695, %v7334, %v7374
      %v7376 = vsel %vm695, %v7336, %v7352
      %7393 = vst [vmem:[#allocation3 + $0xc0] sm:$0xff] %v7354
      %7394 = vst [vmem:[#allocation3 + $0xc8] sm:$0xf] %v7355
      %7395 = vst [vmem:[#allocation3 + $0xcc] sm:$0xff] %v7357
      %7396 = vst [vmem:[#allocation3 + $0xd4] sm:$0xf] %v7358
      %7397 = vst [vmem:[#allocation3 + $0xd8] sm:$0xff] %v7360
      %7398 = vst [vmem:[#allocation3 + $0xe0] sm:$0xf] %v7361
      %7399 = vst [vmem:[#allocation3 + $0xe4] sm:$0xff] %v7363
      %7400 = vst [vmem:[#allocation3 + $0xec] sm:$0xf] %v7364
      %7401 = vst [vmem:[#allocation3 + $0xf0] sm:$0xff] %v7366
      %7402 = vst [vmem:[#allocation3 + $0xf8] sm:$0xf] %v7367
      %7403 = vst [vmem:[#allocation3 + $0xfc] sm:$0xff] %v7369
      %7404 = vst [vmem:[#allocation3 + $0x104] sm:$0xf] %v7370
      %7405 = vst [vmem:[#allocation3 + $0x108] sm:$0xff] %v7372
      %7406 = vst [vmem:[#allocation3 + $0x110] sm:$0xf] %v7373
      %7407 = vst [vmem:[#allocation3 + $0x114] sm:$0xff] %v7375
      %7408 = vst [vmem:[#allocation3 + $0x11c] sm:$0xf] %v7376
      %v7409 = vld [vmem:[#allocation2 + $0xc8] sm:$0xff]
      %v7410 = vld [vmem:[#allocation2 + $0xd0] sm:$0xff]
      %v7411 = vld [vmem:[#allocation2 + $0xdc] sm:$0xff]
      %v7412 = vld [vmem:[#allocation2 + $0xe4] sm:$0xff]
      %v7413 = vld [vmem:[#allocation2 + $0xf0] sm:$0xff]
      %v7414 = vld [vmem:[#allocation2 + $0xf8] sm:$0xff]
      %v7415 = vld [vmem:[#allocation2 + $0x104] sm:$0xff]
      %v7416 = vld [vmem:[#allocation2 + $0x10c] sm:$0xff]
      %v7417 = vld [vmem:[#allocation2 + $0x118] sm:$0xff]
      %v7418 = vld [vmem:[#allocation2 + $0x120] sm:$0xff]
      %v7419 = vld [vmem:[#allocation2 + $0x12c] sm:$0xff]
      %v7420 = vld [vmem:[#allocation2 + $0x134] sm:$0xff]
      %v7421 = vld [vmem:[#allocation2 + $0x140] sm:$0xff]
      %v7422 = vld [vmem:[#allocation2 + $0x148] sm:$0xff]
      %v7423 = vld [vmem:[#allocation2 + $0x154] sm:$0xff]
      %v7424 = vld [vmem:[#allocation2 + $0x15c] sm:$0xff]
      %7441 = vrot.lane.b32.xlu0 %v7409, 1
      %v7442 = vpop.permute.xlu0 %7441
      %7443 = vrot.lane.b32.xlu0 %v7410, 1
      %v7444 = vpop.permute.xlu0 %7443
      %7445 = vrot.lane.b32.xlu0 %v7411, 1
      %v7446 = vpop.permute.xlu0 %7445
      %7447 = vrot.lane.b32.xlu0 %v7412, 1
      %v7448 = vpop.permute.xlu0 %7447
      %7449 = vrot.lane.b32.xlu0 %v7413, 1
      %v7450 = vpop.permute.xlu0 %7449
      %7451 = vrot.lane.b32.xlu0 %v7414, 1
      %v7452 = vpop.permute.xlu0 %7451
      %7453 = vrot.lane.b32.xlu0 %v7415, 1
      %v7454 = vpop.permute.xlu0 %7453
      %7455 = vrot.lane.b32.xlu0 %v7416, 1
      %v7456 = vpop.permute.xlu0 %7455
      %7457 = vrot.lane.b32.xlu0 %v7417, 1
      %v7458 = vpop.permute.xlu0 %7457
      %7459 = vrot.lane.b32.xlu0 %v7418, 1
      %v7460 = vpop.permute.xlu0 %7459
      %7461 = vrot.lane.b32.xlu0 %v7419, 1
      %v7462 = vpop.permute.xlu0 %7461
      %7463 = vrot.lane.b32.xlu0 %v7420, 1
      %v7464 = vpop.permute.xlu0 %7463
      %7465 = vrot.lane.b32.xlu0 %v7421, 1
      %v7466 = vpop.permute.xlu0 %7465
      %7467 = vrot.lane.b32.xlu0 %v7422, 1
      %v7468 = vpop.permute.xlu0 %7467
      %7469 = vrot.lane.b32.xlu0 %v7423, 1
      %v7470 = vpop.permute.xlu0 %7469
      %7471 = vrot.lane.b32.xlu0 %v7424, 1
      %v7472 = vpop.permute.xlu0 %7471
      %v7473 = vrot.slane %v7442, 4
      %v7474 = vrot.slane %v7444, 4
      %v7475 = vrot.slane %v7446, 4
      %v7476 = vrot.slane %v7448, 4
      %v7477 = vrot.slane %v7450, 4
      %v7478 = vrot.slane %v7452, 4
      %v7479 = vrot.slane %v7454, 4
      %v7480 = vrot.slane %v7456, 4
      %v7481 = vrot.slane %v7458, 4
      %v7482 = vrot.slane %v7460, 4
      %v7483 = vrot.slane %v7462, 4
      %v7484 = vrot.slane %v7464, 4
      %v7485 = vrot.slane %v7466, 4
      %v7486 = vrot.slane %v7468, 4
      %v7487 = vrot.slane %v7470, 4
      %v7488 = vrot.slane %v7472, 4
      %v7489 = vsel %vm623, %v7473, %v7474
      %v7490 = vsel %vm730, %v7442, %v7489
      %v7491 = vsel %vm730, %v7444, %v7474
      %v7492 = vsel %vm623, %v7475, %v7476
      %v7493 = vsel %vm730, %v7446, %v7492
      %v7494 = vsel %vm730, %v7448, %v7476
      %v7495 = vsel %vm623, %v7477, %v7478
      %v7496 = vsel %vm730, %v7450, %v7495
      %v7497 = vsel %vm730, %v7452, %v7478
      %v7498 = vsel %vm623, %v7479, %v7480
      %v7499 = vsel %vm730, %v7454, %v7498
      %v7500 = vsel %vm730, %v7456, %v7480
      %v7501 = vsel %vm623, %v7481, %v7482
      %v7502 = vsel %vm730, %v7458, %v7501
      %v7503 = vsel %vm730, %v7460, %v7482
      %v7504 = vsel %vm623, %v7483, %v7484
      %v7505 = vsel %vm730, %v7462, %v7504
      %v7506 = vsel %vm730, %v7464, %v7484
      %v7507 = vsel %vm623, %v7485, %v7486
      %v7508 = vsel %vm730, %v7466, %v7507
      %v7509 = vsel %vm730, %v7468, %v7486
      %v7510 = vsel %vm623, %v7487, %v7488
      %v7511 = vsel %vm730, %v7470, %v7510
      %v7512 = vsel %vm730, %v7472, %v7488
      %7529 = vst [vmem:[#allocation3 + $0x120] sm:$0xff] %v7490
      %7530 = vst [vmem:[#allocation3 + $0x128] sm:$0xf] %v7491
      %7531 = vst [vmem:[#allocation3 + $0x12c] sm:$0xff] %v7493
      %7532 = vst [vmem:[#allocation3 + $0x134] sm:$0xf] %v7494
      %7533 = vst [vmem:[#allocation3 + $0x138] sm:$0xff] %v7496
      %7534 = vst [vmem:[#allocation3 + $0x140] sm:$0xf] %v7497
      %7535 = vst [vmem:[#allocation3 + $0x144] sm:$0xff] %v7499
      %7536 = vst [vmem:[#allocation3 + $0x14c] sm:$0xf] %v7500
      %7537 = vst [vmem:[#allocation3 + $0x150] sm:$0xff] %v7502
      %7538 = vst [vmem:[#allocation3 + $0x158] sm:$0xf] %v7503
      %7539 = vst [vmem:[#allocation3 + $0x15c] sm:$0xff] %v7505
      %7540 = vst [vmem:[#allocation3 + $0x164] sm:$0xf] %v7506
      %7541 = vst [vmem:[#allocation3 + $0x168] sm:$0xff] %v7508
      %7542 = vst [vmem:[#allocation3 + $0x170] sm:$0xf] %v7509
      %7543 = vst [vmem:[#allocation3 + $0x174] sm:$0xff] %v7511
      %7544 = vst [vmem:[#allocation3 + $0x17c] sm:$0xf] %v7512
      %v7545 = vld [vmem:[#allocation2 + $0xcc] sm:$0xff]
      %v7546 = vld [vmem:[#allocation2 + $0xd4] sm:$0xf]
      %v7547 = vld [vmem:[#allocation2 + $0xe0] sm:$0xff]
      %v7548 = vld [vmem:[#allocation2 + $0xe8] sm:$0xf]
      %v7549 = vld [vmem:[#allocation2 + $0xf4] sm:$0xff]
      %v7550 = vld [vmem:[#allocation2 + $0xfc] sm:$0xf]
      %v7551 = vld [vmem:[#allocation2 + $0x108] sm:$0xff]
      %v7552 = vld [vmem:[#allocation2 + $0x110] sm:$0xf]
      %v7553 = vld [vmem:[#allocation2 + $0x11c] sm:$0xff]
      %v7554 = vld [vmem:[#allocation2 + $0x124] sm:$0xf]
      %v7555 = vld [vmem:[#allocation2 + $0x130] sm:$0xff]
      %v7556 = vld [vmem:[#allocation2 + $0x138] sm:$0xf]
      %v7557 = vld [vmem:[#allocation2 + $0x144] sm:$0xff]
      %v7558 = vld [vmem:[#allocation2 + $0x14c] sm:$0xf]
      %v7559 = vld [vmem:[#allocation2 + $0x158] sm:$0xff]
      %v7560 = vld [vmem:[#allocation2 + $0x160] sm:$0xf]
      %7561 = vst [vmem:[#allocation3 + $0x180] sm:$0xff] %v7545
      %7562 = vst [vmem:[#allocation3 + $0x188] sm:$0xf] %v7546
      %7563 = vst [vmem:[#allocation3 + $0x18c] sm:$0xff] %v7547
      %7564 = vst [vmem:[#allocation3 + $0x194] sm:$0xf] %v7548
      %7565 = vst [vmem:[#allocation3 + $0x198] sm:$0xff] %v7549
      %7566 = vst [vmem:[#allocation3 + $0x1a0] sm:$0xf] %v7550
      %7567 = vst [vmem:[#allocation3 + $0x1a4] sm:$0xff] %v7551
      %7568 = vst [vmem:[#allocation3 + $0x1ac] sm:$0xf] %v7552
      %7569 = vst [vmem:[#allocation3 + $0x1b0] sm:$0xff] %v7553
      %7570 = vst [vmem:[#allocation3 + $0x1b8] sm:$0xf] %v7554
      %7571 = vst [vmem:[#allocation3 + $0x1bc] sm:$0xff] %v7555
      %7572 = vst [vmem:[#allocation3 + $0x1c4] sm:$0xf] %v7556
      %7573 = vst [vmem:[#allocation3 + $0x1c8] sm:$0xff] %v7557
      %7574 = vst [vmem:[#allocation3 + $0x1d0] sm:$0xf] %v7558
      %7575 = vst [vmem:[#allocation3 + $0x1d4] sm:$0xff] %v7559
      %7576 = vst [vmem:[#allocation3 + $0x1dc] sm:$0xf] %v7560
      %v7577 = vld [vmem:[#allocation2 + $0xcc] sm:$0xff]
      %v7578 = vld [vmem:[#allocation2 + $0xd4] sm:$0xff]
      %v7579 = vld [vmem:[#allocation2 + $0xe0] sm:$0xff]
      %v7580 = vld [vmem:[#allocation2 + $0xe8] sm:$0xff]
      %v7581 = vld [vmem:[#allocation2 + $0xf4] sm:$0xff]
      %v7582 = vld [vmem:[#allocation2 + $0xfc] sm:$0xff]
      %v7583 = vld [vmem:[#allocation2 + $0x108] sm:$0xff]
      %v7584 = vld [vmem:[#allocation2 + $0x110] sm:$0xff]
      %v7585 = vld [vmem:[#allocation2 + $0x11c] sm:$0xff]
      %v7586 = vld [vmem:[#allocation2 + $0x124] sm:$0xff]
      %v7587 = vld [vmem:[#allocation2 + $0x130] sm:$0xff]
      %v7588 = vld [vmem:[#allocation2 + $0x138] sm:$0xff]
      %v7589 = vld [vmem:[#allocation2 + $0x144] sm:$0xff]
      %v7590 = vld [vmem:[#allocation2 + $0x14c] sm:$0xff]
      %v7591 = vld [vmem:[#allocation2 + $0x158] sm:$0xff]
      %v7592 = vld [vmem:[#allocation2 + $0x160] sm:$0xff]
      %7609 = vrot.lane.b32.xlu0 %v7577, 127
      %v7610 = vpop.permute.xlu0 %7609
      %7611 = vrot.lane.b32.xlu0 %v7578, 127
      %v7612 = vpop.permute.xlu0 %7611
      %7613 = vrot.lane.b32.xlu0 %v7579, 127
      %v7614 = vpop.permute.xlu0 %7613
      %7615 = vrot.lane.b32.xlu0 %v7580, 127
      %v7616 = vpop.permute.xlu0 %7615
      %7617 = vrot.lane.b32.xlu0 %v7581, 127
      %v7618 = vpop.permute.xlu0 %7617
      %7619 = vrot.lane.b32.xlu0 %v7582, 127
      %v7620 = vpop.permute.xlu0 %7619
      %7621 = vrot.lane.b32.xlu0 %v7583, 127
      %v7622 = vpop.permute.xlu0 %7621
      %7623 = vrot.lane.b32.xlu0 %v7584, 127
      %v7624 = vpop.permute.xlu0 %7623
      %7625 = vrot.lane.b32.xlu0 %v7585, 127
      %v7626 = vpop.permute.xlu0 %7625
      %7627 = vrot.lane.b32.xlu0 %v7586, 127
      %v7628 = vpop.permute.xlu0 %7627
      %7629 = vrot.lane.b32.xlu0 %v7587, 127
      %v7630 = vpop.permute.xlu0 %7629
      %7631 = vrot.lane.b32.xlu0 %v7588, 127
      %v7632 = vpop.permute.xlu0 %7631
      %7633 = vrot.lane.b32.xlu0 %v7589, 127
      %v7634 = vpop.permute.xlu0 %7633
      %7635 = vrot.lane.b32.xlu0 %v7590, 127
      %v7636 = vpop.permute.xlu0 %7635
      %7637 = vrot.lane.b32.xlu0 %v7591, 127
      %v7638 = vpop.permute.xlu0 %7637
      %7639 = vrot.lane.b32.xlu0 %v7592, 127
      %v7640 = vpop.permute.xlu0 %7639
      %v7641 = vrot.slane %v7610, 4
      %v7642 = vrot.slane %v7612, 4
      %v7643 = vrot.slane %v7614, 4
      %v7644 = vrot.slane %v7616, 4
      %v7645 = vrot.slane %v7618, 4
      %v7646 = vrot.slane %v7620, 4
      %v7647 = vrot.slane %v7622, 4
      %v7648 = vrot.slane %v7624, 4
      %v7649 = vrot.slane %v7626, 4
      %v7650 = vrot.slane %v7628, 4
      %v7651 = vrot.slane %v7630, 4
      %v7652 = vrot.slane %v7632, 4
      %v7653 = vrot.slane %v7634, 4
      %v7654 = vrot.slane %v7636, 4
      %v7655 = vrot.slane %v7638, 4
      %v7656 = vrot.slane %v7640, 4
      %v7657 = vsel %vm623, %v7641, %v7642
      %v7658 = vsel %vm773, %v7610, %v7657
      %v7659 = vsel %vm773, %v7612, %v7642
      %v7660 = vsel %vm623, %v7643, %v7644
      %v7661 = vsel %vm773, %v7614, %v7660
      %v7662 = vsel %vm773, %v7616, %v7644
      %v7663 = vsel %vm623, %v7645, %v7646
      %v7664 = vsel %vm773, %v7618, %v7663
      %v7665 = vsel %vm773, %v7620, %v7646
      %v7666 = vsel %vm623, %v7647, %v7648
      %v7667 = vsel %vm773, %v7622, %v7666
      %v7668 = vsel %vm773, %v7624, %v7648
      %v7669 = vsel %vm623, %v7649, %v7650
      %v7670 = vsel %vm773, %v7626, %v7669
      %v7671 = vsel %vm773, %v7628, %v7650
      %v7672 = vsel %vm623, %v7651, %v7652
      %v7673 = vsel %vm773, %v7630, %v7672
      %v7674 = vsel %vm773, %v7632, %v7652
      %v7675 = vsel %vm623, %v7653, %v7654
      %v7676 = vsel %vm773, %v7634, %v7675
      %v7677 = vsel %vm773, %v7636, %v7654
      %v7678 = vsel %vm623, %v7655, %v7656
      %v7679 = vsel %vm773, %v7638, %v7678
      %v7680 = vsel %vm773, %v7640, %v7656
      %7697 = vst [vmem:[#allocation3 + $0x1e0] sm:$0xff] %v7658
      %7698 = vst [vmem:[#allocation3 + $0x1e8] sm:$0xf] %v7659
      %7699 = vst [vmem:[#allocation3 + $0x1ec] sm:$0xff] %v7661
      %7700 = vst [vmem:[#allocation3 + $0x1f4] sm:$0xf] %v7662
      %7701 = vst [vmem:[#allocation3 + $0x1f8] sm:$0xff] %v7664
      %7702 = vst [vmem:[#allocation3 + $0x200] sm:$0xf] %v7665
      %7703 = vst [vmem:[#allocation3 + $0x204] sm:$0xff] %v7667
      %7704 = vst [vmem:[#allocation3 + $0x20c] sm:$0xf] %v7668
      %7705 = vst [vmem:[#allocation3 + $0x210] sm:$0xff] %v7670
      %7706 = vst [vmem:[#allocation3 + $0x218] sm:$0xf] %v7671
      %7707 = vst [vmem:[#allocation3 + $0x21c] sm:$0xff] %v7673
      %7708 = vst [vmem:[#allocation3 + $0x224] sm:$0xf] %v7674
      %7709 = vst [vmem:[#allocation3 + $0x228] sm:$0xff] %v7676
      %7710 = vst [vmem:[#allocation3 + $0x230] sm:$0xf] %v7677
      %7711 = vst [vmem:[#allocation3 + $0x234] sm:$0xff] %v7679
      %7712 = vst [vmem:[#allocation3 + $0x23c] sm:$0xf] %v7680
      %v7713 = vld [vmem:[#allocation2 + $0xcc] sm:$0xff]
      %v7714 = vld [vmem:[#allocation2 + $0xd4] sm:$0xff]
      %v7715 = vld [vmem:[#allocation2 + $0xe0] sm:$0xff]
      %v7716 = vld [vmem:[#allocation2 + $0xe8] sm:$0xff]
      %v7717 = vld [vmem:[#allocation2 + $0xf4] sm:$0xff]
      %v7718 = vld [vmem:[#allocation2 + $0xfc] sm:$0xff]
      %v7719 = vld [vmem:[#allocation2 + $0x108] sm:$0xff]
      %v7720 = vld [vmem:[#allocation2 + $0x110] sm:$0xff]
      %v7721 = vld [vmem:[#allocation2 + $0x11c] sm:$0xff]
      %v7722 = vld [vmem:[#allocation2 + $0x124] sm:$0xff]
      %v7723 = vld [vmem:[#allocation2 + $0x130] sm:$0xff]
      %v7724 = vld [vmem:[#allocation2 + $0x138] sm:$0xff]
      %v7725 = vld [vmem:[#allocation2 + $0x144] sm:$0xff]
      %v7726 = vld [vmem:[#allocation2 + $0x14c] sm:$0xff]
      %v7727 = vld [vmem:[#allocation2 + $0x158] sm:$0xff]
      %v7728 = vld [vmem:[#allocation2 + $0x160] sm:$0xff]
      %7745 = vrot.lane.b32.xlu0 %v7713, 111
      %v7746 = vpop.permute.xlu0 %7745
      %7747 = vrot.lane.b32.xlu0 %v7714, 111
      %v7748 = vpop.permute.xlu0 %7747
      %7749 = vrot.lane.b32.xlu0 %v7715, 111
      %v7750 = vpop.permute.xlu0 %7749
      %7751 = vrot.lane.b32.xlu0 %v7716, 111
      %v7752 = vpop.permute.xlu0 %7751
      %7753 = vrot.lane.b32.xlu0 %v7717, 111
      %v7754 = vpop.permute.xlu0 %7753
      %7755 = vrot.lane.b32.xlu0 %v7718, 111
      %v7756 = vpop.permute.xlu0 %7755
      %7757 = vrot.lane.b32.xlu0 %v7719, 111
      %v7758 = vpop.permute.xlu0 %7757
      %7759 = vrot.lane.b32.xlu0 %v7720, 111
      %v7760 = vpop.permute.xlu0 %7759
      %7761 = vrot.lane.b32.xlu0 %v7721, 111
      %v7762 = vpop.permute.xlu0 %7761
      %7763 = vrot.lane.b32.xlu0 %v7722, 111
      %v7764 = vpop.permute.xlu0 %7763
      %7765 = vrot.lane.b32.xlu0 %v7723, 111
      %v7766 = vpop.permute.xlu0 %7765
      %7767 = vrot.lane.b32.xlu0 %v7724, 111
      %v7768 = vpop.permute.xlu0 %7767
      %7769 = vrot.lane.b32.xlu0 %v7725, 111
      %v7770 = vpop.permute.xlu0 %7769
      %7771 = vrot.lane.b32.xlu0 %v7726, 111
      %v7772 = vpop.permute.xlu0 %7771
      %7773 = vrot.lane.b32.xlu0 %v7727, 111
      %v7774 = vpop.permute.xlu0 %7773
      %7775 = vrot.lane.b32.xlu0 %v7728, 111
      %v7776 = vpop.permute.xlu0 %7775
      %v7777 = vrot.slane %v7746, 4
      %v7778 = vrot.slane %v7748, 4
      %v7779 = vrot.slane %v7750, 4
      %v7780 = vrot.slane %v7752, 4
      %v7781 = vrot.slane %v7754, 4
      %v7782 = vrot.slane %v7756, 4
      %v7783 = vrot.slane %v7758, 4
      %v7784 = vrot.slane %v7760, 4
      %v7785 = vrot.slane %v7762, 4
      %v7786 = vrot.slane %v7764, 4
      %v7787 = vrot.slane %v7766, 4
      %v7788 = vrot.slane %v7768, 4
      %v7789 = vrot.slane %v7770, 4
      %v7790 = vrot.slane %v7772, 4
      %v7791 = vrot.slane %v7774, 4
      %v7792 = vrot.slane %v7776, 4
      %v7793 = vsel %vm623, %v7777, %v7778
      %v7794 = vsel %vm808, %v7746, %v7793
      %v7795 = vsel %vm808, %v7748, %v7778
      %v7796 = vsel %vm623, %v7779, %v7780
      %v7797 = vsel %vm808, %v7750, %v7796
      %v7798 = vsel %vm808, %v7752, %v7780
      %v7799 = vsel %vm623, %v7781, %v7782
      %v7800 = vsel %vm808, %v7754, %v7799
      %v7801 = vsel %vm808, %v7756, %v7782
      %v7802 = vsel %vm623, %v7783, %v7784
      %v7803 = vsel %vm808, %v7758, %v7802
      %v7804 = vsel %vm808, %v7760, %v7784
      %v7805 = vsel %vm623, %v7785, %v7786
      %v7806 = vsel %vm808, %v7762, %v7805
      %v7807 = vsel %vm808, %v7764, %v7786
      %v7808 = vsel %vm623, %v7787, %v7788
      %v7809 = vsel %vm808, %v7766, %v7808
      %v7810 = vsel %vm808, %v7768, %v7788
      %v7811 = vsel %vm623, %v7789, %v7790
      %v7812 = vsel %vm808, %v7770, %v7811
      %v7813 = vsel %vm808, %v7772, %v7790
      %v7814 = vsel %vm623, %v7791, %v7792
      %v7815 = vsel %vm808, %v7774, %v7814
      %v7816 = vsel %vm808, %v7776, %v7792
      %7833 = vst [vmem:[#allocation3 + $0x240] sm:$0xff] %v7794
      %7834 = vst [vmem:[#allocation3 + $0x248] sm:$0xf] %v7795
      %7835 = vst [vmem:[#allocation3 + $0x24c] sm:$0xff] %v7797
      %7836 = vst [vmem:[#allocation3 + $0x254] sm:$0xf] %v7798
      %7837 = vst [vmem:[#allocation3 + $0x258] sm:$0xff] %v7800
      %7838 = vst [vmem:[#allocation3 + $0x260] sm:$0xf] %v7801
      %7839 = vst [vmem:[#allocation3 + $0x264] sm:$0xff] %v7803
      %7840 = vst [vmem:[#allocation3 + $0x26c] sm:$0xf] %v7804
      %7841 = vst [vmem:[#allocation3 + $0x270] sm:$0xff] %v7806
      %7842 = vst [vmem:[#allocation3 + $0x278] sm:$0xf] %v7807
      %7843 = vst [vmem:[#allocation3 + $0x27c] sm:$0xff] %v7809
      %7844 = vst [vmem:[#allocation3 + $0x284] sm:$0xf] %v7810
      %7845 = vst [vmem:[#allocation3 + $0x288] sm:$0xff] %v7812
      %7846 = vst [vmem:[#allocation3 + $0x290] sm:$0xf] %v7813
      %7847 = vst [vmem:[#allocation3 + $0x294] sm:$0xff] %v7815
      %7848 = vst [vmem:[#allocation3 + $0x29c] sm:$0xf] %v7816
      %v7849 = vld [vmem:[#allocation2 + $0xcc] sm:$0xff]
      %v7850 = vld [vmem:[#allocation2 + $0xd4] sm:$0xff]
      %v7851 = vld [vmem:[#allocation2 + $0xe0] sm:$0xff]
      %v7852 = vld [vmem:[#allocation2 + $0xe8] sm:$0xff]
      %v7853 = vld [vmem:[#allocation2 + $0xf4] sm:$0xff]
      %v7854 = vld [vmem:[#allocation2 + $0xfc] sm:$0xff]
      %v7855 = vld [vmem:[#allocation2 + $0x108] sm:$0xff]
      %v7856 = vld [vmem:[#allocation2 + $0x110] sm:$0xff]
      %v7857 = vld [vmem:[#allocation2 + $0x11c] sm:$0xff]
      %v7858 = vld [vmem:[#allocation2 + $0x124] sm:$0xff]
      %v7859 = vld [vmem:[#allocation2 + $0x130] sm:$0xff]
      %v7860 = vld [vmem:[#allocation2 + $0x138] sm:$0xff]
      %v7861 = vld [vmem:[#allocation2 + $0x144] sm:$0xff]
      %v7862 = vld [vmem:[#allocation2 + $0x14c] sm:$0xff]
      %v7863 = vld [vmem:[#allocation2 + $0x158] sm:$0xff]
      %v7864 = vld [vmem:[#allocation2 + $0x160] sm:$0xff]
      %7881 = vrot.lane.b32.xlu0 %v7849, 110
      %v7882 = vpop.permute.xlu0 %7881
      %7883 = vrot.lane.b32.xlu0 %v7850, 110
      %v7884 = vpop.permute.xlu0 %7883
      %7885 = vrot.lane.b32.xlu0 %v7851, 110
      %v7886 = vpop.permute.xlu0 %7885
      %7887 = vrot.lane.b32.xlu0 %v7852, 110
      %v7888 = vpop.permute.xlu0 %7887
      %7889 = vrot.lane.b32.xlu0 %v7853, 110
      %v7890 = vpop.permute.xlu0 %7889
      %7891 = vrot.lane.b32.xlu0 %v7854, 110
      %v7892 = vpop.permute.xlu0 %7891
      %7893 = vrot.lane.b32.xlu0 %v7855, 110
      %v7894 = vpop.permute.xlu0 %7893
      %7895 = vrot.lane.b32.xlu0 %v7856, 110
      %v7896 = vpop.permute.xlu0 %7895
      %7897 = vrot.lane.b32.xlu0 %v7857, 110
      %v7898 = vpop.permute.xlu0 %7897
      %7899 = vrot.lane.b32.xlu0 %v7858, 110
      %v7900 = vpop.permute.xlu0 %7899
      %7901 = vrot.lane.b32.xlu0 %v7859, 110
      %v7902 = vpop.permute.xlu0 %7901
      %7903 = vrot.lane.b32.xlu0 %v7860, 110
      %v7904 = vpop.permute.xlu0 %7903
      %7905 = vrot.lane.b32.xlu0 %v7861, 110
      %v7906 = vpop.permute.xlu0 %7905
      %7907 = vrot.lane.b32.xlu0 %v7862, 110
      %v7908 = vpop.permute.xlu0 %7907
      %7909 = vrot.lane.b32.xlu0 %v7863, 110
      %v7910 = vpop.permute.xlu0 %7909
      %7911 = vrot.lane.b32.xlu0 %v7864, 110
      %v7912 = vpop.permute.xlu0 %7911
      %v7913 = vrot.slane %v7882, 4
      %v7914 = vrot.slane %v7884, 4
      %v7915 = vrot.slane %v7886, 4
      %v7916 = vrot.slane %v7888, 4
      %v7917 = vrot.slane %v7890, 4
      %v7918 = vrot.slane %v7892, 4
      %v7919 = vrot.slane %v7894, 4
      %v7920 = vrot.slane %v7896, 4
      %v7921 = vrot.slane %v7898, 4
      %v7922 = vrot.slane %v7900, 4
      %v7923 = vrot.slane %v7902, 4
      %v7924 = vrot.slane %v7904, 4
      %v7925 = vrot.slane %v7906, 4
      %v7926 = vrot.slane %v7908, 4
      %v7927 = vrot.slane %v7910, 4
      %v7928 = vrot.slane %v7912, 4
      %v7929 = vsel %vm623, %v7913, %v7914
      %v7930 = vsel %vm843, %v7882, %v7929
      %v7931 = vsel %vm843, %v7884, %v7914
      %v7932 = vsel %vm623, %v7915, %v7916
      %v7933 = vsel %vm843, %v7886, %v7932
      %v7934 = vsel %vm843, %v7888, %v7916
      %v7935 = vsel %vm623, %v7917, %v7918
      %v7936 = vsel %vm843, %v7890, %v7935
      %v7937 = vsel %vm843, %v7892, %v7918
      %v7938 = vsel %vm623, %v7919, %v7920
      %v7939 = vsel %vm843, %v7894, %v7938
      %v7940 = vsel %vm843, %v7896, %v7920
      %v7941 = vsel %vm623, %v7921, %v7922
      %v7942 = vsel %vm843, %v7898, %v7941
      %v7943 = vsel %vm843, %v7900, %v7922
      %v7944 = vsel %vm623, %v7923, %v7924
      %v7945 = vsel %vm843, %v7902, %v7944
      %v7946 = vsel %vm843, %v7904, %v7924
      %v7947 = vsel %vm623, %v7925, %v7926
      %v7948 = vsel %vm843, %v7906, %v7947
      %v7949 = vsel %vm843, %v7908, %v7926
      %v7950 = vsel %vm623, %v7927, %v7928
      %v7951 = vsel %vm843, %v7910, %v7950
      %v7952 = vsel %vm843, %v7912, %v7928
      %7969 = vst [vmem:[#allocation3 + $0x2a0] sm:$0xff] %v7930
      %7970 = vst [vmem:[#allocation3 + $0x2a8] sm:$0xf] %v7931
      %7971 = vst [vmem:[#allocation3 + $0x2ac] sm:$0xff] %v7933
      %7972 = vst [vmem:[#allocation3 + $0x2b4] sm:$0xf] %v7934
      %7973 = vst [vmem:[#allocation3 + $0x2b8] sm:$0xff] %v7936
      %7974 = vst [vmem:[#allocation3 + $0x2c0] sm:$0xf] %v7937
      %7975 = vst [vmem:[#allocation3 + $0x2c4] sm:$0xff] %v7939
      %7976 = vst [vmem:[#allocation3 + $0x2cc] sm:$0xf] %v7940
      %7977 = vst [vmem:[#allocation3 + $0x2d0] sm:$0xff] %v7942
      %7978 = vst [vmem:[#allocation3 + $0x2d8] sm:$0xf] %v7943
      %7979 = vst [vmem:[#allocation3 + $0x2dc] sm:$0xff] %v7945
      %7980 = vst [vmem:[#allocation3 + $0x2e4] sm:$0xf] %v7946
      %7981 = vst [vmem:[#allocation3 + $0x2e8] sm:$0xff] %v7948
      %7982 = vst [vmem:[#allocation3 + $0x2f0] sm:$0xf] %v7949
      %7983 = vst [vmem:[#allocation3 + $0x2f4] sm:$0xff] %v7951
      %7984 = vst [vmem:[#allocation3 + $0x2fc] sm:$0xf] %v7952
      %v7985 = vld [vmem:[#allocation2 + $0xcc] sm:$0xff]
      %v7986 = vld [vmem:[#allocation2 + $0xd4] sm:$0xff]
      %v7987 = vld [vmem:[#allocation2 + $0xe0] sm:$0xff]
      %v7988 = vld [vmem:[#allocation2 + $0xe8] sm:$0xff]
      %v7989 = vld [vmem:[#allocation2 + $0xf4] sm:$0xff]
      %v7990 = vld [vmem:[#allocation2 + $0xfc] sm:$0xff]
      %v7991 = vld [vmem:[#allocation2 + $0x108] sm:$0xff]
      %v7992 = vld [vmem:[#allocation2 + $0x110] sm:$0xff]
      %v7993 = vld [vmem:[#allocation2 + $0x11c] sm:$0xff]
      %v7994 = vld [vmem:[#allocation2 + $0x124] sm:$0xff]
      %v7995 = vld [vmem:[#allocation2 + $0x130] sm:$0xff]
      %v7996 = vld [vmem:[#allocation2 + $0x138] sm:$0xff]
      %v7997 = vld [vmem:[#allocation2 + $0x144] sm:$0xff]
      %v7998 = vld [vmem:[#allocation2 + $0x14c] sm:$0xff]
      %v7999 = vld [vmem:[#allocation2 + $0x158] sm:$0xff]
      %v8000 = vld [vmem:[#allocation2 + $0x160] sm:$0xff]
      %8017 = vrot.lane.b32.xlu0 %v7985, 109
      %v8018 = vpop.permute.xlu0 %8017
      %8019 = vrot.lane.b32.xlu0 %v7986, 109
      %v8020 = vpop.permute.xlu0 %8019
      %8021 = vrot.lane.b32.xlu0 %v7987, 109
      %v8022 = vpop.permute.xlu0 %8021
      %8023 = vrot.lane.b32.xlu0 %v7988, 109
      %v8024 = vpop.permute.xlu0 %8023
      %8025 = vrot.lane.b32.xlu0 %v7989, 109
      %v8026 = vpop.permute.xlu0 %8025
      %8027 = vrot.lane.b32.xlu0 %v7990, 109
      %v8028 = vpop.permute.xlu0 %8027
      %8029 = vrot.lane.b32.xlu0 %v7991, 109
      %v8030 = vpop.permute.xlu0 %8029
      %8031 = vrot.lane.b32.xlu0 %v7992, 109
      %v8032 = vpop.permute.xlu0 %8031
      %8033 = vrot.lane.b32.xlu0 %v7993, 109
      %v8034 = vpop.permute.xlu0 %8033
      %8035 = vrot.lane.b32.xlu0 %v7994, 109
      %v8036 = vpop.permute.xlu0 %8035
      %8037 = vrot.lane.b32.xlu0 %v7995, 109
      %v8038 = vpop.permute.xlu0 %8037
      %8039 = vrot.lane.b32.xlu0 %v7996, 109
      %v8040 = vpop.permute.xlu0 %8039
      %8041 = vrot.lane.b32.xlu0 %v7997, 109
      %v8042 = vpop.permute.xlu0 %8041
      %8043 = vrot.lane.b32.xlu0 %v7998, 109
      %v8044 = vpop.permute.xlu0 %8043
      %8045 = vrot.lane.b32.xlu0 %v7999, 109
      %v8046 = vpop.permute.xlu0 %8045
      %8047 = vrot.lane.b32.xlu0 %v8000, 109
      %v8048 = vpop.permute.xlu0 %8047
      %v8049 = vrot.slane %v8018, 4
      %v8050 = vrot.slane %v8020, 4
      %v8051 = vrot.slane %v8022, 4
      %v8052 = vrot.slane %v8024, 4
      %v8053 = vrot.slane %v8026, 4
      %v8054 = vrot.slane %v8028, 4
      %v8055 = vrot.slane %v8030, 4
      %v8056 = vrot.slane %v8032, 4
      %v8057 = vrot.slane %v8034, 4
      %v8058 = vrot.slane %v8036, 4
      %v8059 = vrot.slane %v8038, 4
      %v8060 = vrot.slane %v8040, 4
      %v8061 = vrot.slane %v8042, 4
      %v8062 = vrot.slane %v8044, 4
      %v8063 = vrot.slane %v8046, 4
      %v8064 = vrot.slane %v8048, 4
      %v8065 = vsel %vm623, %v8049, %v8050
      %v8066 = vsel %vm878, %v8018, %v8065
      %v8067 = vsel %vm878, %v8020, %v8050
      %v8068 = vsel %vm623, %v8051, %v8052
      %v8069 = vsel %vm878, %v8022, %v8068
      %v8070 = vsel %vm878, %v8024, %v8052
      %v8071 = vsel %vm623, %v8053, %v8054
      %v8072 = vsel %vm878, %v8026, %v8071
      %v8073 = vsel %vm878, %v8028, %v8054
      %v8074 = vsel %vm623, %v8055, %v8056
      %v8075 = vsel %vm878, %v8030, %v8074
      %v8076 = vsel %vm878, %v8032, %v8056
      %v8077 = vsel %vm623, %v8057, %v8058
      %v8078 = vsel %vm878, %v8034, %v8077
      %v8079 = vsel %vm878, %v8036, %v8058
      %v8080 = vsel %vm623, %v8059, %v8060
      %v8081 = vsel %vm878, %v8038, %v8080
      %v8082 = vsel %vm878, %v8040, %v8060
      %v8083 = vsel %vm623, %v8061, %v8062
      %v8084 = vsel %vm878, %v8042, %v8083
      %v8085 = vsel %vm878, %v8044, %v8062
      %v8086 = vsel %vm623, %v8063, %v8064
      %v8087 = vsel %vm878, %v8046, %v8086
      %v8088 = vsel %vm878, %v8048, %v8064
      %8105 = vst [vmem:[#allocation3 + $0x300] sm:$0xff] %v8066
      %8106 = vst [vmem:[#allocation3 + $0x308] sm:$0xf] %v8067
      %8107 = vst [vmem:[#allocation3 + $0x30c] sm:$0xff] %v8069
      %8108 = vst [vmem:[#allocation3 + $0x314] sm:$0xf] %v8070
      %8109 = vst [vmem:[#allocation3 + $0x318] sm:$0xff] %v8072
      %8110 = vst [vmem:[#allocation3 + $0x320] sm:$0xf] %v8073
      %8111 = vst [vmem:[#allocation3 + $0x324] sm:$0xff] %v8075
      %8112 = vst [vmem:[#allocation3 + $0x32c] sm:$0xf] %v8076
      %8113 = vst [vmem:[#allocation3 + $0x330] sm:$0xff] %v8078
      %8114 = vst [vmem:[#allocation3 + $0x338] sm:$0xf] %v8079
      %8115 = vst [vmem:[#allocation3 + $0x33c] sm:$0xff] %v8081
      %8116 = vst [vmem:[#allocation3 + $0x344] sm:$0xf] %v8082
      %8117 = vst [vmem:[#allocation3 + $0x348] sm:$0xff] %v8084
      %8118 = vst [vmem:[#allocation3 + $0x350] sm:$0xf] %v8085
      %8119 = vst [vmem:[#allocation3 + $0x354] sm:$0xff] %v8087
      %8120 = vst [vmem:[#allocation3 + $0x35c] sm:$0xf] %v8088
      %v8121 = vld [vmem:[%s11] sm:$0xff]
      %v8122 = vld [vmem:[%s11 + $0x8] sm:$0xff]
      %v8123 = vld [vmem:[%s11 + $0x10] sm:$0xf]
      %v8124 = vld [vmem:[%s11 + $0x14] sm:$0xff]
      %v8125 = vld [vmem:[%s11 + $0x1c] sm:$0xff]
      %v8126 = vld [vmem:[%s11 + $0x24] sm:$0xf]
      %v8127 = vld [vmem:[%s11 + $0x28] sm:$0xff]
      %v8128 = vld [vmem:[%s11 + $0x30] sm:$0xff]
      %v8129 = vld [vmem:[%s11 + $0x38] sm:$0xf]
      %v8130 = vld [vmem:[%s11 + $0x3c] sm:$0xff]
      %v8131 = vld [vmem:[%s11 + $0x44] sm:$0xff]
      %v8132 = vld [vmem:[%s11 + $0x4c] sm:$0xf]
      %v8133 = vld [vmem:[#allocation3] sm:$0xff]
      %v8134 = vld [vmem:[#allocation3 + $0x8] sm:$0xf]
      %v8135 = vld [vmem:[#allocation3 + $0xc] sm:$0xff]
      %v8136 = vld [vmem:[#allocation3 + $0x14] sm:$0xf]
      %v8137 = vld [vmem:[#allocation3 + $0x18] sm:$0xff]
      %v8138 = vld [vmem:[#allocation3 + $0x20] sm:$0xf]
      %v8139 = vld [vmem:[#allocation3 + $0x24] sm:$0xff]
      %v8140 = vld [vmem:[#allocation3 + $0x2c] sm:$0xf]
      %v8141 = vld [vmem:[#allocation3 + $0x30] sm:$0xff]
      %v8142 = vld [vmem:[#allocation3 + $0x38] sm:$0xf]
      %v8143 = vld [vmem:[#allocation3 + $0x3c] sm:$0xff]
      %v8144 = vld [vmem:[#allocation3 + $0x44] sm:$0xf]
      %v8145 = vld [vmem:[#allocation3 + $0x48] sm:$0xff]
      %v8146 = vld [vmem:[#allocation3 + $0x50] sm:$0xf]
      %v8147 = vld [vmem:[#allocation3 + $0x54] sm:$0xff]
      %v8148 = vld [vmem:[#allocation3 + $0x5c] sm:$0xf]
      %v8149 = vld [vmem:[#allocation3 + $0x60] sm:$0xff]
      %v8150 = vld [vmem:[#allocation3 + $0x68] sm:$0xf]
      %v8151 = vld [vmem:[#allocation3 + $0x6c] sm:$0xff]
      %v8152 = vld [vmem:[#allocation3 + $0x74] sm:$0xf]
      %v8153 = vld [vmem:[#allocation3 + $0x78] sm:$0xff]
      %v8154 = vld [vmem:[#allocation3 + $0x80] sm:$0xf]
      %v8155 = vld [vmem:[#allocation3 + $0x84] sm:$0xff]
      %v8156 = vld [vmem:[#allocation3 + $0x8c] sm:$0xf]
      %v8157 = vld [vmem:[#allocation3 + $0x90] sm:$0xff]
      %v8158 = vld [vmem:[#allocation3 + $0x98] sm:$0xf]
      %v8159 = vld [vmem:[#allocation3 + $0x9c] sm:$0xff]
      %v8160 = vld [vmem:[#allocation3 + $0xa4] sm:$0xf]
      %v8161 = vld [vmem:[#allocation3 + $0xa8] sm:$0xff]
      %v8162 = vld [vmem:[#allocation3 + $0xb0] sm:$0xf]
      %v8163 = vld [vmem:[#allocation3 + $0xb4] sm:$0xff]
      %v8164 = vld [vmem:[#allocation3 + $0xbc] sm:$0xf]
      %v8165 = vld [vmem:[#allocation3 + $0xc0] sm:$0xff]
      %v8166 = vld [vmem:[#allocation3 + $0xc8] sm:$0xf]
      %v8167 = vld [vmem:[#allocation3 + $0xcc] sm:$0xff]
      %v8168 = vld [vmem:[#allocation3 + $0xd4] sm:$0xf]
      %v8169 = vld [vmem:[#allocation3 + $0xd8] sm:$0xff]
      %v8170 = vld [vmem:[#allocation3 + $0xe0] sm:$0xf]
      %v8171 = vld [vmem:[#allocation3 + $0xe4] sm:$0xff]
      %v8172 = vld [vmem:[#allocation3 + $0xec] sm:$0xf]
      %v8173 = vld [vmem:[#allocation3 + $0xf0] sm:$0xff]
      %v8174 = vld [vmem:[#allocation3 + $0xf8] sm:$0xf]
      %v8175 = vld [vmem:[#allocation3 + $0xfc] sm:$0xff]
      %v8176 = vld [vmem:[#allocation3 + $0x104] sm:$0xf]
      %v8177 = vld [vmem:[#allocation3 + $0x108] sm:$0xff]
      %v8178 = vld [vmem:[#allocation3 + $0x110] sm:$0xf]
      %v8179 = vld [vmem:[#allocation3 + $0x114] sm:$0xff]
      %v8180 = vld [vmem:[#allocation3 + $0x11c] sm:$0xf]
      %v8181 = vld [vmem:[#allocation3 + $0x120] sm:$0xff]
      %v8182 = vld [vmem:[#allocation3 + $0x128] sm:$0xf]
      %v8183 = vld [vmem:[#allocation3 + $0x12c] sm:$0xff]
      %v8184 = vld [vmem:[#allocation3 + $0x134] sm:$0xf]
      %v8185 = vld [vmem:[#allocation3 + $0x138] sm:$0xff]
      %v8186 = vld [vmem:[#allocation3 + $0x140] sm:$0xf]
      %v8187 = vld [vmem:[#allocation3 + $0x144] sm:$0xff]
      %v8188 = vld [vmem:[#allocation3 + $0x14c] sm:$0xf]
      %v8189 = vld [vmem:[#allocation3 + $0x150] sm:$0xff]
      %v8190 = vld [vmem:[#allocation3 + $0x158] sm:$0xf]
      %v8191 = vld [vmem:[#allocation3 + $0x15c] sm:$0xff]
      %v8192 = vld [vmem:[#allocation3 + $0x164] sm:$0xf]
      %v8193 = vld [vmem:[#allocation3 + $0x168] sm:$0xff]
      %v8194 = vld [vmem:[#allocation3 + $0x170] sm:$0xf]
      %v8195 = vld [vmem:[#allocation3 + $0x174] sm:$0xff]
      %v8196 = vld [vmem:[#allocation3 + $0x17c] sm:$0xf]
      %v8197 = vld [vmem:[#allocation3 + $0x180] sm:$0xff]
      %v8198 = vld [vmem:[#allocation3 + $0x188] sm:$0xf]
      %v8199 = vld [vmem:[#allocation3 + $0x18c] sm:$0xff]
      %v8200 = vld [vmem:[#allocation3 + $0x194] sm:$0xf]
      %v8201 = vld [vmem:[#allocation3 + $0x198] sm:$0xff]
      %v8202 = vld [vmem:[#allocation3 + $0x1a0] sm:$0xf]
      %v8203 = vld [vmem:[#allocation3 + $0x1a4] sm:$0xff]
      %v8204 = vld [vmem:[#allocation3 + $0x1ac] sm:$0xf]
      %v8205 = vld [vmem:[#allocation3 + $0x1b0] sm:$0xff]
      %v8206 = vld [vmem:[#allocation3 + $0x1b8] sm:$0xf]
      %v8207 = vld [vmem:[#allocation3 + $0x1bc] sm:$0xff]
      %v8208 = vld [vmem:[#allocation3 + $0x1c4] sm:$0xf]
      %v8209 = vld [vmem:[#allocation3 + $0x1c8] sm:$0xff]
      %v8210 = vld [vmem:[#allocation3 + $0x1d0] sm:$0xf]
      %v8211 = vld [vmem:[#allocation3 + $0x1d4] sm:$0xff]
      %v8212 = vld [vmem:[#allocation3 + $0x1dc] sm:$0xf]
      %v8213 = vld [vmem:[#allocation3 + $0x1e0] sm:$0xff]
      %v8214 = vld [vmem:[#allocation3 + $0x1e8] sm:$0xf]
      %v8215 = vld [vmem:[#allocation3 + $0x1ec] sm:$0xff]
      %v8216 = vld [vmem:[#allocation3 + $0x1f4] sm:$0xf]
      %v8217 = vld [vmem:[#allocation3 + $0x1f8] sm:$0xff]
      %v8218 = vld [vmem:[#allocation3 + $0x200] sm:$0xf]
      %v8219 = vld [vmem:[#allocation3 + $0x204] sm:$0xff]
      %v8220 = vld [vmem:[#allocation3 + $0x20c] sm:$0xf]
      %v8221 = vld [vmem:[#allocation3 + $0x210] sm:$0xff]
      %v8222 = vld [vmem:[#allocation3 + $0x218] sm:$0xf]
      %v8223 = vld [vmem:[#allocation3 + $0x21c] sm:$0xff]
      %v8224 = vld [vmem:[#allocation3 + $0x224] sm:$0xf]
      %v8225 = vld [vmem:[#allocation3 + $0x228] sm:$0xff]
      %v8226 = vld [vmem:[#allocation3 + $0x230] sm:$0xf]
      %v8227 = vld [vmem:[#allocation3 + $0x234] sm:$0xff]
      %v8228 = vld [vmem:[#allocation3 + $0x23c] sm:$0xf]
      %v8229 = vld [vmem:[#allocation3 + $0x240] sm:$0xff]
      %v8230 = vld [vmem:[#allocation3 + $0x248] sm:$0xf]
      %v8231 = vld [vmem:[#allocation3 + $0x24c] sm:$0xff]
      %v8232 = vld [vmem:[#allocation3 + $0x254] sm:$0xf]
      %v8233 = vld [vmem:[#allocation3 + $0x258] sm:$0xff]
      %v8234 = vld [vmem:[#allocation3 + $0x260] sm:$0xf]
      %v8235 = vld [vmem:[#allocation3 + $0x264] sm:$0xff]
      %v8236 = vld [vmem:[#allocation3 + $0x26c] sm:$0xf]
      %v8237 = vld [vmem:[#allocation3 + $0x270] sm:$0xff]
      %v8238 = vld [vmem:[#allocation3 + $0x278] sm:$0xf]
      %v8239 = vld [vmem:[#allocation3 + $0x27c] sm:$0xff]
      %v8240 = vld [vmem:[#allocation3 + $0x284] sm:$0xf]
      %v8241 = vld [vmem:[#allocation3 + $0x288] sm:$0xff]
      %v8242 = vld [vmem:[#allocation3 + $0x290] sm:$0xf]
      %v8243 = vld [vmem:[#allocation3 + $0x294] sm:$0xff]
      %v8244 = vld [vmem:[#allocation3 + $0x29c] sm:$0xf]
      %v8245 = vld [vmem:[#allocation3 + $0x2a0] sm:$0xff]
      %v8246 = vld [vmem:[#allocation3 + $0x2a8] sm:$0xf]
      %v8247 = vld [vmem:[#allocation3 + $0x2ac] sm:$0xff]
      %v8248 = vld [vmem:[#allocation3 + $0x2b4] sm:$0xf]
      %v8249 = vld [vmem:[#allocation3 + $0x2b8] sm:$0xff]
      %v8250 = vld [vmem:[#allocation3 + $0x2c0] sm:$0xf]
      %v8251 = vld [vmem:[#allocation3 + $0x2c4] sm:$0xff]
      %v8252 = vld [vmem:[#allocation3 + $0x2cc] sm:$0xf]
      %v8253 = vld [vmem:[#allocation3 + $0x2d0] sm:$0xff]
      %v8254 = vld [vmem:[#allocation3 + $0x2d8] sm:$0xf]
      %v8255 = vld [vmem:[#allocation3 + $0x2dc] sm:$0xff]
      %v8256 = vld [vmem:[#allocation3 + $0x2e4] sm:$0xf]
      %v8257 = vld [vmem:[#allocation3 + $0x2e8] sm:$0xff]
      %v8258 = vld [vmem:[#allocation3 + $0x2f0] sm:$0xf]
      %v8259 = vld [vmem:[#allocation3 + $0x2f4] sm:$0xff]
      %v8260 = vld [vmem:[#allocation3 + $0x2fc] sm:$0xf]
      %v8261 = vld [vmem:[#allocation3 + $0x300] sm:$0xff]
      %v8262 = vld [vmem:[#allocation3 + $0x308] sm:$0xf]
      %v8263 = vld [vmem:[#allocation3 + $0x30c] sm:$0xff]
      %v8264 = vld [vmem:[#allocation3 + $0x314] sm:$0xf]
      %v8265 = vld [vmem:[#allocation3 + $0x318] sm:$0xff]
      %v8266 = vld [vmem:[#allocation3 + $0x320] sm:$0xf]
      %v8267 = vld [vmem:[#allocation3 + $0x324] sm:$0xff]
      %v8268 = vld [vmem:[#allocation3 + $0x32c] sm:$0xf]
      %v8269 = vld [vmem:[#allocation3 + $0x330] sm:$0xff]
      %v8270 = vld [vmem:[#allocation3 + $0x338] sm:$0xf]
      %v8271 = vld [vmem:[#allocation3 + $0x33c] sm:$0xff]
      %v8272 = vld [vmem:[#allocation3 + $0x344] sm:$0xf]
      %v8273 = vld [vmem:[#allocation3 + $0x348] sm:$0xff]
      %v8274 = vld [vmem:[#allocation3 + $0x350] sm:$0xf]
      %v8275 = vld [vmem:[#allocation3 + $0x354] sm:$0xff]
      %v8276 = vld [vmem:[#allocation3 + $0x35c] sm:$0xf]
      %v8277 = vld [vmem:[%s12] sm:$0xff]
      %v8278 = vld [vmem:[%s12 + $0x8] sm:$0xff]
      %v8279 = vld [vmem:[%s12 + $0x10] sm:$0xff]
      %v8280 = vld [vmem:[%s12 + $0x18] sm:$0xff]
      %8282 = vset.pattern.permute.xlu0 0
      %8283 = vperm.xlu0 %8282, %v8277
      %v8284 = vpop.permute.xlu0 %8283
      %8287 = vset.pattern.permute.xlu0 0
      %8288 = vperm.xlu0 %8287, %v8278
      %v8289 = vpop.permute.xlu0 %8288
      %8292 = vset.pattern.permute.xlu0 0
      %8293 = vperm.xlu0 %8292, %v8279
      %v8294 = vpop.permute.xlu0 %8293
      %8297 = vset.pattern.permute.xlu0 0
      %8298 = vperm.xlu0 %8297, %v8280
      %v8299 = vpop.permute.xlu0 %8298
      %v8313 = vunpack.c.l.b16 %v8121
      %v8314 = vunpack.c.h.b16 %v8121
      %v8315 = vunpack.c.l.b16 %v8122
      %v8316 = vunpack.c.h.b16 %v8122
      %v8317 = vunpack.c.l.b16 %v8123
      %v8318 = vunpack.c.l.b16 %v8124
      %v8319 = vunpack.c.h.b16 %v8124
      %v8320 = vunpack.c.l.b16 %v8125
      %v8321 = vunpack.c.h.b16 %v8125
      %v8322 = vunpack.c.l.b16 %v8126
      %v8323 = vunpack.c.l.b16 %v8127
      %v8324 = vunpack.c.h.b16 %v8127
      %v8325 = vunpack.c.l.b16 %v8128
      %v8326 = vunpack.c.h.b16 %v8128
      %v8327 = vunpack.c.l.b16 %v8129
      %v8328 = vunpack.c.l.b16 %v8130
      %v8329 = vunpack.c.h.b16 %v8130
      %v8330 = vunpack.c.l.b16 %v8131
      %v8331 = vunpack.c.h.b16 %v8131
      %v8332 = vunpack.c.l.b16 %v8132
      %v8333 = vpack.c.b16 %v8318, %v8313
      %v8334 = vpack.c.b16 %v8319, %v8314
      %v8335 = vpack.c.b16 %v8320, %v8315
      %v8336 = vpack.c.b16 %v8321, %v8316
      %v8337 = vpack.c.b16 %v8322, %v8317
      %v8338 = vpack.c.b16 %v8328, %v8323
      %v8339 = vpack.c.b16 %v8329, %v8324
      %v8340 = vpack.c.b16 %v8330, %v8325
      %v8341 = vpack.c.b16 %v8331, %v8326
      %v8342 = vpack.c.b16 %v8332, %v8327
      %v8495 = vunpack.c.l.b16 %v8133
      %v8496 = vunpack.c.h.b16 %v8133
      %v8497 = vunpack.c.l.b16 %v8134
      %v8498 = vunpack.c.l.b16 %v8135
      %v8499 = vunpack.c.h.b16 %v8135
      %v8500 = vunpack.c.l.b16 %v8136
      %v8501 = vunpack.c.l.b16 %v8137
      %v8502 = vunpack.c.h.b16 %v8137
      %v8503 = vunpack.c.l.b16 %v8138
      %v8504 = vunpack.c.l.b16 %v8139
      %v8505 = vunpack.c.h.b16 %v8139
      %v8506 = vunpack.c.l.b16 %v8140
      %v8507 = vunpack.c.l.b16 %v8141
      %v8508 = vunpack.c.h.b16 %v8141
      %v8509 = vunpack.c.l.b16 %v8142
      %v8510 = vunpack.c.l.b16 %v8143
      %v8511 = vunpack.c.h.b16 %v8143
      %v8512 = vunpack.c.l.b16 %v8144
      %v8513 = vunpack.c.l.b16 %v8145
      %v8514 = vunpack.c.h.b16 %v8145
      %v8515 = vunpack.c.l.b16 %v8146
      %v8516 = vunpack.c.l.b16 %v8147
      %v8517 = vunpack.c.h.b16 %v8147
      %v8518 = vunpack.c.l.b16 %v8148
      %v8519 = vunpack.c.l.b16 %v8149
      %v8520 = vunpack.c.h.b16 %v8149
      %v8521 = vunpack.c.l.b16 %v8150
      %v8522 = vunpack.c.l.b16 %v8151
      %v8523 = vunpack.c.h.b16 %v8151
      %v8524 = vunpack.c.l.b16 %v8152
      %v8525 = vunpack.c.l.b16 %v8153
      %v8526 = vunpack.c.h.b16 %v8153
      %v8527 = vunpack.c.l.b16 %v8154
      %v8528 = vunpack.c.l.b16 %v8155
      %v8529 = vunpack.c.h.b16 %v8155
      %v8530 = vunpack.c.l.b16 %v8156
      %v8531 = vunpack.c.l.b16 %v8157
      %v8532 = vunpack.c.h.b16 %v8157
      %v8533 = vunpack.c.l.b16 %v8158
      %v8534 = vunpack.c.l.b16 %v8159
      %v8535 = vunpack.c.h.b16 %v8159
      %v8536 = vunpack.c.l.b16 %v8160
      %v8537 = vunpack.c.l.b16 %v8161
      %v8538 = vunpack.c.h.b16 %v8161
      %v8539 = vunpack.c.l.b16 %v8162
      %v8540 = vunpack.c.l.b16 %v8163
      %v8541 = vunpack.c.h.b16 %v8163
      %v8542 = vunpack.c.l.b16 %v8164
      %v8543 = vunpack.c.l.b16 %v8165
      %v8544 = vunpack.c.h.b16 %v8165
      %v8545 = vunpack.c.l.b16 %v8166
      %v8546 = vunpack.c.l.b16 %v8167
      %v8547 = vunpack.c.h.b16 %v8167
      %v8548 = vunpack.c.l.b16 %v8168
      %v8549 = vunpack.c.l.b16 %v8169
      %v8550 = vunpack.c.h.b16 %v8169
      %v8551 = vunpack.c.l.b16 %v8170
      %v8552 = vunpack.c.l.b16 %v8171
      %v8553 = vunpack.c.h.b16 %v8171
      %v8554 = vunpack.c.l.b16 %v8172
      %v8555 = vunpack.c.l.b16 %v8173
      %v8556 = vunpack.c.h.b16 %v8173
      %v8557 = vunpack.c.l.b16 %v8174
      %v8558 = vunpack.c.l.b16 %v8175
      %v8559 = vunpack.c.h.b16 %v8175
      %v8560 = vunpack.c.l.b16 %v8176
      %v8561 = vunpack.c.l.b16 %v8177
      %v8562 = vunpack.c.h.b16 %v8177
      %v8563 = vunpack.c.l.b16 %v8178
      %v8564 = vunpack.c.l.b16 %v8179
      %v8565 = vunpack.c.h.b16 %v8179
      %v8566 = vunpack.c.l.b16 %v8180
      %v8567 = vunpack.c.l.b16 %v8181
      %v8568 = vunpack.c.h.b16 %v8181
      %v8569 = vunpack.c.l.b16 %v8182
      %v8570 = vunpack.c.l.b16 %v8183
      %v8571 = vunpack.c.h.b16 %v8183
      %v8572 = vunpack.c.l.b16 %v8184
      %v8573 = vunpack.c.l.b16 %v8185
      %v8574 = vunpack.c.h.b16 %v8185
      %v8575 = vunpack.c.l.b16 %v8186
      %v8576 = vunpack.c.l.b16 %v8187
      %v8577 = vunpack.c.h.b16 %v8187
      %v8578 = vunpack.c.l.b16 %v8188
      %v8579 = vunpack.c.l.b16 %v8189
      %v8580 = vunpack.c.h.b16 %v8189
      %v8581 = vunpack.c.l.b16 %v8190
      %v8582 = vunpack.c.l.b16 %v8191
      %v8583 = vunpack.c.h.b16 %v8191
      %v8584 = vunpack.c.l.b16 %v8192
      %v8585 = vunpack.c.l.b16 %v8193
      %v8586 = vunpack.c.h.b16 %v8193
      %v8587 = vunpack.c.l.b16 %v8194
      %v8588 = vunpack.c.l.b16 %v8195
      %v8589 = vunpack.c.h.b16 %v8195
      %v8590 = vunpack.c.l.b16 %v8196
      %v8591 = vunpack.c.l.b16 %v8197
      %v8592 = vunpack.c.h.b16 %v8197
      %v8593 = vunpack.c.l.b16 %v8198
      %v8594 = vunpack.c.l.b16 %v8199
      %v8595 = vunpack.c.h.b16 %v8199
      %v8596 = vunpack.c.l.b16 %v8200
      %v8597 = vunpack.c.l.b16 %v8201
      %v8598 = vunpack.c.h.b16 %v8201
      %v8599 = vunpack.c.l.b16 %v8202
      %v8600 = vunpack.c.l.b16 %v8203
      %v8601 = vunpack.c.h.b16 %v8203
      %v8602 = vunpack.c.l.b16 %v8204
      %v8603 = vunpack.c.l.b16 %v8205
      %v8604 = vunpack.c.h.b16 %v8205
      %v8605 = vunpack.c.l.b16 %v8206
      %v8606 = vunpack.c.l.b16 %v8207
      %v8607 = vunpack.c.h.b16 %v8207
      %v8608 = vunpack.c.l.b16 %v8208
      %v8609 = vunpack.c.l.b16 %v8209
      %v8610 = vunpack.c.h.b16 %v8209
      %v8611 = vunpack.c.l.b16 %v8210
      %v8612 = vunpack.c.l.b16 %v8211
      %v8613 = vunpack.c.h.b16 %v8211
      %v8614 = vunpack.c.l.b16 %v8212
      %v8615 = vunpack.c.l.b16 %v8213
      %v8616 = vunpack.c.h.b16 %v8213
      %v8617 = vunpack.c.l.b16 %v8214
      %v8618 = vunpack.c.l.b16 %v8215
      %v8619 = vunpack.c.h.b16 %v8215
      %v8620 = vunpack.c.l.b16 %v8216
      %v8621 = vunpack.c.l.b16 %v8217
      %v8622 = vunpack.c.h.b16 %v8217
      %v8623 = vunpack.c.l.b16 %v8218
      %v8624 = vunpack.c.l.b16 %v8219
      %v8625 = vunpack.c.h.b16 %v8219
      %v8626 = vunpack.c.l.b16 %v8220
      %v8627 = vunpack.c.l.b16 %v8221
      %v8628 = vunpack.c.h.b16 %v8221
      %v8629 = vunpack.c.l.b16 %v8222
      %v8630 = vunpack.c.l.b16 %v8223
      %v8631 = vunpack.c.h.b16 %v8223
      %v8632 = vunpack.c.l.b16 %v8224
      %v8633 = vunpack.c.l.b16 %v8225
      %v8634 = vunpack.c.h.b16 %v8225
      %v8635 = vunpack.c.l.b16 %v8226
      %v8636 = vunpack.c.l.b16 %v8227
      %v8637 = vunpack.c.h.b16 %v8227
      %v8638 = vunpack.c.l.b16 %v8228
      %v8639 = vunpack.c.l.b16 %v8229
      %v8640 = vunpack.c.h.b16 %v8229
      %v8641 = vunpack.c.l.b16 %v8230
      %v8642 = vunpack.c.l.b16 %v8231
      %v8643 = vunpack.c.h.b16 %v8231
      %v8644 = vunpack.c.l.b16 %v8232
      %v8645 = vunpack.c.l.b16 %v8233
      %v8646 = vunpack.c.h.b16 %v8233
      %v8647 = vunpack.c.l.b16 %v8234
      %v8648 = vunpack.c.l.b16 %v8235
      %v8649 = vunpack.c.h.b16 %v8235
      %v8650 = vunpack.c.l.b16 %v8236
      %v8651 = vunpack.c.l.b16 %v8237
      %v8652 = vunpack.c.h.b16 %v8237
      %v8653 = vunpack.c.l.b16 %v8238
      %v8654 = vunpack.c.l.b16 %v8239
      %v8655 = vunpack.c.h.b16 %v8239
      %v8656 = vunpack.c.l.b16 %v8240
      %v8657 = vunpack.c.l.b16 %v8241
      %v8658 = vunpack.c.h.b16 %v8241
      %v8659 = vunpack.c.l.b16 %v8242
      %v8660 = vunpack.c.l.b16 %v8243
      %v8661 = vunpack.c.h.b16 %v8243
      %v8662 = vunpack.c.l.b16 %v8244
      %v8663 = vunpack.c.l.b16 %v8245
      %v8664 = vunpack.c.h.b16 %v8245
      %v8665 = vunpack.c.l.b16 %v8246
      %v8666 = vunpack.c.l.b16 %v8247
      %v8667 = vunpack.c.h.b16 %v8247
      %v8668 = vunpack.c.l.b16 %v8248
      %v8669 = vunpack.c.l.b16 %v8249
      %v8670 = vunpack.c.h.b16 %v8249
      %v8671 = vunpack.c.l.b16 %v8250
      %v8672 = vunpack.c.l.b16 %v8251
      %v8673 = vunpack.c.h.b16 %v8251
      %v8674 = vunpack.c.l.b16 %v8252
      %v8675 = vunpack.c.l.b16 %v8253
      %v8676 = vunpack.c.h.b16 %v8253
      %v8677 = vunpack.c.l.b16 %v8254
      %v8678 = vunpack.c.l.b16 %v8255
      %v8679 = vunpack.c.h.b16 %v8255
      %v8680 = vunpack.c.l.b16 %v8256
      %v8681 = vunpack.c.l.b16 %v8257
      %v8682 = vunpack.c.h.b16 %v8257
      %v8683 = vunpack.c.l.b16 %v8258
      %v8684 = vunpack.c.l.b16 %v8259
      %v8685 = vunpack.c.h.b16 %v8259
      %v8686 = vunpack.c.l.b16 %v8260
      %v8687 = vunpack.c.l.b16 %v8261
      %v8688 = vunpack.c.h.b16 %v8261
      %v8689 = vunpack.c.l.b16 %v8262
      %v8690 = vunpack.c.l.b16 %v8263
      %v8691 = vunpack.c.h.b16 %v8263
      %v8692 = vunpack.c.l.b16 %v8264
      %v8693 = vunpack.c.l.b16 %v8265
      %v8694 = vunpack.c.h.b16 %v8265
      %v8695 = vunpack.c.l.b16 %v8266
      %v8696 = vunpack.c.l.b16 %v8267
      %v8697 = vunpack.c.h.b16 %v8267
      %v8698 = vunpack.c.l.b16 %v8268
      %v8699 = vunpack.c.l.b16 %v8269
      %v8700 = vunpack.c.h.b16 %v8269
      %v8701 = vunpack.c.l.b16 %v8270
      %v8702 = vunpack.c.l.b16 %v8271
      %v8703 = vunpack.c.h.b16 %v8271
      %v8704 = vunpack.c.l.b16 %v8272
      %v8705 = vunpack.c.l.b16 %v8273
      %v8706 = vunpack.c.h.b16 %v8273
      %v8707 = vunpack.c.l.b16 %v8274
      %v8708 = vunpack.c.l.b16 %v8275
      %v8709 = vunpack.c.h.b16 %v8275
      %v8710 = vunpack.c.l.b16 %v8276
      %v8711 = vpack.c.b16 %v8498, %v8495
      %v8712 = vpack.c.b16 %v8499, %v8496
      %v8713 = vpack.c.b16 %v8500, %v8497
      %v8714 = vpack.c.b16 %v8504, %v8501
      %v8715 = vpack.c.b16 %v8505, %v8502
      %v8716 = vpack.c.b16 %v8506, %v8503
      %v8717 = vpack.c.b16 %v8510, %v8507
      %v8718 = vpack.c.b16 %v8511, %v8508
      %v8719 = vpack.c.b16 %v8512, %v8509
      %v8720 = vpack.c.b16 %v8516, %v8513
      %v8721 = vpack.c.b16 %v8517, %v8514
      %v8722 = vpack.c.b16 %v8518, %v8515
      %v8723 = vpack.c.b16 %v8522, %v8519
      %v8724 = vpack.c.b16 %v8523, %v8520
      %v8725 = vpack.c.b16 %v8524, %v8521
      %v8726 = vpack.c.b16 %v8528, %v8525
      %v8727 = vpack.c.b16 %v8529, %v8526
      %v8728 = vpack.c.b16 %v8530, %v8527
      %v8729 = vpack.c.b16 %v8534, %v8531
      %v8730 = vpack.c.b16 %v8535, %v8532
      %v8731 = vpack.c.b16 %v8536, %v8533
      %v8732 = vpack.c.b16 %v8540, %v8537
      %v8733 = vpack.c.b16 %v8541, %v8538
      %v8734 = vpack.c.b16 %v8542, %v8539
      %v8735 = vpack.c.b16 %v8546, %v8543
      %v8736 = vpack.c.b16 %v8547, %v8544
      %v8737 = vpack.c.b16 %v8548, %v8545
      %v8738 = vpack.c.b16 %v8552, %v8549
      %v8739 = vpack.c.b16 %v8553, %v8550
      %v8740 = vpack.c.b16 %v8554, %v8551
      %v8741 = vpack.c.b16 %v8558, %v8555
      %v8742 = vpack.c.b16 %v8559, %v8556
      %v8743 = vpack.c.b16 %v8560, %v8557
      %v8744 = vpack.c.b16 %v8564, %v8561
      %v8745 = vpack.c.b16 %v8565, %v8562
      %v8746 = vpack.c.b16 %v8566, %v8563
      %v8747 = vpack.c.b16 %v8570, %v8567
      %v8748 = vpack.c.b16 %v8571, %v8568
      %v8749 = vpack.c.b16 %v8572, %v8569
      %v8750 = vpack.c.b16 %v8576, %v8573
      %v8751 = vpack.c.b16 %v8577, %v8574
      %v8752 = vpack.c.b16 %v8578, %v8575
      %v8753 = vpack.c.b16 %v8582, %v8579
      %v8754 = vpack.c.b16 %v8583, %v8580
      %v8755 = vpack.c.b16 %v8584, %v8581
      %v8756 = vpack.c.b16 %v8588, %v8585
      %v8757 = vpack.c.b16 %v8589, %v8586
      %v8758 = vpack.c.b16 %v8590, %v8587
      %v8759 = vpack.c.b16 %v8594, %v8591
      %v8760 = vpack.c.b16 %v8595, %v8592
      %v8761 = vpack.c.b16 %v8596, %v8593
      %v8762 = vpack.c.b16 %v8600, %v8597
      %v8763 = vpack.c.b16 %v8601, %v8598
      %v8764 = vpack.c.b16 %v8602, %v8599
      %v8765 = vpack.c.b16 %v8606, %v8603
      %v8766 = vpack.c.b16 %v8607, %v8604
      %v8767 = vpack.c.b16 %v8608, %v8605
      %v8768 = vpack.c.b16 %v8612, %v8609
      %v8769 = vpack.c.b16 %v8613, %v8610
      %v8770 = vpack.c.b16 %v8614, %v8611
      %v8771 = vpack.c.b16 %v8618, %v8615
      %v8772 = vpack.c.b16 %v8619, %v8616
      %v8773 = vpack.c.b16 %v8620, %v8617
      %v8774 = vpack.c.b16 %v8624, %v8621
      %v8775 = vpack.c.b16 %v8625, %v8622
      %v8776 = vpack.c.b16 %v8626, %v8623
      %v8777 = vpack.c.b16 %v8630, %v8627
      %v8778 = vpack.c.b16 %v8631, %v8628
      %v8779 = vpack.c.b16 %v8632, %v8629
      %v8780 = vpack.c.b16 %v8636, %v8633
      %v8781 = vpack.c.b16 %v8637, %v8634
      %v8782 = vpack.c.b16 %v8638, %v8635
      %v8783 = vpack.c.b16 %v8642, %v8639
      %v8784 = vpack.c.b16 %v8643, %v8640
      %v8785 = vpack.c.b16 %v8644, %v8641
      %v8786 = vpack.c.b16 %v8648, %v8645
      %v8787 = vpack.c.b16 %v8649, %v8646
      %v8788 = vpack.c.b16 %v8650, %v8647
      %v8789 = vpack.c.b16 %v8654, %v8651
      %v8790 = vpack.c.b16 %v8655, %v8652
      %v8791 = vpack.c.b16 %v8656, %v8653
      %v8792 = vpack.c.b16 %v8660, %v8657
      %v8793 = vpack.c.b16 %v8661, %v8658
      %v8794 = vpack.c.b16 %v8662, %v8659
      %v8795 = vpack.c.b16 %v8666, %v8663
      %v8796 = vpack.c.b16 %v8667, %v8664
      %v8797 = vpack.c.b16 %v8668, %v8665
      %v8798 = vpack.c.b16 %v8672, %v8669
      %v8799 = vpack.c.b16 %v8673, %v8670
      %v8800 = vpack.c.b16 %v8674, %v8671
      %v8801 = vpack.c.b16 %v8678, %v8675
      %v8802 = vpack.c.b16 %v8679, %v8676
      %v8803 = vpack.c.b16 %v8680, %v8677
      %v8804 = vpack.c.b16 %v8684, %v8681
      %v8805 = vpack.c.b16 %v8685, %v8682
      %v8806 = vpack.c.b16 %v8686, %v8683
      %v8807 = vpack.c.b16 %v8690, %v8687
      %v8808 = vpack.c.b16 %v8691, %v8688
      %v8809 = vpack.c.b16 %v8692, %v8689
      %v8810 = vpack.c.b16 %v8696, %v8693
      %v8811 = vpack.c.b16 %v8697, %v8694
      %v8812 = vpack.c.b16 %v8698, %v8695
      %v8813 = vpack.c.b16 %v8702, %v8699
      %v8814 = vpack.c.b16 %v8703, %v8700
      %v8815 = vpack.c.b16 %v8704, %v8701
      %v8816 = vpack.c.b16 %v8708, %v8705
      %v8817 = vpack.c.b16 %v8709, %v8706
      %v8818 = vpack.c.b16 %v8710, %v8707
      %v8928 = vsel %vm4412, %v8337, 0
      %v8931 = vsel %vm4412, %v8342, 0
      %8933 = vmatpush.bf16.msra.mxu0 %v8732
      %8934 = vmatpush.bf16.msra.mxu0 %v8729
      %8935 = vmatpush.bf16.msra.mxu0 %v8726
      %8936 = vmatpush.bf16.msra.mxu0 %v8723
      %8937 = vmatpush.bf16.msra.mxu0 %v8720
      %8938 = vmatpush.bf16.msra.mxu0 %v8717
      %8939 = vmatpush.bf16.msra.mxu0 %v8714
      %8940 = vmatpush.bf16.msra.mxu0 %v8711
      %8941 = vmatmul.bf16.gmra.mxu0 %v8333
      %v8942 = vpop.f32.mrf.mxu0
      %v8943 = vadd.f32 %v8284, %v8942
      %v8944 = vpop.f32.mrf.mxu0
      %v8945 = vadd.f32 %v8289, %v8944
      %8946 = vmatmul.bf16.gmra.mxu0 %v8338
      %v8947 = vpop.f32.mrf.mxu0
      %v8948 = vadd.f32 %v8294, %v8947
      %v8949 = vpop.f32.mrf.mxu0
      %v8950 = vadd.f32 %v8299, %v8949
      %8951 = vdwg.mxu0
      %8952 = vmatpush.bf16.msra.mxu0 %v8756
      %8953 = vmatpush.bf16.msra.mxu0 %v8753
      %8954 = vmatpush.bf16.msra.mxu0 %v8750
      %8955 = vmatpush.bf16.msra.mxu0 %v8747
      %8956 = vmatpush.bf16.msra.mxu0 %v8744
      %8957 = vmatpush.bf16.msra.mxu0 %v8741
      %8958 = vmatpush.bf16.msra.mxu0 %v8738
      %8959 = vmatpush.bf16.msra.mxu0 %v8735
      %8960 = vmatmul.bf16.gmra.mxu0 %v8334
      %v8961 = vpop.f32.mrf.mxu0
      %v8962 = vadd.f32 %v8943, %v8961
      %v8963 = vpop.f32.mrf.mxu0
      %v8964 = vadd.f32 %v8945, %v8963
      %8965 = vmatmul.bf16.gmra.mxu0 %v8339
      %v8966 = vpop.f32.mrf.mxu0
      %v8967 = vadd.f32 %v8948, %v8966
      %v8968 = vpop.f32.mrf.mxu0
      %v8969 = vadd.f32 %v8950, %v8968
      %8970 = vdwg.mxu0
      %8971 = vmatpush.bf16.msra.mxu0 %v8780
      %8972 = vmatpush.bf16.msra.mxu0 %v8777
      %8973 = vmatpush.bf16.msra.mxu0 %v8774
      %8974 = vmatpush.bf16.msra.mxu0 %v8771
      %8975 = vmatpush.bf16.msra.mxu0 %v8768
      %8976 = vmatpush.bf16.msra.mxu0 %v8765
      %8977 = vmatpush.bf16.msra.mxu0 %v8762
      %8978 = vmatpush.bf16.msra.mxu0 %v8759
      %8979 = vmatmul.bf16.gmra.mxu0 %v8335
      %v8980 = vpop.f32.mrf.mxu0
      %v8981 = vadd.f32 %v8962, %v8980
      %v8982 = vpop.f32.mrf.mxu0
      %v8983 = vadd.f32 %v8964, %v8982
      %8984 = vmatmul.bf16.gmra.mxu0 %v8340
      %v8985 = vpop.f32.mrf.mxu0
      %v8986 = vadd.f32 %v8967, %v8985
      %v8987 = vpop.f32.mrf.mxu0
      %v8988 = vadd.f32 %v8969, %v8987
      %8989 = vdwg.mxu0
      %8990 = vmatpush.bf16.msra.mxu0 %v8804
      %8991 = vmatpush.bf16.msra.mxu0 %v8801
      %8992 = vmatpush.bf16.msra.mxu0 %v8798
      %8993 = vmatpush.bf16.msra.mxu0 %v8795
      %8994 = vmatpush.bf16.msra.mxu0 %v8792
      %8995 = vmatpush.bf16.msra.mxu0 %v8789
      %8996 = vmatpush.bf16.msra.mxu0 %v8786
      %8997 = vmatpush.bf16.msra.mxu0 %v8783
      %8998 = vmatmul.bf16.gmra.mxu0 %v8336
      %v8999 = vpop.f32.mrf.mxu0
      %v9000 = vadd.f32 %v8981, %v8999
      %v9001 = vpop.f32.mrf.mxu0
      %v9002 = vadd.f32 %v8983, %v9001
      %9003 = vmatmul.bf16.gmra.mxu0 %v8341
      %v9004 = vpop.f32.mrf.mxu0
      %v9005 = vadd.f32 %v8986, %v9004
      %v9006 = vpop.f32.mrf.mxu0
      %v9007 = vadd.f32 %v8988, %v9006
      %9008 = vdwg.mxu0
      %9009 = vmatpush.bf16.msra.mxu0 0
      %9010 = vmatpush.bf16.msra.mxu0 0
      %9011 = vmatpush.bf16.msra.mxu0 0
      %9012 = vmatpush.bf16.msra.mxu0 0
      %9013 = vmatpush.bf16.msra.mxu0 %v8816
      %9014 = vmatpush.bf16.msra.mxu0 %v8813
      %9015 = vmatpush.bf16.msra.mxu0 %v8810
      %9016 = vmatpush.bf16.msra.mxu0 %v8807
      %9017 = vmatmul.bf16.gmra.mxu0 %v8928
      %v9018 = vpop.f32.mrf.mxu0
      %v9019 = vadd.f32 %v9000, %v9018
      %v9020 = vpop.f32.mrf.mxu0
      %v9021 = vadd.f32 %v9002, %v9020
      %9022 = vmatmul.bf16.gmra.mxu0 %v8931
      %v9023 = vpop.f32.mrf.mxu0
      %v9024 = vadd.f32 %v9005, %v9023
      %v9025 = vpop.f32.mrf.mxu0
      %v9026 = vadd.f32 %v9007, %v9025
      %9027 = vdwg.mxu0
      %9028 = vmatpush.bf16.msra.mxu0 %v8733
      %9029 = vmatpush.bf16.msra.mxu0 %v8730
      %9030 = vmatpush.bf16.msra.mxu0 %v8727
      %9031 = vmatpush.bf16.msra.mxu0 %v8724
      %9032 = vmatpush.bf16.msra.mxu0 %v8721
      %9033 = vmatpush.bf16.msra.mxu0 %v8718
      %9034 = vmatpush.bf16.msra.mxu0 %v8715
      %9035 = vmatpush.bf16.msra.mxu0 %v8712
      %9036 = vmatmul.bf16.gmra.mxu0 %v8333
      %v9037 = vpop.f32.mrf.mxu0
      %v9038 = vadd.f32 %v8284, %v9037
      %v9039 = vpop.f32.mrf.mxu0
      %v9040 = vadd.f32 %v8289, %v9039
      %9041 = vmatmul.bf16.gmra.mxu0 %v8338
      %v9042 = vpop.f32.mrf.mxu0
      %v9043 = vadd.f32 %v8294, %v9042
      %v9044 = vpop.f32.mrf.mxu0
      %v9045 = vadd.f32 %v8299, %v9044
      %9046 = vdwg.mxu0
      %9047 = vmatpush.bf16.msra.mxu0 %v8757
      %9048 = vmatpush.bf16.msra.mxu0 %v8754
      %9049 = vmatpush.bf16.msra.mxu0 %v8751
      %9050 = vmatpush.bf16.msra.mxu0 %v8748
      %9051 = vmatpush.bf16.msra.mxu0 %v8745
      %9052 = vmatpush.bf16.msra.mxu0 %v8742
      %9053 = vmatpush.bf16.msra.mxu0 %v8739
      %9054 = vmatpush.bf16.msra.mxu0 %v8736
      %9055 = vmatmul.bf16.gmra.mxu0 %v8334
      %v9056 = vpop.f32.mrf.mxu0
      %v9057 = vadd.f32 %v9038, %v9056
      %v9058 = vpop.f32.mrf.mxu0
      %v9059 = vadd.f32 %v9040, %v9058
      %9060 = vmatmul.bf16.gmra.mxu0 %v8339
      %v9061 = vpop.f32.mrf.mxu0
      %v9062 = vadd.f32 %v9043, %v9061
      %v9063 = vpop.f32.mrf.mxu0
      %v9064 = vadd.f32 %v9045, %v9063
      %9065 = vdwg.mxu0
      %9066 = vmatpush.bf16.msra.mxu0 %v8781
      %9067 = vmatpush.bf16.msra.mxu0 %v8778
      %9068 = vmatpush.bf16.msra.mxu0 %v8775
      %9069 = vmatpush.bf16.msra.mxu0 %v8772
      %9070 = vmatpush.bf16.msra.mxu0 %v8769
      %9071 = vmatpush.bf16.msra.mxu0 %v8766
      %9072 = vmatpush.bf16.msra.mxu0 %v8763
      %9073 = vmatpush.bf16.msra.mxu0 %v8760
      %9074 = vmatmul.bf16.gmra.mxu0 %v8335
      %v9075 = vpop.f32.mrf.mxu0
      %v9076 = vadd.f32 %v9057, %v9075
      %v9077 = vpop.f32.mrf.mxu0
      %v9078 = vadd.f32 %v9059, %v9077
      %9079 = vmatmul.bf16.gmra.mxu0 %v8340
      %v9080 = vpop.f32.mrf.mxu0
      %v9081 = vadd.f32 %v9062, %v9080
      %v9082 = vpop.f32.mrf.mxu0
      %v9083 = vadd.f32 %v9064, %v9082
      %9084 = vdwg.mxu0
      %9085 = vmatpush.bf16.msra.mxu0 %v8805
      %9086 = vmatpush.bf16.msra.mxu0 %v8802
      %9087 = vmatpush.bf16.msra.mxu0 %v8799
      %9088 = vmatpush.bf16.msra.mxu0 %v8796
      %9089 = vmatpush.bf16.msra.mxu0 %v8793
      %9090 = vmatpush.bf16.msra.mxu0 %v8790
      %9091 = vmatpush.bf16.msra.mxu0 %v8787
      %9092 = vmatpush.bf16.msra.mxu0 %v8784
      %9093 = vmatmul.bf16.gmra.mxu0 %v8336
      %v9094 = vpop.f32.mrf.mxu0
      %v9095 = vadd.f32 %v9076, %v9094
      %v9096 = vpop.f32.mrf.mxu0
      %v9097 = vadd.f32 %v9078, %v9096
      %9098 = vmatmul.bf16.gmra.mxu0 %v8341
      %v9099 = vpop.f32.mrf.mxu0
      %v9100 = vadd.f32 %v9081, %v9099
      %v9101 = vpop.f32.mrf.mxu0
      %v9102 = vadd.f32 %v9083, %v9101
      %9103 = vdwg.mxu0
      %9104 = vmatpush.bf16.msra.mxu0 0
      %9105 = vmatpush.bf16.msra.mxu0 0
      %9106 = vmatpush.bf16.msra.mxu0 0
      %9107 = vmatpush.bf16.msra.mxu0 0
      %9108 = vmatpush.bf16.msra.mxu0 %v8817
      %9109 = vmatpush.bf16.msra.mxu0 %v8814
      %9110 = vmatpush.bf16.msra.mxu0 %v8811
      %9111 = vmatpush.bf16.msra.mxu0 %v8808
      %9112 = vmatmul.bf16.gmra.mxu0 %v8928
      %v9113 = vpop.f32.mrf.mxu0
      %v9114 = vadd.f32 %v9095, %v9113
      %v9115 = vpop.f32.mrf.mxu0
      %v9116 = vadd.f32 %v9097, %v9115
      %9117 = vmatmul.bf16.gmra.mxu0 %v8931
      %v9118 = vpop.f32.mrf.mxu0
      %v9119 = vadd.f32 %v9100, %v9118
      %v9120 = vpop.f32.mrf.mxu0
      %v9121 = vadd.f32 %v9102, %v9120
      %9122 = vdwg.mxu0
      %9123 = vmatpush.bf16.msra.mxu0 %v8734
      %9124 = vmatpush.bf16.msra.mxu0 %v8731
      %9125 = vmatpush.bf16.msra.mxu0 %v8728
      %9126 = vmatpush.bf16.msra.mxu0 %v8725
      %9127 = vmatpush.bf16.msra.mxu0 %v8722
      %9128 = vmatpush.bf16.msra.mxu0 %v8719
      %9129 = vmatpush.bf16.msra.mxu0 %v8716
      %9130 = vmatpush.bf16.msra.mxu0 %v8713
      %9131 = vmatmul.bf16.gmra.mxu0 %v8333
      %v9132 = vpop.f32.mrf.mxu0
      %v9133 = vadd.f32 %v8284, %v9132
      %v9134 = vpop.f32.mrf.mxu0
      %v9135 = vadd.f32 %v8289, %v9134
      %9136 = vmatmul.bf16.gmra.mxu0 %v8338
      %v9137 = vpop.f32.mrf.mxu0
      %v9138 = vadd.f32 %v8294, %v9137
      %v9139 = vpop.f32.mrf.mxu0
      %v9140 = vadd.f32 %v8299, %v9139
      %9141 = vdwg.mxu0
      %9142 = vmatpush.bf16.msra.mxu0 %v8758
      %9143 = vmatpush.bf16.msra.mxu0 %v8755
      %9144 = vmatpush.bf16.msra.mxu0 %v8752
      %9145 = vmatpush.bf16.msra.mxu0 %v8749
      %9146 = vmatpush.bf16.msra.mxu0 %v8746
      %9147 = vmatpush.bf16.msra.mxu0 %v8743
      %9148 = vmatpush.bf16.msra.mxu0 %v8740
      %9149 = vmatpush.bf16.msra.mxu0 %v8737
      %9150 = vmatmul.bf16.gmra.mxu0 %v8334
      %v9151 = vpop.f32.mrf.mxu0
      %v9152 = vadd.f32 %v9133, %v9151
      %v9153 = vpop.f32.mrf.mxu0
      %v9154 = vadd.f32 %v9135, %v9153
      %9155 = vmatmul.bf16.gmra.mxu0 %v8339
      %v9156 = vpop.f32.mrf.mxu0
      %v9157 = vadd.f32 %v9138, %v9156
      %v9158 = vpop.f32.mrf.mxu0
      %v9159 = vadd.f32 %v9140, %v9158
      %9160 = vdwg.mxu0
      %9161 = vmatpush.bf16.msra.mxu0 %v8782
      %9162 = vmatpush.bf16.msra.mxu0 %v8779
      %9163 = vmatpush.bf16.msra.mxu0 %v8776
      %9164 = vmatpush.bf16.msra.mxu0 %v8773
      %9165 = vmatpush.bf16.msra.mxu0 %v8770
      %9166 = vmatpush.bf16.msra.mxu0 %v8767
      %9167 = vmatpush.bf16.msra.mxu0 %v8764
      %9168 = vmatpush.bf16.msra.mxu0 %v8761
      %9169 = vmatmul.bf16.gmra.mxu0 %v8335
      %v9170 = vpop.f32.mrf.mxu0
      %v9171 = vadd.f32 %v9152, %v9170
      %v9172 = vpop.f32.mrf.mxu0
      %v9173 = vadd.f32 %v9154, %v9172
      %9174 = vmatmul.bf16.gmra.mxu0 %v8340
      %v9175 = vpop.f32.mrf.mxu0
      %v9176 = vadd.f32 %v9157, %v9175
      %v9177 = vpop.f32.mrf.mxu0
      %v9178 = vadd.f32 %v9159, %v9177
      %9179 = vdwg.mxu0
      %9180 = vmatpush.bf16.msra.mxu0 %v8806
      %9181 = vmatpush.bf16.msra.mxu0 %v8803
      %9182 = vmatpush.bf16.msra.mxu0 %v8800
      %9183 = vmatpush.bf16.msra.mxu0 %v8797
      %9184 = vmatpush.bf16.msra.mxu0 %v8794
      %9185 = vmatpush.bf16.msra.mxu0 %v8791
      %9186 = vmatpush.bf16.msra.mxu0 %v8788
      %9187 = vmatpush.bf16.msra.mxu0 %v8785
      %9188 = vmatmul.bf16.gmra.mxu0 %v8336
      %v9189 = vpop.f32.mrf.mxu0
      %v9190 = vadd.f32 %v9171, %v9189
      %v9191 = vpop.f32.mrf.mxu0
      %v9192 = vadd.f32 %v9173, %v9191
      %9193 = vmatmul.bf16.gmra.mxu0 %v8341
      %v9194 = vpop.f32.mrf.mxu0
      %v9195 = vadd.f32 %v9176, %v9194
      %v9196 = vpop.f32.mrf.mxu0
      %v9197 = vadd.f32 %v9178, %v9196
      %9198 = vdwg.mxu0
      %9199 = vmatpush.bf16.msra.mxu0 0
      %9200 = vmatpush.bf16.msra.mxu0 0
      %9201 = vmatpush.bf16.msra.mxu0 0
      %9202 = vmatpush.bf16.msra.mxu0 0
      %9203 = vmatpush.bf16.msra.mxu0 %v8818
      %9204 = vmatpush.bf16.msra.mxu0 %v8815
      %9205 = vmatpush.bf16.msra.mxu0 %v8812
      %9206 = vmatpush.bf16.msra.mxu0 %v8809
      %9207 = vmatmul.bf16.gmra.mxu0 %v8928
      %v9208 = vpop.f32.mrf.mxu0
      %v9209 = vadd.f32 %v9190, %v9208
      %v9210 = vpop.f32.mrf.mxu0
      %v9211 = vadd.f32 %v9192, %v9210
      %9212 = vmatmul.bf16.gmra.mxu0 %v8931
      %v9213 = vpop.f32.mrf.mxu0
      %v9214 = vadd.f32 %v9195, %v9213
      %v9215 = vpop.f32.mrf.mxu0
      %v9216 = vadd.f32 %v9197, %v9215
      %9217 = vdwg.mxu0
      %v9218 = vmax.f32 %v9019, 0.0
      %v9219 = vmax.f32 %v9114, 0.0
      %v9220 = vmax.f32 %v9209, 0.0
      %v9221 = vmax.f32 %v9021, 0.0
      %v9222 = vmax.f32 %v9116, 0.0
      %v9223 = vmax.f32 %v9211, 0.0
      %v9224 = vmax.f32 %v9024, 0.0
      %v9225 = vmax.f32 %v9119, 0.0
      %v9226 = vmax.f32 %v9214, 0.0
      %v9227 = vmax.f32 %v9026, 0.0
      %v9228 = vmax.f32 %v9121, 0.0
      %v9229 = vmax.f32 %v9216, 0.0
      %v9230 = vmul.f32 %v9218, %v1252
      %v9231 = vmul.f32 %v9219, %v1253
      %v9232 = vmul.f32 %v9220, %v1254
      %v9233 = vmul.f32 %v9221, %v1252
      %v9234 = vmul.f32 %v9222, %v1253
      %v9235 = vmul.f32 %v9223, %v1254
      %v9236 = vmul.f32 %v9224, %v1252
      %v9237 = vmul.f32 %v9225, %v1253
      %v9238 = vmul.f32 %v9226, %v1254
      %v9239 = vmul.f32 %v9227, %v1252
      %v9240 = vmul.f32 %v9228, %v1253
      %v9241 = vmul.f32 %v9229, %v1254
      %v9242 = vpack.c.bf16 %v9231, %v9230
      %v9243 = vpack.c.bf16 %v9232, %v9232
      %v9244 = vpack.c.bf16 %v9234, %v9233
      %v9245 = vpack.c.bf16 %v9235, %v9235
      %v9246 = vpack.c.bf16 %v9237, %v9236
      %v9247 = vpack.c.bf16 %v9238, %v9238
      %v9248 = vpack.c.bf16 %v9240, %v9239
      %v9249 = vpack.c.bf16 %v9241, %v9241
      %9250 = vst [vmem:[#allocation2 + $0x16c] sm:$0xff] %v9242
      %9251 = vst [vmem:[#allocation2 + $0x174] sm:$0xf] %v9243
      %9252 = vst [vmem:[#allocation2 + $0x180] sm:$0xff] %v9244
      %9253 = vst [vmem:[#allocation2 + $0x188] sm:$0xf] %v9245
      %9254 = vst [vmem:[#allocation2 + $0x194] sm:$0xff] %v9246
      %9255 = vst [vmem:[#allocation2 + $0x19c] sm:$0xf] %v9247
      %9256 = vst [vmem:[#allocation2 + $0x1a8] sm:$0xff] %v9248
      %9257 = vst [vmem:[#allocation2 + $0x1b0] sm:$0xf] %v9249
      %v9258 = vld [vmem:[#allocation2 + $0x118] sm:$0xff]
      %v9259 = vld [vmem:[#allocation2 + $0x120] sm:$0xff]
      %v9260 = vld [vmem:[#allocation2 + $0x12c] sm:$0xff]
      %v9261 = vld [vmem:[#allocation2 + $0x134] sm:$0xff]
      %v9262 = vld [vmem:[#allocation2 + $0x140] sm:$0xff]
      %v9263 = vld [vmem:[#allocation2 + $0x148] sm:$0xff]
      %v9264 = vld [vmem:[#allocation2 + $0x154] sm:$0xff]
      %v9265 = vld [vmem:[#allocation2 + $0x15c] sm:$0xff]
      %v9266 = vld [vmem:[#allocation2 + $0x168] sm:$0xff]
      %v9267 = vld [vmem:[#allocation2 + $0x170] sm:$0xff]
      %v9268 = vld [vmem:[#allocation2 + $0x17c] sm:$0xff]
      %v9269 = vld [vmem:[#allocation2 + $0x184] sm:$0xff]
      %v9270 = vld [vmem:[#allocation2 + $0x190] sm:$0xff]
      %v9271 = vld [vmem:[#allocation2 + $0x198] sm:$0xff]
      %v9272 = vld [vmem:[#allocation2 + $0x1a4] sm:$0xff]
      %v9273 = vld [vmem:[#allocation2 + $0x1ac] sm:$0xff]
      %9290 = vrot.lane.b32.xlu0 %v9258, 19
      %v9291 = vpop.permute.xlu0 %9290
      %9292 = vrot.lane.b32.xlu0 %v9259, 19
      %v9293 = vpop.permute.xlu0 %9292
      %9294 = vrot.lane.b32.xlu0 %v9260, 19
      %v9295 = vpop.permute.xlu0 %9294
      %9296 = vrot.lane.b32.xlu0 %v9261, 19
      %v9297 = vpop.permute.xlu0 %9296
      %9298 = vrot.lane.b32.xlu0 %v9262, 19
      %v9299 = vpop.permute.xlu0 %9298
      %9300 = vrot.lane.b32.xlu0 %v9263, 19
      %v9301 = vpop.permute.xlu0 %9300
      %9302 = vrot.lane.b32.xlu0 %v9264, 19
      %v9303 = vpop.permute.xlu0 %9302
      %9304 = vrot.lane.b32.xlu0 %v9265, 19
      %v9305 = vpop.permute.xlu0 %9304
      %9306 = vrot.lane.b32.xlu0 %v9266, 19
      %v9307 = vpop.permute.xlu0 %9306
      %9308 = vrot.lane.b32.xlu0 %v9267, 19
      %v9309 = vpop.permute.xlu0 %9308
      %9310 = vrot.lane.b32.xlu0 %v9268, 19
      %v9311 = vpop.permute.xlu0 %9310
      %9312 = vrot.lane.b32.xlu0 %v9269, 19
      %v9313 = vpop.permute.xlu0 %9312
      %9314 = vrot.lane.b32.xlu0 %v9270, 19
      %v9315 = vpop.permute.xlu0 %9314
      %9316 = vrot.lane.b32.xlu0 %v9271, 19
      %v9317 = vpop.permute.xlu0 %9316
      %9318 = vrot.lane.b32.xlu0 %v9272, 19
      %v9319 = vpop.permute.xlu0 %9318
      %9320 = vrot.lane.b32.xlu0 %v9273, 19
      %v9321 = vpop.permute.xlu0 %9320
      %v9322 = vrot.slane %v9291, 4
      %v9323 = vrot.slane %v9293, 4
      %v9324 = vrot.slane %v9295, 4
      %v9325 = vrot.slane %v9297, 4
      %v9326 = vrot.slane %v9299, 4
      %v9327 = vrot.slane %v9301, 4
      %v9328 = vrot.slane %v9303, 4
      %v9329 = vrot.slane %v9305, 4
      %v9330 = vrot.slane %v9307, 4
      %v9331 = vrot.slane %v9309, 4
      %v9332 = vrot.slane %v9311, 4
      %v9333 = vrot.slane %v9313, 4
      %v9334 = vrot.slane %v9315, 4
      %v9335 = vrot.slane %v9317, 4
      %v9336 = vrot.slane %v9319, 4
      %v9337 = vrot.slane %v9321, 4
      %v9338 = vsel %vm623, %v9322, %v9323
      %v9339 = vsel %vm625, %v9291, %v9338
      %v9340 = vsel %vm625, %v9293, %v9323
      %v9341 = vsel %vm623, %v9324, %v9325
      %v9342 = vsel %vm625, %v9295, %v9341
      %v9343 = vsel %vm625, %v9297, %v9325
      %v9344 = vsel %vm623, %v9326, %v9327
      %v9345 = vsel %vm625, %v9299, %v9344
      %v9346 = vsel %vm625, %v9301, %v9327
      %v9347 = vsel %vm623, %v9328, %v9329
      %v9348 = vsel %vm625, %v9303, %v9347
      %v9349 = vsel %vm625, %v9305, %v9329
      %v9350 = vsel %vm623, %v9330, %v9331
      %v9351 = vsel %vm625, %v9307, %v9350
      %v9352 = vsel %vm625, %v9309, %v9331
      %v9353 = vsel %vm623, %v9332, %v9333
      %v9354 = vsel %vm625, %v9311, %v9353
      %v9355 = vsel %vm625, %v9313, %v9333
      %v9356 = vsel %vm623, %v9334, %v9335
      %v9357 = vsel %vm625, %v9315, %v9356
      %v9358 = vsel %vm625, %v9317, %v9335
      %v9359 = vsel %vm623, %v9336, %v9337
      %v9360 = vsel %vm625, %v9319, %v9359
      %v9361 = vsel %vm625, %v9321, %v9337
      %9378 = vst [vmem:[#allocation3] sm:$0xff] %v9339
      %9379 = vst [vmem:[#allocation3 + $0x8] sm:$0xf] %v9340
      %9380 = vst [vmem:[#allocation3 + $0xc] sm:$0xff] %v9342
      %9381 = vst [vmem:[#allocation3 + $0x14] sm:$0xf] %v9343
      %9382 = vst [vmem:[#allocation3 + $0x18] sm:$0xff] %v9345
      %9383 = vst [vmem:[#allocation3 + $0x20] sm:$0xf] %v9346
      %9384 = vst [vmem:[#allocation3 + $0x24] sm:$0xff] %v9348
      %9385 = vst [vmem:[#allocation3 + $0x2c] sm:$0xf] %v9349
      %9386 = vst [vmem:[#allocation3 + $0x30] sm:$0xff] %v9351
      %9387 = vst [vmem:[#allocation3 + $0x38] sm:$0xf] %v9352
      %9388 = vst [vmem:[#allocation3 + $0x3c] sm:$0xff] %v9354
      %9389 = vst [vmem:[#allocation3 + $0x44] sm:$0xf] %v9355
      %9390 = vst [vmem:[#allocation3 + $0x48] sm:$0xff] %v9357
      %9391 = vst [vmem:[#allocation3 + $0x50] sm:$0xf] %v9358
      %9392 = vst [vmem:[#allocation3 + $0x54] sm:$0xff] %v9360
      %9393 = vst [vmem:[#allocation3 + $0x5c] sm:$0xf] %v9361
      %v9394 = vld [vmem:[#allocation2 + $0x118] sm:$0xff]
      %v9395 = vld [vmem:[#allocation2 + $0x120] sm:$0xff]
      %v9396 = vld [vmem:[#allocation2 + $0x12c] sm:$0xff]
      %v9397 = vld [vmem:[#allocation2 + $0x134] sm:$0xff]
      %v9398 = vld [vmem:[#allocation2 + $0x140] sm:$0xff]
      %v9399 = vld [vmem:[#allocation2 + $0x148] sm:$0xff]
      %v9400 = vld [vmem:[#allocation2 + $0x154] sm:$0xff]
      %v9401 = vld [vmem:[#allocation2 + $0x15c] sm:$0xff]
      %v9402 = vld [vmem:[#allocation2 + $0x168] sm:$0xff]
      %v9403 = vld [vmem:[#allocation2 + $0x170] sm:$0xff]
      %v9404 = vld [vmem:[#allocation2 + $0x17c] sm:$0xff]
      %v9405 = vld [vmem:[#allocation2 + $0x184] sm:$0xff]
      %v9406 = vld [vmem:[#allocation2 + $0x190] sm:$0xff]
      %v9407 = vld [vmem:[#allocation2 + $0x198] sm:$0xff]
      %v9408 = vld [vmem:[#allocation2 + $0x1a4] sm:$0xff]
      %v9409 = vld [vmem:[#allocation2 + $0x1ac] sm:$0xff]
      %9426 = vrot.lane.b32.xlu0 %v9394, 18
      %v9427 = vpop.permute.xlu0 %9426
      %9428 = vrot.lane.b32.xlu0 %v9395, 18
      %v9429 = vpop.permute.xlu0 %9428
      %9430 = vrot.lane.b32.xlu0 %v9396, 18
      %v9431 = vpop.permute.xlu0 %9430
      %9432 = vrot.lane.b32.xlu0 %v9397, 18
      %v9433 = vpop.permute.xlu0 %9432
      %9434 = vrot.lane.b32.xlu0 %v9398, 18
      %v9435 = vpop.permute.xlu0 %9434
      %9436 = vrot.lane.b32.xlu0 %v9399, 18
      %v9437 = vpop.permute.xlu0 %9436
      %9438 = vrot.lane.b32.xlu0 %v9400, 18
      %v9439 = vpop.permute.xlu0 %9438
      %9440 = vrot.lane.b32.xlu0 %v9401, 18
      %v9441 = vpop.permute.xlu0 %9440
      %9442 = vrot.lane.b32.xlu0 %v9402, 18
      %v9443 = vpop.permute.xlu0 %9442
      %9444 = vrot.lane.b32.xlu0 %v9403, 18
      %v9445 = vpop.permute.xlu0 %9444
      %9446 = vrot.lane.b32.xlu0 %v9404, 18
      %v9447 = vpop.permute.xlu0 %9446
      %9448 = vrot.lane.b32.xlu0 %v9405, 18
      %v9449 = vpop.permute.xlu0 %9448
      %9450 = vrot.lane.b32.xlu0 %v9406, 18
      %v9451 = vpop.permute.xlu0 %9450
      %9452 = vrot.lane.b32.xlu0 %v9407, 18
      %v9453 = vpop.permute.xlu0 %9452
      %9454 = vrot.lane.b32.xlu0 %v9408, 18
      %v9455 = vpop.permute.xlu0 %9454
      %9456 = vrot.lane.b32.xlu0 %v9409, 18
      %v9457 = vpop.permute.xlu0 %9456
      %v9458 = vrot.slane %v9427, 4
      %v9459 = vrot.slane %v9429, 4
      %v9460 = vrot.slane %v9431, 4
      %v9461 = vrot.slane %v9433, 4
      %v9462 = vrot.slane %v9435, 4
      %v9463 = vrot.slane %v9437, 4
      %v9464 = vrot.slane %v9439, 4
      %v9465 = vrot.slane %v9441, 4
      %v9466 = vrot.slane %v9443, 4
      %v9467 = vrot.slane %v9445, 4
      %v9468 = vrot.slane %v9447, 4
      %v9469 = vrot.slane %v9449, 4
      %v9470 = vrot.slane %v9451, 4
      %v9471 = vrot.slane %v9453, 4
      %v9472 = vrot.slane %v9455, 4
      %v9473 = vrot.slane %v9457, 4
      %v9474 = vsel %vm623, %v9458, %v9459
      %v9475 = vsel %vm660, %v9427, %v9474
      %v9476 = vsel %vm660, %v9429, %v9459
      %v9477 = vsel %vm623, %v9460, %v9461
      %v9478 = vsel %vm660, %v9431, %v9477
      %v9479 = vsel %vm660, %v9433, %v9461
      %v9480 = vsel %vm623, %v9462, %v9463
      %v9481 = vsel %vm660, %v9435, %v9480
      %v9482 = vsel %vm660, %v9437, %v9463
      %v9483 = vsel %vm623, %v9464, %v9465
      %v9484 = vsel %vm660, %v9439, %v9483
      %v9485 = vsel %vm660, %v9441, %v9465
      %v9486 = vsel %vm623, %v9466, %v9467
      %v9487 = vsel %vm660, %v9443, %v9486
      %v9488 = vsel %vm660, %v9445, %v9467
      %v9489 = vsel %vm623, %v9468, %v9469
      %v9490 = vsel %vm660, %v9447, %v9489
      %v9491 = vsel %vm660, %v9449, %v9469
      %v9492 = vsel %vm623, %v9470, %v9471
      %v9493 = vsel %vm660, %v9451, %v9492
      %v9494 = vsel %vm660, %v9453, %v9471
      %v9495 = vsel %vm623, %v9472, %v9473
      %v9496 = vsel %vm660, %v9455, %v9495
      %v9497 = vsel %vm660, %v9457, %v9473
      %9514 = vst [vmem:[#allocation3 + $0x60] sm:$0xff] %v9475
      %9515 = vst [vmem:[#allocation3 + $0x68] sm:$0xf] %v9476
      %9516 = vst [vmem:[#allocation3 + $0x6c] sm:$0xff] %v9478
      %9517 = vst [vmem:[#allocation3 + $0x74] sm:$0xf] %v9479
      %9518 = vst [vmem:[#allocation3 + $0x78] sm:$0xff] %v9481
      %9519 = vst [vmem:[#allocation3 + $0x80] sm:$0xf] %v9482
      %9520 = vst [vmem:[#allocation3 + $0x84] sm:$0xff] %v9484
      %9521 = vst [vmem:[#allocation3 + $0x8c] sm:$0xf] %v9485
      %9522 = vst [vmem:[#allocation3 + $0x90] sm:$0xff] %v9487
      %9523 = vst [vmem:[#allocation3 + $0x98] sm:$0xf] %v9488
      %9524 = vst [vmem:[#allocation3 + $0x9c] sm:$0xff] %v9490
      %9525 = vst [vmem:[#allocation3 + $0xa4] sm:$0xf] %v9491
      %9526 = vst [vmem:[#allocation3 + $0xa8] sm:$0xff] %v9493
      %9527 = vst [vmem:[#allocation3 + $0xb0] sm:$0xf] %v9494
      %9528 = vst [vmem:[#allocation3 + $0xb4] sm:$0xff] %v9496
      %9529 = vst [vmem:[#allocation3 + $0xbc] sm:$0xf] %v9497
      %v9530 = vld [vmem:[#allocation2 + $0x118] sm:$0xff]
      %v9531 = vld [vmem:[#allocation2 + $0x120] sm:$0xff]
      %v9532 = vld [vmem:[#allocation2 + $0x12c] sm:$0xff]
      %v9533 = vld [vmem:[#allocation2 + $0x134] sm:$0xff]
      %v9534 = vld [vmem:[#allocation2 + $0x140] sm:$0xff]
      %v9535 = vld [vmem:[#allocation2 + $0x148] sm:$0xff]
      %v9536 = vld [vmem:[#allocation2 + $0x154] sm:$0xff]
      %v9537 = vld [vmem:[#allocation2 + $0x15c] sm:$0xff]
      %v9538 = vld [vmem:[#allocation2 + $0x168] sm:$0xff]
      %v9539 = vld [vmem:[#allocation2 + $0x170] sm:$0xff]
      %v9540 = vld [vmem:[#allocation2 + $0x17c] sm:$0xff]
      %v9541 = vld [vmem:[#allocation2 + $0x184] sm:$0xff]
      %v9542 = vld [vmem:[#allocation2 + $0x190] sm:$0xff]
      %v9543 = vld [vmem:[#allocation2 + $0x198] sm:$0xff]
      %v9544 = vld [vmem:[#allocation2 + $0x1a4] sm:$0xff]
      %v9545 = vld [vmem:[#allocation2 + $0x1ac] sm:$0xff]
      %9562 = vrot.lane.b32.xlu0 %v9530, 17
      %v9563 = vpop.permute.xlu0 %9562
      %9564 = vrot.lane.b32.xlu0 %v9531, 17
      %v9565 = vpop.permute.xlu0 %9564
      %9566 = vrot.lane.b32.xlu0 %v9532, 17
      %v9567 = vpop.permute.xlu0 %9566
      %9568 = vrot.lane.b32.xlu0 %v9533, 17
      %v9569 = vpop.permute.xlu0 %9568
      %9570 = vrot.lane.b32.xlu0 %v9534, 17
      %v9571 = vpop.permute.xlu0 %9570
      %9572 = vrot.lane.b32.xlu0 %v9535, 17
      %v9573 = vpop.permute.xlu0 %9572
      %9574 = vrot.lane.b32.xlu0 %v9536, 17
      %v9575 = vpop.permute.xlu0 %9574
      %9576 = vrot.lane.b32.xlu0 %v9537, 17
      %v9577 = vpop.permute.xlu0 %9576
      %9578 = vrot.lane.b32.xlu0 %v9538, 17
      %v9579 = vpop.permute.xlu0 %9578
      %9580 = vrot.lane.b32.xlu0 %v9539, 17
      %v9581 = vpop.permute.xlu0 %9580
      %9582 = vrot.lane.b32.xlu0 %v9540, 17
      %v9583 = vpop.permute.xlu0 %9582
      %9584 = vrot.lane.b32.xlu0 %v9541, 17
      %v9585 = vpop.permute.xlu0 %9584
      %9586 = vrot.lane.b32.xlu0 %v9542, 17
      %v9587 = vpop.permute.xlu0 %9586
      %9588 = vrot.lane.b32.xlu0 %v9543, 17
      %v9589 = vpop.permute.xlu0 %9588
      %9590 = vrot.lane.b32.xlu0 %v9544, 17
      %v9591 = vpop.permute.xlu0 %9590
      %9592 = vrot.lane.b32.xlu0 %v9545, 17
      %v9593 = vpop.permute.xlu0 %9592
      %v9594 = vrot.slane %v9563, 4
      %v9595 = vrot.slane %v9565, 4
      %v9596 = vrot.slane %v9567, 4
      %v9597 = vrot.slane %v9569, 4
      %v9598 = vrot.slane %v9571, 4
      %v9599 = vrot.slane %v9573, 4
      %v9600 = vrot.slane %v9575, 4
      %v9601 = vrot.slane %v9577, 4
      %v9602 = vrot.slane %v9579, 4
      %v9603 = vrot.slane %v9581, 4
      %v9604 = vrot.slane %v9583, 4
      %v9605 = vrot.slane %v9585, 4
      %v9606 = vrot.slane %v9587, 4
      %v9607 = vrot.slane %v9589, 4
      %v9608 = vrot.slane %v9591, 4
      %v9609 = vrot.slane %v9593, 4
      %v9610 = vsel %vm623, %v9594, %v9595
      %v9611 = vsel %vm695, %v9563, %v9610
      %v9612 = vsel %vm695, %v9565, %v9595
      %v9613 = vsel %vm623, %v9596, %v9597
      %v9614 = vsel %vm695, %v9567, %v9613
      %v9615 = vsel %vm695, %v9569, %v9597
      %v9616 = vsel %vm623, %v9598, %v9599
      %v9617 = vsel %vm695, %v9571, %v9616
      %v9618 = vsel %vm695, %v9573, %v9599
      %v9619 = vsel %vm623, %v9600, %v9601
      %v9620 = vsel %vm695, %v9575, %v9619
      %v9621 = vsel %vm695, %v9577, %v9601
      %v9622 = vsel %vm623, %v9602, %v9603
      %v9623 = vsel %vm695, %v9579, %v9622
      %v9624 = vsel %vm695, %v9581, %v9603
      %v9625 = vsel %vm623, %v9604, %v9605
      %v9626 = vsel %vm695, %v9583, %v9625
      %v9627 = vsel %vm695, %v9585, %v9605
      %v9628 = vsel %vm623, %v9606, %v9607
      %v9629 = vsel %vm695, %v9587, %v9628
      %v9630 = vsel %vm695, %v9589, %v9607
      %v9631 = vsel %vm623, %v9608, %v9609
      %v9632 = vsel %vm695, %v9591, %v9631
      %v9633 = vsel %vm695, %v9593, %v9609
      %9650 = vst [vmem:[#allocation3 + $0xc0] sm:$0xff] %v9611
      %9651 = vst [vmem:[#allocation3 + $0xc8] sm:$0xf] %v9612
      %9652 = vst [vmem:[#allocation3 + $0xcc] sm:$0xff] %v9614
      %9653 = vst [vmem:[#allocation3 + $0xd4] sm:$0xf] %v9615
      %9654 = vst [vmem:[#allocation3 + $0xd8] sm:$0xff] %v9617
      %9655 = vst [vmem:[#allocation3 + $0xe0] sm:$0xf] %v9618
      %9656 = vst [vmem:[#allocation3 + $0xe4] sm:$0xff] %v9620
      %9657 = vst [vmem:[#allocation3 + $0xec] sm:$0xf] %v9621
      %9658 = vst [vmem:[#allocation3 + $0xf0] sm:$0xff] %v9623
      %9659 = vst [vmem:[#allocation3 + $0xf8] sm:$0xf] %v9624
      %9660 = vst [vmem:[#allocation3 + $0xfc] sm:$0xff] %v9626
      %9661 = vst [vmem:[#allocation3 + $0x104] sm:$0xf] %v9627
      %9662 = vst [vmem:[#allocation3 + $0x108] sm:$0xff] %v9629
      %9663 = vst [vmem:[#allocation3 + $0x110] sm:$0xf] %v9630
      %9664 = vst [vmem:[#allocation3 + $0x114] sm:$0xff] %v9632
      %9665 = vst [vmem:[#allocation3 + $0x11c] sm:$0xf] %v9633
      %v9666 = vld [vmem:[#allocation2 + $0x118] sm:$0xff]
      %v9667 = vld [vmem:[#allocation2 + $0x120] sm:$0xff]
      %v9668 = vld [vmem:[#allocation2 + $0x12c] sm:$0xff]
      %v9669 = vld [vmem:[#allocation2 + $0x134] sm:$0xff]
      %v9670 = vld [vmem:[#allocation2 + $0x140] sm:$0xff]
      %v9671 = vld [vmem:[#allocation2 + $0x148] sm:$0xff]
      %v9672 = vld [vmem:[#allocation2 + $0x154] sm:$0xff]
      %v9673 = vld [vmem:[#allocation2 + $0x15c] sm:$0xff]
      %v9674 = vld [vmem:[#allocation2 + $0x168] sm:$0xff]
      %v9675 = vld [vmem:[#allocation2 + $0x170] sm:$0xff]
      %v9676 = vld [vmem:[#allocation2 + $0x17c] sm:$0xff]
      %v9677 = vld [vmem:[#allocation2 + $0x184] sm:$0xff]
      %v9678 = vld [vmem:[#allocation2 + $0x190] sm:$0xff]
      %v9679 = vld [vmem:[#allocation2 + $0x198] sm:$0xff]
      %v9680 = vld [vmem:[#allocation2 + $0x1a4] sm:$0xff]
      %v9681 = vld [vmem:[#allocation2 + $0x1ac] sm:$0xff]
      %9698 = vrot.lane.b32.xlu0 %v9666, 1
      %v9699 = vpop.permute.xlu0 %9698
      %9700 = vrot.lane.b32.xlu0 %v9667, 1
      %v9701 = vpop.permute.xlu0 %9700
      %9702 = vrot.lane.b32.xlu0 %v9668, 1
      %v9703 = vpop.permute.xlu0 %9702
      %9704 = vrot.lane.b32.xlu0 %v9669, 1
      %v9705 = vpop.permute.xlu0 %9704
      %9706 = vrot.lane.b32.xlu0 %v9670, 1
      %v9707 = vpop.permute.xlu0 %9706
      %9708 = vrot.lane.b32.xlu0 %v9671, 1
      %v9709 = vpop.permute.xlu0 %9708
      %9710 = vrot.lane.b32.xlu0 %v9672, 1
      %v9711 = vpop.permute.xlu0 %9710
      %9712 = vrot.lane.b32.xlu0 %v9673, 1
      %v9713 = vpop.permute.xlu0 %9712
      %9714 = vrot.lane.b32.xlu0 %v9674, 1
      %v9715 = vpop.permute.xlu0 %9714
      %9716 = vrot.lane.b32.xlu0 %v9675, 1
      %v9717 = vpop.permute.xlu0 %9716
      %9718 = vrot.lane.b32.xlu0 %v9676, 1
      %v9719 = vpop.permute.xlu0 %9718
      %9720 = vrot.lane.b32.xlu0 %v9677, 1
      %v9721 = vpop.permute.xlu0 %9720
      %9722 = vrot.lane.b32.xlu0 %v9678, 1
      %v9723 = vpop.permute.xlu0 %9722
      %9724 = vrot.lane.b32.xlu0 %v9679, 1
      %v9725 = vpop.permute.xlu0 %9724
      %9726 = vrot.lane.b32.xlu0 %v9680, 1
      %v9727 = vpop.permute.xlu0 %9726
      %9728 = vrot.lane.b32.xlu0 %v9681, 1
      %v9729 = vpop.permute.xlu0 %9728
      %v9730 = vrot.slane %v9699, 4
      %v9731 = vrot.slane %v9701, 4
      %v9732 = vrot.slane %v9703, 4
      %v9733 = vrot.slane %v9705, 4
      %v9734 = vrot.slane %v9707, 4
      %v9735 = vrot.slane %v9709, 4
      %v9736 = vrot.slane %v9711, 4
      %v9737 = vrot.slane %v9713, 4
      %v9738 = vrot.slane %v9715, 4
      %v9739 = vrot.slane %v9717, 4
      %v9740 = vrot.slane %v9719, 4
      %v9741 = vrot.slane %v9721, 4
      %v9742 = vrot.slane %v9723, 4
      %v9743 = vrot.slane %v9725, 4
      %v9744 = vrot.slane %v9727, 4
      %v9745 = vrot.slane %v9729, 4
      %v9746 = vsel %vm623, %v9730, %v9731
      %v9747 = vsel %vm730, %v9699, %v9746
      %v9748 = vsel %vm730, %v9701, %v9731
      %v9749 = vsel %vm623, %v9732, %v9733
      %v9750 = vsel %vm730, %v9703, %v9749
      %v9751 = vsel %vm730, %v9705, %v9733
      %v9752 = vsel %vm623, %v9734, %v9735
      %v9753 = vsel %vm730, %v9707, %v9752
      %v9754 = vsel %vm730, %v9709, %v9735
      %v9755 = vsel %vm623, %v9736, %v9737
      %v9756 = vsel %vm730, %v9711, %v9755
      %v9757 = vsel %vm730, %v9713, %v9737
      %v9758 = vsel %vm623, %v9738, %v9739
      %v9759 = vsel %vm730, %v9715, %v9758
      %v9760 = vsel %vm730, %v9717, %v9739
      %v9761 = vsel %vm623, %v9740, %v9741
      %v9762 = vsel %vm730, %v9719, %v9761
      %v9763 = vsel %vm730, %v9721, %v9741
      %v9764 = vsel %vm623, %v9742, %v9743
      %v9765 = vsel %vm730, %v9723, %v9764
      %v9766 = vsel %vm730, %v9725, %v9743
      %v9767 = vsel %vm623, %v9744, %v9745
      %v9768 = vsel %vm730, %v9727, %v9767
      %v9769 = vsel %vm730, %v9729, %v9745
      %9786 = vst [vmem:[#allocation3 + $0x120] sm:$0xff] %v9747
      %9787 = vst [vmem:[#allocation3 + $0x128] sm:$0xf] %v9748
      %9788 = vst [vmem:[#allocation3 + $0x12c] sm:$0xff] %v9750
      %9789 = vst [vmem:[#allocation3 + $0x134] sm:$0xf] %v9751
      %9790 = vst [vmem:[#allocation3 + $0x138] sm:$0xff] %v9753
      %9791 = vst [vmem:[#allocation3 + $0x140] sm:$0xf] %v9754
      %9792 = vst [vmem:[#allocation3 + $0x144] sm:$0xff] %v9756
      %9793 = vst [vmem:[#allocation3 + $0x14c] sm:$0xf] %v9757
      %9794 = vst [vmem:[#allocation3 + $0x150] sm:$0xff] %v9759
      %9795 = vst [vmem:[#allocation3 + $0x158] sm:$0xf] %v9760
      %9796 = vst [vmem:[#allocation3 + $0x15c] sm:$0xff] %v9762
      %9797 = vst [vmem:[#allocation3 + $0x164] sm:$0xf] %v9763
      %9798 = vst [vmem:[#allocation3 + $0x168] sm:$0xff] %v9765
      %9799 = vst [vmem:[#allocation3 + $0x170] sm:$0xf] %v9766
      %9800 = vst [vmem:[#allocation3 + $0x174] sm:$0xff] %v9768
      %9801 = vst [vmem:[#allocation3 + $0x17c] sm:$0xf] %v9769
      %v9802 = vld [vmem:[#allocation2 + $0x11c] sm:$0xff]
      %v9803 = vld [vmem:[#allocation2 + $0x124] sm:$0xf]
      %v9804 = vld [vmem:[#allocation2 + $0x130] sm:$0xff]
      %v9805 = vld [vmem:[#allocation2 + $0x138] sm:$0xf]
      %v9806 = vld [vmem:[#allocation2 + $0x144] sm:$0xff]
      %v9807 = vld [vmem:[#allocation2 + $0x14c] sm:$0xf]
      %v9808 = vld [vmem:[#allocation2 + $0x158] sm:$0xff]
      %v9809 = vld [vmem:[#allocation2 + $0x160] sm:$0xf]
      %v9810 = vld [vmem:[#allocation2 + $0x16c] sm:$0xff]
      %v9811 = vld [vmem:[#allocation2 + $0x174] sm:$0xf]
      %v9812 = vld [vmem:[#allocation2 + $0x180] sm:$0xff]
      %v9813 = vld [vmem:[#allocation2 + $0x188] sm:$0xf]
      %v9814 = vld [vmem:[#allocation2 + $0x194] sm:$0xff]
      %v9815 = vld [vmem:[#allocation2 + $0x19c] sm:$0xf]
      %v9816 = vld [vmem:[#allocation2 + $0x1a8] sm:$0xff]
      %v9817 = vld [vmem:[#allocation2 + $0x1b0] sm:$0xf]
      %9818 = vst [vmem:[#allocation3 + $0x180] sm:$0xff] %v9802
      %9819 = vst [vmem:[#allocation3 + $0x188] sm:$0xf] %v9803
      %9820 = vst [vmem:[#allocation3 + $0x18c] sm:$0xff] %v9804
      %9821 = vst [vmem:[#allocation3 + $0x194] sm:$0xf] %v9805
      %9822 = vst [vmem:[#allocation3 + $0x198] sm:$0xff] %v9806
      %9823 = vst [vmem:[#allocation3 + $0x1a0] sm:$0xf] %v9807
      %9824 = vst [vmem:[#allocation3 + $0x1a4] sm:$0xff] %v9808
      %9825 = vst [vmem:[#allocation3 + $0x1ac] sm:$0xf] %v9809
      %9826 = vst [vmem:[#allocation3 + $0x1b0] sm:$0xff] %v9810
      %9827 = vst [vmem:[#allocation3 + $0x1b8] sm:$0xf] %v9811
      %9828 = vst [vmem:[#allocation3 + $0x1bc] sm:$0xff] %v9812
      %9829 = vst [vmem:[#allocation3 + $0x1c4] sm:$0xf] %v9813
      %9830 = vst [vmem:[#allocation3 + $0x1c8] sm:$0xff] %v9814
      %9831 = vst [vmem:[#allocation3 + $0x1d0] sm:$0xf] %v9815
      %9832 = vst [vmem:[#allocation3 + $0x1d4] sm:$0xff] %v9816
      %9833 = vst [vmem:[#allocation3 + $0x1dc] sm:$0xf] %v9817
      %v9834 = vld [vmem:[#allocation2 + $0x11c] sm:$0xff]
      %v9835 = vld [vmem:[#allocation2 + $0x124] sm:$0xff]
      %v9836 = vld [vmem:[#allocation2 + $0x130] sm:$0xff]
      %v9837 = vld [vmem:[#allocation2 + $0x138] sm:$0xff]
      %v9838 = vld [vmem:[#allocation2 + $0x144] sm:$0xff]
      %v9839 = vld [vmem:[#allocation2 + $0x14c] sm:$0xff]
      %v9840 = vld [vmem:[#allocation2 + $0x158] sm:$0xff]
      %v9841 = vld [vmem:[#allocation2 + $0x160] sm:$0xff]
      %v9842 = vld [vmem:[#allocation2 + $0x16c] sm:$0xff]
      %v9843 = vld [vmem:[#allocation2 + $0x174] sm:$0xff]
      %v9844 = vld [vmem:[#allocation2 + $0x180] sm:$0xff]
      %v9845 = vld [vmem:[#allocation2 + $0x188] sm:$0xff]
      %v9846 = vld [vmem:[#allocation2 + $0x194] sm:$0xff]
      %v9847 = vld [vmem:[#allocation2 + $0x19c] sm:$0xff]
      %v9848 = vld [vmem:[#allocation2 + $0x1a8] sm:$0xff]
      %v9849 = vld [vmem:[#allocation2 + $0x1b0] sm:$0xff]
      %9866 = vrot.lane.b32.xlu0 %v9834, 127
      %v9867 = vpop.permute.xlu0 %9866
      %9868 = vrot.lane.b32.xlu0 %v9835, 127
      %v9869 = vpop.permute.xlu0 %9868
      %9870 = vrot.lane.b32.xlu0 %v9836, 127
      %v9871 = vpop.permute.xlu0 %9870
      %9872 = vrot.lane.b32.xlu0 %v9837, 127
      %v9873 = vpop.permute.xlu0 %9872
      %9874 = vrot.lane.b32.xlu0 %v9838, 127
      %v9875 = vpop.permute.xlu0 %9874
      %9876 = vrot.lane.b32.xlu0 %v9839, 127
      %v9877 = vpop.permute.xlu0 %9876
      %9878 = vrot.lane.b32.xlu0 %v9840, 127
      %v9879 = vpop.permute.xlu0 %9878
      %9880 = vrot.lane.b32.xlu0 %v9841, 127
      %v9881 = vpop.permute.xlu0 %9880
      %9882 = vrot.lane.b32.xlu0 %v9842, 127
      %v9883 = vpop.permute.xlu0 %9882
      %9884 = vrot.lane.b32.xlu0 %v9843, 127
      %v9885 = vpop.permute.xlu0 %9884
      %9886 = vrot.lane.b32.xlu0 %v9844, 127
      %v9887 = vpop.permute.xlu0 %9886
      %9888 = vrot.lane.b32.xlu0 %v9845, 127
      %v9889 = vpop.permute.xlu0 %9888
      %9890 = vrot.lane.b32.xlu0 %v9846, 127
      %v9891 = vpop.permute.xlu0 %9890
      %9892 = vrot.lane.b32.xlu0 %v9847, 127
      %v9893 = vpop.permute.xlu0 %9892
      %9894 = vrot.lane.b32.xlu0 %v9848, 127
      %v9895 = vpop.permute.xlu0 %9894
      %9896 = vrot.lane.b32.xlu0 %v9849, 127
      %v9897 = vpop.permute.xlu0 %9896
      %v9898 = vrot.slane %v9867, 4
      %v9899 = vrot.slane %v9869, 4
      %v9900 = vrot.slane %v9871, 4
      %v9901 = vrot.slane %v9873, 4
      %v9902 = vrot.slane %v9875, 4
      %v9903 = vrot.slane %v9877, 4
      %v9904 = vrot.slane %v9879, 4
      %v9905 = vrot.slane %v9881, 4
      %v9906 = vrot.slane %v9883, 4
      %v9907 = vrot.slane %v9885, 4
      %v9908 = vrot.slane %v9887, 4
      %v9909 = vrot.slane %v9889, 4
      %v9910 = vrot.slane %v9891, 4
      %v9911 = vrot.slane %v9893, 4
      %v9912 = vrot.slane %v9895, 4
      %v9913 = vrot.slane %v9897, 4
      %v9914 = vsel %vm623, %v9898, %v9899
      %v9915 = vsel %vm773, %v9867, %v9914
      %v9916 = vsel %vm773, %v9869, %v9899
      %v9917 = vsel %vm623, %v9900, %v9901
      %v9918 = vsel %vm773, %v9871, %v9917
      %v9919 = vsel %vm773, %v9873, %v9901
      %v9920 = vsel %vm623, %v9902, %v9903
      %v9921 = vsel %vm773, %v9875, %v9920
      %v9922 = vsel %vm773, %v9877, %v9903
      %v9923 = vsel %vm623, %v9904, %v9905
      %v9924 = vsel %vm773, %v9879, %v9923
      %v9925 = vsel %vm773, %v9881, %v9905
      %v9926 = vsel %vm623, %v9906, %v9907
      %v9927 = vsel %vm773, %v9883, %v9926
      %v9928 = vsel %vm773, %v9885, %v9907
      %v9929 = vsel %vm623, %v9908, %v9909
      %v9930 = vsel %vm773, %v9887, %v9929
      %v9931 = vsel %vm773, %v9889, %v9909
      %v9932 = vsel %vm623, %v9910, %v9911
      %v9933 = vsel %vm773, %v9891, %v9932
      %v9934 = vsel %vm773, %v9893, %v9911
      %v9935 = vsel %vm623, %v9912, %v9913
      %v9936 = vsel %vm773, %v9895, %v9935
      %v9937 = vsel %vm773, %v9897, %v9913
      %9954 = vst [vmem:[#allocation3 + $0x1e0] sm:$0xff] %v9915
      %9955 = vst [vmem:[#allocation3 + $0x1e8] sm:$0xf] %v9916
      %9956 = vst [vmem:[#allocation3 + $0x1ec] sm:$0xff] %v9918
      %9957 = vst [vmem:[#allocation3 + $0x1f4] sm:$0xf] %v9919
      %9958 = vst [vmem:[#allocation3 + $0x1f8] sm:$0xff] %v9921
      %9959 = vst [vmem:[#allocation3 + $0x200] sm:$0xf] %v9922
      %9960 = vst [vmem:[#allocation3 + $0x204] sm:$0xff] %v9924
      %9961 = vst [vmem:[#allocation3 + $0x20c] sm:$0xf] %v9925
      %9962 = vst [vmem:[#allocation3 + $0x210] sm:$0xff] %v9927
      %9963 = vst [vmem:[#allocation3 + $0x218] sm:$0xf] %v9928
      %9964 = vst [vmem:[#allocation3 + $0x21c] sm:$0xff] %v9930
      %9965 = vst [vmem:[#allocation3 + $0x224] sm:$0xf] %v9931
      %9966 = vst [vmem:[#allocation3 + $0x228] sm:$0xff] %v9933
      %9967 = vst [vmem:[#allocation3 + $0x230] sm:$0xf] %v9934
      %9968 = vst [vmem:[#allocation3 + $0x234] sm:$0xff] %v9936
      %9969 = vst [vmem:[#allocation3 + $0x23c] sm:$0xf] %v9937
      %v9970 = vld [vmem:[#allocation2 + $0x11c] sm:$0xff]
      %v9971 = vld [vmem:[#allocation2 + $0x124] sm:$0xff]
      %v9972 = vld [vmem:[#allocation2 + $0x130] sm:$0xff]
      %v9973 = vld [vmem:[#allocation2 + $0x138] sm:$0xff]
      %v9974 = vld [vmem:[#allocation2 + $0x144] sm:$0xff]
      %v9975 = vld [vmem:[#allocation2 + $0x14c] sm:$0xff]
      %v9976 = vld [vmem:[#allocation2 + $0x158] sm:$0xff]
      %v9977 = vld [vmem:[#allocation2 + $0x160] sm:$0xff]
      %v9978 = vld [vmem:[#allocation2 + $0x16c] sm:$0xff]
      %v9979 = vld [vmem:[#allocation2 + $0x174] sm:$0xff]
      %v9980 = vld [vmem:[#allocation2 + $0x180] sm:$0xff]
      %v9981 = vld [vmem:[#allocation2 + $0x188] sm:$0xff]
      %v9982 = vld [vmem:[#allocation2 + $0x194] sm:$0xff]
      %v9983 = vld [vmem:[#allocation2 + $0x19c] sm:$0xff]
      %v9984 = vld [vmem:[#allocation2 + $0x1a8] sm:$0xff]
      %v9985 = vld [vmem:[#allocation2 + $0x1b0] sm:$0xff]
      %10002 = vrot.lane.b32.xlu0 %v9970, 111
      %v10003 = vpop.permute.xlu0 %10002
      %10004 = vrot.lane.b32.xlu0 %v9971, 111
      %v10005 = vpop.permute.xlu0 %10004
      %10006 = vrot.lane.b32.xlu0 %v9972, 111
      %v10007 = vpop.permute.xlu0 %10006
      %10008 = vrot.lane.b32.xlu0 %v9973, 111
      %v10009 = vpop.permute.xlu0 %10008
      %10010 = vrot.lane.b32.xlu0 %v9974, 111
      %v10011 = vpop.permute.xlu0 %10010
      %10012 = vrot.lane.b32.xlu0 %v9975, 111
      %v10013 = vpop.permute.xlu0 %10012
      %10014 = vrot.lane.b32.xlu0 %v9976, 111
      %v10015 = vpop.permute.xlu0 %10014
      %10016 = vrot.lane.b32.xlu0 %v9977, 111
      %v10017 = vpop.permute.xlu0 %10016
      %10018 = vrot.lane.b32.xlu0 %v9978, 111
      %v10019 = vpop.permute.xlu0 %10018
      %10020 = vrot.lane.b32.xlu0 %v9979, 111
      %v10021 = vpop.permute.xlu0 %10020
      %10022 = vrot.lane.b32.xlu0 %v9980, 111
      %v10023 = vpop.permute.xlu0 %10022
      %10024 = vrot.lane.b32.xlu0 %v9981, 111
      %v10025 = vpop.permute.xlu0 %10024
      %10026 = vrot.lane.b32.xlu0 %v9982, 111
      %v10027 = vpop.permute.xlu0 %10026
      %10028 = vrot.lane.b32.xlu0 %v9983, 111
      %v10029 = vpop.permute.xlu0 %10028
      %10030 = vrot.lane.b32.xlu0 %v9984, 111
      %v10031 = vpop.permute.xlu0 %10030
      %10032 = vrot.lane.b32.xlu0 %v9985, 111
      %v10033 = vpop.permute.xlu0 %10032
      %v10034 = vrot.slane %v10003, 4
      %v10035 = vrot.slane %v10005, 4
      %v10036 = vrot.slane %v10007, 4
      %v10037 = vrot.slane %v10009, 4
      %v10038 = vrot.slane %v10011, 4
      %v10039 = vrot.slane %v10013, 4
      %v10040 = vrot.slane %v10015, 4
      %v10041 = vrot.slane %v10017, 4
      %v10042 = vrot.slane %v10019, 4
      %v10043 = vrot.slane %v10021, 4
      %v10044 = vrot.slane %v10023, 4
      %v10045 = vrot.slane %v10025, 4
      %v10046 = vrot.slane %v10027, 4
      %v10047 = vrot.slane %v10029, 4
      %v10048 = vrot.slane %v10031, 4
      %v10049 = vrot.slane %v10033, 4
      %v10050 = vsel %vm623, %v10034, %v10035
      %v10051 = vsel %vm808, %v10003, %v10050
      %v10052 = vsel %vm808, %v10005, %v10035
      %v10053 = vsel %vm623, %v10036, %v10037
      %v10054 = vsel %vm808, %v10007, %v10053
      %v10055 = vsel %vm808, %v10009, %v10037
      %v10056 = vsel %vm623, %v10038, %v10039
      %v10057 = vsel %vm808, %v10011, %v10056
      %v10058 = vsel %vm808, %v10013, %v10039
      %v10059 = vsel %vm623, %v10040, %v10041
      %v10060 = vsel %vm808, %v10015, %v10059
      %v10061 = vsel %vm808, %v10017, %v10041
      %v10062 = vsel %vm623, %v10042, %v10043
      %v10063 = vsel %vm808, %v10019, %v10062
      %v10064 = vsel %vm808, %v10021, %v10043
      %v10065 = vsel %vm623, %v10044, %v10045
      %v10066 = vsel %vm808, %v10023, %v10065
      %v10067 = vsel %vm808, %v10025, %v10045
      %v10068 = vsel %vm623, %v10046, %v10047
      %v10069 = vsel %vm808, %v10027, %v10068
      %v10070 = vsel %vm808, %v10029, %v10047
      %v10071 = vsel %vm623, %v10048, %v10049
      %v10072 = vsel %vm808, %v10031, %v10071
      %v10073 = vsel %vm808, %v10033, %v10049
      %10090 = vst [vmem:[#allocation3 + $0x240] sm:$0xff] %v10051
      %10091 = vst [vmem:[#allocation3 + $0x248] sm:$0xf] %v10052
      %10092 = vst [vmem:[#allocation3 + $0x24c] sm:$0xff] %v10054
      %10093 = vst [vmem:[#allocation3 + $0x254] sm:$0xf] %v10055
      %10094 = vst [vmem:[#allocation3 + $0x258] sm:$0xff] %v10057
      %10095 = vst [vmem:[#allocation3 + $0x260] sm:$0xf] %v10058
      %10096 = vst [vmem:[#allocation3 + $0x264] sm:$0xff] %v10060
      %10097 = vst [vmem:[#allocation3 + $0x26c] sm:$0xf] %v10061
      %10098 = vst [vmem:[#allocation3 + $0x270] sm:$0xff] %v10063
      %10099 = vst [vmem:[#allocation3 + $0x278] sm:$0xf] %v10064
      %10100 = vst [vmem:[#allocation3 + $0x27c] sm:$0xff] %v10066
      %10101 = vst [vmem:[#allocation3 + $0x284] sm:$0xf] %v10067
      %10102 = vst [vmem:[#allocation3 + $0x288] sm:$0xff] %v10069
      %10103 = vst [vmem:[#allocation3 + $0x290] sm:$0xf] %v10070
      %10104 = vst [vmem:[#allocation3 + $0x294] sm:$0xff] %v10072
      %10105 = vst [vmem:[#allocation3 + $0x29c] sm:$0xf] %v10073
      %v10106 = vld [vmem:[#allocation2 + $0x11c] sm:$0xff]
      %v10107 = vld [vmem:[#allocation2 + $0x124] sm:$0xff]
      %v10108 = vld [vmem:[#allocation2 + $0x130] sm:$0xff]
      %v10109 = vld [vmem:[#allocation2 + $0x138] sm:$0xff]
      %v10110 = vld [vmem:[#allocation2 + $0x144] sm:$0xff]
      %v10111 = vld [vmem:[#allocation2 + $0x14c] sm:$0xff]
      %v10112 = vld [vmem:[#allocation2 + $0x158] sm:$0xff]
      %v10113 = vld [vmem:[#allocation2 + $0x160] sm:$0xff]
      %v10114 = vld [vmem:[#allocation2 + $0x16c] sm:$0xff]
      %v10115 = vld [vmem:[#allocation2 + $0x174] sm:$0xff]
      %v10116 = vld [vmem:[#allocation2 + $0x180] sm:$0xff]
      %v10117 = vld [vmem:[#allocation2 + $0x188] sm:$0xff]
      %v10118 = vld [vmem:[#allocation2 + $0x194] sm:$0xff]
      %v10119 = vld [vmem:[#allocation2 + $0x19c] sm:$0xff]
      %v10120 = vld [vmem:[#allocation2 + $0x1a8] sm:$0xff]
      %v10121 = vld [vmem:[#allocation2 + $0x1b0] sm:$0xff]
      %10138 = vrot.lane.b32.xlu0 %v10106, 110
      %v10139 = vpop.permute.xlu0 %10138
      %10140 = vrot.lane.b32.xlu0 %v10107, 110
      %v10141 = vpop.permute.xlu0 %10140
      %10142 = vrot.lane.b32.xlu0 %v10108, 110
      %v10143 = vpop.permute.xlu0 %10142
      %10144 = vrot.lane.b32.xlu0 %v10109, 110
      %v10145 = vpop.permute.xlu0 %10144
      %10146 = vrot.lane.b32.xlu0 %v10110, 110
      %v10147 = vpop.permute.xlu0 %10146
      %10148 = vrot.lane.b32.xlu0 %v10111, 110
      %v10149 = vpop.permute.xlu0 %10148
      %10150 = vrot.lane.b32.xlu0 %v10112, 110
      %v10151 = vpop.permute.xlu0 %10150
      %10152 = vrot.lane.b32.xlu0 %v10113, 110
      %v10153 = vpop.permute.xlu0 %10152
      %10154 = vrot.lane.b32.xlu0 %v10114, 110
      %v10155 = vpop.permute.xlu0 %10154
      %10156 = vrot.lane.b32.xlu0 %v10115, 110
      %v10157 = vpop.permute.xlu0 %10156
      %10158 = vrot.lane.b32.xlu0 %v10116, 110
      %v10159 = vpop.permute.xlu0 %10158
      %10160 = vrot.lane.b32.xlu0 %v10117, 110
      %v10161 = vpop.permute.xlu0 %10160
      %10162 = vrot.lane.b32.xlu0 %v10118, 110
      %v10163 = vpop.permute.xlu0 %10162
      %10164 = vrot.lane.b32.xlu0 %v10119, 110
      %v10165 = vpop.permute.xlu0 %10164
      %10166 = vrot.lane.b32.xlu0 %v10120, 110
      %v10167 = vpop.permute.xlu0 %10166
      %10168 = vrot.lane.b32.xlu0 %v10121, 110
      %v10169 = vpop.permute.xlu0 %10168
      %v10170 = vrot.slane %v10139, 4
      %v10171 = vrot.slane %v10141, 4
      %v10172 = vrot.slane %v10143, 4
      %v10173 = vrot.slane %v10145, 4
      %v10174 = vrot.slane %v10147, 4
      %v10175 = vrot.slane %v10149, 4
      %v10176 = vrot.slane %v10151, 4
      %v10177 = vrot.slane %v10153, 4
      %v10178 = vrot.slane %v10155, 4
      %v10179 = vrot.slane %v10157, 4
      %v10180 = vrot.slane %v10159, 4
      %v10181 = vrot.slane %v10161, 4
      %v10182 = vrot.slane %v10163, 4
      %v10183 = vrot.slane %v10165, 4
      %v10184 = vrot.slane %v10167, 4
      %v10185 = vrot.slane %v10169, 4
      %v10186 = vsel %vm623, %v10170, %v10171
      %v10187 = vsel %vm843, %v10139, %v10186
      %v10188 = vsel %vm843, %v10141, %v10171
      %v10189 = vsel %vm623, %v10172, %v10173
      %v10190 = vsel %vm843, %v10143, %v10189
      %v10191 = vsel %vm843, %v10145, %v10173
      %v10192 = vsel %vm623, %v10174, %v10175
      %v10193 = vsel %vm843, %v10147, %v10192
      %v10194 = vsel %vm843, %v10149, %v10175
      %v10195 = vsel %vm623, %v10176, %v10177
      %v10196 = vsel %vm843, %v10151, %v10195
      %v10197 = vsel %vm843, %v10153, %v10177
      %v10198 = vsel %vm623, %v10178, %v10179
      %v10199 = vsel %vm843, %v10155, %v10198
      %v10200 = vsel %vm843, %v10157, %v10179
      %v10201 = vsel %vm623, %v10180, %v10181
      %v10202 = vsel %vm843, %v10159, %v10201
      %v10203 = vsel %vm843, %v10161, %v10181
      %v10204 = vsel %vm623, %v10182, %v10183
      %v10205 = vsel %vm843, %v10163, %v10204
      %v10206 = vsel %vm843, %v10165, %v10183
      %v10207 = vsel %vm623, %v10184, %v10185
      %v10208 = vsel %vm843, %v10167, %v10207
      %v10209 = vsel %vm843, %v10169, %v10185
      %10226 = vst [vmem:[#allocation3 + $0x2a0] sm:$0xff] %v10187
      %10227 = vst [vmem:[#allocation3 + $0x2a8] sm:$0xf] %v10188
      %10228 = vst [vmem:[#allocation3 + $0x2ac] sm:$0xff] %v10190
      %10229 = vst [vmem:[#allocation3 + $0x2b4] sm:$0xf] %v10191
      %10230 = vst [vmem:[#allocation3 + $0x2b8] sm:$0xff] %v10193
      %10231 = vst [vmem:[#allocation3 + $0x2c0] sm:$0xf] %v10194
      %10232 = vst [vmem:[#allocation3 + $0x2c4] sm:$0xff] %v10196
      %10233 = vst [vmem:[#allocation3 + $0x2cc] sm:$0xf] %v10197
      %10234 = vst [vmem:[#allocation3 + $0x2d0] sm:$0xff] %v10199
      %10235 = vst [vmem:[#allocation3 + $0x2d8] sm:$0xf] %v10200
      %10236 = vst [vmem:[#allocation3 + $0x2dc] sm:$0xff] %v10202
      %10237 = vst [vmem:[#allocation3 + $0x2e4] sm:$0xf] %v10203
      %10238 = vst [vmem:[#allocation3 + $0x2e8] sm:$0xff] %v10205
      %10239 = vst [vmem:[#allocation3 + $0x2f0] sm:$0xf] %v10206
      %10240 = vst [vmem:[#allocation3 + $0x2f4] sm:$0xff] %v10208
      %10241 = vst [vmem:[#allocation3 + $0x2fc] sm:$0xf] %v10209
      %v10242 = vld [vmem:[#allocation2 + $0x11c] sm:$0xff]
      %v10243 = vld [vmem:[#allocation2 + $0x124] sm:$0xff]
      %v10244 = vld [vmem:[#allocation2 + $0x130] sm:$0xff]
      %v10245 = vld [vmem:[#allocation2 + $0x138] sm:$0xff]
      %v10246 = vld [vmem:[#allocation2 + $0x144] sm:$0xff]
      %v10247 = vld [vmem:[#allocation2 + $0x14c] sm:$0xff]
      %v10248 = vld [vmem:[#allocation2 + $0x158] sm:$0xff]
      %v10249 = vld [vmem:[#allocation2 + $0x160] sm:$0xff]
      %v10250 = vld [vmem:[#allocation2 + $0x16c] sm:$0xff]
      %v10251 = vld [vmem:[#allocation2 + $0x174] sm:$0xff]
      %v10252 = vld [vmem:[#allocation2 + $0x180] sm:$0xff]
      %v10253 = vld [vmem:[#allocation2 + $0x188] sm:$0xff]
      %v10254 = vld [vmem:[#allocation2 + $0x194] sm:$0xff]
      %v10255 = vld [vmem:[#allocation2 + $0x19c] sm:$0xff]
      %v10256 = vld [vmem:[#allocation2 + $0x1a8] sm:$0xff]
      %v10257 = vld [vmem:[#allocation2 + $0x1b0] sm:$0xff]
      %10274 = vrot.lane.b32.xlu0 %v10242, 109
      %v10275 = vpop.permute.xlu0 %10274
      %10276 = vrot.lane.b32.xlu0 %v10243, 109
      %v10277 = vpop.permute.xlu0 %10276
      %10278 = vrot.lane.b32.xlu0 %v10244, 109
      %v10279 = vpop.permute.xlu0 %10278
      %10280 = vrot.lane.b32.xlu0 %v10245, 109
      %v10281 = vpop.permute.xlu0 %10280
      %10282 = vrot.lane.b32.xlu0 %v10246, 109
      %v10283 = vpop.permute.xlu0 %10282
      %10284 = vrot.lane.b32.xlu0 %v10247, 109
      %v10285 = vpop.permute.xlu0 %10284
      %10286 = vrot.lane.b32.xlu0 %v10248, 109
      %v10287 = vpop.permute.xlu0 %10286
      %10288 = vrot.lane.b32.xlu0 %v10249, 109
      %v10289 = vpop.permute.xlu0 %10288
      %10290 = vrot.lane.b32.xlu0 %v10250, 109
      %v10291 = vpop.permute.xlu0 %10290
      %10292 = vrot.lane.b32.xlu0 %v10251, 109
      %v10293 = vpop.permute.xlu0 %10292
      %10294 = vrot.lane.b32.xlu0 %v10252, 109
      %v10295 = vpop.permute.xlu0 %10294
      %10296 = vrot.lane.b32.xlu0 %v10253, 109
      %v10297 = vpop.permute.xlu0 %10296
      %10298 = vrot.lane.b32.xlu0 %v10254, 109
      %v10299 = vpop.permute.xlu0 %10298
      %10300 = vrot.lane.b32.xlu0 %v10255, 109
      %v10301 = vpop.permute.xlu0 %10300
      %10302 = vrot.lane.b32.xlu0 %v10256, 109
      %v10303 = vpop.permute.xlu0 %10302
      %10304 = vrot.lane.b32.xlu0 %v10257, 109
      %v10305 = vpop.permute.xlu0 %10304
      %v10306 = vrot.slane %v10275, 4
      %v10307 = vrot.slane %v10277, 4
      %v10308 = vrot.slane %v10279, 4
      %v10309 = vrot.slane %v10281, 4
      %v10310 = vrot.slane %v10283, 4
      %v10311 = vrot.slane %v10285, 4
      %v10312 = vrot.slane %v10287, 4
      %v10313 = vrot.slane %v10289, 4
      %v10314 = vrot.slane %v10291, 4
      %v10315 = vrot.slane %v10293, 4
      %v10316 = vrot.slane %v10295, 4
      %v10317 = vrot.slane %v10297, 4
      %v10318 = vrot.slane %v10299, 4
      %v10319 = vrot.slane %v10301, 4
      %v10320 = vrot.slane %v10303, 4
      %v10321 = vrot.slane %v10305, 4
      %v10322 = vsel %vm623, %v10306, %v10307
      %v10323 = vsel %vm878, %v10275, %v10322
      %v10324 = vsel %vm878, %v10277, %v10307
      %v10325 = vsel %vm623, %v10308, %v10309
      %v10326 = vsel %vm878, %v10279, %v10325
      %v10327 = vsel %vm878, %v10281, %v10309
      %v10328 = vsel %vm623, %v10310, %v10311
      %v10329 = vsel %vm878, %v10283, %v10328
      %v10330 = vsel %vm878, %v10285, %v10311
      %v10331 = vsel %vm623, %v10312, %v10313
      %v10332 = vsel %vm878, %v10287, %v10331
      %v10333 = vsel %vm878, %v10289, %v10313
      %v10334 = vsel %vm623, %v10314, %v10315
      %v10335 = vsel %vm878, %v10291, %v10334
      %v10336 = vsel %vm878, %v10293, %v10315
      %v10337 = vsel %vm623, %v10316, %v10317
      %v10338 = vsel %vm878, %v10295, %v10337
      %v10339 = vsel %vm878, %v10297, %v10317
      %v10340 = vsel %vm623, %v10318, %v10319
      %v10341 = vsel %vm878, %v10299, %v10340
      %v10342 = vsel %vm878, %v10301, %v10319
      %v10343 = vsel %vm623, %v10320, %v10321
      %v10344 = vsel %vm878, %v10303, %v10343
      %v10345 = vsel %vm878, %v10305, %v10321
      %10362 = vst [vmem:[#allocation3 + $0x300] sm:$0xff] %v10323
      %10363 = vst [vmem:[#allocation3 + $0x308] sm:$0xf] %v10324
      %10364 = vst [vmem:[#allocation3 + $0x30c] sm:$0xff] %v10326
      %10365 = vst [vmem:[#allocation3 + $0x314] sm:$0xf] %v10327
      %10366 = vst [vmem:[#allocation3 + $0x318] sm:$0xff] %v10329
      %10367 = vst [vmem:[#allocation3 + $0x320] sm:$0xf] %v10330
      %10368 = vst [vmem:[#allocation3 + $0x324] sm:$0xff] %v10332
      %10369 = vst [vmem:[#allocation3 + $0x32c] sm:$0xf] %v10333
      %10370 = vst [vmem:[#allocation3 + $0x330] sm:$0xff] %v10335
      %10371 = vst [vmem:[#allocation3 + $0x338] sm:$0xf] %v10336
      %10372 = vst [vmem:[#allocation3 + $0x33c] sm:$0xff] %v10338
      %10373 = vst [vmem:[#allocation3 + $0x344] sm:$0xf] %v10339
      %10374 = vst [vmem:[#allocation3 + $0x348] sm:$0xff] %v10341
      %10375 = vst [vmem:[#allocation3 + $0x350] sm:$0xf] %v10342
      %10376 = vst [vmem:[#allocation3 + $0x354] sm:$0xff] %v10344
      %10377 = vst [vmem:[#allocation3 + $0x35c] sm:$0xf] %v10345
      %v10378 = vld [vmem:[%s13] sm:$0xff]
      %v10379 = vld [vmem:[%s13 + $0x8] sm:$0xff]
      %v10380 = vld [vmem:[%s13 + $0x10] sm:$0xf]
      %v10381 = vld [vmem:[%s13 + $0x14] sm:$0xff]
      %v10382 = vld [vmem:[%s13 + $0x1c] sm:$0xff]
      %v10383 = vld [vmem:[%s13 + $0x24] sm:$0xf]
      %v10384 = vld [vmem:[#allocation3] sm:$0xff]
      %v10385 = vld [vmem:[#allocation3 + $0x8] sm:$0xf]
      %v10386 = vld [vmem:[#allocation3 + $0xc] sm:$0xff]
      %v10387 = vld [vmem:[#allocation3 + $0x14] sm:$0xf]
      %v10388 = vld [vmem:[#allocation3 + $0x18] sm:$0xff]
      %v10389 = vld [vmem:[#allocation3 + $0x20] sm:$0xf]
      %v10390 = vld [vmem:[#allocation3 + $0x24] sm:$0xff]
      %v10391 = vld [vmem:[#allocation3 + $0x2c] sm:$0xf]
      %v10392 = vld [vmem:[#allocation3 + $0x30] sm:$0xff]
      %v10393 = vld [vmem:[#allocation3 + $0x38] sm:$0xf]
      %v10394 = vld [vmem:[#allocation3 + $0x3c] sm:$0xff]
      %v10395 = vld [vmem:[#allocation3 + $0x44] sm:$0xf]
      %v10396 = vld [vmem:[#allocation3 + $0x48] sm:$0xff]
      %v10397 = vld [vmem:[#allocation3 + $0x50] sm:$0xf]
      %v10398 = vld [vmem:[#allocation3 + $0x54] sm:$0xff]
      %v10399 = vld [vmem:[#allocation3 + $0x5c] sm:$0xf]
      %v10400 = vld [vmem:[#allocation3 + $0x60] sm:$0xff]
      %v10401 = vld [vmem:[#allocation3 + $0x68] sm:$0xf]
      %v10402 = vld [vmem:[#allocation3 + $0x6c] sm:$0xff]
      %v10403 = vld [vmem:[#allocation3 + $0x74] sm:$0xf]
      %v10404 = vld [vmem:[#allocation3 + $0x78] sm:$0xff]
      %v10405 = vld [vmem:[#allocation3 + $0x80] sm:$0xf]
      %v10406 = vld [vmem:[#allocation3 + $0x84] sm:$0xff]
      %v10407 = vld [vmem:[#allocation3 + $0x8c] sm:$0xf]
      %v10408 = vld [vmem:[#allocation3 + $0x90] sm:$0xff]
      %v10409 = vld [vmem:[#allocation3 + $0x98] sm:$0xf]
      %v10410 = vld [vmem:[#allocation3 + $0x9c] sm:$0xff]
      %v10411 = vld [vmem:[#allocation3 + $0xa4] sm:$0xf]
      %v10412 = vld [vmem:[#allocation3 + $0xa8] sm:$0xff]
      %v10413 = vld [vmem:[#allocation3 + $0xb0] sm:$0xf]
      %v10414 = vld [vmem:[#allocation3 + $0xb4] sm:$0xff]
      %v10415 = vld [vmem:[#allocation3 + $0xbc] sm:$0xf]
      %v10416 = vld [vmem:[#allocation3 + $0xc0] sm:$0xff]
      %v10417 = vld [vmem:[#allocation3 + $0xc8] sm:$0xf]
      %v10418 = vld [vmem:[#allocation3 + $0xcc] sm:$0xff]
      %v10419 = vld [vmem:[#allocation3 + $0xd4] sm:$0xf]
      %v10420 = vld [vmem:[#allocation3 + $0xd8] sm:$0xff]
      %v10421 = vld [vmem:[#allocation3 + $0xe0] sm:$0xf]
      %v10422 = vld [vmem:[#allocation3 + $0xe4] sm:$0xff]
      %v10423 = vld [vmem:[#allocation3 + $0xec] sm:$0xf]
      %v10424 = vld [vmem:[#allocation3 + $0xf0] sm:$0xff]
      %v10425 = vld [vmem:[#allocation3 + $0xf8] sm:$0xf]
      %v10426 = vld [vmem:[#allocation3 + $0xfc] sm:$0xff]
      %v10427 = vld [vmem:[#allocation3 + $0x104] sm:$0xf]
      %v10428 = vld [vmem:[#allocation3 + $0x108] sm:$0xff]
      %v10429 = vld [vmem:[#allocation3 + $0x110] sm:$0xf]
      %v10430 = vld [vmem:[#allocation3 + $0x114] sm:$0xff]
      %v10431 = vld [vmem:[#allocation3 + $0x11c] sm:$0xf]
      %v10432 = vld [vmem:[#allocation3 + $0x120] sm:$0xff]
      %v10433 = vld [vmem:[#allocation3 + $0x128] sm:$0xf]
      %v10434 = vld [vmem:[#allocation3 + $0x12c] sm:$0xff]
      %v10435 = vld [vmem:[#allocation3 + $0x134] sm:$0xf]
      %v10436 = vld [vmem:[#allocation3 + $0x138] sm:$0xff]
      %v10437 = vld [vmem:[#allocation3 + $0x140] sm:$0xf]
      %v10438 = vld [vmem:[#allocation3 + $0x144] sm:$0xff]
      %v10439 = vld [vmem:[#allocation3 + $0x14c] sm:$0xf]
      %v10440 = vld [vmem:[#allocation3 + $0x150] sm:$0xff]
      %v10441 = vld [vmem:[#allocation3 + $0x158] sm:$0xf]
      %v10442 = vld [vmem:[#allocation3 + $0x15c] sm:$0xff]
      %v10443 = vld [vmem:[#allocation3 + $0x164] sm:$0xf]
      %v10444 = vld [vmem:[#allocation3 + $0x168] sm:$0xff]
      %v10445 = vld [vmem:[#allocation3 + $0x170] sm:$0xf]
      %v10446 = vld [vmem:[#allocation3 + $0x174] sm:$0xff]
      %v10447 = vld [vmem:[#allocation3 + $0x17c] sm:$0xf]
      %v10448 = vld [vmem:[#allocation3 + $0x180] sm:$0xff]
      %v10449 = vld [vmem:[#allocation3 + $0x188] sm:$0xf]
      %v10450 = vld [vmem:[#allocation3 + $0x18c] sm:$0xff]
      %v10451 = vld [vmem:[#allocation3 + $0x194] sm:$0xf]
      %v10452 = vld [vmem:[#allocation3 + $0x198] sm:$0xff]
      %v10453 = vld [vmem:[#allocation3 + $0x1a0] sm:$0xf]
      %v10454 = vld [vmem:[#allocation3 + $0x1a4] sm:$0xff]
      %v10455 = vld [vmem:[#allocation3 + $0x1ac] sm:$0xf]
      %v10456 = vld [vmem:[#allocation3 + $0x1b0] sm:$0xff]
      %v10457 = vld [vmem:[#allocation3 + $0x1b8] sm:$0xf]
      %v10458 = vld [vmem:[#allocation3 + $0x1bc] sm:$0xff]
      %v10459 = vld [vmem:[#allocation3 + $0x1c4] sm:$0xf]
      %v10460 = vld [vmem:[#allocation3 + $0x1c8] sm:$0xff]
      %v10461 = vld [vmem:[#allocation3 + $0x1d0] sm:$0xf]
      %v10462 = vld [vmem:[#allocation3 + $0x1d4] sm:$0xff]
      %v10463 = vld [vmem:[#allocation3 + $0x1dc] sm:$0xf]
      %v10464 = vld [vmem:[#allocation3 + $0x1e0] sm:$0xff]
      %v10465 = vld [vmem:[#allocation3 + $0x1e8] sm:$0xf]
      %v10466 = vld [vmem:[#allocation3 + $0x1ec] sm:$0xff]
      %v10467 = vld [vmem:[#allocation3 + $0x1f4] sm:$0xf]
      %v10468 = vld [vmem:[#allocation3 + $0x1f8] sm:$0xff]
      %v10469 = vld [vmem:[#allocation3 + $0x200] sm:$0xf]
      %v10470 = vld [vmem:[#allocation3 + $0x204] sm:$0xff]
      %v10471 = vld [vmem:[#allocation3 + $0x20c] sm:$0xf]
      %v10472 = vld [vmem:[#allocation3 + $0x210] sm:$0xff]
      %v10473 = vld [vmem:[#allocation3 + $0x218] sm:$0xf]
      %v10474 = vld [vmem:[#allocation3 + $0x21c] sm:$0xff]
      %v10475 = vld [vmem:[#allocation3 + $0x224] sm:$0xf]
      %v10476 = vld [vmem:[#allocation3 + $0x228] sm:$0xff]
      %v10477 = vld [vmem:[#allocation3 + $0x230] sm:$0xf]
      %v10478 = vld [vmem:[#allocation3 + $0x234] sm:$0xff]
      %v10479 = vld [vmem:[#allocation3 + $0x23c] sm:$0xf]
      %v10480 = vld [vmem:[#allocation3 + $0x240] sm:$0xff]
      %v10481 = vld [vmem:[#allocation3 + $0x248] sm:$0xf]
      %v10482 = vld [vmem:[#allocation3 + $0x24c] sm:$0xff]
      %v10483 = vld [vmem:[#allocation3 + $0x254] sm:$0xf]
      %v10484 = vld [vmem:[#allocation3 + $0x258] sm:$0xff]
      %v10485 = vld [vmem:[#allocation3 + $0x260] sm:$0xf]
      %v10486 = vld [vmem:[#allocation3 + $0x264] sm:$0xff]
      %v10487 = vld [vmem:[#allocation3 + $0x26c] sm:$0xf]
      %v10488 = vld [vmem:[#allocation3 + $0x270] sm:$0xff]
      %v10489 = vld [vmem:[#allocation3 + $0x278] sm:$0xf]
      %v10490 = vld [vmem:[#allocation3 + $0x27c] sm:$0xff]
      %v10491 = vld [vmem:[#allocation3 + $0x284] sm:$0xf]
      %v10492 = vld [vmem:[#allocation3 + $0x288] sm:$0xff]
      %v10493 = vld [vmem:[#allocation3 + $0x290] sm:$0xf]
      %v10494 = vld [vmem:[#allocation3 + $0x294] sm:$0xff]
      %v10495 = vld [vmem:[#allocation3 + $0x29c] sm:$0xf]
      %v10496 = vld [vmem:[#allocation3 + $0x2a0] sm:$0xff]
      %v10497 = vld [vmem:[#allocation3 + $0x2a8] sm:$0xf]
      %v10498 = vld [vmem:[#allocation3 + $0x2ac] sm:$0xff]
      %v10499 = vld [vmem:[#allocation3 + $0x2b4] sm:$0xf]
      %v10500 = vld [vmem:[#allocation3 + $0x2b8] sm:$0xff]
      %v10501 = vld [vmem:[#allocation3 + $0x2c0] sm:$0xf]
      %v10502 = vld [vmem:[#allocation3 + $0x2c4] sm:$0xff]
      %v10503 = vld [vmem:[#allocation3 + $0x2cc] sm:$0xf]
      %v10504 = vld [vmem:[#allocation3 + $0x2d0] sm:$0xff]
      %v10505 = vld [vmem:[#allocation3 + $0x2d8] sm:$0xf]
      %v10506 = vld [vmem:[#allocation3 + $0x2dc] sm:$0xff]
      %v10507 = vld [vmem:[#allocation3 + $0x2e4] sm:$0xf]
      %v10508 = vld [vmem:[#allocation3 + $0x2e8] sm:$0xff]
      %v10509 = vld [vmem:[#allocation3 + $0x2f0] sm:$0xf]
      %v10510 = vld [vmem:[#allocation3 + $0x2f4] sm:$0xff]
      %v10511 = vld [vmem:[#allocation3 + $0x2fc] sm:$0xf]
      %v10512 = vld [vmem:[#allocation3 + $0x300] sm:$0xff]
      %v10513 = vld [vmem:[#allocation3 + $0x308] sm:$0xf]
      %v10514 = vld [vmem:[#allocation3 + $0x30c] sm:$0xff]
      %v10515 = vld [vmem:[#allocation3 + $0x314] sm:$0xf]
      %v10516 = vld [vmem:[#allocation3 + $0x318] sm:$0xff]
      %v10517 = vld [vmem:[#allocation3 + $0x320] sm:$0xf]
      %v10518 = vld [vmem:[#allocation3 + $0x324] sm:$0xff]
      %v10519 = vld [vmem:[#allocation3 + $0x32c] sm:$0xf]
      %v10520 = vld [vmem:[#allocation3 + $0x330] sm:$0xff]
      %v10521 = vld [vmem:[#allocation3 + $0x338] sm:$0xf]
      %v10522 = vld [vmem:[#allocation3 + $0x33c] sm:$0xff]
      %v10523 = vld [vmem:[#allocation3 + $0x344] sm:$0xf]
      %v10524 = vld [vmem:[#allocation3 + $0x348] sm:$0xff]
      %v10525 = vld [vmem:[#allocation3 + $0x350] sm:$0xf]
      %v10526 = vld [vmem:[#allocation3 + $0x354] sm:$0xff]
      %v10527 = vld [vmem:[#allocation3 + $0x35c] sm:$0xf]
      %v10528 = vld [vmem:[%s14] sm:$0xff]
      %v10529 = vld [vmem:[%s14 + $0x8] sm:$0xff]
      %10531 = vset.pattern.permute.xlu0 0
      %10532 = vperm.xlu0 %10531, %v10528
      %v10533 = vpop.permute.xlu0 %10532
      %10536 = vset.pattern.permute.xlu0 0
      %10537 = vperm.xlu0 %10536, %v10529
      %v10538 = vpop.permute.xlu0 %10537
      %v10546 = vunpack.c.l.b16 %v10378
      %v10547 = vunpack.c.h.b16 %v10378
      %v10548 = vunpack.c.l.b16 %v10379
      %v10549 = vunpack.c.h.b16 %v10379
      %v10550 = vunpack.c.l.b16 %v10380
      %v10551 = vunpack.c.l.b16 %v10381
      %v10552 = vunpack.c.h.b16 %v10381
      %v10553 = vunpack.c.l.b16 %v10382
      %v10554 = vunpack.c.h.b16 %v10382
      %v10555 = vunpack.c.l.b16 %v10383
      %v10556 = vpack.c.b16 %v10551, %v10546
      %v10557 = vpack.c.b16 %v10552, %v10547
      %v10558 = vpack.c.b16 %v10553, %v10548
      %v10559 = vpack.c.b16 %v10554, %v10549
      %v10560 = vpack.c.b16 %v10555, %v10550
      %v10709 = vunpack.c.l.b16 %v10384
      %v10710 = vunpack.c.h.b16 %v10384
      %v10711 = vunpack.c.l.b16 %v10385
      %v10712 = vunpack.c.l.b16 %v10386
      %v10713 = vunpack.c.h.b16 %v10386
      %v10714 = vunpack.c.l.b16 %v10387
      %v10715 = vunpack.c.l.b16 %v10388
      %v10716 = vunpack.c.h.b16 %v10388
      %v10717 = vunpack.c.l.b16 %v10389
      %v10718 = vunpack.c.l.b16 %v10390
      %v10719 = vunpack.c.h.b16 %v10390
      %v10720 = vunpack.c.l.b16 %v10391
      %v10721 = vunpack.c.l.b16 %v10392
      %v10722 = vunpack.c.h.b16 %v10392
      %v10723 = vunpack.c.l.b16 %v10393
      %v10724 = vunpack.c.l.b16 %v10394
      %v10725 = vunpack.c.h.b16 %v10394
      %v10726 = vunpack.c.l.b16 %v10395
      %v10727 = vunpack.c.l.b16 %v10396
      %v10728 = vunpack.c.h.b16 %v10396
      %v10729 = vunpack.c.l.b16 %v10397
      %v10730 = vunpack.c.l.b16 %v10398
      %v10731 = vunpack.c.h.b16 %v10398
      %v10732 = vunpack.c.l.b16 %v10399
      %v10733 = vunpack.c.l.b16 %v10400
      %v10734 = vunpack.c.h.b16 %v10400
      %v10735 = vunpack.c.l.b16 %v10401
      %v10736 = vunpack.c.l.b16 %v10402
      %v10737 = vunpack.c.h.b16 %v10402
      %v10738 = vunpack.c.l.b16 %v10403
      %v10739 = vunpack.c.l.b16 %v10404
      %v10740 = vunpack.c.h.b16 %v10404
      %v10741 = vunpack.c.l.b16 %v10405
      %v10742 = vunpack.c.l.b16 %v10406
      %v10743 = vunpack.c.h.b16 %v10406
      %v10744 = vunpack.c.l.b16 %v10407
      %v10745 = vunpack.c.l.b16 %v10408
      %v10746 = vunpack.c.h.b16 %v10408
      %v10747 = vunpack.c.l.b16 %v10409
      %v10748 = vunpack.c.l.b16 %v10410
      %v10749 = vunpack.c.h.b16 %v10410
      %v10750 = vunpack.c.l.b16 %v10411
      %v10751 = vunpack.c.l.b16 %v10412
      %v10752 = vunpack.c.h.b16 %v10412
      %v10753 = vunpack.c.l.b16 %v10413
      %v10754 = vunpack.c.l.b16 %v10414
      %v10755 = vunpack.c.h.b16 %v10414
      %v10756 = vunpack.c.l.b16 %v10415
      %v10757 = vunpack.c.l.b16 %v10416
      %v10758 = vunpack.c.h.b16 %v10416
      %v10759 = vunpack.c.l.b16 %v10417
      %v10760 = vunpack.c.l.b16 %v10418
      %v10761 = vunpack.c.h.b16 %v10418
      %v10762 = vunpack.c.l.b16 %v10419
      %v10763 = vunpack.c.l.b16 %v10420
      %v10764 = vunpack.c.h.b16 %v10420
      %v10765 = vunpack.c.l.b16 %v10421
      %v10766 = vunpack.c.l.b16 %v10422
      %v10767 = vunpack.c.h.b16 %v10422
      %v10768 = vunpack.c.l.b16 %v10423
      %v10769 = vunpack.c.l.b16 %v10424
      %v10770 = vunpack.c.h.b16 %v10424
      %v10771 = vunpack.c.l.b16 %v10425
      %v10772 = vunpack.c.l.b16 %v10426
      %v10773 = vunpack.c.h.b16 %v10426
      %v10774 = vunpack.c.l.b16 %v10427
      %v10775 = vunpack.c.l.b16 %v10428
      %v10776 = vunpack.c.h.b16 %v10428
      %v10777 = vunpack.c.l.b16 %v10429
      %v10778 = vunpack.c.l.b16 %v10430
      %v10779 = vunpack.c.h.b16 %v10430
      %v10780 = vunpack.c.l.b16 %v10431
      %v10781 = vunpack.c.l.b16 %v10432
      %v10782 = vunpack.c.h.b16 %v10432
      %v10783 = vunpack.c.l.b16 %v10433
      %v10784 = vunpack.c.l.b16 %v10434
      %v10785 = vunpack.c.h.b16 %v10434
      %v10786 = vunpack.c.l.b16 %v10435
      %v10787 = vunpack.c.l.b16 %v10436
      %v10788 = vunpack.c.h.b16 %v10436
      %v10789 = vunpack.c.l.b16 %v10437
      %v10790 = vunpack.c.l.b16 %v10438
      %v10791 = vunpack.c.h.b16 %v10438
      %v10792 = vunpack.c.l.b16 %v10439
      %v10793 = vunpack.c.l.b16 %v10440
      %v10794 = vunpack.c.h.b16 %v10440
      %v10795 = vunpack.c.l.b16 %v10441
      %v10796 = vunpack.c.l.b16 %v10442
      %v10797 = vunpack.c.h.b16 %v10442
      %v10798 = vunpack.c.l.b16 %v10443
      %v10799 = vunpack.c.l.b16 %v10444
      %v10800 = vunpack.c.h.b16 %v10444
      %v10801 = vunpack.c.l.b16 %v10445
      %v10802 = vunpack.c.l.b16 %v10446
      %v10803 = vunpack.c.h.b16 %v10446
      %v10804 = vunpack.c.l.b16 %v10447
      %v10805 = vunpack.c.l.b16 %v10448
      %v10806 = vunpack.c.h.b16 %v10448
      %v10807 = vunpack.c.l.b16 %v10449
      %v10808 = vunpack.c.l.b16 %v10450
      %v10809 = vunpack.c.h.b16 %v10450
      %v10810 = vunpack.c.l.b16 %v10451
      %v10811 = vunpack.c.l.b16 %v10452
      %v10812 = vunpack.c.h.b16 %v10452
      %v10813 = vunpack.c.l.b16 %v10453
      %v10814 = vunpack.c.l.b16 %v10454
      %v10815 = vunpack.c.h.b16 %v10454
      %v10816 = vunpack.c.l.b16 %v10455
      %v10817 = vunpack.c.l.b16 %v10456
      %v10818 = vunpack.c.h.b16 %v10456
      %v10819 = vunpack.c.l.b16 %v10457
      %v10820 = vunpack.c.l.b16 %v10458
      %v10821 = vunpack.c.h.b16 %v10458
      %v10822 = vunpack.c.l.b16 %v10459
      %v10823 = vunpack.c.l.b16 %v10460
      %v10824 = vunpack.c.h.b16 %v10460
      %v10825 = vunpack.c.l.b16 %v10461
      %v10826 = vunpack.c.l.b16 %v10462
      %v10827 = vunpack.c.h.b16 %v10462
      %v10828 = vunpack.c.l.b16 %v10463
      %v10829 = vunpack.c.l.b16 %v10464
      %v10830 = vunpack.c.h.b16 %v10464
      %v10831 = vunpack.c.l.b16 %v10465
      %v10832 = vunpack.c.l.b16 %v10466
      %v10833 = vunpack.c.h.b16 %v10466
      %v10834 = vunpack.c.l.b16 %v10467
      %v10835 = vunpack.c.l.b16 %v10468
      %v10836 = vunpack.c.h.b16 %v10468
      %v10837 = vunpack.c.l.b16 %v10469
      %v10838 = vunpack.c.l.b16 %v10470
      %v10839 = vunpack.c.h.b16 %v10470
      %v10840 = vunpack.c.l.b16 %v10471
      %v10841 = vunpack.c.l.b16 %v10472
      %v10842 = vunpack.c.h.b16 %v10472
      %v10843 = vunpack.c.l.b16 %v10473
      %v10844 = vunpack.c.l.b16 %v10474
      %v10845 = vunpack.c.h.b16 %v10474
      %v10846 = vunpack.c.l.b16 %v10475
      %v10847 = vunpack.c.l.b16 %v10476
      %v10848 = vunpack.c.h.b16 %v10476
      %v10849 = vunpack.c.l.b16 %v10477
      %v10850 = vunpack.c.l.b16 %v10478
      %v10851 = vunpack.c.h.b16 %v10478
      %v10852 = vunpack.c.l.b16 %v10479
      %v10853 = vunpack.c.l.b16 %v10480
      %v10854 = vunpack.c.h.b16 %v10480
      %v10855 = vunpack.c.l.b16 %v10481
      %v10856 = vunpack.c.l.b16 %v10482
      %v10857 = vunpack.c.h.b16 %v10482
      %v10858 = vunpack.c.l.b16 %v10483
      %v10859 = vunpack.c.l.b16 %v10484
      %v10860 = vunpack.c.h.b16 %v10484
      %v10861 = vunpack.c.l.b16 %v10485
      %v10862 = vunpack.c.l.b16 %v10486
      %v10863 = vunpack.c.h.b16 %v10486
      %v10864 = vunpack.c.l.b16 %v10487
      %v10865 = vunpack.c.l.b16 %v10488
      %v10866 = vunpack.c.h.b16 %v10488
      %v10867 = vunpack.c.l.b16 %v10489
      %v10868 = vunpack.c.l.b16 %v10490
      %v10869 = vunpack.c.h.b16 %v10490
      %v10870 = vunpack.c.l.b16 %v10491
      %v10871 = vunpack.c.l.b16 %v10492
      %v10872 = vunpack.c.h.b16 %v10492
      %v10873 = vunpack.c.l.b16 %v10493
      %v10874 = vunpack.c.l.b16 %v10494
      %v10875 = vunpack.c.h.b16 %v10494
      %v10876 = vunpack.c.l.b16 %v10495
      %v10877 = vunpack.c.l.b16 %v10496
      %v10878 = vunpack.c.h.b16 %v10496
      %v10879 = vunpack.c.l.b16 %v10497
      %v10880 = vunpack.c.l.b16 %v10498
      %v10881 = vunpack.c.h.b16 %v10498
      %v10882 = vunpack.c.l.b16 %v10499
      %v10883 = vunpack.c.l.b16 %v10500
      %v10884 = vunpack.c.h.b16 %v10500
      %v10885 = vunpack.c.l.b16 %v10501
      %v10886 = vunpack.c.l.b16 %v10502
      %v10887 = vunpack.c.h.b16 %v10502
      %v10888 = vunpack.c.l.b16 %v10503
      %v10889 = vunpack.c.l.b16 %v10504
      %v10890 = vunpack.c.h.b16 %v10504
      %v10891 = vunpack.c.l.b16 %v10505
      %v10892 = vunpack.c.l.b16 %v10506
      %v10893 = vunpack.c.h.b16 %v10506
      %v10894 = vunpack.c.l.b16 %v10507
      %v10895 = vunpack.c.l.b16 %v10508
      %v10896 = vunpack.c.h.b16 %v10508
      %v10897 = vunpack.c.l.b16 %v10509
      %v10898 = vunpack.c.l.b16 %v10510
      %v10899 = vunpack.c.h.b16 %v10510
      %v10900 = vunpack.c.l.b16 %v10511
      %v10901 = vunpack.c.l.b16 %v10512
      %v10902 = vunpack.c.h.b16 %v10512
      %v10903 = vunpack.c.l.b16 %v10513
      %v10904 = vunpack.c.l.b16 %v10514
      %v10905 = vunpack.c.h.b16 %v10514
      %v10906 = vunpack.c.l.b16 %v10515
      %v10907 = vunpack.c.l.b16 %v10516
      %v10908 = vunpack.c.h.b16 %v10516
      %v10909 = vunpack.c.l.b16 %v10517
      %v10910 = vunpack.c.l.b16 %v10518
      %v10911 = vunpack.c.h.b16 %v10518
      %v10912 = vunpack.c.l.b16 %v10519
      %v10913 = vunpack.c.l.b16 %v10520
      %v10914 = vunpack.c.h.b16 %v10520
      %v10915 = vunpack.c.l.b16 %v10521
      %v10916 = vunpack.c.l.b16 %v10522
      %v10917 = vunpack.c.h.b16 %v10522
      %v10918 = vunpack.c.l.b16 %v10523
      %v10919 = vunpack.c.l.b16 %v10524
      %v10920 = vunpack.c.h.b16 %v10524
      %v10921 = vunpack.c.l.b16 %v10525
      %v10922 = vunpack.c.l.b16 %v10526
      %v10923 = vunpack.c.h.b16 %v10526
      %v10924 = vunpack.c.l.b16 %v10527
      %v10925 = vpack.c.b16 %v10712, %v10709
      %v10926 = vpack.c.b16 %v10713, %v10710
      %v10927 = vpack.c.b16 %v10714, %v10711
      %v10928 = vpack.c.b16 %v10718, %v10715
      %v10929 = vpack.c.b16 %v10719, %v10716
      %v10930 = vpack.c.b16 %v10720, %v10717
      %v10931 = vpack.c.b16 %v10724, %v10721
      %v10932 = vpack.c.b16 %v10725, %v10722
      %v10933 = vpack.c.b16 %v10726, %v10723
      %v10934 = vpack.c.b16 %v10730, %v10727
      %v10935 = vpack.c.b16 %v10731, %v10728
      %v10936 = vpack.c.b16 %v10732, %v10729
      %v10937 = vpack.c.b16 %v10736, %v10733
      %v10938 = vpack.c.b16 %v10737, %v10734
      %v10939 = vpack.c.b16 %v10738, %v10735
      %v10940 = vpack.c.b16 %v10742, %v10739
      %v10941 = vpack.c.b16 %v10743, %v10740
      %v10942 = vpack.c.b16 %v10744, %v10741
      %v10943 = vpack.c.b16 %v10748, %v10745
      %v10944 = vpack.c.b16 %v10749, %v10746
      %v10945 = vpack.c.b16 %v10750, %v10747
      %v10946 = vpack.c.b16 %v10754, %v10751
      %v10947 = vpack.c.b16 %v10755, %v10752
      %v10948 = vpack.c.b16 %v10756, %v10753
      %v10949 = vpack.c.b16 %v10760, %v10757
      %v10950 = vpack.c.b16 %v10761, %v10758
      %v10951 = vpack.c.b16 %v10762, %v10759
      %v10952 = vpack.c.b16 %v10766, %v10763
      %v10953 = vpack.c.b16 %v10767, %v10764
      %v10954 = vpack.c.b16 %v10768, %v10765
      %v10955 = vpack.c.b16 %v10772, %v10769
      %v10956 = vpack.c.b16 %v10773, %v10770
      %v10957 = vpack.c.b16 %v10774, %v10771
      %v10958 = vpack.c.b16 %v10778, %v10775
      %v10959 = vpack.c.b16 %v10779, %v10776
      %v10960 = vpack.c.b16 %v10780, %v10777
      %v10961 = vpack.c.b16 %v10784, %v10781
      %v10962 = vpack.c.b16 %v10785, %v10782
      %v10963 = vpack.c.b16 %v10786, %v10783
      %v10964 = vpack.c.b16 %v10790, %v10787
      %v10965 = vpack.c.b16 %v10791, %v10788
      %v10966 = vpack.c.b16 %v10792, %v10789
      %v10967 = vpack.c.b16 %v10796, %v10793
      %v10968 = vpack.c.b16 %v10797, %v10794
      %v10969 = vpack.c.b16 %v10798, %v10795
      %v10970 = vpack.c.b16 %v10802, %v10799
      %v10971 = vpack.c.b16 %v10803, %v10800
      %v10972 = vpack.c.b16 %v10804, %v10801
      %v10973 = vpack.c.b16 %v10808, %v10805
      %v10974 = vpack.c.b16 %v10809, %v10806
      %v10975 = vpack.c.b16 %v10810, %v10807
      %v10976 = vpack.c.b16 %v10814, %v10811
      %v10977 = vpack.c.b16 %v10815, %v10812
      %v10978 = vpack.c.b16 %v10816, %v10813
      %v10979 = vpack.c.b16 %v10820, %v10817
      %v10980 = vpack.c.b16 %v10821, %v10818
      %v10981 = vpack.c.b16 %v10822, %v10819
      %v10982 = vpack.c.b16 %v10826, %v10823
      %v10983 = vpack.c.b16 %v10827, %v10824
      %v10984 = vpack.c.b16 %v10828, %v10825
      %v10985 = vpack.c.b16 %v10832, %v10829
      %v10986 = vpack.c.b16 %v10833, %v10830
      %v10987 = vpack.c.b16 %v10834, %v10831
      %v10988 = vpack.c.b16 %v10838, %v10835
      %v10989 = vpack.c.b16 %v10839, %v10836
      %v10990 = vpack.c.b16 %v10840, %v10837
      %v10991 = vpack.c.b16 %v10844, %v10841
      %v10992 = vpack.c.b16 %v10845, %v10842
      %v10993 = vpack.c.b16 %v10846, %v10843
      %v10994 = vpack.c.b16 %v10850, %v10847
      %v10995 = vpack.c.b16 %v10851, %v10848
      %v10996 = vpack.c.b16 %v10852, %v10849
      %v10997 = vpack.c.b16 %v10856, %v10853
      %v10998 = vpack.c.b16 %v10857, %v10854
      %v10999 = vpack.c.b16 %v10858, %v10855
      %v11000 = vpack.c.b16 %v10862, %v10859
      %v11001 = vpack.c.b16 %v10863, %v10860
      %v11002 = vpack.c.b16 %v10864, %v10861
      %v11003 = vpack.c.b16 %v10868, %v10865
      %v11004 = vpack.c.b16 %v10869, %v10866
      %v11005 = vpack.c.b16 %v10870, %v10867
      %v11006 = vpack.c.b16 %v10874, %v10871
      %v11007 = vpack.c.b16 %v10875, %v10872
      %v11008 = vpack.c.b16 %v10876, %v10873
      %v11009 = vpack.c.b16 %v10880, %v10877
      %v11010 = vpack.c.b16 %v10881, %v10878
      %v11011 = vpack.c.b16 %v10882, %v10879
      %v11012 = vpack.c.b16 %v10886, %v10883
      %v11013 = vpack.c.b16 %v10887, %v10884
      %v11014 = vpack.c.b16 %v10888, %v10885
      %v11015 = vpack.c.b16 %v10892, %v10889
      %v11016 = vpack.c.b16 %v10893, %v10890
      %v11017 = vpack.c.b16 %v10894, %v10891
      %v11018 = vpack.c.b16 %v10898, %v10895
      %v11019 = vpack.c.b16 %v10899, %v10896
      %v11020 = vpack.c.b16 %v10900, %v10897
      %v11021 = vpack.c.b16 %v10904, %v10901
      %v11022 = vpack.c.b16 %v10905, %v10902
      %v11023 = vpack.c.b16 %v10906, %v10903
      %v11024 = vpack.c.b16 %v10910, %v10907
      %v11025 = vpack.c.b16 %v10911, %v10908
      %v11026 = vpack.c.b16 %v10912, %v10909
      %v11027 = vpack.c.b16 %v10916, %v10913
      %v11028 = vpack.c.b16 %v10917, %v10914
      %v11029 = vpack.c.b16 %v10918, %v10915
      %v11030 = vpack.c.b16 %v10922, %v10919
      %v11031 = vpack.c.b16 %v10923, %v10920
      %v11032 = vpack.c.b16 %v10924, %v10921
      %v11142 = vsel %vm4412, %v10560, 0
      %11144 = vmatpush.bf16.msra.mxu0 %v10946
      %11145 = vmatpush.bf16.msra.mxu0 %v10943
      %11146 = vmatpush.bf16.msra.mxu0 %v10940
      %11147 = vmatpush.bf16.msra.mxu0 %v10937
      %11148 = vmatpush.bf16.msra.mxu0 %v10934
      %11149 = vmatpush.bf16.msra.mxu0 %v10931
      %11150 = vmatpush.bf16.msra.mxu0 %v10928
      %11151 = vmatpush.bf16.msra.mxu0 %v10925
      %11152 = vmatmul.bf16.gmra.mxu0 %v10556
      %v11153 = vpop.f32.mrf.mxu0
      %v11154 = vadd.f32 %v10533, %v11153
      %v11155 = vpop.f32.mrf.mxu0
      %v11156 = vadd.f32 %v10538, %v11155
      %11157 = vdwg.mxu0
      %11158 = vmatpush.bf16.msra.mxu0 %v10970
      %11159 = vmatpush.bf16.msra.mxu0 %v10967
      %11160 = vmatpush.bf16.msra.mxu0 %v10964
      %11161 = vmatpush.bf16.msra.mxu0 %v10961
      %11162 = vmatpush.bf16.msra.mxu0 %v10958
      %11163 = vmatpush.bf16.msra.mxu0 %v10955
      %11164 = vmatpush.bf16.msra.mxu0 %v10952
      %11165 = vmatpush.bf16.msra.mxu0 %v10949
      %11166 = vmatmul.bf16.gmra.mxu0 %v10557
      %v11167 = vpop.f32.mrf.mxu0
      %v11168 = vadd.f32 %v11154, %v11167
      %v11169 = vpop.f32.mrf.mxu0
      %v11170 = vadd.f32 %v11156, %v11169
      %11171 = vdwg.mxu0
      %11172 = vmatpush.bf16.msra.mxu0 %v10994
      %11173 = vmatpush.bf16.msra.mxu0 %v10991
      %11174 = vmatpush.bf16.msra.mxu0 %v10988
      %11175 = vmatpush.bf16.msra.mxu0 %v10985
      %11176 = vmatpush.bf16.msra.mxu0 %v10982
      %11177 = vmatpush.bf16.msra.mxu0 %v10979
      %11178 = vmatpush.bf16.msra.mxu0 %v10976
      %11179 = vmatpush.bf16.msra.mxu0 %v10973
      %11180 = vmatmul.bf16.gmra.mxu0 %v10558
      %v11181 = vpop.f32.mrf.mxu0
      %v11182 = vadd.f32 %v11168, %v11181
      %v11183 = vpop.f32.mrf.mxu0
      %v11184 = vadd.f32 %v11170, %v11183
      %11185 = vdwg.mxu0
      %11186 = vmatpush.bf16.msra.mxu0 %v11018
      %11187 = vmatpush.bf16.msra.mxu0 %v11015
      %11188 = vmatpush.bf16.msra.mxu0 %v11012
      %11189 = vmatpush.bf16.msra.mxu0 %v11009
      %11190 = vmatpush.bf16.msra.mxu0 %v11006
      %11191 = vmatpush.bf16.msra.mxu0 %v11003
      %11192 = vmatpush.bf16.msra.mxu0 %v11000
      %11193 = vmatpush.bf16.msra.mxu0 %v10997
      %11194 = vmatmul.bf16.gmra.mxu0 %v10559
      %v11195 = vpop.f32.mrf.mxu0
      %v11196 = vadd.f32 %v11182, %v11195
      %v11197 = vpop.f32.mrf.mxu0
      %v11198 = vadd.f32 %v11184, %v11197
      %11199 = vdwg.mxu0
      %11200 = vmatpush.bf16.msra.mxu0 0
      %11201 = vmatpush.bf16.msra.mxu0 0
      %11202 = vmatpush.bf16.msra.mxu0 0
      %11203 = vmatpush.bf16.msra.mxu0 0
      %11204 = vmatpush.bf16.msra.mxu0 %v11030
      %11205 = vmatpush.bf16.msra.mxu0 %v11027
      %11206 = vmatpush.bf16.msra.mxu0 %v11024
      %11207 = vmatpush.bf16.msra.mxu0 %v11021
      %11208 = vmatmul.bf16.gmra.mxu0 %v11142
      %v11209 = vpop.f32.mrf.mxu0
      %v11210 = vadd.f32 %v11196, %v11209
      %v11211 = vpop.f32.mrf.mxu0
      %v11212 = vadd.f32 %v11198, %v11211
      %11213 = vdwg.mxu0
      %11214 = vmatpush.bf16.msra.mxu0 %v10947
      %11215 = vmatpush.bf16.msra.mxu0 %v10944
      %11216 = vmatpush.bf16.msra.mxu0 %v10941
      %11217 = vmatpush.bf16.msra.mxu0 %v10938
      %11218 = vmatpush.bf16.msra.mxu0 %v10935
      %11219 = vmatpush.bf16.msra.mxu0 %v10932
      %11220 = vmatpush.bf16.msra.mxu0 %v10929
      %11221 = vmatpush.bf16.msra.mxu0 %v10926
      %11222 = vmatmul.bf16.gmra.mxu0 %v10556
      %v11223 = vpop.f32.mrf.mxu0
      %v11224 = vadd.f32 %v10533, %v11223
      %v11225 = vpop.f32.mrf.mxu0
      %v11226 = vadd.f32 %v10538, %v11225
      %11227 = vdwg.mxu0
      %11228 = vmatpush.bf16.msra.mxu0 %v10971
      %11229 = vmatpush.bf16.msra.mxu0 %v10968
      %11230 = vmatpush.bf16.msra.mxu0 %v10965
      %11231 = vmatpush.bf16.msra.mxu0 %v10962
      %11232 = vmatpush.bf16.msra.mxu0 %v10959
      %11233 = vmatpush.bf16.msra.mxu0 %v10956
      %11234 = vmatpush.bf16.msra.mxu0 %v10953
      %11235 = vmatpush.bf16.msra.mxu0 %v10950
      %11236 = vmatmul.bf16.gmra.mxu0 %v10557
      %v11237 = vpop.f32.mrf.mxu0
      %v11238 = vadd.f32 %v11224, %v11237
      %v11239 = vpop.f32.mrf.mxu0
      %v11240 = vadd.f32 %v11226, %v11239
      %11241 = vdwg.mxu0
      %11242 = vmatpush.bf16.msra.mxu0 %v10995
      %11243 = vmatpush.bf16.msra.mxu0 %v10992
      %11244 = vmatpush.bf16.msra.mxu0 %v10989
      %11245 = vmatpush.bf16.msra.mxu0 %v10986
      %11246 = vmatpush.bf16.msra.mxu0 %v10983
      %11247 = vmatpush.bf16.msra.mxu0 %v10980
      %11248 = vmatpush.bf16.msra.mxu0 %v10977
      %11249 = vmatpush.bf16.msra.mxu0 %v10974
      %11250 = vmatmul.bf16.gmra.mxu0 %v10558
      %v11251 = vpop.f32.mrf.mxu0
      %v11252 = vadd.f32 %v11238, %v11251
      %v11253 = vpop.f32.mrf.mxu0
      %v11254 = vadd.f32 %v11240, %v11253
      %11255 = vdwg.mxu0
      %11256 = vmatpush.bf16.msra.mxu0 %v11019
      %11257 = vmatpush.bf16.msra.mxu0 %v11016
      %11258 = vmatpush.bf16.msra.mxu0 %v11013
      %11259 = vmatpush.bf16.msra.mxu0 %v11010
      %11260 = vmatpush.bf16.msra.mxu0 %v11007
      %11261 = vmatpush.bf16.msra.mxu0 %v11004
      %11262 = vmatpush.bf16.msra.mxu0 %v11001
      %11263 = vmatpush.bf16.msra.mxu0 %v10998
      %11264 = vmatmul.bf16.gmra.mxu0 %v10559
      %v11265 = vpop.f32.mrf.mxu0
      %v11266 = vadd.f32 %v11252, %v11265
      %v11267 = vpop.f32.mrf.mxu0
      %v11268 = vadd.f32 %v11254, %v11267
      %11269 = vdwg.mxu0
      %11270 = vmatpush.bf16.msra.mxu0 0
      %11271 = vmatpush.bf16.msra.mxu0 0
      %11272 = vmatpush.bf16.msra.mxu0 0
      %11273 = vmatpush.bf16.msra.mxu0 0
      %11274 = vmatpush.bf16.msra.mxu0 %v11031
      %11275 = vmatpush.bf16.msra.mxu0 %v11028
      %11276 = vmatpush.bf16.msra.mxu0 %v11025
      %11277 = vmatpush.bf16.msra.mxu0 %v11022
      %11278 = vmatmul.bf16.gmra.mxu0 %v11142
      %v11279 = vpop.f32.mrf.mxu0
      %v11280 = vadd.f32 %v11266, %v11279
      %v11281 = vpop.f32.mrf.mxu0
      %v11282 = vadd.f32 %v11268, %v11281
      %11283 = vdwg.mxu0
      %11284 = vmatpush.bf16.msra.mxu0 %v10948
      %11285 = vmatpush.bf16.msra.mxu0 %v10945
      %11286 = vmatpush.bf16.msra.mxu0 %v10942
      %11287 = vmatpush.bf16.msra.mxu0 %v10939
      %11288 = vmatpush.bf16.msra.mxu0 %v10936
      %11289 = vmatpush.bf16.msra.mxu0 %v10933
      %11290 = vmatpush.bf16.msra.mxu0 %v10930
      %11291 = vmatpush.bf16.msra.mxu0 %v10927
      %11292 = vmatmul.bf16.gmra.mxu0 %v10556
      %v11293 = vpop.f32.mrf.mxu0
      %v11294 = vadd.f32 %v10533, %v11293
      %v11295 = vpop.f32.mrf.mxu0
      %v11296 = vadd.f32 %v10538, %v11295
      %11297 = vdwg.mxu0
      %11298 = vmatpush.bf16.msra.mxu0 %v10972
      %11299 = vmatpush.bf16.msra.mxu0 %v10969
      %11300 = vmatpush.bf16.msra.mxu0 %v10966
      %11301 = vmatpush.bf16.msra.mxu0 %v10963
      %11302 = vmatpush.bf16.msra.mxu0 %v10960
      %11303 = vmatpush.bf16.msra.mxu0 %v10957
      %11304 = vmatpush.bf16.msra.mxu0 %v10954
      %11305 = vmatpush.bf16.msra.mxu0 %v10951
      %11306 = vmatmul.bf16.gmra.mxu0 %v10557
      %v11307 = vpop.f32.mrf.mxu0
      %v11308 = vadd.f32 %v11294, %v11307
      %v11309 = vpop.f32.mrf.mxu0
      %v11310 = vadd.f32 %v11296, %v11309
      %11311 = vdwg.mxu0
      %11312 = vmatpush.bf16.msra.mxu0 %v10996
      %11313 = vmatpush.bf16.msra.mxu0 %v10993
      %11314 = vmatpush.bf16.msra.mxu0 %v10990
      %11315 = vmatpush.bf16.msra.mxu0 %v10987
      %11316 = vmatpush.bf16.msra.mxu0 %v10984
      %11317 = vmatpush.bf16.msra.mxu0 %v10981
      %11318 = vmatpush.bf16.msra.mxu0 %v10978
      %11319 = vmatpush.bf16.msra.mxu0 %v10975
      %11320 = vmatmul.bf16.gmra.mxu0 %v10558
      %v11321 = vpop.f32.mrf.mxu0
      %v11322 = vadd.f32 %v11308, %v11321
      %v11323 = vpop.f32.mrf.mxu0
      %v11324 = vadd.f32 %v11310, %v11323
      %11325 = vdwg.mxu0
      %11326 = vmatpush.bf16.msra.mxu0 %v11020
      %11327 = vmatpush.bf16.msra.mxu0 %v11017
      %11328 = vmatpush.bf16.msra.mxu0 %v11014
      %11329 = vmatpush.bf16.msra.mxu0 %v11011
      %11330 = vmatpush.bf16.msra.mxu0 %v11008
      %11331 = vmatpush.bf16.msra.mxu0 %v11005
      %11332 = vmatpush.bf16.msra.mxu0 %v11002
      %11333 = vmatpush.bf16.msra.mxu0 %v10999
      %11334 = vmatmul.bf16.gmra.mxu0 %v10559
      %v11335 = vpop.f32.mrf.mxu0
      %v11336 = vadd.f32 %v11322, %v11335
      %v11337 = vpop.f32.mrf.mxu0
      %v11338 = vadd.f32 %v11324, %v11337
      %11339 = vdwg.mxu0
      %11340 = vmatpush.bf16.msra.mxu0 0
      %11341 = vmatpush.bf16.msra.mxu0 0
      %11342 = vmatpush.bf16.msra.mxu0 0
      %11343 = vmatpush.bf16.msra.mxu0 0
      %11344 = vmatpush.bf16.msra.mxu0 %v11032
      %11345 = vmatpush.bf16.msra.mxu0 %v11029
      %11346 = vmatpush.bf16.msra.mxu0 %v11026
      %11347 = vmatpush.bf16.msra.mxu0 %v11023
      %11348 = vmatmul.bf16.gmra.mxu0 %v11142
      %v11349 = vpop.f32.mrf.mxu0
      %v11350 = vadd.f32 %v11336, %v11349
      %v11351 = vpop.f32.mrf.mxu0
      %v11352 = vadd.f32 %v11338, %v11351
      %11353 = vdwg.mxu0
      %v11354 = vtanh.pop %v11210
      %v11355 = vtanh.pop %v11280
      %v11356 = vtanh.pop %v11350
      %v11357 = vtanh.pop %v11212
      %v11358 = vtanh.pop %v11282
      %v11359 = vtanh.pop %v11352
      %v11360 = vld [vmem:[%s2] sm:$0xff]
      %v11361 = vld [vmem:[%s2 + $0x8] sm:$0xff]
      %11363 = vset.pattern.permute.xlu0 0
      %11364 = vperm.xlu0 %11363, %v11360
      %v11365 = vpop.permute.xlu0 %11364
      %11368 = vset.pattern.permute.xlu0 0
      %11369 = vperm.xlu0 %11368, %v11361
      %v11370 = vpop.permute.xlu0 %11369
      %v11372 = vadd.f32 %v11354, %v11365
      %v11373 = vadd.f32 %v11355, %v11365
      %v11374 = vadd.f32 %v11356, %v11365
      %v11375 = vadd.f32 %v11357, %v11370
      %v11376 = vadd.f32 %v11358, %v11370
      %v11377 = vadd.f32 %v11359, %v11370
      %v11378 = vperm.slane %v11375, 0
      %v11379 = vperm.slane %v11376, 0
      %v11380 = vperm.slane %v11377, 0
      %v11381 = vsub.f32 %v581, %v11378
      %v11382 = vsub.f32 %v582, %v11379
      %v11383 = vsub.f32 %v583, %v11380
      %v11384 = vperm.slane %v11372, 0
      %v11385 = vperm.slane %v11373, 0
      %v11386 = vperm.slane %v11374, 0
      %v11387 = vmul.f32 %v11381, %v11384
      %v11388 = vmul.f32 %v11382, %v11385
      %v11389 = vmul.f32 %v11383, %v11386
      %v11390 = vperm.slane %v11375, 1
      %v11391 = vperm.slane %v11376, 1
      %v11392 = vperm.slane %v11377, 1
      %v11393 = vsub.f32 %v11387, %v11390
      %v11394 = vsub.f32 %v11388, %v11391
      %v11395 = vsub.f32 %v11389, %v11392
      %v11396 = vperm.slane %v11372, 1
      %v11397 = vperm.slane %v11373, 1
      %v11398 = vperm.slane %v11374, 1
      %v11399 = vmul.f32 %v11393, %v11396
      %v11400 = vmul.f32 %v11394, %v11397
      %v11401 = vmul.f32 %v11395, %v11398
      %v11402 = vperm.slane %v11375, 2
      %v11403 = vperm.slane %v11376, 2
      %v11404 = vperm.slane %v11377, 2
      %v11405 = vsub.f32 %v11399, %v11402
      %v11406 = vsub.f32 %v11400, %v11403
      %v11407 = vsub.f32 %v11401, %v11404
      %v11408 = vperm.slane %v11372, 2
      %v11409 = vperm.slane %v11373, 2
      %v11410 = vperm.slane %v11374, 2
      %v11411 = vmul.f32 %v11405, %v11408
      %v11412 = vmul.f32 %v11406, %v11409
      %v11413 = vmul.f32 %v11407, %v11410
      %v11414 = vperm.slane %v11375, 3
      %v11415 = vperm.slane %v11376, 3
      %v11416 = vperm.slane %v11377, 3
      %v11417 = vsub.f32 %v11411, %v11414
      %v11418 = vsub.f32 %v11412, %v11415
      %v11419 = vsub.f32 %v11413, %v11416
      %v11420 = vperm.slane %v11372, 3
      %v11421 = vperm.slane %v11373, 3
      %v11422 = vperm.slane %v11374, 3
      %v11423 = vmul.f32 %v11417, %v11420
      %v11424 = vmul.f32 %v11418, %v11421
      %v11425 = vmul.f32 %v11419, %v11422
      %v11426 = vperm.slane %v11375, 4
      %v11427 = vperm.slane %v11376, 4
      %v11428 = vperm.slane %v11377, 4
      %v11429 = vsub.f32 %v11423, %v11426
      %v11430 = vsub.f32 %v11424, %v11427
      %v11431 = vsub.f32 %v11425, %v11428
      %v11432 = vperm.slane %v11372, 4
      %v11433 = vperm.slane %v11373, 4
      %v11434 = vperm.slane %v11374, 4
      %v11435 = vmul.f32 %v11429, %v11432
      %v11436 = vmul.f32 %v11430, %v11433
      %v11437 = vmul.f32 %v11431, %v11434
      %v11438 = vperm.slane %v11375, 5
      %v11439 = vperm.slane %v11376, 5
      %v11440 = vperm.slane %v11377, 5
      %v11441 = vsub.f32 %v11435, %v11438
      %v11442 = vsub.f32 %v11436, %v11439
      %v11443 = vsub.f32 %v11437, %v11440
      %v11444 = vperm.slane %v11372, 5
      %v11445 = vperm.slane %v11373, 5
      %v11446 = vperm.slane %v11374, 5
      %v11447 = vmul.f32 %v11441, %v11444
      %v11448 = vmul.f32 %v11442, %v11445
      %v11449 = vmul.f32 %v11443, %v11446
      %v11450 = vperm.slane %v11375, 6
      %v11451 = vperm.slane %v11376, 6
      %v11452 = vperm.slane %v11377, 6
      %v11453 = vsub.f32 %v11447, %v11450
      %v11454 = vsub.f32 %v11448, %v11451
      %v11455 = vsub.f32 %v11449, %v11452
      %v11456 = vperm.slane %v11372, 6
      %v11457 = vperm.slane %v11373, 6
      %v11458 = vperm.slane %v11374, 6
      %v11459 = vmul.f32 %v11453, %v11456
      %v11460 = vmul.f32 %v11454, %v11457
      %v11461 = vmul.f32 %v11455, %v11458
      %v11462 = vperm.slane %v11375, 7
      %v11463 = vperm.slane %v11376, 7
      %v11464 = vperm.slane %v11377, 7
      %v11465 = vsub.f32 %v11459, %v11462
      %v11466 = vsub.f32 %v11460, %v11463
      %v11467 = vsub.f32 %v11461, %v11464
      %v11468 = vperm.slane %v11372, 7
      %v11469 = vperm.slane %v11373, 7
      %v11470 = vperm.slane %v11374, 7
      %v11471 = vmul.f32 %v11465, %v11468
      %v11472 = vmul.f32 %v11466, %v11469
      %v11473 = vmul.f32 %v11467, %v11470
      %v11476 = vrot.slane %v11472, 4
      %vm11477 = vcmask 1043456
      %v11478 = vsel %vm11477, %v11471, %v11476
      %11480 = vst [vmem:[%s529] sm:$0x77] %v11478
      %11481 = vst [vmem:[%s529 + $0x8] sm:$0x7] %v11473
      %11482 = vst [vmem:[%s534] sm:$0xff] %v11372
      %11483 = vst [vmem:[%s534 + $0x8] sm:$0xff] %v11373
      %11484 = vst [vmem:[%s534 + $0x10] sm:$0xff] %v11374
      %11485 = vst [vmem:[%s534 + $0x18] sm:$0xff] %v11375
      %11486 = vst [vmem:[%s534 + $0x20] sm:$0xff] %v11376
      %11487 = vst [vmem:[%s534 + $0x28] sm:$0xff] %v11377
      %p11488 = scmp.lt.s32.totalorder %s28, 1
      %s11489 = scalar_select %p11488, %s28, 1
      %s11490 = smul.addr %s11489, 3
      %s11491 = smul.addr %s11490, 4
      %s11492 = scalar_lea.vmem %s15, %s11491
      %p11493 = scmp.lt.s32.totalorder %s28, 1
      %s11494 = scalar_select %p11493, %s28, 1
      %s11495 = smul.addr %s11494, 6
      %s11496 = smul.addr %s11495, 8
      %s11497 = scalar_lea.vmem %s16, %s11496
      // Predicated region
      $region81: #{_lambda_.1} parent=79 // pred_check
        %p11498 = pneg %p366
      $region82: #{_lambda_.1} parent=79 // pred_check_branch
        %11500 = sbr.rel (%p11498) target = $region84
      $region83: #{_lambda_.1} parent=79 // pred_region
        _
      $region84: #{_lambda_.1} parent=79 // pred_fallthru
        _
      // Predicated region
      $region85: #{_lambda_.1} parent=79 // pred_check
        %p11501 = pneg %p392
      $region86: #{_lambda_.1} parent=79 // pred_check_branch
        %11503 = sbr.rel (%p11501) target = $region88
      $region87: #{_lambda_.1} parent=79 // pred_region
        _
      $region88: #{_lambda_.1} parent=79 // pred_fallthru
        _
    $region80: #{_lambda_.1} parent=5 // pred_fallthru
      _
    %p11504 = scmp.le.s32.totalorder 2, %s23
    // Predicated region
    $region89: #{_lambda_.1} parent=5 // pred_check
      %p11505 = pneg %p11504
    $region90: #{_lambda_.1} parent=5 // pred_check_branch
      %11507 = sbr.rel (%p11505) target = $region92
    $region91: #{_lambda_.1} parent=5 // pred_region
      %s11508 = ssub.s32 %s23, 2
      // Predicated region
      $region93: #{_lambda_.1} parent=91 // pred_check
        %p11509 = pneg %p372
      $region94: #{_lambda_.1} parent=91 // pred_check_branch
        %11511 = sbr.rel (%p11509) target = $region96
      $region95: #{_lambda_.1} parent=91 // pred_region
        %p11512 = scmp.lt.s32.totalorder %s29, 1
        %s11513 = scalar_select %p11512, %s29, 1
        %s11514 = smul.addr %s11513, 3
        %s11515 = smul.addr %s11514, 4
        %s11516 = scalar_lea.vmem %s15, %s11515
      $region96: #{_lambda_.1} parent=91 // pred_fallthru
        _
      // Predicated region
      $region97: #{_lambda_.1} parent=91 // pred_check
        %p11517 = pneg %p398
      $region98: #{_lambda_.1} parent=91 // pred_check_branch
        %11519 = sbr.rel (%p11517) target = $region100
      $region99: #{_lambda_.1} parent=91 // pred_region
        %p11520 = scmp.lt.s32.totalorder %s29, 1
        %s11521 = scalar_select %p11520, %s29, 1
        %s11522 = smul.addr %s11521, 6
        %s11523 = smul.addr %s11522, 8
        %s11524 = scalar_lea.vmem %s16, %s11523
      $region100: #{_lambda_.1} parent=91 // pred_fallthru
        _
    $region92: #{_lambda_.1} parent=5 // pred_fallthru
      _
  $region6: #{_lambda_.1} parent=0 // loop_footer
    %s27 = sadd.s32 1, %s23
  $region7: #{_lambda_.1} parent=0 // loop_footer_branch
    %22 = sbr.rel target = $region3
  $region8: #{_lambda_.1} parent=0 // loop_exit
    _

</llo_original>
